<compile_context>
chip_gen: v5e
topology: v5e:2x2
jax: 0.10.0
libtpu: 0.0.40
codegen_flags: <defaults>
</compile_context>

<pallas_src>
import jax
import jax.numpy as jnp
from jax.experimental import pallas as pl
from jax.experimental.pallas import tpu as pltpu


# ----------------------------------------------------------------------------
# Fused ResnetBlockDown kernel factory
# ----------------------------------------------------------------------------
def _make_block_kernel(H, W, Cin, F, KH=3, KW=3, mdt=jnp.bfloat16):
    H2, W2 = H // 2, W // 2
    HW, HW2 = H * W, H2 * W2
    f32 = jnp.float32

    def kernel(x_ref, w1_ref, b1_ref, w2_ref, wsc_ref, bout_ref, pool_ref,
               o_ref, xpad_s, c1_s, p1pad_s, c2_s):
        # ------------------------------------------------------------------
        # Stage A: ReLU(x) into a zero-padded scratch.  Only the borders are
        # cleared (interior is fully overwritten each image); clears repeat
        # per step so megacore batch-splitting stays correct.
        # ------------------------------------------------------------------
        zr = jnp.zeros((1, W + 2, Cin), f32)
        zc = jnp.zeros((H + 2, 1, Cin), f32)
        xpad_s[pl.ds(0, 1), :, :] = zr
        xpad_s[pl.ds(H + 1, 1), :, :] = zr
        xpad_s[:, pl.ds(0, 1), :] = zc
        xpad_s[:, pl.ds(W + 1, 1), :] = zc
        xv = x_ref[...].reshape(H, W, Cin)
        xpad_s[pl.ds(1, H), pl.ds(1, W), :] = jnp.maximum(xv, 0.0)

        # conv1 as ONE matmul: the 9 taps are folded into K = KH*KW*Cin, so the
        # MXU accumulates internally (no 9x RMW of a big VMEM accumulator).
        for kh in range(KH):
            for kw in range(KW):
                t = kh * KW + kw
                patch = xpad_s[pl.ds(kh, H), pl.ds(kw, W), :]
                c1_s[:, pl.ds(t * Cin, Cin)] = patch.reshape(HW, Cin).astype(mdt)
        h1 = jnp.dot(c1_s[...], w1_ref[...],
                     preferred_element_type=f32)                 # (H*W, F)
        h1 = jnp.maximum(h1 + b1_ref[...], 0.0)                  # bias + ReLU (f32)

        # 2x2 average pool as a matmul against a constant 0.25 pooling matrix:
        # no strided loads, no sublane relayouts, runs on the MXU.
        p1 = jnp.dot(pool_ref[...], h1.astype(mdt),
                     preferred_element_type=f32)                 # (H2*W2, F)

        # ------------------------------------------------------------------
        # Stage B: padded pooled map + conv2 im2col (lane-aligned F-wide slabs,
        # F = 256 -> 128-aligned unmasked stores).
        # ------------------------------------------------------------------
        zr2 = jnp.zeros((1, W2 + 2, F), f32)
        zc2 = jnp.zeros((H2 + 2, 1, F), f32)
        p1pad_s[pl.ds(0, 1), :, :] = zr2
        p1pad_s[pl.ds(H2 + 1, 1), :, :] = zr2
        p1pad_s[:, pl.ds(0, 1), :] = zc2
        p1pad_s[:, pl.ds(W2 + 1, 1), :] = zc2
        p1pad_s[pl.ds(1, H2), pl.ds(1, W2), :] = p1.reshape(H2, W2, F)
        for kh in range(KH):
            for kw in range(KW):
                t = kh * KW + kw
                patch = p1pad_s[pl.ds(kh, H2), pl.ds(kw, W2), :]
                c2_s[:, pl.ds(t * F, F)] = patch.reshape(HW2, F).astype(mdt)

        # conv2 (one matmul, K = 9F -> MXU-internal accumulation) + shortcut
        # (pool-matmul on raw x, then 1x1 conv) + fused biases, all combined as
        # values -> a single lane-dense output store.
        y = jnp.dot(c2_s[...], w2_ref[...], preferred_element_type=f32)   # (H2*W2, F)
        px = jnp.dot(pool_ref[...], x_ref[...].reshape(HW, Cin).astype(mdt),
                     preferred_element_type=f32)                          # avg-pooled raw x
        y = y + jnp.dot(px.astype(mdt), wsc_ref[...], preferred_element_type=f32)
        y = y + bout_ref[...]                                             # + (b2 + bsc)
        o_ref[...] = y.reshape(1, H2, W2, F).astype(o_ref.dtype)

    return kernel


# ----------------------------------------------------------------------------
# Wrapper: one-time parameter prep + pallas_call (grid over batch only)
# ----------------------------------------------------------------------------
def resnet_block_down(x, params, *, matmul_dtype=jnp.bfloat16):
    """x: (B, H, W, Cin) NHWC float32  ->  (B, H//2, W//2, n_filters) NHWC."""
    w1, b1, w2, b2, wsc, bsc = params
    B, H, W, Cin = x.shape
    KH, KW, _, F = w1.shape
    assert (KH, KW) == (3, 3), "block uses 3x3 convs with padding=1"
    assert H % 2 == 0 and W % 16 == 0, "need even H and W multiple of 16"
    H2, W2 = H // 2, W // 2

    # ---- hoisted one-time parameter prep (layout + dtype), all tiny ---------
    w1p = w1.reshape(KH * KW * Cin, F).astype(matmul_dtype)       # (9*Cin, F)
    w2p = w2.reshape(KH * KW * F, F).astype(matmul_dtype)         # (9*F, F)
    wscp = wsc.reshape(Cin, F).astype(matmul_dtype)               # (Cin, F)
    b1p = b1.reshape(1, F).astype(jnp.float32)
    boutp = (b2 + bsc).reshape(1, F).astype(jnp.float32)          # fused biases

    # 2x2 average-pool matrix: P[r, q] = 0.25 iff flat pixel q is one of the 4
    # sources of pooled output r.  Applied on the MXU inside the kernel.
    r = jnp.arange(H2 * W2)
    q = jnp.arange(H * W)
    sel = ((((q[None, :] // W) // 2) == (r[:, None] // W2)) &
           (((q[None, :] % W) // 2) == (r[:, None] % W2)))
    poolm = jnp.where(sel, 0.25, 0.0).astype(matmul_dtype)        # (H2*W2, H*W)

    kernel = _make_block_kernel(H, W, Cin, F, KH=KH, KW=KW, mdt=matmul_dtype)
    return pl.pallas_call(
        kernel,
        out_shape=jax.ShapeDtypeStruct((B, H2, W2, F), x.dtype),
        grid=(B,),
        in_specs=[
            pl.BlockSpec((1, H, W, Cin), lambda b: (b, 0, 0, 0)),
            pl.BlockSpec((KH * KW * Cin, F), lambda b: (0, 0)),   # resident, DMA'd once
            pl.BlockSpec((1, F), lambda b: (0, 0)),
            pl.BlockSpec((KH * KW * F, F), lambda b: (0, 0)),     # resident, DMA'd once
            pl.BlockSpec((Cin, F), lambda b: (0, 0)),
            pl.BlockSpec((1, F), lambda b: (0, 0)),
            pl.BlockSpec((H2 * W2, H * W), lambda b: (0, 0)),     # pooling matrix
        ],
        out_specs=pl.BlockSpec((1, H2, W2, F), lambda b: (b, 0, 0, 0)),
        scratch_shapes=[
            pltpu.VMEM((H + 2, W + 2, Cin), jnp.float32),          # padded ReLU(x)
            pltpu.VMEM((H * W, KH * KW * Cin), matmul_dtype),      # conv1 im2col (K=9*Cin)
            pltpu.VMEM((H2 + 2, W2 + 2, F), jnp.float32),          # padded pooled h1
            pltpu.VMEM((H2 * W2, KH * KW * F), matmul_dtype),      # conv2 im2col (K=9*F)
        ],
        compiler_params=pltpu.CompilerParams(
            dimension_semantics=("parallel",)),
    )(x, w1p, b1p, w2p, wscp, boutp, poolm)


# ----------------------------------------------------------------------------
# Pure-JAX (f32) reference for verification
# ----------------------------------------------------------------------------
def ref_forward(x, params):
    w1, b1, w2, b2, wsc, bsc = params

    def conv(z, w, b, pad):
        out = jax.lax.conv_general_dilated(
            z, w, window_strides=(1, 1), padding=[(pad, pad), (pad, pad)],
            dimension_numbers=("NHWC", "HWIO", "NHWC"))
        return out + b

    def pool(z):
        B, H, W, C = z.shape
        return z.reshape(B, H // 2, 2, W // 2, 2, C).mean(axis=(2, 4))

    h1 = conv(jax.nn.relu(x), w1, b1, 1)
    p1 = pool(jax.nn.relu(h1))
    y = conv(p1, w2, b2, 1)
    s = conv(pool(x), wsc, bsc, 0)
    return s + y


if __name__ == "__main__":
    B, Cin, Hs, Ws = 2, 4, 16, 16
    n_filters = 256                      # the module's default n_filters

    key = jax.random.PRNGKey(0)
    k = jax.random.split(key, 7)
    x_nchw = jax.random.normal(k[0], (B, Cin, Hs, Ws), jnp.float32)
    x = jnp.transpose(x_nchw, (0, 2, 3, 1))        # NCHW -> NHWC boundary glue

    # Deterministic synthetic parameters (shapes from the module's __init__), HWIO.
    W1 = 0.1 * jax.random.normal(k[1], (3, 3, Cin, n_filters), jnp.float32)
    b1 = 0.1 * jax.random.normal(k[2], (n_filters,), jnp.float32)
    W2 = 0.1 * jax.random.normal(k[3], (3, 3, n_filters, n_filters), jnp.float32)
    b2 = 0.1 * jax.random.normal(k[4], (n_filters,), jnp.float32)
    Wsc = 0.1 * jax.random.normal(k[5], (1, 1, Cin, n_filters), jnp.float32)
    bsc = 0.1 * jax.random.normal(k[6], (n_filters,), jnp.float32)
    params = (W1, b1, W2, b2, Wsc, bsc)

    out = jax.block_until_ready(jax.jit(resnet_block_down)(x, params))
    ref = jax.block_until_ready(jax.jit(ref_forward)(x, params))

    assert out.shape == (B, Hs // 2, Ws // 2, n_filters), out.shape
    # bf16 matmul operands with f32 accumulation: expected max|err| ~ 1e-2 vs the
    # pure-f32 reference, so a 1e-1 absolute tolerance is comfortable.
    max_err = float(jnp.max(jnp.abs(out - ref)))
    assert max_err < 1e-1, f"max abs err {max_err}"
    print("KERNEL_OK")
</pallas_src>

<mosaic_0001>
module attributes {stable_mosaic.version = 11 : i64} {
  func.func @kernel(%arg0: i32, %arg1: memref<1x16x16x4xf32, #tpu.memory_space<vmem>>, %arg2: memref<36x256xbf16, #tpu.memory_space<vmem>>, %arg3: memref<1x256xf32, #tpu.memory_space<vmem>>, %arg4: memref<2304x256xbf16, #tpu.memory_space<vmem>>, %arg5: memref<4x256xbf16, #tpu.memory_space<vmem>>, %arg6: memref<1x256xf32, #tpu.memory_space<vmem>>, %arg7: memref<64x256xbf16, #tpu.memory_space<vmem>>, %arg8: memref<1x8x8x256xf32, #tpu.memory_space<vmem>>, %arg9: memref<18x18x4xf32, #tpu.memory_space<vmem>>, %arg10: memref<256x36xbf16, #tpu.memory_space<vmem>>, %arg11: memref<10x10x256xf32, #tpu.memory_space<vmem>>, %arg12: memref<64x2304xbf16, #tpu.memory_space<vmem>>) attributes {dimension_semantics = [#tpu.dimension_semantics<parallel>], iteration_bounds = array<i64: 2>, scalar_prefetch = 0 : i64, scratch_operands = 4 : i64, tpu.core_type = #tpu.core_type<tc>, window_params = [{transform_indices = @transform_0, window_bounds = array<i64: 1, 16, 16, 4>}, {pipeline_mode = #tpu.pipeline_mode<synchronous>, transform_indices = @transform_1, window_bounds = array<i64: 36, 256>}, {pipeline_mode = #tpu.pipeline_mode<synchronous>, transform_indices = @transform_2, window_bounds = array<i64: 1, 256>}, {pipeline_mode = #tpu.pipeline_mode<synchronous>, transform_indices = @transform_3, window_bounds = array<i64: 2304, 256>}, {pipeline_mode = #tpu.pipeline_mode<synchronous>, transform_indices = @transform_4, window_bounds = array<i64: 4, 256>}, {pipeline_mode = #tpu.pipeline_mode<synchronous>, transform_indices = @transform_5, window_bounds = array<i64: 1, 256>}, {pipeline_mode = #tpu.pipeline_mode<synchronous>, transform_indices = @transform_6, window_bounds = array<i64: 64, 256>}, {transform_indices = @transform_7, window_bounds = array<i64: 1, 8, 8, 256>}]} {
    %cst = arith.constant 0.000000e+00 : f32
    %0 = vector.broadcast %cst : f32 to vector<1x18x4xf32>
    %cst_0 = arith.constant 0.000000e+00 : f32
    %1 = vector.broadcast %cst_0 : f32 to vector<18x1x4xf32>
    %c0 = arith.constant 0 : index
    %c0_1 = arith.constant 0 : index
    %c0_2 = arith.constant 0 : index
    %2 = vector.load %arg9[%c0, %c0_1, %c0_2] : memref<18x18x4xf32, #tpu.memory_space<vmem>>, vector<1x18x4xf32>
    tpu.vector_store %arg9[%c0, %c0_1, %c0_2], %0 {strides = array<i32>} : memref<18x18x4xf32, #tpu.memory_space<vmem>>, vector<1x18x4xf32>,
    %c17 = arith.constant 17 : index
    %c0_3 = arith.constant 0 : index
    %c0_4 = arith.constant 0 : index
    %3 = vector.load %arg9[%c17, %c0_3, %c0_4] : memref<18x18x4xf32, #tpu.memory_space<vmem>>, vector<1x18x4xf32>
    tpu.vector_store %arg9[%c17, %c0_3, %c0_4], %0 {strides = array<i32>} : memref<18x18x4xf32, #tpu.memory_space<vmem>>, vector<1x18x4xf32>,
    %c0_5 = arith.constant 0 : index
    %c0_6 = arith.constant 0 : index
    %c0_7 = arith.constant 0 : index
    %4 = vector.load %arg9[%c0_5, %c0_6, %c0_7] : memref<18x18x4xf32, #tpu.memory_space<vmem>>, vector<18x1x4xf32>
    tpu.vector_store %arg9[%c0_5, %c0_6, %c0_7], %1 {strides = array<i32>} : memref<18x18x4xf32, #tpu.memory_space<vmem>>, vector<18x1x4xf32>,
    %c0_8 = arith.constant 0 : index
    %c17_9 = arith.constant 17 : index
    %c0_10 = arith.constant 0 : index
    %5 = vector.load %arg9[%c0_8, %c17_9, %c0_10] : memref<18x18x4xf32, #tpu.memory_space<vmem>>, vector<18x1x4xf32>
    tpu.vector_store %arg9[%c0_8, %c17_9, %c0_10], %1 {strides = array<i32>} : memref<18x18x4xf32, #tpu.memory_space<vmem>>, vector<18x1x4xf32>,
    %c0_11 = arith.constant 0 : index
    %c0_12 = arith.constant 0 : index
    %c0_13 = arith.constant 0 : index
    %c0_14 = arith.constant 0 : index
    %6 = vector.load %arg1[%c0_11, %c0_12, %c0_13, %c0_14] : memref<1x16x16x4xf32, #tpu.memory_space<vmem>>, vector<1x16x16x4xf32>
    %7 = vector.shape_cast %6 : vector<1x16x16x4xf32> to vector<16x16x4xf32>
    %cst_15 = arith.constant 0.000000e+00 : f32
    %8 = vector.broadcast %cst_15 : f32 to vector<16x16x4xf32>
    %9 = arith.maximumf %7, %8 : vector<16x16x4xf32>
    %c1 = arith.constant 1 : index
    %c1_16 = arith.constant 1 : index
    %c0_17 = arith.constant 0 : index
    %10 = vector.load %arg9[%c1, %c1_16, %c0_17] : memref<18x18x4xf32, #tpu.memory_space<vmem>>, vector<16x16x4xf32>
    tpu.vector_store %arg9[%c1, %c1_16, %c0_17], %9 {strides = array<i32>} : memref<18x18x4xf32, #tpu.memory_space<vmem>>, vector<16x16x4xf32>,
    %c0_18 = arith.constant 0 : index
    %c0_19 = arith.constant 0 : index
    %c0_20 = arith.constant 0 : index
    %11 = vector.load %arg9[%c0_18, %c0_19, %c0_20] : memref<18x18x4xf32, #tpu.memory_space<vmem>>, vector<16x16x4xf32>
    %12 = vector.shape_cast %11 : vector<16x16x4xf32> to vector<256x4xf32>
    %13 = arith.truncf %12 : vector<256x4xf32> to vector<256x4xbf16>
    %c0_21 = arith.constant 0 : index
    %c0_22 = arith.constant 0 : index
    %14 = vector.load %arg10[%c0_21, %c0_22] : memref<256x36xbf16, #tpu.memory_space<vmem>>, vector<256x4xbf16>
    tpu.vector_store %arg10[%c0_21, %c0_22], %13 {strides = array<i32>} : memref<256x36xbf16, #tpu.memory_space<vmem>>, vector<256x4xbf16>,
    %c0_23 = arith.constant 0 : index
    %c1_24 = arith.constant 1 : index
    %c0_25 = arith.constant 0 : index
    %15 = vector.load %arg9[%c0_23, %c1_24, %c0_25] : memref<18x18x4xf32, #tpu.memory_space<vmem>>, vector<16x16x4xf32>
    %16 = vector.shape_cast %15 : vector<16x16x4xf32> to vector<256x4xf32>
    %17 = arith.truncf %16 : vector<256x4xf32> to vector<256x4xbf16>
    %c0_26 = arith.constant 0 : index
    %c4 = arith.constant 4 : index
    %18 = vector.load %arg10[%c0_26, %c4] : memref<256x36xbf16, #tpu.memory_space<vmem>>, vector<256x4xbf16>
    tpu.vector_store %arg10[%c0_26, %c4], %17 {strides = array<i32>} : memref<256x36xbf16, #tpu.memory_space<vmem>>, vector<256x4xbf16>,
    %c0_27 = arith.constant 0 : index
    %c2 = arith.constant 2 : index
    %c0_28 = arith.constant 0 : index
    %19 = vector.load %arg9[%c0_27, %c2, %c0_28] : memref<18x18x4xf32, #tpu.memory_space<vmem>>, vector<16x16x4xf32>
    %20 = vector.shape_cast %19 : vector<16x16x4xf32> to vector<256x4xf32>
    %21 = arith.truncf %20 : vector<256x4xf32> to vector<256x4xbf16>
    %c0_29 = arith.constant 0 : index
    %c8 = arith.constant 8 : index
    %22 = vector.load %arg10[%c0_29, %c8] : memref<256x36xbf16, #tpu.memory_space<vmem>>, vector<256x4xbf16>
    tpu.vector_store %arg10[%c0_29, %c8], %21 {strides = array<i32>} : memref<256x36xbf16, #tpu.memory_space<vmem>>, vector<256x4xbf16>,
    %c1_30 = arith.constant 1 : index
    %c0_31 = arith.constant 0 : index
    %c0_32 = arith.constant 0 : index
    %23 = vector.load %arg9[%c1_30, %c0_31, %c0_32] : memref<18x18x4xf32, #tpu.memory_space<vmem>>, vector<16x16x4xf32>
    %24 = vector.shape_cast %23 : vector<16x16x4xf32> to vector<256x4xf32>
    %25 = arith.truncf %24 : vector<256x4xf32> to vector<256x4xbf16>
    %c0_33 = arith.constant 0 : index
    %c12 = arith.constant 12 : index
    %26 = vector.load %arg10[%c0_33, %c12] : memref<256x36xbf16, #tpu.memory_space<vmem>>, vector<256x4xbf16>
    tpu.vector_store %arg10[%c0_33, %c12], %25 {strides = array<i32>} : memref<256x36xbf16, #tpu.memory_space<vmem>>, vector<256x4xbf16>,
    %c1_34 = arith.constant 1 : index
    %c1_35 = arith.constant 1 : index
    %c0_36 = arith.constant 0 : index
    %27 = vector.load %arg9[%c1_34, %c1_35, %c0_36] : memref<18x18x4xf32, #tpu.memory_space<vmem>>, vector<16x16x4xf32>
    %28 = vector.shape_cast %27 : vector<16x16x4xf32> to vector<256x4xf32>
    %29 = arith.truncf %28 : vector<256x4xf32> to vector<256x4xbf16>
    %c0_37 = arith.constant 0 : index
    %c16 = arith.constant 16 : index
    %30 = vector.load %arg10[%c0_37, %c16] : memref<256x36xbf16, #tpu.memory_space<vmem>>, vector<256x4xbf16>
    tpu.vector_store %arg10[%c0_37, %c16], %29 {strides = array<i32>} : memref<256x36xbf16, #tpu.memory_space<vmem>>, vector<256x4xbf16>,
    %c1_38 = arith.constant 1 : index
    %c2_39 = arith.constant 2 : index
    %c0_40 = arith.constant 0 : index
    %31 = vector.load %arg9[%c1_38, %c2_39, %c0_40] : memref<18x18x4xf32, #tpu.memory_space<vmem>>, vector<16x16x4xf32>
    %32 = vector.shape_cast %31 : vector<16x16x4xf32> to vector<256x4xf32>
    %33 = arith.truncf %32 : vector<256x4xf32> to vector<256x4xbf16>
    %c0_41 = arith.constant 0 : index
    %c20 = arith.constant 20 : index
    %34 = vector.load %arg10[%c0_41, %c20] : memref<256x36xbf16, #tpu.memory_space<vmem>>, vector<256x4xbf16>
    tpu.vector_store %arg10[%c0_41, %c20], %33 {strides = array<i32>} : memref<256x36xbf16, #tpu.memory_space<vmem>>, vector<256x4xbf16>,
    %c2_42 = arith.constant 2 : index
    %c0_43 = arith.constant 0 : index
    %c0_44 = arith.constant 0 : index
    %35 = vector.load %arg9[%c2_42, %c0_43, %c0_44] : memref<18x18x4xf32, #tpu.memory_space<vmem>>, vector<16x16x4xf32>
    %36 = vector.shape_cast %35 : vector<16x16x4xf32> to vector<256x4xf32>
    %37 = arith.truncf %36 : vector<256x4xf32> to vector<256x4xbf16>
    %c0_45 = arith.constant 0 : index
    %c24 = arith.constant 24 : index
    %38 = vector.load %arg10[%c0_45, %c24] : memref<256x36xbf16, #tpu.memory_space<vmem>>, vector<256x4xbf16>
    tpu.vector_store %arg10[%c0_45, %c24], %37 {strides = array<i32>} : memref<256x36xbf16, #tpu.memory_space<vmem>>, vector<256x4xbf16>,
    %c2_46 = arith.constant 2 : index
    %c1_47 = arith.constant 1 : index
    %c0_48 = arith.constant 0 : index
    %39 = vector.load %arg9[%c2_46, %c1_47, %c0_48] : memref<18x18x4xf32, #tpu.memory_space<vmem>>, vector<16x16x4xf32>
    %40 = vector.shape_cast %39 : vector<16x16x4xf32> to vector<256x4xf32>
    %41 = arith.truncf %40 : vector<256x4xf32> to vector<256x4xbf16>
    %c0_49 = arith.constant 0 : index
    %c28 = arith.constant 28 : index
    %42 = vector.load %arg10[%c0_49, %c28] : memref<256x36xbf16, #tpu.memory_space<vmem>>, vector<256x4xbf16>
    tpu.vector_store %arg10[%c0_49, %c28], %41 {strides = array<i32>} : memref<256x36xbf16, #tpu.memory_space<vmem>>, vector<256x4xbf16>,
    %c2_50 = arith.constant 2 : index
    %c2_51 = arith.constant 2 : index
    %c0_52 = arith.constant 0 : index
    %43 = vector.load %arg9[%c2_50, %c2_51, %c0_52] : memref<18x18x4xf32, #tpu.memory_space<vmem>>, vector<16x16x4xf32>
    %44 = vector.shape_cast %43 : vector<16x16x4xf32> to vector<256x4xf32>
    %45 = arith.truncf %44 : vector<256x4xf32> to vector<256x4xbf16>
    %c0_53 = arith.constant 0 : index
    %c32 = arith.constant 32 : index
    %46 = vector.load %arg10[%c0_53, %c32] : memref<256x36xbf16, #tpu.memory_space<vmem>>, vector<256x4xbf16>
    tpu.vector_store %arg10[%c0_53, %c32], %45 {strides = array<i32>} : memref<256x36xbf16, #tpu.memory_space<vmem>>, vector<256x4xbf16>,
    %c0_54 = arith.constant 0 : index
    %c0_55 = arith.constant 0 : index
    %47 = vector.load %arg10[%c0_54, %c0_55] : memref<256x36xbf16, #tpu.memory_space<vmem>>, vector<256x36xbf16>
    %c0_56 = arith.constant 0 : index
    %c0_57 = arith.constant 0 : index
    %48 = vector.load %arg2[%c0_56, %c0_57] : memref<36x256xbf16, #tpu.memory_space<vmem>>, vector<36x256xbf16>
    %cst_58 = arith.constant dense<0.000000e+00> : vector<256x256xf32>
    %49 = tpu.matmul %47, %48, %cst_58 {dimension_numbers = #tpu.dot_dimension_numbers<[1], [0], [0], [1], [0, 0, 1, 1], [], []>} : vector<256x36xbf16>, vector<36x256xbf16>, vector<256x256xf32> -> vector<256x256xf32>
    %c0_59 = arith.constant 0 : index
    %c0_60 = arith.constant 0 : index
    %50 = vector.load %arg3[%c0_59, %c0_60] : memref<1x256xf32, #tpu.memory_space<vmem>>, vector<1x256xf32>
    %51 = vector.broadcast %50 : vector<1x256xf32> to vector<256x256xf32>
    %52 = arith.addf %49, %51 : vector<256x256xf32>
    %cst_61 = arith.constant 0.000000e+00 : f32
    %53 = vector.broadcast %cst_61 : f32 to vector<256x256xf32>
    %54 = arith.maximumf %52, %53 : vector<256x256xf32>
    %c0_62 = arith.constant 0 : index
    %c0_63 = arith.constant 0 : index
    %55 = vector.load %arg7[%c0_62, %c0_63] : memref<64x256xbf16, #tpu.memory_space<vmem>>, vector<64x256xbf16>
    %56 = arith.truncf %54 : vector<256x256xf32> to vector<256x256xbf16>
    %cst_64 = arith.constant dense<0.000000e+00> : vector<64x256xf32>
    %57 = tpu.matmul %55, %56, %cst_64 {dimension_numbers = #tpu.dot_dimension_numbers<[1], [0], [0], [1], [0, 0, 1, 1], [], []>} : vector<64x256xbf16>, vector<256x256xbf16>, vector<64x256xf32> -> vector<64x256xf32>
    %cst_65 = arith.constant 0.000000e+00 : f32
    %58 = vector.broadcast %cst_65 : f32 to vector<1x10x256xf32>
    %cst_66 = arith.constant 0.000000e+00 : f32
    %59 = vector.broadcast %cst_66 : f32 to vector<10x1x256xf32>
    %c0_67 = arith.constant 0 : index
    %c0_68 = arith.constant 0 : index
    %c0_69 = arith.constant 0 : index
    %60 = vector.load %arg11[%c0_67, %c0_68, %c0_69] : memref<10x10x256xf32, #tpu.memory_space<vmem>>, vector<1x10x256xf32>
    tpu.vector_store %arg11[%c0_67, %c0_68, %c0_69], %58 {strides = array<i32>} : memref<10x10x256xf32, #tpu.memory_space<vmem>>, vector<1x10x256xf32>,
    %c9 = arith.constant 9 : index
    %c0_70 = arith.constant 0 : index
    %c0_71 = arith.constant 0 : index
    %61 = vector.load %arg11[%c9, %c0_70, %c0_71] : memref<10x10x256xf32, #tpu.memory_space<vmem>>, vector<1x10x256xf32>
    tpu.vector_store %arg11[%c9, %c0_70, %c0_71], %58 {strides = array<i32>} : memref<10x10x256xf32, #tpu.memory_space<vmem>>, vector<1x10x256xf32>,
    %c0_72 = arith.constant 0 : index
    %c0_73 = arith.constant 0 : index
    %c0_74 = arith.constant 0 : index
    %62 = vector.load %arg11[%c0_72, %c0_73, %c0_74] : memref<10x10x256xf32, #tpu.memory_space<vmem>>, vector<10x1x256xf32>
    tpu.vector_store %arg11[%c0_72, %c0_73, %c0_74], %59 {strides = array<i32>} : memref<10x10x256xf32, #tpu.memory_space<vmem>>, vector<10x1x256xf32>,
    %c0_75 = arith.constant 0 : index
    %c9_76 = arith.constant 9 : index
    %c0_77 = arith.constant 0 : index
    %63 = vector.load %arg11[%c0_75, %c9_76, %c0_77] : memref<10x10x256xf32, #tpu.memory_space<vmem>>, vector<10x1x256xf32>
    tpu.vector_store %arg11[%c0_75, %c9_76, %c0_77], %59 {strides = array<i32>} : memref<10x10x256xf32, #tpu.memory_space<vmem>>, vector<10x1x256xf32>,
    %64 = vector.shape_cast %57 : vector<64x256xf32> to vector<8x8x256xf32>
    %c1_78 = arith.constant 1 : index
    %c1_79 = arith.constant 1 : index
    %c0_80 = arith.constant 0 : index
    %65 = vector.load %arg11[%c1_78, %c1_79, %c0_80] : memref<10x10x256xf32, #tpu.memory_space<vmem>>, vector<8x8x256xf32>
    tpu.vector_store %arg11[%c1_78, %c1_79, %c0_80], %64 {strides = array<i32>} : memref<10x10x256xf32, #tpu.memory_space<vmem>>, vector<8x8x256xf32>,
    %c0_81 = arith.constant 0 : index
    %c0_82 = arith.constant 0 : index
    %c0_83 = arith.constant 0 : index
    %66 = vector.load %arg11[%c0_81, %c0_82, %c0_83] : memref<10x10x256xf32, #tpu.memory_space<vmem>>, vector<8x8x256xf32>
    %67 = vector.shape_cast %66 : vector<8x8x256xf32> to vector<64x256xf32>
    %68 = arith.truncf %67 : vector<64x256xf32> to vector<64x256xbf16>
    %c0_84 = arith.constant 0 : index
    %c0_85 = arith.constant 0 : index
    %69 = vector.load %arg12[%c0_84, %c0_85] : memref<64x2304xbf16, #tpu.memory_space<vmem>>, vector<64x256xbf16>
    tpu.vector_store %arg12[%c0_84, %c0_85], %68 {strides = array<i32>} : memref<64x2304xbf16, #tpu.memory_space<vmem>>, vector<64x256xbf16>,
    %c0_86 = arith.constant 0 : index
    %c1_87 = arith.constant 1 : index
    %c0_88 = arith.constant 0 : index
    %70 = vector.load %arg11[%c0_86, %c1_87, %c0_88] : memref<10x10x256xf32, #tpu.memory_space<vmem>>, vector<8x8x256xf32>
    %71 = vector.shape_cast %70 : vector<8x8x256xf32> to vector<64x256xf32>
    %72 = arith.truncf %71 : vector<64x256xf32> to vector<64x256xbf16>
    %c0_89 = arith.constant 0 : index
    %c256 = arith.constant 256 : index
    %73 = vector.load %arg12[%c0_89, %c256] : memref<64x2304xbf16, #tpu.memory_space<vmem>>, vector<64x256xbf16>
    tpu.vector_store %arg12[%c0_89, %c256], %72 {strides = array<i32>} : memref<64x2304xbf16, #tpu.memory_space<vmem>>, vector<64x256xbf16>,
    %c0_90 = arith.constant 0 : index
    %c2_91 = arith.constant 2 : index
    %c0_92 = arith.constant 0 : index
    %74 = vector.load %arg11[%c0_90, %c2_91, %c0_92] : memref<10x10x256xf32, #tpu.memory_space<vmem>>, vector<8x8x256xf32>
    %75 = vector.shape_cast %74 : vector<8x8x256xf32> to vector<64x256xf32>
    %76 = arith.truncf %75 : vector<64x256xf32> to vector<64x256xbf16>
    %c0_93 = arith.constant 0 : index
    %c512 = arith.constant 512 : index
    %77 = vector.load %arg12[%c0_93, %c512] : memref<64x2304xbf16, #tpu.memory_space<vmem>>, vector<64x256xbf16>
    tpu.vector_store %arg12[%c0_93, %c512], %76 {strides = array<i32>} : memref<64x2304xbf16, #tpu.memory_space<vmem>>, vector<64x256xbf16>,
    %c1_94 = arith.constant 1 : index
    %c0_95 = arith.constant 0 : index
    %c0_96 = arith.constant 0 : index
    %78 = vector.load %arg11[%c1_94, %c0_95, %c0_96] : memref<10x10x256xf32, #tpu.memory_space<vmem>>, vector<8x8x256xf32>
    %79 = vector.shape_cast %78 : vector<8x8x256xf32> to vector<64x256xf32>
    %80 = arith.truncf %79 : vector<64x256xf32> to vector<64x256xbf16>
    %c0_97 = arith.constant 0 : index
    %c768 = arith.constant 768 : index
    %81 = vector.load %arg12[%c0_97, %c768] : memref<64x2304xbf16, #tpu.memory_space<vmem>>, vector<64x256xbf16>
    tpu.vector_store %arg12[%c0_97, %c768], %80 {strides = array<i32>} : memref<64x2304xbf16, #tpu.memory_space<vmem>>, vector<64x256xbf16>,
    %c1_98 = arith.constant 1 : index
    %c1_99 = arith.constant 1 : index
    %c0_100 = arith.constant 0 : index
    %82 = vector.load %arg11[%c1_98, %c1_99, %c0_100] : memref<10x10x256xf32, #tpu.memory_space<vmem>>, vector<8x8x256xf32>
    %83 = vector.shape_cast %82 : vector<8x8x256xf32> to vector<64x256xf32>
    %84 = arith.truncf %83 : vector<64x256xf32> to vector<64x256xbf16>
    %c0_101 = arith.constant 0 : index
    %c1024 = arith.constant 1024 : index
    %85 = vector.load %arg12[%c0_101, %c1024] : memref<64x2304xbf16, #tpu.memory_space<vmem>>, vector<64x256xbf16>
    tpu.vector_store %arg12[%c0_101, %c1024], %84 {strides = array<i32>} : memref<64x2304xbf16, #tpu.memory_space<vmem>>, vector<64x256xbf16>,
    %c1_102 = arith.constant 1 : index
    %c2_103 = arith.constant 2 : index
    %c0_104 = arith.constant 0 : index
    %86 = vector.load %arg11[%c1_102, %c2_103, %c0_104] : memref<10x10x256xf32, #tpu.memory_space<vmem>>, vector<8x8x256xf32>
    %87 = vector.shape_cast %86 : vector<8x8x256xf32> to vector<64x256xf32>
    %88 = arith.truncf %87 : vector<64x256xf32> to vector<64x256xbf16>
    %c0_105 = arith.constant 0 : index
    %c1280 = arith.constant 1280 : index
    %89 = vector.load %arg12[%c0_105, %c1280] : memref<64x2304xbf16, #tpu.memory_space<vmem>>, vector<64x256xbf16>
    tpu.vector_store %arg12[%c0_105, %c1280], %88 {strides = array<i32>} : memref<64x2304xbf16, #tpu.memory_space<vmem>>, vector<64x256xbf16>,
    %c2_106 = arith.constant 2 : index
    %c0_107 = arith.constant 0 : index
    %c0_108 = arith.constant 0 : index
    %90 = vector.load %arg11[%c2_106, %c0_107, %c0_108] : memref<10x10x256xf32, #tpu.memory_space<vmem>>, vector<8x8x256xf32>
    %91 = vector.shape_cast %90 : vector<8x8x256xf32> to vector<64x256xf32>
    %92 = arith.truncf %91 : vector<64x256xf32> to vector<64x256xbf16>
    %c0_109 = arith.constant 0 : index
    %c1536 = arith.constant 1536 : index
    %93 = vector.load %arg12[%c0_109, %c1536] : memref<64x2304xbf16, #tpu.memory_space<vmem>>, vector<64x256xbf16>
    tpu.vector_store %arg12[%c0_109, %c1536], %92 {strides = array<i32>} : memref<64x2304xbf16, #tpu.memory_space<vmem>>, vector<64x256xbf16>,
    %c2_110 = arith.constant 2 : index
    %c1_111 = arith.constant 1 : index
    %c0_112 = arith.constant 0 : index
    %94 = vector.load %arg11[%c2_110, %c1_111, %c0_112] : memref<10x10x256xf32, #tpu.memory_space<vmem>>, vector<8x8x256xf32>
    %95 = vector.shape_cast %94 : vector<8x8x256xf32> to vector<64x256xf32>
    %96 = arith.truncf %95 : vector<64x256xf32> to vector<64x256xbf16>
    %c0_113 = arith.constant 0 : index
    %c1792 = arith.constant 1792 : index
    %97 = vector.load %arg12[%c0_113, %c1792] : memref<64x2304xbf16, #tpu.memory_space<vmem>>, vector<64x256xbf16>
    tpu.vector_store %arg12[%c0_113, %c1792], %96 {strides = array<i32>} : memref<64x2304xbf16, #tpu.memory_space<vmem>>, vector<64x256xbf16>,
    %c2_114 = arith.constant 2 : index
    %c2_115 = arith.constant 2 : index
    %c0_116 = arith.constant 0 : index
    %98 = vector.load %arg11[%c2_114, %c2_115, %c0_116] : memref<10x10x256xf32, #tpu.memory_space<vmem>>, vector<8x8x256xf32>
    %99 = vector.shape_cast %98 : vector<8x8x256xf32> to vector<64x256xf32>
    %100 = arith.truncf %99 : vector<64x256xf32> to vector<64x256xbf16>
    %c0_117 = arith.constant 0 : index
    %c2048 = arith.constant 2048 : index
    %101 = vector.load %arg12[%c0_117, %c2048] : memref<64x2304xbf16, #tpu.memory_space<vmem>>, vector<64x256xbf16>
    tpu.vector_store %arg12[%c0_117, %c2048], %100 {strides = array<i32>} : memref<64x2304xbf16, #tpu.memory_space<vmem>>, vector<64x256xbf16>,
    %c0_118 = arith.constant 0 : index
    %c0_119 = arith.constant 0 : index
    %102 = vector.load %arg12[%c0_118, %c0_119] : memref<64x2304xbf16, #tpu.memory_space<vmem>>, vector<64x2304xbf16>
    %c0_120 = arith.constant 0 : index
    %c0_121 = arith.constant 0 : index
    %103 = vector.load %arg4[%c0_120, %c0_121] : memref<2304x256xbf16, #tpu.memory_space<vmem>>, vector<2304x256xbf16>
    %cst_122 = arith.constant dense<0.000000e+00> : vector<64x256xf32>
    %104 = tpu.matmul %102, %103, %cst_122 {dimension_numbers = #tpu.dot_dimension_numbers<[1], [0], [0], [1], [0, 0, 1, 1], [], []>} : vector<64x2304xbf16>, vector<2304x256xbf16>, vector<64x256xf32> -> vector<64x256xf32>
    %c0_123 = arith.constant 0 : index
    %c0_124 = arith.constant 0 : index
    %105 = vector.load %arg7[%c0_123, %c0_124] : memref<64x256xbf16, #tpu.memory_space<vmem>>, vector<64x256xbf16>
    %c0_125 = arith.constant 0 : index
    %c0_126 = arith.constant 0 : index
    %c0_127 = arith.constant 0 : index
    %c0_128 = arith.constant 0 : index
    %106 = vector.load %arg1[%c0_125, %c0_126, %c0_127, %c0_128] : memref<1x16x16x4xf32, #tpu.memory_space<vmem>>, vector<1x16x16x4xf32>
    %107 = vector.shape_cast %106 : vector<1x16x16x4xf32> to vector<256x4xf32>
    %108 = arith.truncf %107 : vector<256x4xf32> to vector<256x4xbf16>
    %cst_129 = arith.constant dense<0.000000e+00> : vector<64x4xf32>
    %109 = tpu.matmul %105, %108, %cst_129 {dimension_numbers = #tpu.dot_dimension_numbers<[1], [0], [0], [1], [0, 0, 1, 1], [], []>} : vector<64x256xbf16>, vector<256x4xbf16>, vector<64x4xf32> -> vector<64x4xf32>
    %110 = arith.truncf %109 : vector<64x4xf32> to vector<64x4xbf16>
    %c0_130 = arith.constant 0 : index
    %c0_131 = arith.constant 0 : index
    %111 = vector.load %arg5[%c0_130, %c0_131] : memref<4x256xbf16, #tpu.memory_space<vmem>>, vector<4x256xbf16>
    %cst_132 = arith.constant dense<0.000000e+00> : vector<64x256xf32>
    %112 = tpu.matmul %110, %111, %cst_132 {dimension_numbers = #tpu.dot_dimension_numbers<[1], [0], [0], [1], [0, 0, 1, 1], [], []>} : vector<64x4xbf16>, vector<4x256xbf16>, vector<64x256xf32> -> vector<64x256xf32>
    %113 = arith.addf %104, %112 : vector<64x256xf32>
    %c0_133 = arith.constant 0 : index
    %c0_134 = arith.constant 0 : index
    %114 = vector.load %arg6[%c0_133, %c0_134] : memref<1x256xf32, #tpu.memory_space<vmem>>, vector<1x256xf32>
    %115 = vector.broadcast %114 : vector<1x256xf32> to vector<64x256xf32>
    %116 = arith.addf %113, %115 : vector<64x256xf32>
    %117 = vector.shape_cast %116 : vector<64x256xf32> to vector<1x8x8x256xf32>
    %c0_135 = arith.constant 0 : index
    %c0_136 = arith.constant 0 : index
    %c0_137 = arith.constant 0 : index
    %c0_138 = arith.constant 0 : index
    %118 = vector.load %arg8[%c0_135, %c0_136, %c0_137, %c0_138] : memref<1x8x8x256xf32, #tpu.memory_space<vmem>>, vector<1x8x8x256xf32>
    tpu.vector_store %arg8[%c0_135, %c0_136, %c0_137, %c0_138], %117 {strides = array<i32>} : memref<1x8x8x256xf32, #tpu.memory_space<vmem>>, vector<1x8x8x256xf32>,
    return
  }
  func.func @transform_0(%arg0: i32) -> (i32, i32, i32, i32) {
    %c0_i32 = arith.constant 0 : i32
    %c0_i32_0 = arith.constant 0 : i32
    %c0_i32_1 = arith.constant 0 : i32
    %c0_i32_2 = arith.constant 0 : i32
    return %arg0, %c0_i32, %c0_i32_0, %c0_i32_1 : i32, i32, i32, i32
  }
  func.func @transform_1(%arg0: i32) -> (i32, i32) {
    %c0_i32 = arith.constant 0 : i32
    %c0_i32_0 = arith.constant 0 : i32
    %c0_i32_1 = arith.constant 0 : i32
    return %c0_i32, %c0_i32_0 : i32, i32
  }
  func.func @transform_2(%arg0: i32) -> (i32, i32) {
    %c0_i32 = arith.constant 0 : i32
    %c0_i32_0 = arith.constant 0 : i32
    %c0_i32_1 = arith.constant 0 : i32
    return %c0_i32, %c0_i32_0 : i32, i32
  }
  func.func @transform_3(%arg0: i32) -> (i32, i32) {
    %c0_i32 = arith.constant 0 : i32
    %c0_i32_0 = arith.constant 0 : i32
    %c0_i32_1 = arith.constant 0 : i32
    return %c0_i32, %c0_i32_0 : i32, i32
  }
  func.func @transform_4(%arg0: i32) -> (i32, i32) {
    %c0_i32 = arith.constant 0 : i32
    %c0_i32_0 = arith.constant 0 : i32
    %c0_i32_1 = arith.constant 0 : i32
    return %c0_i32, %c0_i32_0 : i32, i32
  }
  func.func @transform_5(%arg0: i32) -> (i32, i32) {
    %c0_i32 = arith.constant 0 : i32
    %c0_i32_0 = arith.constant 0 : i32
    %c0_i32_1 = arith.constant 0 : i32
    return %c0_i32, %c0_i32_0 : i32, i32
  }
  func.func @transform_6(%arg0: i32) -> (i32, i32) {
    %c0_i32 = arith.constant 0 : i32
    %c0_i32_0 = arith.constant 0 : i32
    %c0_i32_1 = arith.constant 0 : i32
    return %c0_i32, %c0_i32_0 : i32, i32
  }
  func.func @transform_7(%arg0: i32) -> (i32, i32, i32, i32) {
    %c0_i32 = arith.constant 0 : i32
    %c0_i32_0 = arith.constant 0 : i32
    %c0_i32_1 = arith.constant 0 : i32
    %c0_i32_2 = arith.constant 0 : i32
    return %arg0, %c0_i32, %c0_i32_0, %c0_i32_1 : i32, i32, i32, i32
  }
}

</mosaic_0001>

<llo_original>
// kernel: resnet_block_down.1
$region0: #{resnet_block_down.1}
  #allocation0 [shape = 'u32[]', space=smem, size = 0x4, offset = 0x4, fixed_abs, tag = 'smem constant byte address 0x4 - core index']
  #allocation1 [shape = 'u32[72,128]{1,0:T(1,128)}', space=vmem, size = 0x9000, scoped, tag = 'internal scratch']
  #allocation2 [shape = 'f32[18,18,4]{2,1,0:T(8,128)}', space=vmem, size = 0x36000, scoped, tag = 'scratch operand']
  #allocation3 [shape = 'bf16[256,36]{1,0:T(8,128)(2,1)}', space=vmem, size = 0x10000, scoped, tag = 'scratch operand']
  #allocation4 [shape = 'f32[10,10,256]{2,1,0:T(8,128)}', space=vmem, size = 0x28000, scoped, tag = 'scratch operand']
  #allocation5 [shape = 'bf16[64,2304]{1,0:T(8,128)(2,1)}', space=vmem, size = 0x48000, scoped, tag = 'scratch operand']
  %s0 = inlined_call_operand.vmem [shape: f32[2,16,16,4], index: 0, kind: input, shape index: {}]
  %s1 = inlined_call_operand.vmem [shape: bf16[36,256], index: 1, kind: input, shape index: {}]
  %s2 = inlined_call_operand.vmem [shape: f32[1,256], index: 2, kind: input, shape index: {}]
  %s3 = inlined_call_operand.vmem [shape: bf16[2304,256], index: 3, kind: input, shape index: {}]
  %s4 = inlined_call_operand.vmem [shape: bf16[4,256], index: 4, kind: input, shape index: {}]
  %s5 = inlined_call_operand.vmem [shape: f32[1,256], index: 5, kind: input, shape index: {}]
  %s6 = inlined_call_operand.vmem [shape: bf16[64,256], index: 6, kind: input, shape index: {}]
  %s7 = inlined_call_operand.hbm [shape: f32[2,8,8,256], index: 7, kind: output, shape index: {}]
  %s8 = sld [smem:[#allocation0]]
  $region61: #{resnet_block_down.1} parent=0
    _
  %s10 = ssub.s32 1, %s8
  %s11 = scalar_select 0, %s10, %s8
  $region1: #{resnet_block_down.1} parent=0
    #allocation6 [shape = 'u8[131072]{0}', space=vmem, size = 0x20000, scoped, tag = 'output window, operand 0']
    #allocation7 [shape = 's32[2]{0}', space=sflag, size = 0x8, scoped, tag = 'scoped memory for resnet_block_down.1']
    %12 = vsyncpa [#allocation7], 0
    %s13 = scalar_lea.sflag [#allocation7], 1
    %14 = vsyncpa %s13, 0
    loop: start=0, step=1, limit=4
    $region2: #{resnet_block_down.1} parent=1 // loop_pre_header
      _
    $region3: #{resnet_block_down.1} parent=1 // loop_header
      %s16 = sphi 0, %s20
      %p17 = scmp.ge.s32.totalorder %s16, 4
      %s26 = sphi 0, %s28
      %s29 = sphi 0, %s26
      %s30 = sphi 0, %s29
      %s46 = sphi 0, %s30
      %s50 = sphi 0, %s50
      %s52 = sphi 0, %s50
      %s53 = sphi 0, %s52
      %s67 = sphi 0, %s53
      %s71 = sphi 0, %s71
      %s73 = sphi 0, %s71
      %s74 = sphi 0, %s73
      %s88 = sphi 0, %s74
      %s92 = sphi 0, %s92
      %s94 = sphi 0, %s92
      %s95 = sphi 0, %s94
      %s109 = sphi 0, %s95
      %s113 = sphi 0, %s113
      %s115 = sphi 0, %s113
      %s116 = sphi 0, %s115
      %s130 = sphi 0, %s116
      %s134 = sphi 0, %s134
      %s136 = sphi 0, %s134
      %s137 = sphi 0, %s136
      %s151 = sphi 0, %s137
      %s155 = sphi 0, %s155
      %s157 = sphi 0, %s155
      %s158 = sphi 0, %s157
      %s172 = sphi 0, %s158
      %s178 = sphi 0, %s180
      %s181 = sphi 0, %s178
      %s182 = sphi 0, %s181
      %s198 = sphi 0, %s182
    $region4: #{resnet_block_down.1} parent=1 // loop_header_branch
      %19 = sbr.rel (%p17) target = $region8
    $region5: #{resnet_block_down.1} parent=1 // loop_body
      %s21 = ssub.s32 %s16, 1
      %s22 = ssub.s32 %s16, 2
      %s23 = sadd.s32 %s16, 1
      %s24 = ssub.s32 %s16, %s23
      %p25 = scmp.eq.s32.totalorder %s24, 0
      %s27 = sadd.s32 %s26, 1
      %s28 = scalar_select %p25, %s26, %s27
      %p31 = pneg %p25
      %p32 = scmp.eq.s32.totalorder %s16, 1
      %p33 = por %p31, %p32
      %p34 = scmp.ne.s32.totalorder %s26, %s29
      %p35 = scmp.eq.s32.totalorder %s16, 0
      %p36 = por %p34, %p35
      %p37 = scmp.ne.s32.totalorder %s26, %s29
      %p38 = scmp.eq.s32.totalorder %s21, 1
      %p39 = por %p37, %p38
      %p40 = scmp.ne.s32.totalorder %s29, %s30
      %p41 = scmp.eq.s32.totalorder %s21, 0
      %p42 = por %p40, %p41
      %p43 = scmp.ne.s32.totalorder %s29, %s30
      %p44 = scmp.eq.s32.totalorder %s22, 1
      %p45 = por %p43, %p44
      %p47 = scmp.ne.s32.totalorder %s30, %s46
      %p48 = scmp.eq.s32.totalorder %s22, 0
      %p49 = por %p47, %p48
      %s51 = sadd.s32 %s50, 1
      %p54 = scmp.eq.s32.totalorder %s16, 1
      %p55 = scmp.ne.s32.totalorder %s50, %s52
      %p56 = scmp.eq.s32.totalorder %s16, 0
      %p57 = por %p55, %p56
      %p58 = scmp.ne.s32.totalorder %s50, %s52
      %p59 = scmp.eq.s32.totalorder %s21, 1
      %p60 = por %p58, %p59
      %p61 = scmp.ne.s32.totalorder %s52, %s53
      %p62 = scmp.eq.s32.totalorder %s21, 0
      %p63 = por %p61, %p62
      %p64 = scmp.ne.s32.totalorder %s52, %s53
      %p65 = scmp.eq.s32.totalorder %s22, 1
      %p66 = por %p64, %p65
      %p68 = scmp.ne.s32.totalorder %s53, %s67
      %p69 = scmp.eq.s32.totalorder %s22, 0
      %p70 = por %p68, %p69
      %s72 = sadd.s32 %s71, 1
      %p75 = scmp.eq.s32.totalorder %s16, 1
      %p76 = scmp.ne.s32.totalorder %s71, %s73
      %p77 = scmp.eq.s32.totalorder %s16, 0
      %p78 = por %p76, %p77
      %p79 = scmp.ne.s32.totalorder %s71, %s73
      %p80 = scmp.eq.s32.totalorder %s21, 1
      %p81 = por %p79, %p80
      %p82 = scmp.ne.s32.totalorder %s73, %s74
      %p83 = scmp.eq.s32.totalorder %s21, 0
      %p84 = por %p82, %p83
      %p85 = scmp.ne.s32.totalorder %s73, %s74
      %p86 = scmp.eq.s32.totalorder %s22, 1
      %p87 = por %p85, %p86
      %p89 = scmp.ne.s32.totalorder %s74, %s88
      %p90 = scmp.eq.s32.totalorder %s22, 0
      %p91 = por %p89, %p90
      %s93 = sadd.s32 %s92, 1
      %p96 = scmp.eq.s32.totalorder %s16, 1
      %p97 = scmp.ne.s32.totalorder %s92, %s94
      %p98 = scmp.eq.s32.totalorder %s16, 0
      %p99 = por %p97, %p98
      %p100 = scmp.ne.s32.totalorder %s92, %s94
      %p101 = scmp.eq.s32.totalorder %s21, 1
      %p102 = por %p100, %p101
      %p103 = scmp.ne.s32.totalorder %s94, %s95
      %p104 = scmp.eq.s32.totalorder %s21, 0
      %p105 = por %p103, %p104
      %p106 = scmp.ne.s32.totalorder %s94, %s95
      %p107 = scmp.eq.s32.totalorder %s22, 1
      %p108 = por %p106, %p107
      %p110 = scmp.ne.s32.totalorder %s95, %s109
      %p111 = scmp.eq.s32.totalorder %s22, 0
      %p112 = por %p110, %p111
      %s114 = sadd.s32 %s113, 1
      %p117 = scmp.eq.s32.totalorder %s16, 1
      %p118 = scmp.ne.s32.totalorder %s113, %s115
      %p119 = scmp.eq.s32.totalorder %s16, 0
      %p120 = por %p118, %p119
      %p121 = scmp.ne.s32.totalorder %s113, %s115
      %p122 = scmp.eq.s32.totalorder %s21, 1
      %p123 = por %p121, %p122
      %p124 = scmp.ne.s32.totalorder %s115, %s116
      %p125 = scmp.eq.s32.totalorder %s21, 0
      %p126 = por %p124, %p125
      %p127 = scmp.ne.s32.totalorder %s115, %s116
      %p128 = scmp.eq.s32.totalorder %s22, 1
      %p129 = por %p127, %p128
      %p131 = scmp.ne.s32.totalorder %s116, %s130
      %p132 = scmp.eq.s32.totalorder %s22, 0
      %p133 = por %p131, %p132
      %s135 = sadd.s32 %s134, 1
      %p138 = scmp.eq.s32.totalorder %s16, 1
      %p139 = scmp.ne.s32.totalorder %s134, %s136
      %p140 = scmp.eq.s32.totalorder %s16, 0
      %p141 = por %p139, %p140
      %p142 = scmp.ne.s32.totalorder %s134, %s136
      %p143 = scmp.eq.s32.totalorder %s21, 1
      %p144 = por %p142, %p143
      %p145 = scmp.ne.s32.totalorder %s136, %s137
      %p146 = scmp.eq.s32.totalorder %s21, 0
      %p147 = por %p145, %p146
      %p148 = scmp.ne.s32.totalorder %s136, %s137
      %p149 = scmp.eq.s32.totalorder %s22, 1
      %p150 = por %p148, %p149
      %p152 = scmp.ne.s32.totalorder %s137, %s151
      %p153 = scmp.eq.s32.totalorder %s22, 0
      %p154 = por %p152, %p153
      %s156 = sadd.s32 %s155, 1
      %p159 = scmp.eq.s32.totalorder %s16, 1
      %p160 = scmp.ne.s32.totalorder %s155, %s157
      %p161 = scmp.eq.s32.totalorder %s16, 0
      %p162 = por %p160, %p161
      %p163 = scmp.ne.s32.totalorder %s155, %s157
      %p164 = scmp.eq.s32.totalorder %s21, 1
      %p165 = por %p163, %p164
      %p166 = scmp.ne.s32.totalorder %s157, %s158
      %p167 = scmp.eq.s32.totalorder %s21, 0
      %p168 = por %p166, %p167
      %p169 = scmp.ne.s32.totalorder %s157, %s158
      %p170 = scmp.eq.s32.totalorder %s22, 1
      %p171 = por %p169, %p170
      %p173 = scmp.ne.s32.totalorder %s158, %s172
      %p174 = scmp.eq.s32.totalorder %s22, 0
      %p175 = por %p173, %p174
      %s176 = ssub.s32 %s16, %s23
      %p177 = scmp.eq.s32.totalorder %s176, 0
      %s179 = sadd.s32 %s178, 1
      %s180 = scalar_select %p177, %s178, %s179
      %p183 = pneg %p177
      %p184 = scmp.eq.s32.totalorder %s16, 1
      %p185 = por %p183, %p184
      %p186 = scmp.ne.s32.totalorder %s178, %s181
      %p187 = scmp.eq.s32.totalorder %s16, 0
      %p188 = por %p186, %p187
      %p189 = scmp.ne.s32.totalorder %s178, %s181
      %p190 = scmp.eq.s32.totalorder %s21, 1
      %p191 = por %p189, %p190
      %p192 = scmp.ne.s32.totalorder %s181, %s182
      %p193 = scmp.eq.s32.totalorder %s21, 0
      %p194 = por %p192, %p193
      %p195 = scmp.ne.s32.totalorder %s181, %s182
      %p196 = scmp.eq.s32.totalorder %s22, 1
      %p197 = por %p195, %p196
      %p199 = scmp.ne.s32.totalorder %s182, %s198
      %p200 = scmp.eq.s32.totalorder %s22, 0
      %p201 = por %p199, %p200
      %p202 = scmp.le.s32.totalorder 1, %s16
      %p203 = scmp.lt.s32.totalorder %s16, 3
      %p204 = pnand %p202, %p203
      %p205 = pneg %p204
      // Predicated region
      $region9: #{resnet_block_down.1} parent=5 // pred_check
        _
      $region10: #{resnet_block_down.1} parent=5 // pred_check_branch
        %207 = sbr.rel (%p204) target = $region12
      $region11: #{resnet_block_down.1} parent=5 // pred_region
        %s208 = ssub.s32 %s16, 1
        // Predicated region
        $region13: #{resnet_block_down.1} parent=11 // pred_check
          %p209 = pneg %p63
        $region14: #{resnet_block_down.1} parent=11 // pred_check_branch
          %211 = sbr.rel (%p209) target = $region16
        $region15: #{resnet_block_down.1} parent=11 // pred_region
          _
        $region16: #{resnet_block_down.1} parent=11 // pred_fallthru
          _
        // Predicated region
        $region17: #{resnet_block_down.1} parent=11 // pred_check
          %p212 = pneg %p84
        $region18: #{resnet_block_down.1} parent=11 // pred_check_branch
          %214 = sbr.rel (%p212) target = $region20
        $region19: #{resnet_block_down.1} parent=11 // pred_region
          _
        $region20: #{resnet_block_down.1} parent=11 // pred_fallthru
          _
        // Predicated region
        $region21: #{resnet_block_down.1} parent=11 // pred_check
          %p215 = pneg %p105
        $region22: #{resnet_block_down.1} parent=11 // pred_check_branch
          %217 = sbr.rel (%p215) target = $region24
        $region23: #{resnet_block_down.1} parent=11 // pred_region
          _
        $region24: #{resnet_block_down.1} parent=11 // pred_fallthru
          _
        // Predicated region
        $region25: #{resnet_block_down.1} parent=11 // pred_check
          %p218 = pneg %p126
        $region26: #{resnet_block_down.1} parent=11 // pred_check_branch
          %220 = sbr.rel (%p218) target = $region28
        $region27: #{resnet_block_down.1} parent=11 // pred_region
          _
        $region28: #{resnet_block_down.1} parent=11 // pred_fallthru
          _
        // Predicated region
        $region29: #{resnet_block_down.1} parent=11 // pred_check
          %p221 = pneg %p147
        $region30: #{resnet_block_down.1} parent=11 // pred_check_branch
          %223 = sbr.rel (%p221) target = $region32
        $region31: #{resnet_block_down.1} parent=11 // pred_region
          _
        $region32: #{resnet_block_down.1} parent=11 // pred_fallthru
          _
        // Predicated region
        $region33: #{resnet_block_down.1} parent=11 // pred_check
          %p224 = pneg %p168
        $region34: #{resnet_block_down.1} parent=11 // pred_check_branch
          %226 = sbr.rel (%p224) target = $region36
        $region35: #{resnet_block_down.1} parent=11 // pred_region
          _
        $region36: #{resnet_block_down.1} parent=11 // pred_fallthru
          _
      $region12: #{resnet_block_down.1} parent=5 // pred_fallthru
        _
      %p227 = scmp.lt.s32.totalorder %s16, 2
      // Predicated region
      $region37: #{resnet_block_down.1} parent=5 // pred_check
        %p228 = pneg %p227
      $region38: #{resnet_block_down.1} parent=5 // pred_check_branch
        %230 = sbr.rel (%p228) target = $region40
      $region39: #{resnet_block_down.1} parent=5 // pred_region
        // Predicated region
        $region41: #{resnet_block_down.1} parent=39 // pred_check
          %p231 = pneg %p36
        $region42: #{resnet_block_down.1} parent=39 // pred_check_branch
          %233 = sbr.rel (%p231) target = $region44
        $region43: #{resnet_block_down.1} parent=39 // pred_region
          %p234 = scmp.lt.s32.totalorder %s16, 1
          %s235 = scalar_select %p234, %s16, 1
          %s236 = smul.addr %s235, 32
          %s237 = smul.addr %s236, 8
          %s238 = scalar_lea.vmem %s0, %s237
        $region44: #{resnet_block_down.1} parent=39 // pred_fallthru
          _
      $region40: #{resnet_block_down.1} parent=5 // pred_fallthru
        _
      %p239 = scmp.le.s32.totalorder 1, %s16
      %p240 = scmp.lt.s32.totalorder %s16, 3
      %p241 = pnand %p239, %p240
      %p242 = pneg %p241
      // Predicated region
      $region45: #{resnet_block_down.1} parent=5 // pred_check
        _
      $region46: #{resnet_block_down.1} parent=5 // pred_check_branch
        %244 = sbr.rel (%p241) target = $region48
      $region47: #{resnet_block_down.1} parent=5 // pred_region
        %s245 = ssub.s32 %s16, 1
        %p246 = scmp.lt.s32.totalorder %s21, 1
        %s247 = scalar_select %p246, %s21, 1
        %s248 = smul.addr %s247, 32
        %s249 = smul.addr %s248, 8
        %s250 = scalar_lea.vmem %s0, %s249
        %p251 = pneg %p42
        %p252 = pneg %p39
        %p253 = pneg %p63
        %p254 = pneg %p60
        %p255 = pneg %p84
        %p256 = pneg %p81
        %p257 = pneg %p105
        %p258 = pneg %p102
        %p259 = pneg %p126
        %p260 = pneg %p123
        %p261 = pneg %p147
        %p262 = pneg %p144
        %p263 = pneg %p168
        %p264 = pneg %p165
        %p265 = pneg %p194
        %p266 = pneg %p191
        %s267 = sand.u32 %s181, 1
        %s268 = scalar_lea.sflag [#allocation7], %s267
        %s269 = sand.u32 %s181, 1
        %s270 = smul.addr %s269, 128
        %s271 = scalar_lea.vmem [#allocation6], %s270
        %p272 = scmp.lt.s32.totalorder %s21, 1
        %s273 = scalar_select %p272, %s21, 1
        %s274 = smul.addr %s273, 32
        %s275 = smul.addr %s274, 8
        %s276 = scalar_lea.vmem %s0, %s275
        %vm278 = vcmask 31744
        %279 = vst.msk [vmem:[#allocation2] sm:$0xff] %vm278, 0.0
        %280 = vst.msk [vmem:[#allocation2 + $0x8] sm:$0xff] %vm278, 0.0
        %vm281 = vcmask 25600
        %282 = vst.msk [vmem:[#allocation2 + $0x10] sm:$0x3] %vm281, 0.0
        %s283 = scalar_lea.vmem [#allocation2], 408
        %284 = vst.msk [vmem:[%s283] sm:$0xff] %vm278, 0.0
        %285 = vst.msk [vmem:[%s283 + $0x8] sm:$0xff] %vm278, 0.0
        %286 = vst.msk [vmem:[%s283 + $0x10] sm:$0x3] %vm281, 0.0
        %vm287 = vcmask 24576
        %288 = vst.msk [vmem:[#allocation2] sm:$0x1] %vm287, 0.0
        %289 = vst.msk [vmem:[#allocation2 + $0x18] sm:$0x1] %vm287, 0.0
        %290 = vst.msk [vmem:[#allocation2 + $0x30] sm:$0x1] %vm287, 0.0
        %291 = vst.msk [vmem:[#allocation2 + $0x48] sm:$0x1] %vm287, 0.0
        %292 = vst.msk [vmem:[#allocation2 + $0x60] sm:$0x1] %vm287, 0.0
        %293 = vst.msk [vmem:[#allocation2 + $0x78] sm:$0x1] %vm287, 0.0
        %294 = vst.msk [vmem:[#allocation2 + $0x90] sm:$0x1] %vm287, 0.0
        %295 = vst.msk [vmem:[#allocation2 + $0xa8] sm:$0x1] %vm287, 0.0
        %296 = vst.msk [vmem:[#allocation2 + $0xc0] sm:$0x1] %vm287, 0.0
        %297 = vst.msk [vmem:[#allocation2 + $0xd8] sm:$0x1] %vm287, 0.0
        %298 = vst.msk [vmem:[#allocation2 + $0xf0] sm:$0x1] %vm287, 0.0
        %299 = vst.msk [vmem:[#allocation2 + $0x108] sm:$0x1] %vm287, 0.0
        %300 = vst.msk [vmem:[#allocation2 + $0x120] sm:$0x1] %vm287, 0.0
        %301 = vst.msk [vmem:[#allocation2 + $0x138] sm:$0x1] %vm287, 0.0
        %302 = vst.msk [vmem:[#allocation2 + $0x150] sm:$0x1] %vm287, 0.0
        %303 = vst.msk [vmem:[#allocation2 + $0x168] sm:$0x1] %vm287, 0.0
        %304 = vst.msk [vmem:[#allocation2 + $0x180] sm:$0x1] %vm287, 0.0
        %305 = vst.msk [vmem:[#allocation2 + $0x198] sm:$0x1] %vm287, 0.0
        %306 = vst.msk [vmem:[#allocation2 + $0x11] sm:$0x1] %vm287, 0.0
        %307 = vst.msk [vmem:[#allocation2 + $0x29] sm:$0x1] %vm287, 0.0
        %308 = vst.msk [vmem:[#allocation2 + $0x41] sm:$0x1] %vm287, 0.0
        %309 = vst.msk [vmem:[#allocation2 + $0x59] sm:$0x1] %vm287, 0.0
        %310 = vst.msk [vmem:[#allocation2 + $0x71] sm:$0x1] %vm287, 0.0
        %311 = vst.msk [vmem:[#allocation2 + $0x89] sm:$0x1] %vm287, 0.0
        %312 = vst.msk [vmem:[#allocation2 + $0xa1] sm:$0x1] %vm287, 0.0
        %313 = vst.msk [vmem:[#allocation2 + $0xb9] sm:$0x1] %vm287, 0.0
        %314 = vst.msk [vmem:[#allocation2 + $0xd1] sm:$0x1] %vm287, 0.0
        %315 = vst.msk [vmem:[#allocation2 + $0xe9] sm:$0x1] %vm287, 0.0
        %316 = vst.msk [vmem:[#allocation2 + $0x101] sm:$0x1] %vm287, 0.0
        %317 = vst.msk [vmem:[#allocation2 + $0x119] sm:$0x1] %vm287, 0.0
        %318 = vst.msk [vmem:[#allocation2 + $0x131] sm:$0x1] %vm287, 0.0
        %319 = vst.msk [vmem:[#allocation2 + $0x149] sm:$0x1] %vm287, 0.0
        %320 = vst.msk [vmem:[#allocation2 + $0x161] sm:$0x1] %vm287, 0.0
        %321 = vst.msk [vmem:[#allocation2 + $0x179] sm:$0x1] %vm287, 0.0
        %322 = vst.msk [vmem:[#allocation2 + $0x191] sm:$0x1] %vm287, 0.0
        %323 = vst.msk [vmem:[#allocation2 + $0x1a9] sm:$0x1] %vm287, 0.0
        %v324 = vld [vmem:[%s276] sm:$0xff]
        %v325 = vld [vmem:[%s276 + $0x8] sm:$0xff]
        %v326 = vld [vmem:[%s276 + $0x10] sm:$0xff]
        %v327 = vld [vmem:[%s276 + $0x18] sm:$0xff]
        %v328 = vld [vmem:[%s276 + $0x20] sm:$0xff]
        %v329 = vld [vmem:[%s276 + $0x28] sm:$0xff]
        %v330 = vld [vmem:[%s276 + $0x30] sm:$0xff]
        %v331 = vld [vmem:[%s276 + $0x38] sm:$0xff]
        %v332 = vld [vmem:[%s276 + $0x40] sm:$0xff]
        %v333 = vld [vmem:[%s276 + $0x48] sm:$0xff]
        %v334 = vld [vmem:[%s276 + $0x50] sm:$0xff]
        %v335 = vld [vmem:[%s276 + $0x58] sm:$0xff]
        %v336 = vld [vmem:[%s276 + $0x60] sm:$0xff]
        %v337 = vld [vmem:[%s276 + $0x68] sm:$0xff]
        %v338 = vld [vmem:[%s276 + $0x70] sm:$0xff]
        %v339 = vld [vmem:[%s276 + $0x78] sm:$0xff]
        %v340 = vld [vmem:[%s276 + $0x80] sm:$0xff]
        %v341 = vld [vmem:[%s276 + $0x88] sm:$0xff]
        %v342 = vld [vmem:[%s276 + $0x90] sm:$0xff]
        %v343 = vld [vmem:[%s276 + $0x98] sm:$0xff]
        %v344 = vld [vmem:[%s276 + $0xa0] sm:$0xff]
        %v345 = vld [vmem:[%s276 + $0xa8] sm:$0xff]
        %v346 = vld [vmem:[%s276 + $0xb0] sm:$0xff]
        %v347 = vld [vmem:[%s276 + $0xb8] sm:$0xff]
        %v348 = vld [vmem:[%s276 + $0xc0] sm:$0xff]
        %v349 = vld [vmem:[%s276 + $0xc8] sm:$0xff]
        %v350 = vld [vmem:[%s276 + $0xd0] sm:$0xff]
        %v351 = vld [vmem:[%s276 + $0xd8] sm:$0xff]
        %v352 = vld [vmem:[%s276 + $0xe0] sm:$0xff]
        %v353 = vld [vmem:[%s276 + $0xe8] sm:$0xff]
        %v354 = vld [vmem:[%s276 + $0xf0] sm:$0xff]
        %v355 = vld [vmem:[%s276 + $0xf8] sm:$0xff]
        %v356 = vmax.f32 %v324, 0.0
        %v357 = vmax.f32 %v325, 0.0
        %v358 = vmax.f32 %v326, 0.0
        %v359 = vmax.f32 %v327, 0.0
        %v360 = vmax.f32 %v328, 0.0
        %v361 = vmax.f32 %v329, 0.0
        %v362 = vmax.f32 %v330, 0.0
        %v363 = vmax.f32 %v331, 0.0
        %v364 = vmax.f32 %v332, 0.0
        %v365 = vmax.f32 %v333, 0.0
        %v366 = vmax.f32 %v334, 0.0
        %v367 = vmax.f32 %v335, 0.0
        %v368 = vmax.f32 %v336, 0.0
        %v369 = vmax.f32 %v337, 0.0
        %v370 = vmax.f32 %v338, 0.0
        %v371 = vmax.f32 %v339, 0.0
        %v372 = vmax.f32 %v340, 0.0
        %v373 = vmax.f32 %v341, 0.0
        %v374 = vmax.f32 %v342, 0.0
        %v375 = vmax.f32 %v343, 0.0
        %v376 = vmax.f32 %v344, 0.0
        %v377 = vmax.f32 %v345, 0.0
        %v378 = vmax.f32 %v346, 0.0
        %v379 = vmax.f32 %v347, 0.0
        %v380 = vmax.f32 %v348, 0.0
        %v381 = vmax.f32 %v349, 0.0
        %v382 = vmax.f32 %v350, 0.0
        %v383 = vmax.f32 %v351, 0.0
        %v384 = vmax.f32 %v352, 0.0
        %v385 = vmax.f32 %v353, 0.0
        %v386 = vmax.f32 %v354, 0.0
        %v387 = vmax.f32 %v355, 0.0
        %s388 = scalar_lea.vmem [#allocation2], 24
        %389 = vst.msk [vmem:[%s388 + $0x1] sm:$0xff] %vm278, %v356
        %390 = vst.msk [vmem:[%s388 + $0x9] sm:$0xff] %vm278, %v357
        %391 = vst.msk [vmem:[%s388 + $0x19] sm:$0xff] %vm278, %v358
        %392 = vst.msk [vmem:[%s388 + $0x21] sm:$0xff] %vm278, %v359
        %393 = vst.msk [vmem:[%s388 + $0x31] sm:$0xff] %vm278, %v360
        %394 = vst.msk [vmem:[%s388 + $0x39] sm:$0xff] %vm278, %v361
        %395 = vst.msk [vmem:[%s388 + $0x49] sm:$0xff] %vm278, %v362
        %396 = vst.msk [vmem:[%s388 + $0x51] sm:$0xff] %vm278, %v363
        %397 = vst.msk [vmem:[%s388 + $0x61] sm:$0xff] %vm278, %v364
        %398 = vst.msk [vmem:[%s388 + $0x69] sm:$0xff] %vm278, %v365
        %399 = vst.msk [vmem:[%s388 + $0x79] sm:$0xff] %vm278, %v366
        %400 = vst.msk [vmem:[%s388 + $0x81] sm:$0xff] %vm278, %v367
        %401 = vst.msk [vmem:[%s388 + $0x91] sm:$0xff] %vm278, %v368
        %402 = vst.msk [vmem:[%s388 + $0x99] sm:$0xff] %vm278, %v369
        %403 = vst.msk [vmem:[%s388 + $0xa9] sm:$0xff] %vm278, %v370
        %404 = vst.msk [vmem:[%s388 + $0xb1] sm:$0xff] %vm278, %v371
        %405 = vst.msk [vmem:[%s388 + $0xc1] sm:$0xff] %vm278, %v372
        %406 = vst.msk [vmem:[%s388 + $0xc9] sm:$0xff] %vm278, %v373
        %407 = vst.msk [vmem:[%s388 + $0xd9] sm:$0xff] %vm278, %v374
        %408 = vst.msk [vmem:[%s388 + $0xe1] sm:$0xff] %vm278, %v375
        %409 = vst.msk [vmem:[%s388 + $0xf1] sm:$0xff] %vm278, %v376
        %410 = vst.msk [vmem:[%s388 + $0xf9] sm:$0xff] %vm278, %v377
        %411 = vst.msk [vmem:[%s388 + $0x109] sm:$0xff] %vm278, %v378
        %412 = vst.msk [vmem:[%s388 + $0x111] sm:$0xff] %vm278, %v379
        %413 = vst.msk [vmem:[%s388 + $0x121] sm:$0xff] %vm278, %v380
        %414 = vst.msk [vmem:[%s388 + $0x129] sm:$0xff] %vm278, %v381
        %415 = vst.msk [vmem:[%s388 + $0x139] sm:$0xff] %vm278, %v382
        %416 = vst.msk [vmem:[%s388 + $0x141] sm:$0xff] %vm278, %v383
        %417 = vst.msk [vmem:[%s388 + $0x151] sm:$0xff] %vm278, %v384
        %418 = vst.msk [vmem:[%s388 + $0x159] sm:$0xff] %vm278, %v385
        %419 = vst.msk [vmem:[%s388 + $0x169] sm:$0xff] %vm278, %v386
        %420 = vst.msk [vmem:[%s388 + $0x171] sm:$0xff] %vm278, %v387
        %v421 = vld [vmem:[#allocation2] sm:$0xff]
        %v422 = vld [vmem:[#allocation2 + $0x8] sm:$0xff]
        %v423 = vld [vmem:[#allocation2 + $0x18] sm:$0xff]
        %v424 = vld [vmem:[#allocation2 + $0x20] sm:$0xff]
        %v425 = vld [vmem:[#allocation2 + $0x30] sm:$0xff]
        %v426 = vld [vmem:[#allocation2 + $0x38] sm:$0xff]
        %v427 = vld [vmem:[#allocation2 + $0x48] sm:$0xff]
        %v428 = vld [vmem:[#allocation2 + $0x50] sm:$0xff]
        %v429 = vld [vmem:[#allocation2 + $0x60] sm:$0xff]
        %v430 = vld [vmem:[#allocation2 + $0x68] sm:$0xff]
        %v431 = vld [vmem:[#allocation2 + $0x78] sm:$0xff]
        %v432 = vld [vmem:[#allocation2 + $0x80] sm:$0xff]
        %v433 = vld [vmem:[#allocation2 + $0x90] sm:$0xff]
        %v434 = vld [vmem:[#allocation2 + $0x98] sm:$0xff]
        %v435 = vld [vmem:[#allocation2 + $0xa8] sm:$0xff]
        %v436 = vld [vmem:[#allocation2 + $0xb0] sm:$0xff]
        %v437 = vld [vmem:[#allocation2 + $0xc0] sm:$0xff]
        %v438 = vld [vmem:[#allocation2 + $0xc8] sm:$0xff]
        %v439 = vld [vmem:[#allocation2 + $0xd8] sm:$0xff]
        %v440 = vld [vmem:[#allocation2 + $0xe0] sm:$0xff]
        %v441 = vld [vmem:[#allocation2 + $0xf0] sm:$0xff]
        %v442 = vld [vmem:[#allocation2 + $0xf8] sm:$0xff]
        %v443 = vld [vmem:[#allocation2 + $0x108] sm:$0xff]
        %v444 = vld [vmem:[#allocation2 + $0x110] sm:$0xff]
        %v445 = vld [vmem:[#allocation2 + $0x120] sm:$0xff]
        %v446 = vld [vmem:[#allocation2 + $0x128] sm:$0xff]
        %v447 = vld [vmem:[#allocation2 + $0x138] sm:$0xff]
        %v448 = vld [vmem:[#allocation2 + $0x140] sm:$0xff]
        %v449 = vld [vmem:[#allocation2 + $0x150] sm:$0xff]
        %v450 = vld [vmem:[#allocation2 + $0x158] sm:$0xff]
        %v451 = vld [vmem:[#allocation2 + $0x168] sm:$0xff]
        %v452 = vld [vmem:[#allocation2 + $0x170] sm:$0xff]
        %v453 = vpack.c.bf16 %v421, %v421
        %v454 = vpack.c.bf16 %v422, %v422
        %v455 = vpack.c.bf16 %v423, %v423
        %v456 = vpack.c.bf16 %v424, %v424
        %v457 = vpack.c.bf16 %v425, %v425
        %v458 = vpack.c.bf16 %v426, %v426
        %v459 = vpack.c.bf16 %v427, %v427
        %v460 = vpack.c.bf16 %v428, %v428
        %v461 = vpack.c.bf16 %v429, %v429
        %v462 = vpack.c.bf16 %v430, %v430
        %v463 = vpack.c.bf16 %v431, %v431
        %v464 = vpack.c.bf16 %v432, %v432
        %v465 = vpack.c.bf16 %v433, %v433
        %v466 = vpack.c.bf16 %v434, %v434
        %v467 = vpack.c.bf16 %v435, %v435
        %v468 = vpack.c.bf16 %v436, %v436
        %v469 = vpack.c.bf16 %v437, %v437
        %v470 = vpack.c.bf16 %v438, %v438
        %v471 = vpack.c.bf16 %v439, %v439
        %v472 = vpack.c.bf16 %v440, %v440
        %v473 = vpack.c.bf16 %v441, %v441
        %v474 = vpack.c.bf16 %v442, %v442
        %v475 = vpack.c.bf16 %v443, %v443
        %v476 = vpack.c.bf16 %v444, %v444
        %v477 = vpack.c.bf16 %v445, %v445
        %v478 = vpack.c.bf16 %v446, %v446
        %v479 = vpack.c.bf16 %v447, %v447
        %v480 = vpack.c.bf16 %v448, %v448
        %v481 = vpack.c.bf16 %v449, %v449
        %v482 = vpack.c.bf16 %v450, %v450
        %v483 = vpack.c.bf16 %v451, %v451
        %v484 = vpack.c.bf16 %v452, %v452
        %vm485 = vcmask 27648
        %486 = vst.msk [vmem:[#allocation3] sm:$0xf] %vm485, %v453
        %487 = vst.msk [vmem:[#allocation3 + $0x4] sm:$0xf] %vm485, %v454
        %488 = vst.msk [vmem:[#allocation3 + $0x8] sm:$0xf] %vm485, %v455
        %489 = vst.msk [vmem:[#allocation3 + $0xc] sm:$0xf] %vm485, %v456
        %490 = vst.msk [vmem:[#allocation3 + $0x10] sm:$0xf] %vm485, %v457
        %491 = vst.msk [vmem:[#allocation3 + $0x14] sm:$0xf] %vm485, %v458
        %492 = vst.msk [vmem:[#allocation3 + $0x18] sm:$0xf] %vm485, %v459
        %493 = vst.msk [vmem:[#allocation3 + $0x1c] sm:$0xf] %vm485, %v460
        %494 = vst.msk [vmem:[#allocation3 + $0x20] sm:$0xf] %vm485, %v461
        %495 = vst.msk [vmem:[#allocation3 + $0x24] sm:$0xf] %vm485, %v462
        %496 = vst.msk [vmem:[#allocation3 + $0x28] sm:$0xf] %vm485, %v463
        %497 = vst.msk [vmem:[#allocation3 + $0x2c] sm:$0xf] %vm485, %v464
        %498 = vst.msk [vmem:[#allocation3 + $0x30] sm:$0xf] %vm485, %v465
        %499 = vst.msk [vmem:[#allocation3 + $0x34] sm:$0xf] %vm485, %v466
        %500 = vst.msk [vmem:[#allocation3 + $0x38] sm:$0xf] %vm485, %v467
        %501 = vst.msk [vmem:[#allocation3 + $0x3c] sm:$0xf] %vm485, %v468
        %502 = vst.msk [vmem:[#allocation3 + $0x40] sm:$0xf] %vm485, %v469
        %503 = vst.msk [vmem:[#allocation3 + $0x44] sm:$0xf] %vm485, %v470
        %504 = vst.msk [vmem:[#allocation3 + $0x48] sm:$0xf] %vm485, %v471
        %505 = vst.msk [vmem:[#allocation3 + $0x4c] sm:$0xf] %vm485, %v472
        %506 = vst.msk [vmem:[#allocation3 + $0x50] sm:$0xf] %vm485, %v473
        %507 = vst.msk [vmem:[#allocation3 + $0x54] sm:$0xf] %vm485, %v474
        %508 = vst.msk [vmem:[#allocation3 + $0x58] sm:$0xf] %vm485, %v475
        %509 = vst.msk [vmem:[#allocation3 + $0x5c] sm:$0xf] %vm485, %v476
        %510 = vst.msk [vmem:[#allocation3 + $0x60] sm:$0xf] %vm485, %v477
        %511 = vst.msk [vmem:[#allocation3 + $0x64] sm:$0xf] %vm485, %v478
        %512 = vst.msk [vmem:[#allocation3 + $0x68] sm:$0xf] %vm485, %v479
        %513 = vst.msk [vmem:[#allocation3 + $0x6c] sm:$0xf] %vm485, %v480
        %514 = vst.msk [vmem:[#allocation3 + $0x70] sm:$0xf] %vm485, %v481
        %515 = vst.msk [vmem:[#allocation3 + $0x74] sm:$0xf] %vm485, %v482
        %516 = vst.msk [vmem:[#allocation3 + $0x78] sm:$0xf] %vm485, %v483
        %517 = vst.msk [vmem:[#allocation3 + $0x7c] sm:$0xf] %vm485, %v484
        %v518 = vld [vmem:[#allocation2 + $0x1] sm:$0xff]
        %v519 = vld [vmem:[#allocation2 + $0x9] sm:$0xff]
        %v520 = vld [vmem:[#allocation2 + $0x19] sm:$0xff]
        %v521 = vld [vmem:[#allocation2 + $0x21] sm:$0xff]
        %v522 = vld [vmem:[#allocation2 + $0x31] sm:$0xff]
        %v523 = vld [vmem:[#allocation2 + $0x39] sm:$0xff]
        %v524 = vld [vmem:[#allocation2 + $0x49] sm:$0xff]
        %v525 = vld [vmem:[#allocation2 + $0x51] sm:$0xff]
        %v526 = vld [vmem:[#allocation2 + $0x61] sm:$0xff]
        %v527 = vld [vmem:[#allocation2 + $0x69] sm:$0xff]
        %v528 = vld [vmem:[#allocation2 + $0x79] sm:$0xff]
        %v529 = vld [vmem:[#allocation2 + $0x81] sm:$0xff]
        %v530 = vld [vmem:[#allocation2 + $0x91] sm:$0xff]
        %v531 = vld [vmem:[#allocation2 + $0x99] sm:$0xff]
        %v532 = vld [vmem:[#allocation2 + $0xa9] sm:$0xff]
        %v533 = vld [vmem:[#allocation2 + $0xb1] sm:$0xff]
        %v534 = vld [vmem:[#allocation2 + $0xc1] sm:$0xff]
        %v535 = vld [vmem:[#allocation2 + $0xc9] sm:$0xff]
        %v536 = vld [vmem:[#allocation2 + $0xd9] sm:$0xff]
        %v537 = vld [vmem:[#allocation2 + $0xe1] sm:$0xff]
        %v538 = vld [vmem:[#allocation2 + $0xf1] sm:$0xff]
        %v539 = vld [vmem:[#allocation2 + $0xf9] sm:$0xff]
        %v540 = vld [vmem:[#allocation2 + $0x109] sm:$0xff]
        %v541 = vld [vmem:[#allocation2 + $0x111] sm:$0xff]
        %v542 = vld [vmem:[#allocation2 + $0x121] sm:$0xff]
        %v543 = vld [vmem:[#allocation2 + $0x129] sm:$0xff]
        %v544 = vld [vmem:[#allocation2 + $0x139] sm:$0xff]
        %v545 = vld [vmem:[#allocation2 + $0x141] sm:$0xff]
        %v546 = vld [vmem:[#allocation2 + $0x151] sm:$0xff]
        %v547 = vld [vmem:[#allocation2 + $0x159] sm:$0xff]
        %v548 = vld [vmem:[#allocation2 + $0x169] sm:$0xff]
        %v549 = vld [vmem:[#allocation2 + $0x171] sm:$0xff]
        %v550 = vpack.c.bf16 %v518, %v518
        %v551 = vpack.c.bf16 %v519, %v519
        %v552 = vpack.c.bf16 %v520, %v520
        %v553 = vpack.c.bf16 %v521, %v521
        %v554 = vpack.c.bf16 %v522, %v522
        %v555 = vpack.c.bf16 %v523, %v523
        %v556 = vpack.c.bf16 %v524, %v524
        %v557 = vpack.c.bf16 %v525, %v525
        %v558 = vpack.c.bf16 %v526, %v526
        %v559 = vpack.c.bf16 %v527, %v527
        %v560 = vpack.c.bf16 %v528, %v528
        %v561 = vpack.c.bf16 %v529, %v529
        %v562 = vpack.c.bf16 %v530, %v530
        %v563 = vpack.c.bf16 %v531, %v531
        %v564 = vpack.c.bf16 %v532, %v532
        %v565 = vpack.c.bf16 %v533, %v533
        %v566 = vpack.c.bf16 %v534, %v534
        %v567 = vpack.c.bf16 %v535, %v535
        %v568 = vpack.c.bf16 %v536, %v536
        %v569 = vpack.c.bf16 %v537, %v537
        %v570 = vpack.c.bf16 %v538, %v538
        %v571 = vpack.c.bf16 %v539, %v539
        %v572 = vpack.c.bf16 %v540, %v540
        %v573 = vpack.c.bf16 %v541, %v541
        %v574 = vpack.c.bf16 %v542, %v542
        %v575 = vpack.c.bf16 %v543, %v543
        %v576 = vpack.c.bf16 %v544, %v544
        %v577 = vpack.c.bf16 %v545, %v545
        %v578 = vpack.c.bf16 %v546, %v546
        %v579 = vpack.c.bf16 %v547, %v547
        %v580 = vpack.c.bf16 %v548, %v548
        %v581 = vpack.c.bf16 %v549, %v549
        %614 = vrot.lane.b32.xlu0 %v550, 4
        %v615 = vpop.permute.xlu0 %614
        %616 = vrot.lane.b32.xlu0 %v551, 4
        %v617 = vpop.permute.xlu0 %616
        %618 = vrot.lane.b32.xlu0 %v552, 4
        %v619 = vpop.permute.xlu0 %618
        %620 = vrot.lane.b32.xlu0 %v553, 4
        %v621 = vpop.permute.xlu0 %620
        %622 = vrot.lane.b32.xlu0 %v554, 4
        %v623 = vpop.permute.xlu0 %622
        %624 = vrot.lane.b32.xlu0 %v555, 4
        %v625 = vpop.permute.xlu0 %624
        %626 = vrot.lane.b32.xlu0 %v556, 4
        %v627 = vpop.permute.xlu0 %626
        %628 = vrot.lane.b32.xlu0 %v557, 4
        %v629 = vpop.permute.xlu0 %628
        %630 = vrot.lane.b32.xlu0 %v558, 4
        %v631 = vpop.permute.xlu0 %630
        %632 = vrot.lane.b32.xlu0 %v559, 4
        %v633 = vpop.permute.xlu0 %632
        %634 = vrot.lane.b32.xlu0 %v560, 4
        %v635 = vpop.permute.xlu0 %634
        %636 = vrot.lane.b32.xlu0 %v561, 4
        %v637 = vpop.permute.xlu0 %636
        %638 = vrot.lane.b32.xlu0 %v562, 4
        %v639 = vpop.permute.xlu0 %638
        %640 = vrot.lane.b32.xlu0 %v563, 4
        %v641 = vpop.permute.xlu0 %640
        %642 = vrot.lane.b32.xlu0 %v564, 4
        %v643 = vpop.permute.xlu0 %642
        %644 = vrot.lane.b32.xlu0 %v565, 4
        %v645 = vpop.permute.xlu0 %644
        %646 = vrot.lane.b32.xlu0 %v566, 4
        %v647 = vpop.permute.xlu0 %646
        %648 = vrot.lane.b32.xlu0 %v567, 4
        %v649 = vpop.permute.xlu0 %648
        %650 = vrot.lane.b32.xlu0 %v568, 4
        %v651 = vpop.permute.xlu0 %650
        %652 = vrot.lane.b32.xlu0 %v569, 4
        %v653 = vpop.permute.xlu0 %652
        %654 = vrot.lane.b32.xlu0 %v570, 4
        %v655 = vpop.permute.xlu0 %654
        %656 = vrot.lane.b32.xlu0 %v571, 4
        %v657 = vpop.permute.xlu0 %656
        %658 = vrot.lane.b32.xlu0 %v572, 4
        %v659 = vpop.permute.xlu0 %658
        %660 = vrot.lane.b32.xlu0 %v573, 4
        %v661 = vpop.permute.xlu0 %660
        %662 = vrot.lane.b32.xlu0 %v574, 4
        %v663 = vpop.permute.xlu0 %662
        %664 = vrot.lane.b32.xlu0 %v575, 4
        %v665 = vpop.permute.xlu0 %664
        %666 = vrot.lane.b32.xlu0 %v576, 4
        %v667 = vpop.permute.xlu0 %666
        %668 = vrot.lane.b32.xlu0 %v577, 4
        %v669 = vpop.permute.xlu0 %668
        %670 = vrot.lane.b32.xlu0 %v578, 4
        %v671 = vpop.permute.xlu0 %670
        %672 = vrot.lane.b32.xlu0 %v579, 4
        %v673 = vpop.permute.xlu0 %672
        %674 = vrot.lane.b32.xlu0 %v580, 4
        %v675 = vpop.permute.xlu0 %674
        %676 = vrot.lane.b32.xlu0 %v581, 4
        %v677 = vpop.permute.xlu0 %676
        %vm710 = vcmask 60448
        %711 = vst.msk [vmem:[#allocation3] sm:$0xf] %vm710, %v615
        %712 = vst.msk [vmem:[#allocation3 + $0x4] sm:$0xf] %vm710, %v617
        %713 = vst.msk [vmem:[#allocation3 + $0x8] sm:$0xf] %vm710, %v619
        %714 = vst.msk [vmem:[#allocation3 + $0xc] sm:$0xf] %vm710, %v621
        %715 = vst.msk [vmem:[#allocation3 + $0x10] sm:$0xf] %vm710, %v623
        %716 = vst.msk [vmem:[#allocation3 + $0x14] sm:$0xf] %vm710, %v625
        %717 = vst.msk [vmem:[#allocation3 + $0x18] sm:$0xf] %vm710, %v627
        %718 = vst.msk [vmem:[#allocation3 + $0x1c] sm:$0xf] %vm710, %v629
        %719 = vst.msk [vmem:[#allocation3 + $0x20] sm:$0xf] %vm710, %v631
        %720 = vst.msk [vmem:[#allocation3 + $0x24] sm:$0xf] %vm710, %v633
        %721 = vst.msk [vmem:[#allocation3 + $0x28] sm:$0xf] %vm710, %v635
        %722 = vst.msk [vmem:[#allocation3 + $0x2c] sm:$0xf] %vm710, %v637
        %723 = vst.msk [vmem:[#allocation3 + $0x30] sm:$0xf] %vm710, %v639
        %724 = vst.msk [vmem:[#allocation3 + $0x34] sm:$0xf] %vm710, %v641
        %725 = vst.msk [vmem:[#allocation3 + $0x38] sm:$0xf] %vm710, %v643
        %726 = vst.msk [vmem:[#allocation3 + $0x3c] sm:$0xf] %vm710, %v645
        %727 = vst.msk [vmem:[#allocation3 + $0x40] sm:$0xf] %vm710, %v647
        %728 = vst.msk [vmem:[#allocation3 + $0x44] sm:$0xf] %vm710, %v649
        %729 = vst.msk [vmem:[#allocation3 + $0x48] sm:$0xf] %vm710, %v651
        %730 = vst.msk [vmem:[#allocation3 + $0x4c] sm:$0xf] %vm710, %v653
        %731 = vst.msk [vmem:[#allocation3 + $0x50] sm:$0xf] %vm710, %v655
        %732 = vst.msk [vmem:[#allocation3 + $0x54] sm:$0xf] %vm710, %v657
        %733 = vst.msk [vmem:[#allocation3 + $0x58] sm:$0xf] %vm710, %v659
        %734 = vst.msk [vmem:[#allocation3 + $0x5c] sm:$0xf] %vm710, %v661
        %735 = vst.msk [vmem:[#allocation3 + $0x60] sm:$0xf] %vm710, %v663
        %736 = vst.msk [vmem:[#allocation3 + $0x64] sm:$0xf] %vm710, %v665
        %737 = vst.msk [vmem:[#allocation3 + $0x68] sm:$0xf] %vm710, %v667
        %738 = vst.msk [vmem:[#allocation3 + $0x6c] sm:$0xf] %vm710, %v669
        %739 = vst.msk [vmem:[#allocation3 + $0x70] sm:$0xf] %vm710, %v671
        %740 = vst.msk [vmem:[#allocation3 + $0x74] sm:$0xf] %vm710, %v673
        %741 = vst.msk [vmem:[#allocation3 + $0x78] sm:$0xf] %vm710, %v675
        %742 = vst.msk [vmem:[#allocation3 + $0x7c] sm:$0xf] %vm710, %v677
        %v743 = vld [vmem:[#allocation2 + $0x2] sm:$0xff]
        %v744 = vld [vmem:[#allocation2 + $0xa] sm:$0xff]
        %v745 = vld [vmem:[#allocation2 + $0x1a] sm:$0xff]
        %v746 = vld [vmem:[#allocation2 + $0x22] sm:$0xff]
        %v747 = vld [vmem:[#allocation2 + $0x32] sm:$0xff]
        %v748 = vld [vmem:[#allocation2 + $0x3a] sm:$0xff]
        %v749 = vld [vmem:[#allocation2 + $0x4a] sm:$0xff]
        %v750 = vld [vmem:[#allocation2 + $0x52] sm:$0xff]
        %v751 = vld [vmem:[#allocation2 + $0x62] sm:$0xff]
        %v752 = vld [vmem:[#allocation2 + $0x6a] sm:$0xff]
        %v753 = vld [vmem:[#allocation2 + $0x7a] sm:$0xff]
        %v754 = vld [vmem:[#allocation2 + $0x82] sm:$0xff]
        %v755 = vld [vmem:[#allocation2 + $0x92] sm:$0xff]
        %v756 = vld [vmem:[#allocation2 + $0x9a] sm:$0xff]
        %v757 = vld [vmem:[#allocation2 + $0xaa] sm:$0xff]
        %v758 = vld [vmem:[#allocation2 + $0xb2] sm:$0xff]
        %v759 = vld [vmem:[#allocation2 + $0xc2] sm:$0xff]
        %v760 = vld [vmem:[#allocation2 + $0xca] sm:$0xff]
        %v761 = vld [vmem:[#allocation2 + $0xda] sm:$0xff]
        %v762 = vld [vmem:[#allocation2 + $0xe2] sm:$0xff]
        %v763 = vld [vmem:[#allocation2 + $0xf2] sm:$0xff]
        %v764 = vld [vmem:[#allocation2 + $0xfa] sm:$0xff]
        %v765 = vld [vmem:[#allocation2 + $0x10a] sm:$0xff]
        %v766 = vld [vmem:[#allocation2 + $0x112] sm:$0xff]
        %v767 = vld [vmem:[#allocation2 + $0x122] sm:$0xff]
        %v768 = vld [vmem:[#allocation2 + $0x12a] sm:$0xff]
        %v769 = vld [vmem:[#allocation2 + $0x13a] sm:$0xff]
        %v770 = vld [vmem:[#allocation2 + $0x142] sm:$0xff]
        %v771 = vld [vmem:[#allocation2 + $0x152] sm:$0xff]
        %v772 = vld [vmem:[#allocation2 + $0x15a] sm:$0xff]
        %v773 = vld [vmem:[#allocation2 + $0x16a] sm:$0xff]
        %v774 = vld [vmem:[#allocation2 + $0x172] sm:$0xff]
        %v775 = vpack.c.bf16 %v743, %v743
        %v776 = vpack.c.bf16 %v744, %v744
        %v777 = vpack.c.bf16 %v745, %v745
        %v778 = vpack.c.bf16 %v746, %v746
        %v779 = vpack.c.bf16 %v747, %v747
        %v780 = vpack.c.bf16 %v748, %v748
        %v781 = vpack.c.bf16 %v749, %v749
        %v782 = vpack.c.bf16 %v750, %v750
        %v783 = vpack.c.bf16 %v751, %v751
        %v784 = vpack.c.bf16 %v752, %v752
        %v785 = vpack.c.bf16 %v753, %v753
        %v786 = vpack.c.bf16 %v754, %v754
        %v787 = vpack.c.bf16 %v755, %v755
        %v788 = vpack.c.bf16 %v756, %v756
        %v789 = vpack.c.bf16 %v757, %v757
        %v790 = vpack.c.bf16 %v758, %v758
        %v791 = vpack.c.bf16 %v759, %v759
        %v792 = vpack.c.bf16 %v760, %v760
        %v793 = vpack.c.bf16 %v761, %v761
        %v794 = vpack.c.bf16 %v762, %v762
        %v795 = vpack.c.bf16 %v763, %v763
        %v796 = vpack.c.bf16 %v764, %v764
        %v797 = vpack.c.bf16 %v765, %v765
        %v798 = vpack.c.bf16 %v766, %v766
        %v799 = vpack.c.bf16 %v767, %v767
        %v800 = vpack.c.bf16 %v768, %v768
        %v801 = vpack.c.bf16 %v769, %v769
        %v802 = vpack.c.bf16 %v770, %v770
        %v803 = vpack.c.bf16 %v771, %v771
        %v804 = vpack.c.bf16 %v772, %v772
        %v805 = vpack.c.bf16 %v773, %v773
        %v806 = vpack.c.bf16 %v774, %v774
        %839 = vrot.lane.b32.xlu0 %v775, 8
        %v840 = vpop.permute.xlu0 %839
        %841 = vrot.lane.b32.xlu0 %v776, 8
        %v842 = vpop.permute.xlu0 %841
        %843 = vrot.lane.b32.xlu0 %v777, 8
        %v844 = vpop.permute.xlu0 %843
        %845 = vrot.lane.b32.xlu0 %v778, 8
        %v846 = vpop.permute.xlu0 %845
        %847 = vrot.lane.b32.xlu0 %v779, 8
        %v848 = vpop.permute.xlu0 %847
        %849 = vrot.lane.b32.xlu0 %v780, 8
        %v850 = vpop.permute.xlu0 %849
        %851 = vrot.lane.b32.xlu0 %v781, 8
        %v852 = vpop.permute.xlu0 %851
        %853 = vrot.lane.b32.xlu0 %v782, 8
        %v854 = vpop.permute.xlu0 %853
        %855 = vrot.lane.b32.xlu0 %v783, 8
        %v856 = vpop.permute.xlu0 %855
        %857 = vrot.lane.b32.xlu0 %v784, 8
        %v858 = vpop.permute.xlu0 %857
        %859 = vrot.lane.b32.xlu0 %v785, 8
        %v860 = vpop.permute.xlu0 %859
        %861 = vrot.lane.b32.xlu0 %v786, 8
        %v862 = vpop.permute.xlu0 %861
        %863 = vrot.lane.b32.xlu0 %v787, 8
        %v864 = vpop.permute.xlu0 %863
        %865 = vrot.lane.b32.xlu0 %v788, 8
        %v866 = vpop.permute.xlu0 %865
        %867 = vrot.lane.b32.xlu0 %v789, 8
        %v868 = vpop.permute.xlu0 %867
        %869 = vrot.lane.b32.xlu0 %v790, 8
        %v870 = vpop.permute.xlu0 %869
        %871 = vrot.lane.b32.xlu0 %v791, 8
        %v872 = vpop.permute.xlu0 %871
        %873 = vrot.lane.b32.xlu0 %v792, 8
        %v874 = vpop.permute.xlu0 %873
        %875 = vrot.lane.b32.xlu0 %v793, 8
        %v876 = vpop.permute.xlu0 %875
        %877 = vrot.lane.b32.xlu0 %v794, 8
        %v878 = vpop.permute.xlu0 %877
        %879 = vrot.lane.b32.xlu0 %v795, 8
        %v880 = vpop.permute.xlu0 %879
        %881 = vrot.lane.b32.xlu0 %v796, 8
        %v882 = vpop.permute.xlu0 %881
        %883 = vrot.lane.b32.xlu0 %v797, 8
        %v884 = vpop.permute.xlu0 %883
        %885 = vrot.lane.b32.xlu0 %v798, 8
        %v886 = vpop.permute.xlu0 %885
        %887 = vrot.lane.b32.xlu0 %v799, 8
        %v888 = vpop.permute.xlu0 %887
        %889 = vrot.lane.b32.xlu0 %v800, 8
        %v890 = vpop.permute.xlu0 %889
        %891 = vrot.lane.b32.xlu0 %v801, 8
        %v892 = vpop.permute.xlu0 %891
        %893 = vrot.lane.b32.xlu0 %v802, 8
        %v894 = vpop.permute.xlu0 %893
        %895 = vrot.lane.b32.xlu0 %v803, 8
        %v896 = vpop.permute.xlu0 %895
        %897 = vrot.lane.b32.xlu0 %v804, 8
        %v898 = vpop.permute.xlu0 %897
        %899 = vrot.lane.b32.xlu0 %v805, 8
        %v900 = vpop.permute.xlu0 %899
        %901 = vrot.lane.b32.xlu0 %v806, 8
        %v902 = vpop.permute.xlu0 %901
        %vm935 = vcmask 93248
        %936 = vst.msk [vmem:[#allocation3] sm:$0xf] %vm935, %v840
        %937 = vst.msk [vmem:[#allocation3 + $0x4] sm:$0xf] %vm935, %v842
        %938 = vst.msk [vmem:[#allocation3 + $0x8] sm:$0xf] %vm935, %v844
        %939 = vst.msk [vmem:[#allocation3 + $0xc] sm:$0xf] %vm935, %v846
        %940 = vst.msk [vmem:[#allocation3 + $0x10] sm:$0xf] %vm935, %v848
        %941 = vst.msk [vmem:[#allocation3 + $0x14] sm:$0xf] %vm935, %v850
        %942 = vst.msk [vmem:[#allocation3 + $0x18] sm:$0xf] %vm935, %v852
        %943 = vst.msk [vmem:[#allocation3 + $0x1c] sm:$0xf] %vm935, %v854
        %944 = vst.msk [vmem:[#allocation3 + $0x20] sm:$0xf] %vm935, %v856
        %945 = vst.msk [vmem:[#allocation3 + $0x24] sm:$0xf] %vm935, %v858
        %946 = vst.msk [vmem:[#allocation3 + $0x28] sm:$0xf] %vm935, %v860
        %947 = vst.msk [vmem:[#allocation3 + $0x2c] sm:$0xf] %vm935, %v862
        %948 = vst.msk [vmem:[#allocation3 + $0x30] sm:$0xf] %vm935, %v864
        %949 = vst.msk [vmem:[#allocation3 + $0x34] sm:$0xf] %vm935, %v866
        %950 = vst.msk [vmem:[#allocation3 + $0x38] sm:$0xf] %vm935, %v868
        %951 = vst.msk [vmem:[#allocation3 + $0x3c] sm:$0xf] %vm935, %v870
        %952 = vst.msk [vmem:[#allocation3 + $0x40] sm:$0xf] %vm935, %v872
        %953 = vst.msk [vmem:[#allocation3 + $0x44] sm:$0xf] %vm935, %v874
        %954 = vst.msk [vmem:[#allocation3 + $0x48] sm:$0xf] %vm935, %v876
        %955 = vst.msk [vmem:[#allocation3 + $0x4c] sm:$0xf] %vm935, %v878
        %956 = vst.msk [vmem:[#allocation3 + $0x50] sm:$0xf] %vm935, %v880
        %957 = vst.msk [vmem:[#allocation3 + $0x54] sm:$0xf] %vm935, %v882
        %958 = vst.msk [vmem:[#allocation3 + $0x58] sm:$0xf] %vm935, %v884
        %959 = vst.msk [vmem:[#allocation3 + $0x5c] sm:$0xf] %vm935, %v886
        %960 = vst.msk [vmem:[#allocation3 + $0x60] sm:$0xf] %vm935, %v888
        %961 = vst.msk [vmem:[#allocation3 + $0x64] sm:$0xf] %vm935, %v890
        %962 = vst.msk [vmem:[#allocation3 + $0x68] sm:$0xf] %vm935, %v892
        %963 = vst.msk [vmem:[#allocation3 + $0x6c] sm:$0xf] %vm935, %v894
        %964 = vst.msk [vmem:[#allocation3 + $0x70] sm:$0xf] %vm935, %v896
        %965 = vst.msk [vmem:[#allocation3 + $0x74] sm:$0xf] %vm935, %v898
        %966 = vst.msk [vmem:[#allocation3 + $0x78] sm:$0xf] %vm935, %v900
        %967 = vst.msk [vmem:[#allocation3 + $0x7c] sm:$0xf] %vm935, %v902
        %v968 = vld [vmem:[%s388] sm:$0xff]
        %v969 = vld [vmem:[%s388 + $0x8] sm:$0xff]
        %v970 = vld [vmem:[%s388 + $0x18] sm:$0xff]
        %v971 = vld [vmem:[%s388 + $0x20] sm:$0xff]
        %v972 = vld [vmem:[%s388 + $0x30] sm:$0xff]
        %v973 = vld [vmem:[%s388 + $0x38] sm:$0xff]
        %v974 = vld [vmem:[%s388 + $0x48] sm:$0xff]
        %v975 = vld [vmem:[%s388 + $0x50] sm:$0xff]
        %v976 = vld [vmem:[%s388 + $0x60] sm:$0xff]
        %v977 = vld [vmem:[%s388 + $0x68] sm:$0xff]
        %v978 = vld [vmem:[%s388 + $0x78] sm:$0xff]
        %v979 = vld [vmem:[%s388 + $0x80] sm:$0xff]
        %v980 = vld [vmem:[%s388 + $0x90] sm:$0xff]
        %v981 = vld [vmem:[%s388 + $0x98] sm:$0xff]
        %v982 = vld [vmem:[%s388 + $0xa8] sm:$0xff]
        %v983 = vld [vmem:[%s388 + $0xb0] sm:$0xff]
        %v984 = vld [vmem:[%s388 + $0xc0] sm:$0xff]
        %v985 = vld [vmem:[%s388 + $0xc8] sm:$0xff]
        %v986 = vld [vmem:[%s388 + $0xd8] sm:$0xff]
        %v987 = vld [vmem:[%s388 + $0xe0] sm:$0xff]
        %v988 = vld [vmem:[%s388 + $0xf0] sm:$0xff]
        %v989 = vld [vmem:[%s388 + $0xf8] sm:$0xff]
        %v990 = vld [vmem:[%s388 + $0x108] sm:$0xff]
        %v991 = vld [vmem:[%s388 + $0x110] sm:$0xff]
        %v992 = vld [vmem:[%s388 + $0x120] sm:$0xff]
        %v993 = vld [vmem:[%s388 + $0x128] sm:$0xff]
        %v994 = vld [vmem:[%s388 + $0x138] sm:$0xff]
        %v995 = vld [vmem:[%s388 + $0x140] sm:$0xff]
        %v996 = vld [vmem:[%s388 + $0x150] sm:$0xff]
        %v997 = vld [vmem:[%s388 + $0x158] sm:$0xff]
        %v998 = vld [vmem:[%s388 + $0x168] sm:$0xff]
        %v999 = vld [vmem:[%s388 + $0x170] sm:$0xff]
        %v1000 = vpack.c.bf16 %v968, %v968
        %v1001 = vpack.c.bf16 %v969, %v969
        %v1002 = vpack.c.bf16 %v970, %v970
        %v1003 = vpack.c.bf16 %v971, %v971
        %v1004 = vpack.c.bf16 %v972, %v972
        %v1005 = vpack.c.bf16 %v973, %v973
        %v1006 = vpack.c.bf16 %v974, %v974
        %v1007 = vpack.c.bf16 %v975, %v975
        %v1008 = vpack.c.bf16 %v976, %v976
        %v1009 = vpack.c.bf16 %v977, %v977
        %v1010 = vpack.c.bf16 %v978, %v978
        %v1011 = vpack.c.bf16 %v979, %v979
        %v1012 = vpack.c.bf16 %v980, %v980
        %v1013 = vpack.c.bf16 %v981, %v981
        %v1014 = vpack.c.bf16 %v982, %v982
        %v1015 = vpack.c.bf16 %v983, %v983
        %v1016 = vpack.c.bf16 %v984, %v984
        %v1017 = vpack.c.bf16 %v985, %v985
        %v1018 = vpack.c.bf16 %v986, %v986
        %v1019 = vpack.c.bf16 %v987, %v987
        %v1020 = vpack.c.bf16 %v988, %v988
        %v1021 = vpack.c.bf16 %v989, %v989
        %v1022 = vpack.c.bf16 %v990, %v990
        %v1023 = vpack.c.bf16 %v991, %v991
        %v1024 = vpack.c.bf16 %v992, %v992
        %v1025 = vpack.c.bf16 %v993, %v993
        %v1026 = vpack.c.bf16 %v994, %v994
        %v1027 = vpack.c.bf16 %v995, %v995
        %v1028 = vpack.c.bf16 %v996, %v996
        %v1029 = vpack.c.bf16 %v997, %v997
        %v1030 = vpack.c.bf16 %v998, %v998
        %v1031 = vpack.c.bf16 %v999, %v999
        %1064 = vrot.lane.b32.xlu0 %v1000, 12
        %v1065 = vpop.permute.xlu0 %1064
        %1066 = vrot.lane.b32.xlu0 %v1001, 12
        %v1067 = vpop.permute.xlu0 %1066
        %1068 = vrot.lane.b32.xlu0 %v1002, 12
        %v1069 = vpop.permute.xlu0 %1068
        %1070 = vrot.lane.b32.xlu0 %v1003, 12
        %v1071 = vpop.permute.xlu0 %1070
        %1072 = vrot.lane.b32.xlu0 %v1004, 12
        %v1073 = vpop.permute.xlu0 %1072
        %1074 = vrot.lane.b32.xlu0 %v1005, 12
        %v1075 = vpop.permute.xlu0 %1074
        %1076 = vrot.lane.b32.xlu0 %v1006, 12
        %v1077 = vpop.permute.xlu0 %1076
        %1078 = vrot.lane.b32.xlu0 %v1007, 12
        %v1079 = vpop.permute.xlu0 %1078
        %1080 = vrot.lane.b32.xlu0 %v1008, 12
        %v1081 = vpop.permute.xlu0 %1080
        %1082 = vrot.lane.b32.xlu0 %v1009, 12
        %v1083 = vpop.permute.xlu0 %1082
        %1084 = vrot.lane.b32.xlu0 %v1010, 12
        %v1085 = vpop.permute.xlu0 %1084
        %1086 = vrot.lane.b32.xlu0 %v1011, 12
        %v1087 = vpop.permute.xlu0 %1086
        %1088 = vrot.lane.b32.xlu0 %v1012, 12
        %v1089 = vpop.permute.xlu0 %1088
        %1090 = vrot.lane.b32.xlu0 %v1013, 12
        %v1091 = vpop.permute.xlu0 %1090
        %1092 = vrot.lane.b32.xlu0 %v1014, 12
        %v1093 = vpop.permute.xlu0 %1092
        %1094 = vrot.lane.b32.xlu0 %v1015, 12
        %v1095 = vpop.permute.xlu0 %1094
        %1096 = vrot.lane.b32.xlu0 %v1016, 12
        %v1097 = vpop.permute.xlu0 %1096
        %1098 = vrot.lane.b32.xlu0 %v1017, 12
        %v1099 = vpop.permute.xlu0 %1098
        %1100 = vrot.lane.b32.xlu0 %v1018, 12
        %v1101 = vpop.permute.xlu0 %1100
        %1102 = vrot.lane.b32.xlu0 %v1019, 12
        %v1103 = vpop.permute.xlu0 %1102
        %1104 = vrot.lane.b32.xlu0 %v1020, 12
        %v1105 = vpop.permute.xlu0 %1104
        %1106 = vrot.lane.b32.xlu0 %v1021, 12
        %v1107 = vpop.permute.xlu0 %1106
        %1108 = vrot.lane.b32.xlu0 %v1022, 12
        %v1109 = vpop.permute.xlu0 %1108
        %1110 = vrot.lane.b32.xlu0 %v1023, 12
        %v1111 = vpop.permute.xlu0 %1110
        %1112 = vrot.lane.b32.xlu0 %v1024, 12
        %v1113 = vpop.permute.xlu0 %1112
        %1114 = vrot.lane.b32.xlu0 %v1025, 12
        %v1115 = vpop.permute.xlu0 %1114
        %1116 = vrot.lane.b32.xlu0 %v1026, 12
        %v1117 = vpop.permute.xlu0 %1116
        %1118 = vrot.lane.b32.xlu0 %v1027, 12
        %v1119 = vpop.permute.xlu0 %1118
        %1120 = vrot.lane.b32.xlu0 %v1028, 12
        %v1121 = vpop.permute.xlu0 %1120
        %1122 = vrot.lane.b32.xlu0 %v1029, 12
        %v1123 = vpop.permute.xlu0 %1122
        %1124 = vrot.lane.b32.xlu0 %v1030, 12
        %v1125 = vpop.permute.xlu0 %1124
        %1126 = vrot.lane.b32.xlu0 %v1031, 12
        %v1127 = vpop.permute.xlu0 %1126
        %vm1160 = vcmask 126048
        %1161 = vst.msk [vmem:[#allocation3] sm:$0xf] %vm1160, %v1065
        %1162 = vst.msk [vmem:[#allocation3 + $0x4] sm:$0xf] %vm1160, %v1067
        %1163 = vst.msk [vmem:[#allocation3 + $0x8] sm:$0xf] %vm1160, %v1069
        %1164 = vst.msk [vmem:[#allocation3 + $0xc] sm:$0xf] %vm1160, %v1071
        %1165 = vst.msk [vmem:[#allocation3 + $0x10] sm:$0xf] %vm1160, %v1073
        %1166 = vst.msk [vmem:[#allocation3 + $0x14] sm:$0xf] %vm1160, %v1075
        %1167 = vst.msk [vmem:[#allocation3 + $0x18] sm:$0xf] %vm1160, %v1077
        %1168 = vst.msk [vmem:[#allocation3 + $0x1c] sm:$0xf] %vm1160, %v1079
        %1169 = vst.msk [vmem:[#allocation3 + $0x20] sm:$0xf] %vm1160, %v1081
        %1170 = vst.msk [vmem:[#allocation3 + $0x24] sm:$0xf] %vm1160, %v1083
        %1171 = vst.msk [vmem:[#allocation3 + $0x28] sm:$0xf] %vm1160, %v1085
        %1172 = vst.msk [vmem:[#allocation3 + $0x2c] sm:$0xf] %vm1160, %v1087
        %1173 = vst.msk [vmem:[#allocation3 + $0x30] sm:$0xf] %vm1160, %v1089
        %1174 = vst.msk [vmem:[#allocation3 + $0x34] sm:$0xf] %vm1160, %v1091
        %1175 = vst.msk [vmem:[#allocation3 + $0x38] sm:$0xf] %vm1160, %v1093
        %1176 = vst.msk [vmem:[#allocation3 + $0x3c] sm:$0xf] %vm1160, %v1095
        %1177 = vst.msk [vmem:[#allocation3 + $0x40] sm:$0xf] %vm1160, %v1097
        %1178 = vst.msk [vmem:[#allocation3 + $0x44] sm:$0xf] %vm1160, %v1099
        %1179 = vst.msk [vmem:[#allocation3 + $0x48] sm:$0xf] %vm1160, %v1101
        %1180 = vst.msk [vmem:[#allocation3 + $0x4c] sm:$0xf] %vm1160, %v1103
        %1181 = vst.msk [vmem:[#allocation3 + $0x50] sm:$0xf] %vm1160, %v1105
        %1182 = vst.msk [vmem:[#allocation3 + $0x54] sm:$0xf] %vm1160, %v1107
        %1183 = vst.msk [vmem:[#allocation3 + $0x58] sm:$0xf] %vm1160, %v1109
        %1184 = vst.msk [vmem:[#allocation3 + $0x5c] sm:$0xf] %vm1160, %v1111
        %1185 = vst.msk [vmem:[#allocation3 + $0x60] sm:$0xf] %vm1160, %v1113
        %1186 = vst.msk [vmem:[#allocation3 + $0x64] sm:$0xf] %vm1160, %v1115
        %1187 = vst.msk [vmem:[#allocation3 + $0x68] sm:$0xf] %vm1160, %v1117
        %1188 = vst.msk [vmem:[#allocation3 + $0x6c] sm:$0xf] %vm1160, %v1119
        %1189 = vst.msk [vmem:[#allocation3 + $0x70] sm:$0xf] %vm1160, %v1121
        %1190 = vst.msk [vmem:[#allocation3 + $0x74] sm:$0xf] %vm1160, %v1123
        %1191 = vst.msk [vmem:[#allocation3 + $0x78] sm:$0xf] %vm1160, %v1125
        %1192 = vst.msk [vmem:[#allocation3 + $0x7c] sm:$0xf] %vm1160, %v1127
        %v1193 = vld [vmem:[%s388 + $0x1] sm:$0xff]
        %v1194 = vld [vmem:[%s388 + $0x9] sm:$0xff]
        %v1195 = vld [vmem:[%s388 + $0x19] sm:$0xff]
        %v1196 = vld [vmem:[%s388 + $0x21] sm:$0xff]
        %v1197 = vld [vmem:[%s388 + $0x31] sm:$0xff]
        %v1198 = vld [vmem:[%s388 + $0x39] sm:$0xff]
        %v1199 = vld [vmem:[%s388 + $0x49] sm:$0xff]
        %v1200 = vld [vmem:[%s388 + $0x51] sm:$0xff]
        %v1201 = vld [vmem:[%s388 + $0x61] sm:$0xff]
        %v1202 = vld [vmem:[%s388 + $0x69] sm:$0xff]
        %v1203 = vld [vmem:[%s388 + $0x79] sm:$0xff]
        %v1204 = vld [vmem:[%s388 + $0x81] sm:$0xff]
        %v1205 = vld [vmem:[%s388 + $0x91] sm:$0xff]
        %v1206 = vld [vmem:[%s388 + $0x99] sm:$0xff]
        %v1207 = vld [vmem:[%s388 + $0xa9] sm:$0xff]
        %v1208 = vld [vmem:[%s388 + $0xb1] sm:$0xff]
        %v1209 = vld [vmem:[%s388 + $0xc1] sm:$0xff]
        %v1210 = vld [vmem:[%s388 + $0xc9] sm:$0xff]
        %v1211 = vld [vmem:[%s388 + $0xd9] sm:$0xff]
        %v1212 = vld [vmem:[%s388 + $0xe1] sm:$0xff]
        %v1213 = vld [vmem:[%s388 + $0xf1] sm:$0xff]
        %v1214 = vld [vmem:[%s388 + $0xf9] sm:$0xff]
        %v1215 = vld [vmem:[%s388 + $0x109] sm:$0xff]
        %v1216 = vld [vmem:[%s388 + $0x111] sm:$0xff]
        %v1217 = vld [vmem:[%s388 + $0x121] sm:$0xff]
        %v1218 = vld [vmem:[%s388 + $0x129] sm:$0xff]
        %v1219 = vld [vmem:[%s388 + $0x139] sm:$0xff]
        %v1220 = vld [vmem:[%s388 + $0x141] sm:$0xff]
        %v1221 = vld [vmem:[%s388 + $0x151] sm:$0xff]
        %v1222 = vld [vmem:[%s388 + $0x159] sm:$0xff]
        %v1223 = vld [vmem:[%s388 + $0x169] sm:$0xff]
        %v1224 = vld [vmem:[%s388 + $0x171] sm:$0xff]
        %v1225 = vpack.c.bf16 %v1193, %v1193
        %v1226 = vpack.c.bf16 %v1194, %v1194
        %v1227 = vpack.c.bf16 %v1195, %v1195
        %v1228 = vpack.c.bf16 %v1196, %v1196
        %v1229 = vpack.c.bf16 %v1197, %v1197
        %v1230 = vpack.c.bf16 %v1198, %v1198
        %v1231 = vpack.c.bf16 %v1199, %v1199
        %v1232 = vpack.c.bf16 %v1200, %v1200
        %v1233 = vpack.c.bf16 %v1201, %v1201
        %v1234 = vpack.c.bf16 %v1202, %v1202
        %v1235 = vpack.c.bf16 %v1203, %v1203
        %v1236 = vpack.c.bf16 %v1204, %v1204
        %v1237 = vpack.c.bf16 %v1205, %v1205
        %v1238 = vpack.c.bf16 %v1206, %v1206
        %v1239 = vpack.c.bf16 %v1207, %v1207
        %v1240 = vpack.c.bf16 %v1208, %v1208
        %v1241 = vpack.c.bf16 %v1209, %v1209
        %v1242 = vpack.c.bf16 %v1210, %v1210
        %v1243 = vpack.c.bf16 %v1211, %v1211
        %v1244 = vpack.c.bf16 %v1212, %v1212
        %v1245 = vpack.c.bf16 %v1213, %v1213
        %v1246 = vpack.c.bf16 %v1214, %v1214
        %v1247 = vpack.c.bf16 %v1215, %v1215
        %v1248 = vpack.c.bf16 %v1216, %v1216
        %v1249 = vpack.c.bf16 %v1217, %v1217
        %v1250 = vpack.c.bf16 %v1218, %v1218
        %v1251 = vpack.c.bf16 %v1219, %v1219
        %v1252 = vpack.c.bf16 %v1220, %v1220
        %v1253 = vpack.c.bf16 %v1221, %v1221
        %v1254 = vpack.c.bf16 %v1222, %v1222
        %v1255 = vpack.c.bf16 %v1223, %v1223
        %v1256 = vpack.c.bf16 %v1224, %v1224
        %1289 = vrot.lane.b32.xlu0 %v1225, 16
        %v1290 = vpop.permute.xlu0 %1289
        %1291 = vrot.lane.b32.xlu0 %v1226, 16
        %v1292 = vpop.permute.xlu0 %1291
        %1293 = vrot.lane.b32.xlu0 %v1227, 16
        %v1294 = vpop.permute.xlu0 %1293
        %1295 = vrot.lane.b32.xlu0 %v1228, 16
        %v1296 = vpop.permute.xlu0 %1295
        %1297 = vrot.lane.b32.xlu0 %v1229, 16
        %v1298 = vpop.permute.xlu0 %1297
        %1299 = vrot.lane.b32.xlu0 %v1230, 16
        %v1300 = vpop.permute.xlu0 %1299
        %1301 = vrot.lane.b32.xlu0 %v1231, 16
        %v1302 = vpop.permute.xlu0 %1301
        %1303 = vrot.lane.b32.xlu0 %v1232, 16
        %v1304 = vpop.permute.xlu0 %1303
        %1305 = vrot.lane.b32.xlu0 %v1233, 16
        %v1306 = vpop.permute.xlu0 %1305
        %1307 = vrot.lane.b32.xlu0 %v1234, 16
        %v1308 = vpop.permute.xlu0 %1307
        %1309 = vrot.lane.b32.xlu0 %v1235, 16
        %v1310 = vpop.permute.xlu0 %1309
        %1311 = vrot.lane.b32.xlu0 %v1236, 16
        %v1312 = vpop.permute.xlu0 %1311
        %1313 = vrot.lane.b32.xlu0 %v1237, 16
        %v1314 = vpop.permute.xlu0 %1313
        %1315 = vrot.lane.b32.xlu0 %v1238, 16
        %v1316 = vpop.permute.xlu0 %1315
        %1317 = vrot.lane.b32.xlu0 %v1239, 16
        %v1318 = vpop.permute.xlu0 %1317
        %1319 = vrot.lane.b32.xlu0 %v1240, 16
        %v1320 = vpop.permute.xlu0 %1319
        %1321 = vrot.lane.b32.xlu0 %v1241, 16
        %v1322 = vpop.permute.xlu0 %1321
        %1323 = vrot.lane.b32.xlu0 %v1242, 16
        %v1324 = vpop.permute.xlu0 %1323
        %1325 = vrot.lane.b32.xlu0 %v1243, 16
        %v1326 = vpop.permute.xlu0 %1325
        %1327 = vrot.lane.b32.xlu0 %v1244, 16
        %v1328 = vpop.permute.xlu0 %1327
        %1329 = vrot.lane.b32.xlu0 %v1245, 16
        %v1330 = vpop.permute.xlu0 %1329
        %1331 = vrot.lane.b32.xlu0 %v1246, 16
        %v1332 = vpop.permute.xlu0 %1331
        %1333 = vrot.lane.b32.xlu0 %v1247, 16
        %v1334 = vpop.permute.xlu0 %1333
        %1335 = vrot.lane.b32.xlu0 %v1248, 16
        %v1336 = vpop.permute.xlu0 %1335
        %1337 = vrot.lane.b32.xlu0 %v1249, 16
        %v1338 = vpop.permute.xlu0 %1337
        %1339 = vrot.lane.b32.xlu0 %v1250, 16
        %v1340 = vpop.permute.xlu0 %1339
        %1341 = vrot.lane.b32.xlu0 %v1251, 16
        %v1342 = vpop.permute.xlu0 %1341
        %1343 = vrot.lane.b32.xlu0 %v1252, 16
        %v1344 = vpop.permute.xlu0 %1343
        %1345 = vrot.lane.b32.xlu0 %v1253, 16
        %v1346 = vpop.permute.xlu0 %1345
        %1347 = vrot.lane.b32.xlu0 %v1254, 16
        %v1348 = vpop.permute.xlu0 %1347
        %1349 = vrot.lane.b32.xlu0 %v1255, 16
        %v1350 = vpop.permute.xlu0 %1349
        %1351 = vrot.lane.b32.xlu0 %v1256, 16
        %v1352 = vpop.permute.xlu0 %1351
        %vm1385 = vcmask 158848
        %1386 = vst.msk [vmem:[#allocation3] sm:$0xf] %vm1385, %v1290
        %1387 = vst.msk [vmem:[#allocation3 + $0x4] sm:$0xf] %vm1385, %v1292
        %1388 = vst.msk [vmem:[#allocation3 + $0x8] sm:$0xf] %vm1385, %v1294
        %1389 = vst.msk [vmem:[#allocation3 + $0xc] sm:$0xf] %vm1385, %v1296
        %1390 = vst.msk [vmem:[#allocation3 + $0x10] sm:$0xf] %vm1385, %v1298
        %1391 = vst.msk [vmem:[#allocation3 + $0x14] sm:$0xf] %vm1385, %v1300
        %1392 = vst.msk [vmem:[#allocation3 + $0x18] sm:$0xf] %vm1385, %v1302
        %1393 = vst.msk [vmem:[#allocation3 + $0x1c] sm:$0xf] %vm1385, %v1304
        %1394 = vst.msk [vmem:[#allocation3 + $0x20] sm:$0xf] %vm1385, %v1306
        %1395 = vst.msk [vmem:[#allocation3 + $0x24] sm:$0xf] %vm1385, %v1308
        %1396 = vst.msk [vmem:[#allocation3 + $0x28] sm:$0xf] %vm1385, %v1310
        %1397 = vst.msk [vmem:[#allocation3 + $0x2c] sm:$0xf] %vm1385, %v1312
        %1398 = vst.msk [vmem:[#allocation3 + $0x30] sm:$0xf] %vm1385, %v1314
        %1399 = vst.msk [vmem:[#allocation3 + $0x34] sm:$0xf] %vm1385, %v1316
        %1400 = vst.msk [vmem:[#allocation3 + $0x38] sm:$0xf] %vm1385, %v1318
        %1401 = vst.msk [vmem:[#allocation3 + $0x3c] sm:$0xf] %vm1385, %v1320
        %1402 = vst.msk [vmem:[#allocation3 + $0x40] sm:$0xf] %vm1385, %v1322
        %1403 = vst.msk [vmem:[#allocation3 + $0x44] sm:$0xf] %vm1385, %v1324
        %1404 = vst.msk [vmem:[#allocation3 + $0x48] sm:$0xf] %vm1385, %v1326
        %1405 = vst.msk [vmem:[#allocation3 + $0x4c] sm:$0xf] %vm1385, %v1328
        %1406 = vst.msk [vmem:[#allocation3 + $0x50] sm:$0xf] %vm1385, %v1330
        %1407 = vst.msk [vmem:[#allocation3 + $0x54] sm:$0xf] %vm1385, %v1332
        %1408 = vst.msk [vmem:[#allocation3 + $0x58] sm:$0xf] %vm1385, %v1334
        %1409 = vst.msk [vmem:[#allocation3 + $0x5c] sm:$0xf] %vm1385, %v1336
        %1410 = vst.msk [vmem:[#allocation3 + $0x60] sm:$0xf] %vm1385, %v1338
        %1411 = vst.msk [vmem:[#allocation3 + $0x64] sm:$0xf] %vm1385, %v1340
        %1412 = vst.msk [vmem:[#allocation3 + $0x68] sm:$0xf] %vm1385, %v1342
        %1413 = vst.msk [vmem:[#allocation3 + $0x6c] sm:$0xf] %vm1385, %v1344
        %1414 = vst.msk [vmem:[#allocation3 + $0x70] sm:$0xf] %vm1385, %v1346
        %1415 = vst.msk [vmem:[#allocation3 + $0x74] sm:$0xf] %vm1385, %v1348
        %1416 = vst.msk [vmem:[#allocation3 + $0x78] sm:$0xf] %vm1385, %v1350
        %1417 = vst.msk [vmem:[#allocation3 + $0x7c] sm:$0xf] %vm1385, %v1352
        %v1418 = vld [vmem:[%s388 + $0x2] sm:$0xff]
        %v1419 = vld [vmem:[%s388 + $0xa] sm:$0xff]
        %v1420 = vld [vmem:[%s388 + $0x1a] sm:$0xff]
        %v1421 = vld [vmem:[%s388 + $0x22] sm:$0xff]
        %v1422 = vld [vmem:[%s388 + $0x32] sm:$0xff]
        %v1423 = vld [vmem:[%s388 + $0x3a] sm:$0xff]
        %v1424 = vld [vmem:[%s388 + $0x4a] sm:$0xff]
        %v1425 = vld [vmem:[%s388 + $0x52] sm:$0xff]
        %v1426 = vld [vmem:[%s388 + $0x62] sm:$0xff]
        %v1427 = vld [vmem:[%s388 + $0x6a] sm:$0xff]
        %v1428 = vld [vmem:[%s388 + $0x7a] sm:$0xff]
        %v1429 = vld [vmem:[%s388 + $0x82] sm:$0xff]
        %v1430 = vld [vmem:[%s388 + $0x92] sm:$0xff]
        %v1431 = vld [vmem:[%s388 + $0x9a] sm:$0xff]
        %v1432 = vld [vmem:[%s388 + $0xaa] sm:$0xff]
        %v1433 = vld [vmem:[%s388 + $0xb2] sm:$0xff]
        %v1434 = vld [vmem:[%s388 + $0xc2] sm:$0xff]
        %v1435 = vld [vmem:[%s388 + $0xca] sm:$0xff]
        %v1436 = vld [vmem:[%s388 + $0xda] sm:$0xff]
        %v1437 = vld [vmem:[%s388 + $0xe2] sm:$0xff]
        %v1438 = vld [vmem:[%s388 + $0xf2] sm:$0xff]
        %v1439 = vld [vmem:[%s388 + $0xfa] sm:$0xff]
        %v1440 = vld [vmem:[%s388 + $0x10a] sm:$0xff]
        %v1441 = vld [vmem:[%s388 + $0x112] sm:$0xff]
        %v1442 = vld [vmem:[%s388 + $0x122] sm:$0xff]
        %v1443 = vld [vmem:[%s388 + $0x12a] sm:$0xff]
        %v1444 = vld [vmem:[%s388 + $0x13a] sm:$0xff]
        %v1445 = vld [vmem:[%s388 + $0x142] sm:$0xff]
        %v1446 = vld [vmem:[%s388 + $0x152] sm:$0xff]
        %v1447 = vld [vmem:[%s388 + $0x15a] sm:$0xff]
        %v1448 = vld [vmem:[%s388 + $0x16a] sm:$0xff]
        %v1449 = vld [vmem:[%s388 + $0x172] sm:$0xff]
        %v1450 = vpack.c.bf16 %v1418, %v1418
        %v1451 = vpack.c.bf16 %v1419, %v1419
        %v1452 = vpack.c.bf16 %v1420, %v1420
        %v1453 = vpack.c.bf16 %v1421, %v1421
        %v1454 = vpack.c.bf16 %v1422, %v1422
        %v1455 = vpack.c.bf16 %v1423, %v1423
        %v1456 = vpack.c.bf16 %v1424, %v1424
        %v1457 = vpack.c.bf16 %v1425, %v1425
        %v1458 = vpack.c.bf16 %v1426, %v1426
        %v1459 = vpack.c.bf16 %v1427, %v1427
        %v1460 = vpack.c.bf16 %v1428, %v1428
        %v1461 = vpack.c.bf16 %v1429, %v1429
        %v1462 = vpack.c.bf16 %v1430, %v1430
        %v1463 = vpack.c.bf16 %v1431, %v1431
        %v1464 = vpack.c.bf16 %v1432, %v1432
        %v1465 = vpack.c.bf16 %v1433, %v1433
        %v1466 = vpack.c.bf16 %v1434, %v1434
        %v1467 = vpack.c.bf16 %v1435, %v1435
        %v1468 = vpack.c.bf16 %v1436, %v1436
        %v1469 = vpack.c.bf16 %v1437, %v1437
        %v1470 = vpack.c.bf16 %v1438, %v1438
        %v1471 = vpack.c.bf16 %v1439, %v1439
        %v1472 = vpack.c.bf16 %v1440, %v1440
        %v1473 = vpack.c.bf16 %v1441, %v1441
        %v1474 = vpack.c.bf16 %v1442, %v1442
        %v1475 = vpack.c.bf16 %v1443, %v1443
        %v1476 = vpack.c.bf16 %v1444, %v1444
        %v1477 = vpack.c.bf16 %v1445, %v1445
        %v1478 = vpack.c.bf16 %v1446, %v1446
        %v1479 = vpack.c.bf16 %v1447, %v1447
        %v1480 = vpack.c.bf16 %v1448, %v1448
        %v1481 = vpack.c.bf16 %v1449, %v1449
        %1514 = vrot.lane.b32.xlu0 %v1450, 20
        %v1515 = vpop.permute.xlu0 %1514
        %1516 = vrot.lane.b32.xlu0 %v1451, 20
        %v1517 = vpop.permute.xlu0 %1516
        %1518 = vrot.lane.b32.xlu0 %v1452, 20
        %v1519 = vpop.permute.xlu0 %1518
        %1520 = vrot.lane.b32.xlu0 %v1453, 20
        %v1521 = vpop.permute.xlu0 %1520
        %1522 = vrot.lane.b32.xlu0 %v1454, 20
        %v1523 = vpop.permute.xlu0 %1522
        %1524 = vrot.lane.b32.xlu0 %v1455, 20
        %v1525 = vpop.permute.xlu0 %1524
        %1526 = vrot.lane.b32.xlu0 %v1456, 20
        %v1527 = vpop.permute.xlu0 %1526
        %1528 = vrot.lane.b32.xlu0 %v1457, 20
        %v1529 = vpop.permute.xlu0 %1528
        %1530 = vrot.lane.b32.xlu0 %v1458, 20
        %v1531 = vpop.permute.xlu0 %1530
        %1532 = vrot.lane.b32.xlu0 %v1459, 20
        %v1533 = vpop.permute.xlu0 %1532
        %1534 = vrot.lane.b32.xlu0 %v1460, 20
        %v1535 = vpop.permute.xlu0 %1534
        %1536 = vrot.lane.b32.xlu0 %v1461, 20
        %v1537 = vpop.permute.xlu0 %1536
        %1538 = vrot.lane.b32.xlu0 %v1462, 20
        %v1539 = vpop.permute.xlu0 %1538
        %1540 = vrot.lane.b32.xlu0 %v1463, 20
        %v1541 = vpop.permute.xlu0 %1540
        %1542 = vrot.lane.b32.xlu0 %v1464, 20
        %v1543 = vpop.permute.xlu0 %1542
        %1544 = vrot.lane.b32.xlu0 %v1465, 20
        %v1545 = vpop.permute.xlu0 %1544
        %1546 = vrot.lane.b32.xlu0 %v1466, 20
        %v1547 = vpop.permute.xlu0 %1546
        %1548 = vrot.lane.b32.xlu0 %v1467, 20
        %v1549 = vpop.permute.xlu0 %1548
        %1550 = vrot.lane.b32.xlu0 %v1468, 20
        %v1551 = vpop.permute.xlu0 %1550
        %1552 = vrot.lane.b32.xlu0 %v1469, 20
        %v1553 = vpop.permute.xlu0 %1552
        %1554 = vrot.lane.b32.xlu0 %v1470, 20
        %v1555 = vpop.permute.xlu0 %1554
        %1556 = vrot.lane.b32.xlu0 %v1471, 20
        %v1557 = vpop.permute.xlu0 %1556
        %1558 = vrot.lane.b32.xlu0 %v1472, 20
        %v1559 = vpop.permute.xlu0 %1558
        %1560 = vrot.lane.b32.xlu0 %v1473, 20
        %v1561 = vpop.permute.xlu0 %1560
        %1562 = vrot.lane.b32.xlu0 %v1474, 20
        %v1563 = vpop.permute.xlu0 %1562
        %1564 = vrot.lane.b32.xlu0 %v1475, 20
        %v1565 = vpop.permute.xlu0 %1564
        %1566 = vrot.lane.b32.xlu0 %v1476, 20
        %v1567 = vpop.permute.xlu0 %1566
        %1568 = vrot.lane.b32.xlu0 %v1477, 20
        %v1569 = vpop.permute.xlu0 %1568
        %1570 = vrot.lane.b32.xlu0 %v1478, 20
        %v1571 = vpop.permute.xlu0 %1570
        %1572 = vrot.lane.b32.xlu0 %v1479, 20
        %v1573 = vpop.permute.xlu0 %1572
        %1574 = vrot.lane.b32.xlu0 %v1480, 20
        %v1575 = vpop.permute.xlu0 %1574
        %1576 = vrot.lane.b32.xlu0 %v1481, 20
        %v1577 = vpop.permute.xlu0 %1576
        %vm1610 = vcmask 191648
        %1611 = vst.msk [vmem:[#allocation3] sm:$0xf] %vm1610, %v1515
        %1612 = vst.msk [vmem:[#allocation3 + $0x4] sm:$0xf] %vm1610, %v1517
        %1613 = vst.msk [vmem:[#allocation3 + $0x8] sm:$0xf] %vm1610, %v1519
        %1614 = vst.msk [vmem:[#allocation3 + $0xc] sm:$0xf] %vm1610, %v1521
        %1615 = vst.msk [vmem:[#allocation3 + $0x10] sm:$0xf] %vm1610, %v1523
        %1616 = vst.msk [vmem:[#allocation3 + $0x14] sm:$0xf] %vm1610, %v1525
        %1617 = vst.msk [vmem:[#allocation3 + $0x18] sm:$0xf] %vm1610, %v1527
        %1618 = vst.msk [vmem:[#allocation3 + $0x1c] sm:$0xf] %vm1610, %v1529
        %1619 = vst.msk [vmem:[#allocation3 + $0x20] sm:$0xf] %vm1610, %v1531
        %1620 = vst.msk [vmem:[#allocation3 + $0x24] sm:$0xf] %vm1610, %v1533
        %1621 = vst.msk [vmem:[#allocation3 + $0x28] sm:$0xf] %vm1610, %v1535
        %1622 = vst.msk [vmem:[#allocation3 + $0x2c] sm:$0xf] %vm1610, %v1537
        %1623 = vst.msk [vmem:[#allocation3 + $0x30] sm:$0xf] %vm1610, %v1539
        %1624 = vst.msk [vmem:[#allocation3 + $0x34] sm:$0xf] %vm1610, %v1541
        %1625 = vst.msk [vmem:[#allocation3 + $0x38] sm:$0xf] %vm1610, %v1543
        %1626 = vst.msk [vmem:[#allocation3 + $0x3c] sm:$0xf] %vm1610, %v1545
        %1627 = vst.msk [vmem:[#allocation3 + $0x40] sm:$0xf] %vm1610, %v1547
        %1628 = vst.msk [vmem:[#allocation3 + $0x44] sm:$0xf] %vm1610, %v1549
        %1629 = vst.msk [vmem:[#allocation3 + $0x48] sm:$0xf] %vm1610, %v1551
        %1630 = vst.msk [vmem:[#allocation3 + $0x4c] sm:$0xf] %vm1610, %v1553
        %1631 = vst.msk [vmem:[#allocation3 + $0x50] sm:$0xf] %vm1610, %v1555
        %1632 = vst.msk [vmem:[#allocation3 + $0x54] sm:$0xf] %vm1610, %v1557
        %1633 = vst.msk [vmem:[#allocation3 + $0x58] sm:$0xf] %vm1610, %v1559
        %1634 = vst.msk [vmem:[#allocation3 + $0x5c] sm:$0xf] %vm1610, %v1561
        %1635 = vst.msk [vmem:[#allocation3 + $0x60] sm:$0xf] %vm1610, %v1563
        %1636 = vst.msk [vmem:[#allocation3 + $0x64] sm:$0xf] %vm1610, %v1565
        %1637 = vst.msk [vmem:[#allocation3 + $0x68] sm:$0xf] %vm1610, %v1567
        %1638 = vst.msk [vmem:[#allocation3 + $0x6c] sm:$0xf] %vm1610, %v1569
        %1639 = vst.msk [vmem:[#allocation3 + $0x70] sm:$0xf] %vm1610, %v1571
        %1640 = vst.msk [vmem:[#allocation3 + $0x74] sm:$0xf] %vm1610, %v1573
        %1641 = vst.msk [vmem:[#allocation3 + $0x78] sm:$0xf] %vm1610, %v1575
        %1642 = vst.msk [vmem:[#allocation3 + $0x7c] sm:$0xf] %vm1610, %v1577
        %s1643 = scalar_lea.vmem [#allocation2], 48
        %v1644 = vld [vmem:[%s1643] sm:$0xff]
        %v1645 = vld [vmem:[%s1643 + $0x8] sm:$0xff]
        %v1646 = vld [vmem:[%s1643 + $0x18] sm:$0xff]
        %v1647 = vld [vmem:[%s1643 + $0x20] sm:$0xff]
        %v1648 = vld [vmem:[%s1643 + $0x30] sm:$0xff]
        %v1649 = vld [vmem:[%s1643 + $0x38] sm:$0xff]
        %v1650 = vld [vmem:[%s1643 + $0x48] sm:$0xff]
        %v1651 = vld [vmem:[%s1643 + $0x50] sm:$0xff]
        %v1652 = vld [vmem:[%s1643 + $0x60] sm:$0xff]
        %v1653 = vld [vmem:[%s1643 + $0x68] sm:$0xff]
        %v1654 = vld [vmem:[%s1643 + $0x78] sm:$0xff]
        %v1655 = vld [vmem:[%s1643 + $0x80] sm:$0xff]
        %v1656 = vld [vmem:[%s1643 + $0x90] sm:$0xff]
        %v1657 = vld [vmem:[%s1643 + $0x98] sm:$0xff]
        %v1658 = vld [vmem:[%s1643 + $0xa8] sm:$0xff]
        %v1659 = vld [vmem:[%s1643 + $0xb0] sm:$0xff]
        %v1660 = vld [vmem:[%s1643 + $0xc0] sm:$0xff]
        %v1661 = vld [vmem:[%s1643 + $0xc8] sm:$0xff]
        %v1662 = vld [vmem:[%s1643 + $0xd8] sm:$0xff]
        %v1663 = vld [vmem:[%s1643 + $0xe0] sm:$0xff]
        %v1664 = vld [vmem:[%s1643 + $0xf0] sm:$0xff]
        %v1665 = vld [vmem:[%s1643 + $0xf8] sm:$0xff]
        %v1666 = vld [vmem:[%s1643 + $0x108] sm:$0xff]
        %v1667 = vld [vmem:[%s1643 + $0x110] sm:$0xff]
        %v1668 = vld [vmem:[%s1643 + $0x120] sm:$0xff]
        %v1669 = vld [vmem:[%s1643 + $0x128] sm:$0xff]
        %v1670 = vld [vmem:[%s1643 + $0x138] sm:$0xff]
        %v1671 = vld [vmem:[%s1643 + $0x140] sm:$0xff]
        %v1672 = vld [vmem:[%s1643 + $0x150] sm:$0xff]
        %v1673 = vld [vmem:[%s1643 + $0x158] sm:$0xff]
        %v1674 = vld [vmem:[%s1643 + $0x168] sm:$0xff]
        %v1675 = vld [vmem:[%s1643 + $0x170] sm:$0xff]
        %v1676 = vpack.c.bf16 %v1644, %v1644
        %v1677 = vpack.c.bf16 %v1645, %v1645
        %v1678 = vpack.c.bf16 %v1646, %v1646
        %v1679 = vpack.c.bf16 %v1647, %v1647
        %v1680 = vpack.c.bf16 %v1648, %v1648
        %v1681 = vpack.c.bf16 %v1649, %v1649
        %v1682 = vpack.c.bf16 %v1650, %v1650
        %v1683 = vpack.c.bf16 %v1651, %v1651
        %v1684 = vpack.c.bf16 %v1652, %v1652
        %v1685 = vpack.c.bf16 %v1653, %v1653
        %v1686 = vpack.c.bf16 %v1654, %v1654
        %v1687 = vpack.c.bf16 %v1655, %v1655
        %v1688 = vpack.c.bf16 %v1656, %v1656
        %v1689 = vpack.c.bf16 %v1657, %v1657
        %v1690 = vpack.c.bf16 %v1658, %v1658
        %v1691 = vpack.c.bf16 %v1659, %v1659
        %v1692 = vpack.c.bf16 %v1660, %v1660
        %v1693 = vpack.c.bf16 %v1661, %v1661
        %v1694 = vpack.c.bf16 %v1662, %v1662
        %v1695 = vpack.c.bf16 %v1663, %v1663
        %v1696 = vpack.c.bf16 %v1664, %v1664
        %v1697 = vpack.c.bf16 %v1665, %v1665
        %v1698 = vpack.c.bf16 %v1666, %v1666
        %v1699 = vpack.c.bf16 %v1667, %v1667
        %v1700 = vpack.c.bf16 %v1668, %v1668
        %v1701 = vpack.c.bf16 %v1669, %v1669
        %v1702 = vpack.c.bf16 %v1670, %v1670
        %v1703 = vpack.c.bf16 %v1671, %v1671
        %v1704 = vpack.c.bf16 %v1672, %v1672
        %v1705 = vpack.c.bf16 %v1673, %v1673
        %v1706 = vpack.c.bf16 %v1674, %v1674
        %v1707 = vpack.c.bf16 %v1675, %v1675
        %1740 = vrot.lane.b32.xlu0 %v1676, 24
        %v1741 = vpop.permute.xlu0 %1740
        %1742 = vrot.lane.b32.xlu0 %v1677, 24
        %v1743 = vpop.permute.xlu0 %1742
        %1744 = vrot.lane.b32.xlu0 %v1678, 24
        %v1745 = vpop.permute.xlu0 %1744
        %1746 = vrot.lane.b32.xlu0 %v1679, 24
        %v1747 = vpop.permute.xlu0 %1746
        %1748 = vrot.lane.b32.xlu0 %v1680, 24
        %v1749 = vpop.permute.xlu0 %1748
        %1750 = vrot.lane.b32.xlu0 %v1681, 24
        %v1751 = vpop.permute.xlu0 %1750
        %1752 = vrot.lane.b32.xlu0 %v1682, 24
        %v1753 = vpop.permute.xlu0 %1752
        %1754 = vrot.lane.b32.xlu0 %v1683, 24
        %v1755 = vpop.permute.xlu0 %1754
        %1756 = vrot.lane.b32.xlu0 %v1684, 24
        %v1757 = vpop.permute.xlu0 %1756
        %1758 = vrot.lane.b32.xlu0 %v1685, 24
        %v1759 = vpop.permute.xlu0 %1758
        %1760 = vrot.lane.b32.xlu0 %v1686, 24
        %v1761 = vpop.permute.xlu0 %1760
        %1762 = vrot.lane.b32.xlu0 %v1687, 24
        %v1763 = vpop.permute.xlu0 %1762
        %1764 = vrot.lane.b32.xlu0 %v1688, 24
        %v1765 = vpop.permute.xlu0 %1764
        %1766 = vrot.lane.b32.xlu0 %v1689, 24
        %v1767 = vpop.permute.xlu0 %1766
        %1768 = vrot.lane.b32.xlu0 %v1690, 24
        %v1769 = vpop.permute.xlu0 %1768
        %1770 = vrot.lane.b32.xlu0 %v1691, 24
        %v1771 = vpop.permute.xlu0 %1770
        %1772 = vrot.lane.b32.xlu0 %v1692, 24
        %v1773 = vpop.permute.xlu0 %1772
        %1774 = vrot.lane.b32.xlu0 %v1693, 24
        %v1775 = vpop.permute.xlu0 %1774
        %1776 = vrot.lane.b32.xlu0 %v1694, 24
        %v1777 = vpop.permute.xlu0 %1776
        %1778 = vrot.lane.b32.xlu0 %v1695, 24
        %v1779 = vpop.permute.xlu0 %1778
        %1780 = vrot.lane.b32.xlu0 %v1696, 24
        %v1781 = vpop.permute.xlu0 %1780
        %1782 = vrot.lane.b32.xlu0 %v1697, 24
        %v1783 = vpop.permute.xlu0 %1782
        %1784 = vrot.lane.b32.xlu0 %v1698, 24
        %v1785 = vpop.permute.xlu0 %1784
        %1786 = vrot.lane.b32.xlu0 %v1699, 24
        %v1787 = vpop.permute.xlu0 %1786
        %1788 = vrot.lane.b32.xlu0 %v1700, 24
        %v1789 = vpop.permute.xlu0 %1788
        %1790 = vrot.lane.b32.xlu0 %v1701, 24
        %v1791 = vpop.permute.xlu0 %1790
        %1792 = vrot.lane.b32.xlu0 %v1702, 24
        %v1793 = vpop.permute.xlu0 %1792
        %1794 = vrot.lane.b32.xlu0 %v1703, 24
        %v1795 = vpop.permute.xlu0 %1794
        %1796 = vrot.lane.b32.xlu0 %v1704, 24
        %v1797 = vpop.permute.xlu0 %1796
        %1798 = vrot.lane.b32.xlu0 %v1705, 24
        %v1799 = vpop.permute.xlu0 %1798
        %1800 = vrot.lane.b32.xlu0 %v1706, 24
        %v1801 = vpop.permute.xlu0 %1800
        %1802 = vrot.lane.b32.xlu0 %v1707, 24
        %v1803 = vpop.permute.xlu0 %1802
        %vm1836 = vcmask 224448
        %1837 = vst.msk [vmem:[#allocation3] sm:$0xf] %vm1836, %v1741
        %1838 = vst.msk [vmem:[#allocation3 + $0x4] sm:$0xf] %vm1836, %v1743
        %1839 = vst.msk [vmem:[#allocation3 + $0x8] sm:$0xf] %vm1836, %v1745
        %1840 = vst.msk [vmem:[#allocation3 + $0xc] sm:$0xf] %vm1836, %v1747
        %1841 = vst.msk [vmem:[#allocation3 + $0x10] sm:$0xf] %vm1836, %v1749
        %1842 = vst.msk [vmem:[#allocation3 + $0x14] sm:$0xf] %vm1836, %v1751
        %1843 = vst.msk [vmem:[#allocation3 + $0x18] sm:$0xf] %vm1836, %v1753
        %1844 = vst.msk [vmem:[#allocation3 + $0x1c] sm:$0xf] %vm1836, %v1755
        %1845 = vst.msk [vmem:[#allocation3 + $0x20] sm:$0xf] %vm1836, %v1757
        %1846 = vst.msk [vmem:[#allocation3 + $0x24] sm:$0xf] %vm1836, %v1759
        %1847 = vst.msk [vmem:[#allocation3 + $0x28] sm:$0xf] %vm1836, %v1761
        %1848 = vst.msk [vmem:[#allocation3 + $0x2c] sm:$0xf] %vm1836, %v1763
        %1849 = vst.msk [vmem:[#allocation3 + $0x30] sm:$0xf] %vm1836, %v1765
        %1850 = vst.msk [vmem:[#allocation3 + $0x34] sm:$0xf] %vm1836, %v1767
        %1851 = vst.msk [vmem:[#allocation3 + $0x38] sm:$0xf] %vm1836, %v1769
        %1852 = vst.msk [vmem:[#allocation3 + $0x3c] sm:$0xf] %vm1836, %v1771
        %1853 = vst.msk [vmem:[#allocation3 + $0x40] sm:$0xf] %vm1836, %v1773
        %1854 = vst.msk [vmem:[#allocation3 + $0x44] sm:$0xf] %vm1836, %v1775
        %1855 = vst.msk [vmem:[#allocation3 + $0x48] sm:$0xf] %vm1836, %v1777
        %1856 = vst.msk [vmem:[#allocation3 + $0x4c] sm:$0xf] %vm1836, %v1779
        %1857 = vst.msk [vmem:[#allocation3 + $0x50] sm:$0xf] %vm1836, %v1781
        %1858 = vst.msk [vmem:[#allocation3 + $0x54] sm:$0xf] %vm1836, %v1783
        %1859 = vst.msk [vmem:[#allocation3 + $0x58] sm:$0xf] %vm1836, %v1785
        %1860 = vst.msk [vmem:[#allocation3 + $0x5c] sm:$0xf] %vm1836, %v1787
        %1861 = vst.msk [vmem:[#allocation3 + $0x60] sm:$0xf] %vm1836, %v1789
        %1862 = vst.msk [vmem:[#allocation3 + $0x64] sm:$0xf] %vm1836, %v1791
        %1863 = vst.msk [vmem:[#allocation3 + $0x68] sm:$0xf] %vm1836, %v1793
        %1864 = vst.msk [vmem:[#allocation3 + $0x6c] sm:$0xf] %vm1836, %v1795
        %1865 = vst.msk [vmem:[#allocation3 + $0x70] sm:$0xf] %vm1836, %v1797
        %1866 = vst.msk [vmem:[#allocation3 + $0x74] sm:$0xf] %vm1836, %v1799
        %1867 = vst.msk [vmem:[#allocation3 + $0x78] sm:$0xf] %vm1836, %v1801
        %1868 = vst.msk [vmem:[#allocation3 + $0x7c] sm:$0xf] %vm1836, %v1803
        %v1869 = vld [vmem:[%s1643 + $0x1] sm:$0xff]
        %v1870 = vld [vmem:[%s1643 + $0x9] sm:$0xff]
        %v1871 = vld [vmem:[%s1643 + $0x19] sm:$0xff]
        %v1872 = vld [vmem:[%s1643 + $0x21] sm:$0xff]
        %v1873 = vld [vmem:[%s1643 + $0x31] sm:$0xff]
        %v1874 = vld [vmem:[%s1643 + $0x39] sm:$0xff]
        %v1875 = vld [vmem:[%s1643 + $0x49] sm:$0xff]
        %v1876 = vld [vmem:[%s1643 + $0x51] sm:$0xff]
        %v1877 = vld [vmem:[%s1643 + $0x61] sm:$0xff]
        %v1878 = vld [vmem:[%s1643 + $0x69] sm:$0xff]
        %v1879 = vld [vmem:[%s1643 + $0x79] sm:$0xff]
        %v1880 = vld [vmem:[%s1643 + $0x81] sm:$0xff]
        %v1881 = vld [vmem:[%s1643 + $0x91] sm:$0xff]
        %v1882 = vld [vmem:[%s1643 + $0x99] sm:$0xff]
        %v1883 = vld [vmem:[%s1643 + $0xa9] sm:$0xff]
        %v1884 = vld [vmem:[%s1643 + $0xb1] sm:$0xff]
        %v1885 = vld [vmem:[%s1643 + $0xc1] sm:$0xff]
        %v1886 = vld [vmem:[%s1643 + $0xc9] sm:$0xff]
        %v1887 = vld [vmem:[%s1643 + $0xd9] sm:$0xff]
        %v1888 = vld [vmem:[%s1643 + $0xe1] sm:$0xff]
        %v1889 = vld [vmem:[%s1643 + $0xf1] sm:$0xff]
        %v1890 = vld [vmem:[%s1643 + $0xf9] sm:$0xff]
        %v1891 = vld [vmem:[%s1643 + $0x109] sm:$0xff]
        %v1892 = vld [vmem:[%s1643 + $0x111] sm:$0xff]
        %v1893 = vld [vmem:[%s1643 + $0x121] sm:$0xff]
        %v1894 = vld [vmem:[%s1643 + $0x129] sm:$0xff]
        %v1895 = vld [vmem:[%s1643 + $0x139] sm:$0xff]
        %v1896 = vld [vmem:[%s1643 + $0x141] sm:$0xff]
        %v1897 = vld [vmem:[%s1643 + $0x151] sm:$0xff]
        %v1898 = vld [vmem:[%s1643 + $0x159] sm:$0xff]
        %v1899 = vld [vmem:[%s1643 + $0x169] sm:$0xff]
        %v1900 = vld [vmem:[%s1643 + $0x171] sm:$0xff]
        %v1901 = vpack.c.bf16 %v1869, %v1869
        %v1902 = vpack.c.bf16 %v1870, %v1870
        %v1903 = vpack.c.bf16 %v1871, %v1871
        %v1904 = vpack.c.bf16 %v1872, %v1872
        %v1905 = vpack.c.bf16 %v1873, %v1873
        %v1906 = vpack.c.bf16 %v1874, %v1874
        %v1907 = vpack.c.bf16 %v1875, %v1875
        %v1908 = vpack.c.bf16 %v1876, %v1876
        %v1909 = vpack.c.bf16 %v1877, %v1877
        %v1910 = vpack.c.bf16 %v1878, %v1878
        %v1911 = vpack.c.bf16 %v1879, %v1879
        %v1912 = vpack.c.bf16 %v1880, %v1880
        %v1913 = vpack.c.bf16 %v1881, %v1881
        %v1914 = vpack.c.bf16 %v1882, %v1882
        %v1915 = vpack.c.bf16 %v1883, %v1883
        %v1916 = vpack.c.bf16 %v1884, %v1884
        %v1917 = vpack.c.bf16 %v1885, %v1885
        %v1918 = vpack.c.bf16 %v1886, %v1886
        %v1919 = vpack.c.bf16 %v1887, %v1887
        %v1920 = vpack.c.bf16 %v1888, %v1888
        %v1921 = vpack.c.bf16 %v1889, %v1889
        %v1922 = vpack.c.bf16 %v1890, %v1890
        %v1923 = vpack.c.bf16 %v1891, %v1891
        %v1924 = vpack.c.bf16 %v1892, %v1892
        %v1925 = vpack.c.bf16 %v1893, %v1893
        %v1926 = vpack.c.bf16 %v1894, %v1894
        %v1927 = vpack.c.bf16 %v1895, %v1895
        %v1928 = vpack.c.bf16 %v1896, %v1896
        %v1929 = vpack.c.bf16 %v1897, %v1897
        %v1930 = vpack.c.bf16 %v1898, %v1898
        %v1931 = vpack.c.bf16 %v1899, %v1899
        %v1932 = vpack.c.bf16 %v1900, %v1900
        %1965 = vrot.lane.b32.xlu0 %v1901, 28
        %v1966 = vpop.permute.xlu0 %1965
        %1967 = vrot.lane.b32.xlu0 %v1902, 28
        %v1968 = vpop.permute.xlu0 %1967
        %1969 = vrot.lane.b32.xlu0 %v1903, 28
        %v1970 = vpop.permute.xlu0 %1969
        %1971 = vrot.lane.b32.xlu0 %v1904, 28
        %v1972 = vpop.permute.xlu0 %1971
        %1973 = vrot.lane.b32.xlu0 %v1905, 28
        %v1974 = vpop.permute.xlu0 %1973
        %1975 = vrot.lane.b32.xlu0 %v1906, 28
        %v1976 = vpop.permute.xlu0 %1975
        %1977 = vrot.lane.b32.xlu0 %v1907, 28
        %v1978 = vpop.permute.xlu0 %1977
        %1979 = vrot.lane.b32.xlu0 %v1908, 28
        %v1980 = vpop.permute.xlu0 %1979
        %1981 = vrot.lane.b32.xlu0 %v1909, 28
        %v1982 = vpop.permute.xlu0 %1981
        %1983 = vrot.lane.b32.xlu0 %v1910, 28
        %v1984 = vpop.permute.xlu0 %1983
        %1985 = vrot.lane.b32.xlu0 %v1911, 28
        %v1986 = vpop.permute.xlu0 %1985
        %1987 = vrot.lane.b32.xlu0 %v1912, 28
        %v1988 = vpop.permute.xlu0 %1987
        %1989 = vrot.lane.b32.xlu0 %v1913, 28
        %v1990 = vpop.permute.xlu0 %1989
        %1991 = vrot.lane.b32.xlu0 %v1914, 28
        %v1992 = vpop.permute.xlu0 %1991
        %1993 = vrot.lane.b32.xlu0 %v1915, 28
        %v1994 = vpop.permute.xlu0 %1993
        %1995 = vrot.lane.b32.xlu0 %v1916, 28
        %v1996 = vpop.permute.xlu0 %1995
        %1997 = vrot.lane.b32.xlu0 %v1917, 28
        %v1998 = vpop.permute.xlu0 %1997
        %1999 = vrot.lane.b32.xlu0 %v1918, 28
        %v2000 = vpop.permute.xlu0 %1999
        %2001 = vrot.lane.b32.xlu0 %v1919, 28
        %v2002 = vpop.permute.xlu0 %2001
        %2003 = vrot.lane.b32.xlu0 %v1920, 28
        %v2004 = vpop.permute.xlu0 %2003
        %2005 = vrot.lane.b32.xlu0 %v1921, 28
        %v2006 = vpop.permute.xlu0 %2005
        %2007 = vrot.lane.b32.xlu0 %v1922, 28
        %v2008 = vpop.permute.xlu0 %2007
        %2009 = vrot.lane.b32.xlu0 %v1923, 28
        %v2010 = vpop.permute.xlu0 %2009
        %2011 = vrot.lane.b32.xlu0 %v1924, 28
        %v2012 = vpop.permute.xlu0 %2011
        %2013 = vrot.lane.b32.xlu0 %v1925, 28
        %v2014 = vpop.permute.xlu0 %2013
        %2015 = vrot.lane.b32.xlu0 %v1926, 28
        %v2016 = vpop.permute.xlu0 %2015
        %2017 = vrot.lane.b32.xlu0 %v1927, 28
        %v2018 = vpop.permute.xlu0 %2017
        %2019 = vrot.lane.b32.xlu0 %v1928, 28
        %v2020 = vpop.permute.xlu0 %2019
        %2021 = vrot.lane.b32.xlu0 %v1929, 28
        %v2022 = vpop.permute.xlu0 %2021
        %2023 = vrot.lane.b32.xlu0 %v1930, 28
        %v2024 = vpop.permute.xlu0 %2023
        %2025 = vrot.lane.b32.xlu0 %v1931, 28
        %v2026 = vpop.permute.xlu0 %2025
        %2027 = vrot.lane.b32.xlu0 %v1932, 28
        %v2028 = vpop.permute.xlu0 %2027
        %vm2061 = vcmask 257248
        %2062 = vst.msk [vmem:[#allocation3] sm:$0xf] %vm2061, %v1966
        %2063 = vst.msk [vmem:[#allocation3 + $0x4] sm:$0xf] %vm2061, %v1968
        %2064 = vst.msk [vmem:[#allocation3 + $0x8] sm:$0xf] %vm2061, %v1970
        %2065 = vst.msk [vmem:[#allocation3 + $0xc] sm:$0xf] %vm2061, %v1972
        %2066 = vst.msk [vmem:[#allocation3 + $0x10] sm:$0xf] %vm2061, %v1974
        %2067 = vst.msk [vmem:[#allocation3 + $0x14] sm:$0xf] %vm2061, %v1976
        %2068 = vst.msk [vmem:[#allocation3 + $0x18] sm:$0xf] %vm2061, %v1978
        %2069 = vst.msk [vmem:[#allocation3 + $0x1c] sm:$0xf] %vm2061, %v1980
        %2070 = vst.msk [vmem:[#allocation3 + $0x20] sm:$0xf] %vm2061, %v1982
        %2071 = vst.msk [vmem:[#allocation3 + $0x24] sm:$0xf] %vm2061, %v1984
        %2072 = vst.msk [vmem:[#allocation3 + $0x28] sm:$0xf] %vm2061, %v1986
        %2073 = vst.msk [vmem:[#allocation3 + $0x2c] sm:$0xf] %vm2061, %v1988
        %2074 = vst.msk [vmem:[#allocation3 + $0x30] sm:$0xf] %vm2061, %v1990
        %2075 = vst.msk [vmem:[#allocation3 + $0x34] sm:$0xf] %vm2061, %v1992
        %2076 = vst.msk [vmem:[#allocation3 + $0x38] sm:$0xf] %vm2061, %v1994
        %2077 = vst.msk [vmem:[#allocation3 + $0x3c] sm:$0xf] %vm2061, %v1996
        %2078 = vst.msk [vmem:[#allocation3 + $0x40] sm:$0xf] %vm2061, %v1998
        %2079 = vst.msk [vmem:[#allocation3 + $0x44] sm:$0xf] %vm2061, %v2000
        %2080 = vst.msk [vmem:[#allocation3 + $0x48] sm:$0xf] %vm2061, %v2002
        %2081 = vst.msk [vmem:[#allocation3 + $0x4c] sm:$0xf] %vm2061, %v2004
        %2082 = vst.msk [vmem:[#allocation3 + $0x50] sm:$0xf] %vm2061, %v2006
        %2083 = vst.msk [vmem:[#allocation3 + $0x54] sm:$0xf] %vm2061, %v2008
        %2084 = vst.msk [vmem:[#allocation3 + $0x58] sm:$0xf] %vm2061, %v2010
        %2085 = vst.msk [vmem:[#allocation3 + $0x5c] sm:$0xf] %vm2061, %v2012
        %2086 = vst.msk [vmem:[#allocation3 + $0x60] sm:$0xf] %vm2061, %v2014
        %2087 = vst.msk [vmem:[#allocation3 + $0x64] sm:$0xf] %vm2061, %v2016
        %2088 = vst.msk [vmem:[#allocation3 + $0x68] sm:$0xf] %vm2061, %v2018
        %2089 = vst.msk [vmem:[#allocation3 + $0x6c] sm:$0xf] %vm2061, %v2020
        %2090 = vst.msk [vmem:[#allocation3 + $0x70] sm:$0xf] %vm2061, %v2022
        %2091 = vst.msk [vmem:[#allocation3 + $0x74] sm:$0xf] %vm2061, %v2024
        %2092 = vst.msk [vmem:[#allocation3 + $0x78] sm:$0xf] %vm2061, %v2026
        %2093 = vst.msk [vmem:[#allocation3 + $0x7c] sm:$0xf] %vm2061, %v2028
        %v2094 = vld [vmem:[%s1643 + $0x2] sm:$0xff]
        %v2095 = vld [vmem:[%s1643 + $0xa] sm:$0xff]
        %v2096 = vld [vmem:[%s1643 + $0x1a] sm:$0xff]
        %v2097 = vld [vmem:[%s1643 + $0x22] sm:$0xff]
        %v2098 = vld [vmem:[%s1643 + $0x32] sm:$0xff]
        %v2099 = vld [vmem:[%s1643 + $0x3a] sm:$0xff]
        %v2100 = vld [vmem:[%s1643 + $0x4a] sm:$0xff]
        %v2101 = vld [vmem:[%s1643 + $0x52] sm:$0xff]
        %v2102 = vld [vmem:[%s1643 + $0x62] sm:$0xff]
        %v2103 = vld [vmem:[%s1643 + $0x6a] sm:$0xff]
        %v2104 = vld [vmem:[%s1643 + $0x7a] sm:$0xff]
        %v2105 = vld [vmem:[%s1643 + $0x82] sm:$0xff]
        %v2106 = vld [vmem:[%s1643 + $0x92] sm:$0xff]
        %v2107 = vld [vmem:[%s1643 + $0x9a] sm:$0xff]
        %v2108 = vld [vmem:[%s1643 + $0xaa] sm:$0xff]
        %v2109 = vld [vmem:[%s1643 + $0xb2] sm:$0xff]
        %v2110 = vld [vmem:[%s1643 + $0xc2] sm:$0xff]
        %v2111 = vld [vmem:[%s1643 + $0xca] sm:$0xff]
        %v2112 = vld [vmem:[%s1643 + $0xda] sm:$0xff]
        %v2113 = vld [vmem:[%s1643 + $0xe2] sm:$0xff]
        %v2114 = vld [vmem:[%s1643 + $0xf2] sm:$0xff]
        %v2115 = vld [vmem:[%s1643 + $0xfa] sm:$0xff]
        %v2116 = vld [vmem:[%s1643 + $0x10a] sm:$0xff]
        %v2117 = vld [vmem:[%s1643 + $0x112] sm:$0xff]
        %v2118 = vld [vmem:[%s1643 + $0x122] sm:$0xff]
        %v2119 = vld [vmem:[%s1643 + $0x12a] sm:$0xff]
        %v2120 = vld [vmem:[%s1643 + $0x13a] sm:$0xff]
        %v2121 = vld [vmem:[%s1643 + $0x142] sm:$0xff]
        %v2122 = vld [vmem:[%s1643 + $0x152] sm:$0xff]
        %v2123 = vld [vmem:[%s1643 + $0x15a] sm:$0xff]
        %v2124 = vld [vmem:[%s1643 + $0x16a] sm:$0xff]
        %v2125 = vld [vmem:[%s1643 + $0x172] sm:$0xff]
        %v2126 = vpack.c.bf16 %v2094, %v2094
        %v2127 = vpack.c.bf16 %v2095, %v2095
        %v2128 = vpack.c.bf16 %v2096, %v2096
        %v2129 = vpack.c.bf16 %v2097, %v2097
        %v2130 = vpack.c.bf16 %v2098, %v2098
        %v2131 = vpack.c.bf16 %v2099, %v2099
        %v2132 = vpack.c.bf16 %v2100, %v2100
        %v2133 = vpack.c.bf16 %v2101, %v2101
        %v2134 = vpack.c.bf16 %v2102, %v2102
        %v2135 = vpack.c.bf16 %v2103, %v2103
        %v2136 = vpack.c.bf16 %v2104, %v2104
        %v2137 = vpack.c.bf16 %v2105, %v2105
        %v2138 = vpack.c.bf16 %v2106, %v2106
        %v2139 = vpack.c.bf16 %v2107, %v2107
        %v2140 = vpack.c.bf16 %v2108, %v2108
        %v2141 = vpack.c.bf16 %v2109, %v2109
        %v2142 = vpack.c.bf16 %v2110, %v2110
        %v2143 = vpack.c.bf16 %v2111, %v2111
        %v2144 = vpack.c.bf16 %v2112, %v2112
        %v2145 = vpack.c.bf16 %v2113, %v2113
        %v2146 = vpack.c.bf16 %v2114, %v2114
        %v2147 = vpack.c.bf16 %v2115, %v2115
        %v2148 = vpack.c.bf16 %v2116, %v2116
        %v2149 = vpack.c.bf16 %v2117, %v2117
        %v2150 = vpack.c.bf16 %v2118, %v2118
        %v2151 = vpack.c.bf16 %v2119, %v2119
        %v2152 = vpack.c.bf16 %v2120, %v2120
        %v2153 = vpack.c.bf16 %v2121, %v2121
        %v2154 = vpack.c.bf16 %v2122, %v2122
        %v2155 = vpack.c.bf16 %v2123, %v2123
        %v2156 = vpack.c.bf16 %v2124, %v2124
        %v2157 = vpack.c.bf16 %v2125, %v2125
        %2190 = vrot.lane.b32.xlu0 %v2126, 32
        %v2191 = vpop.permute.xlu0 %2190
        %2192 = vrot.lane.b32.xlu0 %v2127, 32
        %v2193 = vpop.permute.xlu0 %2192
        %2194 = vrot.lane.b32.xlu0 %v2128, 32
        %v2195 = vpop.permute.xlu0 %2194
        %2196 = vrot.lane.b32.xlu0 %v2129, 32
        %v2197 = vpop.permute.xlu0 %2196
        %2198 = vrot.lane.b32.xlu0 %v2130, 32
        %v2199 = vpop.permute.xlu0 %2198
        %2200 = vrot.lane.b32.xlu0 %v2131, 32
        %v2201 = vpop.permute.xlu0 %2200
        %2202 = vrot.lane.b32.xlu0 %v2132, 32
        %v2203 = vpop.permute.xlu0 %2202
        %2204 = vrot.lane.b32.xlu0 %v2133, 32
        %v2205 = vpop.permute.xlu0 %2204
        %2206 = vrot.lane.b32.xlu0 %v2134, 32
        %v2207 = vpop.permute.xlu0 %2206
        %2208 = vrot.lane.b32.xlu0 %v2135, 32
        %v2209 = vpop.permute.xlu0 %2208
        %2210 = vrot.lane.b32.xlu0 %v2136, 32
        %v2211 = vpop.permute.xlu0 %2210
        %2212 = vrot.lane.b32.xlu0 %v2137, 32
        %v2213 = vpop.permute.xlu0 %2212
        %2214 = vrot.lane.b32.xlu0 %v2138, 32
        %v2215 = vpop.permute.xlu0 %2214
        %2216 = vrot.lane.b32.xlu0 %v2139, 32
        %v2217 = vpop.permute.xlu0 %2216
        %2218 = vrot.lane.b32.xlu0 %v2140, 32
        %v2219 = vpop.permute.xlu0 %2218
        %2220 = vrot.lane.b32.xlu0 %v2141, 32
        %v2221 = vpop.permute.xlu0 %2220
        %2222 = vrot.lane.b32.xlu0 %v2142, 32
        %v2223 = vpop.permute.xlu0 %2222
        %2224 = vrot.lane.b32.xlu0 %v2143, 32
        %v2225 = vpop.permute.xlu0 %2224
        %2226 = vrot.lane.b32.xlu0 %v2144, 32
        %v2227 = vpop.permute.xlu0 %2226
        %2228 = vrot.lane.b32.xlu0 %v2145, 32
        %v2229 = vpop.permute.xlu0 %2228
        %2230 = vrot.lane.b32.xlu0 %v2146, 32
        %v2231 = vpop.permute.xlu0 %2230
        %2232 = vrot.lane.b32.xlu0 %v2147, 32
        %v2233 = vpop.permute.xlu0 %2232
        %2234 = vrot.lane.b32.xlu0 %v2148, 32
        %v2235 = vpop.permute.xlu0 %2234
        %2236 = vrot.lane.b32.xlu0 %v2149, 32
        %v2237 = vpop.permute.xlu0 %2236
        %2238 = vrot.lane.b32.xlu0 %v2150, 32
        %v2239 = vpop.permute.xlu0 %2238
        %2240 = vrot.lane.b32.xlu0 %v2151, 32
        %v2241 = vpop.permute.xlu0 %2240
        %2242 = vrot.lane.b32.xlu0 %v2152, 32
        %v2243 = vpop.permute.xlu0 %2242
        %2244 = vrot.lane.b32.xlu0 %v2153, 32
        %v2245 = vpop.permute.xlu0 %2244
        %2246 = vrot.lane.b32.xlu0 %v2154, 32
        %v2247 = vpop.permute.xlu0 %2246
        %2248 = vrot.lane.b32.xlu0 %v2155, 32
        %v2249 = vpop.permute.xlu0 %2248
        %2250 = vrot.lane.b32.xlu0 %v2156, 32
        %v2251 = vpop.permute.xlu0 %2250
        %2252 = vrot.lane.b32.xlu0 %v2157, 32
        %v2253 = vpop.permute.xlu0 %2252
        %vm2286 = vcmask 290048
        %2287 = vst.msk [vmem:[#allocation3] sm:$0xf] %vm2286, %v2191
        %2288 = vst.msk [vmem:[#allocation3 + $0x4] sm:$0xf] %vm2286, %v2193
        %2289 = vst.msk [vmem:[#allocation3 + $0x8] sm:$0xf] %vm2286, %v2195
        %2290 = vst.msk [vmem:[#allocation3 + $0xc] sm:$0xf] %vm2286, %v2197
        %2291 = vst.msk [vmem:[#allocation3 + $0x10] sm:$0xf] %vm2286, %v2199
        %2292 = vst.msk [vmem:[#allocation3 + $0x14] sm:$0xf] %vm2286, %v2201
        %2293 = vst.msk [vmem:[#allocation3 + $0x18] sm:$0xf] %vm2286, %v2203
        %2294 = vst.msk [vmem:[#allocation3 + $0x1c] sm:$0xf] %vm2286, %v2205
        %2295 = vst.msk [vmem:[#allocation3 + $0x20] sm:$0xf] %vm2286, %v2207
        %2296 = vst.msk [vmem:[#allocation3 + $0x24] sm:$0xf] %vm2286, %v2209
        %2297 = vst.msk [vmem:[#allocation3 + $0x28] sm:$0xf] %vm2286, %v2211
        %2298 = vst.msk [vmem:[#allocation3 + $0x2c] sm:$0xf] %vm2286, %v2213
        %2299 = vst.msk [vmem:[#allocation3 + $0x30] sm:$0xf] %vm2286, %v2215
        %2300 = vst.msk [vmem:[#allocation3 + $0x34] sm:$0xf] %vm2286, %v2217
        %2301 = vst.msk [vmem:[#allocation3 + $0x38] sm:$0xf] %vm2286, %v2219
        %2302 = vst.msk [vmem:[#allocation3 + $0x3c] sm:$0xf] %vm2286, %v2221
        %2303 = vst.msk [vmem:[#allocation3 + $0x40] sm:$0xf] %vm2286, %v2223
        %2304 = vst.msk [vmem:[#allocation3 + $0x44] sm:$0xf] %vm2286, %v2225
        %2305 = vst.msk [vmem:[#allocation3 + $0x48] sm:$0xf] %vm2286, %v2227
        %2306 = vst.msk [vmem:[#allocation3 + $0x4c] sm:$0xf] %vm2286, %v2229
        %2307 = vst.msk [vmem:[#allocation3 + $0x50] sm:$0xf] %vm2286, %v2231
        %2308 = vst.msk [vmem:[#allocation3 + $0x54] sm:$0xf] %vm2286, %v2233
        %2309 = vst.msk [vmem:[#allocation3 + $0x58] sm:$0xf] %vm2286, %v2235
        %2310 = vst.msk [vmem:[#allocation3 + $0x5c] sm:$0xf] %vm2286, %v2237
        %2311 = vst.msk [vmem:[#allocation3 + $0x60] sm:$0xf] %vm2286, %v2239
        %2312 = vst.msk [vmem:[#allocation3 + $0x64] sm:$0xf] %vm2286, %v2241
        %2313 = vst.msk [vmem:[#allocation3 + $0x68] sm:$0xf] %vm2286, %v2243
        %2314 = vst.msk [vmem:[#allocation3 + $0x6c] sm:$0xf] %vm2286, %v2245
        %2315 = vst.msk [vmem:[#allocation3 + $0x70] sm:$0xf] %vm2286, %v2247
        %2316 = vst.msk [vmem:[#allocation3 + $0x74] sm:$0xf] %vm2286, %v2249
        %2317 = vst.msk [vmem:[#allocation3 + $0x78] sm:$0xf] %vm2286, %v2251
        %2318 = vst.msk [vmem:[#allocation3 + $0x7c] sm:$0xf] %vm2286, %v2253
        %v2319 = vld [vmem:[#allocation3] sm:$0xf]
        %v2320 = vld [vmem:[#allocation3 + $0x4] sm:$0xf]
        %v2321 = vld [vmem:[#allocation3 + $0x8] sm:$0xf]
        %v2322 = vld [vmem:[#allocation3 + $0xc] sm:$0xf]
        %v2323 = vld [vmem:[#allocation3 + $0x10] sm:$0xf]
        %v2324 = vld [vmem:[#allocation3 + $0x14] sm:$0xf]
        %v2325 = vld [vmem:[#allocation3 + $0x18] sm:$0xf]
        %v2326 = vld [vmem:[#allocation3 + $0x1c] sm:$0xf]
        %v2327 = vld [vmem:[#allocation3 + $0x20] sm:$0xf]
        %v2328 = vld [vmem:[#allocation3 + $0x24] sm:$0xf]
        %v2329 = vld [vmem:[#allocation3 + $0x28] sm:$0xf]
        %v2330 = vld [vmem:[#allocation3 + $0x2c] sm:$0xf]
        %v2331 = vld [vmem:[#allocation3 + $0x30] sm:$0xf]
        %v2332 = vld [vmem:[#allocation3 + $0x34] sm:$0xf]
        %v2333 = vld [vmem:[#allocation3 + $0x38] sm:$0xf]
        %v2334 = vld [vmem:[#allocation3 + $0x3c] sm:$0xf]
        %v2335 = vld [vmem:[#allocation3 + $0x40] sm:$0xf]
        %v2336 = vld [vmem:[#allocation3 + $0x44] sm:$0xf]
        %v2337 = vld [vmem:[#allocation3 + $0x48] sm:$0xf]
        %v2338 = vld [vmem:[#allocation3 + $0x4c] sm:$0xf]
        %v2339 = vld [vmem:[#allocation3 + $0x50] sm:$0xf]
        %v2340 = vld [vmem:[#allocation3 + $0x54] sm:$0xf]
        %v2341 = vld [vmem:[#allocation3 + $0x58] sm:$0xf]
        %v2342 = vld [vmem:[#allocation3 + $0x5c] sm:$0xf]
        %v2343 = vld [vmem:[#allocation3 + $0x60] sm:$0xf]
        %v2344 = vld [vmem:[#allocation3 + $0x64] sm:$0xf]
        %v2345 = vld [vmem:[#allocation3 + $0x68] sm:$0xf]
        %v2346 = vld [vmem:[#allocation3 + $0x6c] sm:$0xf]
        %v2347 = vld [vmem:[#allocation3 + $0x70] sm:$0xf]
        %v2348 = vld [vmem:[#allocation3 + $0x74] sm:$0xf]
        %v2349 = vld [vmem:[#allocation3 + $0x78] sm:$0xf]
        %v2350 = vld [vmem:[#allocation3 + $0x7c] sm:$0xf]
        %v2351 = vld [vmem:[%s1] sm:$0xff]
        %v2352 = vld [vmem:[%s1 + $0x8] sm:$0xff]
        %v2353 = vld [vmem:[%s1 + $0x10] sm:$0xff]
        %v2354 = vld [vmem:[%s1 + $0x18] sm:$0xff]
        %v2355 = vld [vmem:[%s1 + $0x20] sm:$0x33]
        %v2356 = vld [vmem:[%s2] sm:$0x3]
        %v2358 = vperm.slane %v2356, 0
        %v2359 = vperm.slane %v2356, 1
        %v2394 = vunpack.c.l.b16 %v2319
        %v2395 = vunpack.c.l.b16 %v2320
        %v2396 = vunpack.c.l.b16 %v2321
        %v2397 = vunpack.c.l.b16 %v2322
        %v2398 = vunpack.c.l.b16 %v2323
        %v2399 = vunpack.c.l.b16 %v2324
        %v2400 = vunpack.c.l.b16 %v2325
        %v2401 = vunpack.c.l.b16 %v2326
        %v2402 = vunpack.c.l.b16 %v2327
        %v2403 = vunpack.c.l.b16 %v2328
        %v2404 = vunpack.c.l.b16 %v2329
        %v2405 = vunpack.c.l.b16 %v2330
        %v2406 = vunpack.c.l.b16 %v2331
        %v2407 = vunpack.c.l.b16 %v2332
        %v2408 = vunpack.c.l.b16 %v2333
        %v2409 = vunpack.c.l.b16 %v2334
        %v2410 = vunpack.c.l.b16 %v2335
        %v2411 = vunpack.c.l.b16 %v2336
        %v2412 = vunpack.c.l.b16 %v2337
        %v2413 = vunpack.c.l.b16 %v2338
        %v2414 = vunpack.c.l.b16 %v2339
        %v2415 = vunpack.c.l.b16 %v2340
        %v2416 = vunpack.c.l.b16 %v2341
        %v2417 = vunpack.c.l.b16 %v2342
        %v2418 = vunpack.c.l.b16 %v2343
        %v2419 = vunpack.c.l.b16 %v2344
        %v2420 = vunpack.c.l.b16 %v2345
        %v2421 = vunpack.c.l.b16 %v2346
        %v2422 = vunpack.c.l.b16 %v2347
        %v2423 = vunpack.c.l.b16 %v2348
        %v2424 = vunpack.c.l.b16 %v2349
        %v2425 = vunpack.c.l.b16 %v2350
        %v2426 = vpack.c.b16 %v2395, %v2394
        %v2427 = vpack.c.b16 %v2397, %v2396
        %v2428 = vpack.c.b16 %v2399, %v2398
        %v2429 = vpack.c.b16 %v2401, %v2400
        %v2430 = vpack.c.b16 %v2403, %v2402
        %v2431 = vpack.c.b16 %v2405, %v2404
        %v2432 = vpack.c.b16 %v2407, %v2406
        %v2433 = vpack.c.b16 %v2409, %v2408
        %v2434 = vpack.c.b16 %v2411, %v2410
        %v2435 = vpack.c.b16 %v2413, %v2412
        %v2436 = vpack.c.b16 %v2415, %v2414
        %v2437 = vpack.c.b16 %v2417, %v2416
        %v2438 = vpack.c.b16 %v2419, %v2418
        %v2439 = vpack.c.b16 %v2421, %v2420
        %v2440 = vpack.c.b16 %v2423, %v2422
        %v2441 = vpack.c.b16 %v2425, %v2424
        %v2447 = vunpack.c.l.b16 %v2351
        %v2448 = vunpack.c.h.b16 %v2351
        %v2449 = vunpack.c.l.b16 %v2352
        %v2450 = vunpack.c.h.b16 %v2352
        %v2451 = vunpack.c.l.b16 %v2353
        %v2452 = vunpack.c.h.b16 %v2353
        %v2453 = vunpack.c.l.b16 %v2354
        %v2454 = vunpack.c.h.b16 %v2354
        %v2455 = vunpack.c.l.b16 %v2355
        %v2456 = vunpack.c.h.b16 %v2355
        %v2457 = vpack.c.b16 %v2449, %v2447
        %v2458 = vpack.c.b16 %v2450, %v2448
        %v2459 = vpack.c.b16 %v2453, %v2451
        %v2460 = vpack.c.b16 %v2454, %v2452
        %v2461 = vpack.c.b16 %v2455, %v2455
        %v2462 = vpack.c.b16 %v2456, %v2456
        %vm2467 = vcmask 293888
        %v2469 = vsel %vm2467, %v2426, 0
        %v2472 = vsel %vm2467, %v2427, 0
        %v2475 = vsel %vm2467, %v2428, 0
        %v2478 = vsel %vm2467, %v2429, 0
        %v2481 = vsel %vm2467, %v2430, 0
        %v2484 = vsel %vm2467, %v2431, 0
        %v2487 = vsel %vm2467, %v2432, 0
        %v2490 = vsel %vm2467, %v2433, 0
        %v2493 = vsel %vm2467, %v2434, 0
        %v2496 = vsel %vm2467, %v2435, 0
        %v2499 = vsel %vm2467, %v2436, 0
        %v2502 = vsel %vm2467, %v2437, 0
        %v2505 = vsel %vm2467, %v2438, 0
        %v2508 = vsel %vm2467, %v2439, 0
        %v2511 = vsel %vm2467, %v2440, 0
        %v2514 = vsel %vm2467, %v2441, 0
        %vm2516 = vcmask 1041408
        %v2518 = vsel %vm2516, %v2461, 0
        %v2521 = vsel %vm2516, %v2462, 0
        %2523 = vmatpush.bf16.msra.mxu0 0
        %2524 = vmatpush.bf16.msra.mxu0 0
        %2525 = vmatpush.bf16.msra.mxu0 0
        %2526 = vmatpush.bf16.msra.mxu0 0
        %2527 = vmatpush.bf16.msra.mxu0 0
        %2528 = vmatpush.bf16.msra.mxu0 %v2518
        %2529 = vmatpush.bf16.msra.mxu0 %v2459
        %2530 = vmatpush.bf16.msra.mxu0 %v2457
        %2531 = vmatmul.bf16.gmra.mxu0 %v2469
        %v2532 = vpop.f32.mrf.mxu0
        %v2533 = vadd.f32 %v2358, %v2532
        %v2534 = vpop.f32.mrf.mxu0
        %v2535 = vadd.f32 %v2358, %v2534
        %2536 = vmatmul.bf16.gmra.mxu0 %v2472
        %v2537 = vpop.f32.mrf.mxu0
        %v2538 = vadd.f32 %v2358, %v2537
        %v2539 = vpop.f32.mrf.mxu0
        %v2540 = vadd.f32 %v2358, %v2539
        %2541 = vmatmul.bf16.gmra.mxu0 %v2475
        %v2542 = vpop.f32.mrf.mxu0
        %v2543 = vadd.f32 %v2358, %v2542
        %v2544 = vpop.f32.mrf.mxu0
        %v2545 = vadd.f32 %v2358, %v2544
        %2546 = vmatmul.bf16.gmra.mxu0 %v2478
        %v2547 = vpop.f32.mrf.mxu0
        %v2548 = vadd.f32 %v2358, %v2547
        %v2549 = vpop.f32.mrf.mxu0
        %v2550 = vadd.f32 %v2358, %v2549
        %2551 = vmatmul.bf16.gmra.mxu0 %v2481
        %v2552 = vpop.f32.mrf.mxu0
        %v2553 = vadd.f32 %v2358, %v2552
        %v2554 = vpop.f32.mrf.mxu0
        %v2555 = vadd.f32 %v2358, %v2554
        %2556 = vmatmul.bf16.gmra.mxu0 %v2484
        %v2557 = vpop.f32.mrf.mxu0
        %v2558 = vadd.f32 %v2358, %v2557
        %v2559 = vpop.f32.mrf.mxu0
        %v2560 = vadd.f32 %v2358, %v2559
        %2561 = vmatmul.bf16.gmra.mxu0 %v2487
        %v2562 = vpop.f32.mrf.mxu0
        %v2563 = vadd.f32 %v2358, %v2562
        %v2564 = vpop.f32.mrf.mxu0
        %v2565 = vadd.f32 %v2358, %v2564
        %2566 = vmatmul.bf16.gmra.mxu0 %v2490
        %v2567 = vpop.f32.mrf.mxu0
        %v2568 = vadd.f32 %v2358, %v2567
        %v2569 = vpop.f32.mrf.mxu0
        %v2570 = vadd.f32 %v2358, %v2569
        %2571 = vmatmul.bf16.gmra.mxu0 %v2493
        %v2572 = vpop.f32.mrf.mxu0
        %v2573 = vadd.f32 %v2358, %v2572
        %v2574 = vpop.f32.mrf.mxu0
        %v2575 = vadd.f32 %v2358, %v2574
        %2576 = vmatmul.bf16.gmra.mxu0 %v2496
        %v2577 = vpop.f32.mrf.mxu0
        %v2578 = vadd.f32 %v2358, %v2577
        %v2579 = vpop.f32.mrf.mxu0
        %v2580 = vadd.f32 %v2358, %v2579
        %2581 = vmatmul.bf16.gmra.mxu0 %v2499
        %v2582 = vpop.f32.mrf.mxu0
        %v2583 = vadd.f32 %v2358, %v2582
        %v2584 = vpop.f32.mrf.mxu0
        %v2585 = vadd.f32 %v2358, %v2584
        %2586 = vmatmul.bf16.gmra.mxu0 %v2502
        %v2587 = vpop.f32.mrf.mxu0
        %v2588 = vadd.f32 %v2358, %v2587
        %v2589 = vpop.f32.mrf.mxu0
        %v2590 = vadd.f32 %v2358, %v2589
        %2591 = vmatmul.bf16.gmra.mxu0 %v2505
        %v2592 = vpop.f32.mrf.mxu0
        %v2593 = vadd.f32 %v2358, %v2592
        %v2594 = vpop.f32.mrf.mxu0
        %v2595 = vadd.f32 %v2358, %v2594
        %2596 = vmatmul.bf16.gmra.mxu0 %v2508
        %v2597 = vpop.f32.mrf.mxu0
        %v2598 = vadd.f32 %v2358, %v2597
        %v2599 = vpop.f32.mrf.mxu0
        %v2600 = vadd.f32 %v2358, %v2599
        %2601 = vmatmul.bf16.gmra.mxu0 %v2511
        %v2602 = vpop.f32.mrf.mxu0
        %v2603 = vadd.f32 %v2358, %v2602
        %v2604 = vpop.f32.mrf.mxu0
        %v2605 = vadd.f32 %v2358, %v2604
        %2606 = vmatmul.bf16.gmra.mxu0 %v2514
        %v2607 = vpop.f32.mrf.mxu0
        %v2608 = vadd.f32 %v2358, %v2607
        %v2609 = vpop.f32.mrf.mxu0
        %v2610 = vadd.f32 %v2358, %v2609
        %2611 = vdwg.mxu0
        %2612 = vmatpush.bf16.msra.mxu0 0
        %2613 = vmatpush.bf16.msra.mxu0 0
        %2614 = vmatpush.bf16.msra.mxu0 0
        %2615 = vmatpush.bf16.msra.mxu0 0
        %2616 = vmatpush.bf16.msra.mxu0 0
        %2617 = vmatpush.bf16.msra.mxu0 %v2521
        %2618 = vmatpush.bf16.msra.mxu0 %v2460
        %2619 = vmatpush.bf16.msra.mxu0 %v2458
        %2620 = vmatmul.bf16.gmra.mxu0 %v2469
        %v2621 = vpop.f32.mrf.mxu0
        %v2622 = vadd.f32 %v2359, %v2621
        %v2623 = vpop.f32.mrf.mxu0
        %v2624 = vadd.f32 %v2359, %v2623
        %2625 = vmatmul.bf16.gmra.mxu0 %v2472
        %v2626 = vpop.f32.mrf.mxu0
        %v2627 = vadd.f32 %v2359, %v2626
        %v2628 = vpop.f32.mrf.mxu0
        %v2629 = vadd.f32 %v2359, %v2628
        %2630 = vmatmul.bf16.gmra.mxu0 %v2475
        %v2631 = vpop.f32.mrf.mxu0
        %v2632 = vadd.f32 %v2359, %v2631
        %v2633 = vpop.f32.mrf.mxu0
        %v2634 = vadd.f32 %v2359, %v2633
        %2635 = vmatmul.bf16.gmra.mxu0 %v2478
        %v2636 = vpop.f32.mrf.mxu0
        %v2637 = vadd.f32 %v2359, %v2636
        %v2638 = vpop.f32.mrf.mxu0
        %v2639 = vadd.f32 %v2359, %v2638
        %2640 = vmatmul.bf16.gmra.mxu0 %v2481
        %v2641 = vpop.f32.mrf.mxu0
        %v2642 = vadd.f32 %v2359, %v2641
        %v2643 = vpop.f32.mrf.mxu0
        %v2644 = vadd.f32 %v2359, %v2643
        %2645 = vmatmul.bf16.gmra.mxu0 %v2484
        %v2646 = vpop.f32.mrf.mxu0
        %v2647 = vadd.f32 %v2359, %v2646
        %v2648 = vpop.f32.mrf.mxu0
        %v2649 = vadd.f32 %v2359, %v2648
        %2650 = vmatmul.bf16.gmra.mxu0 %v2487
        %v2651 = vpop.f32.mrf.mxu0
        %v2652 = vadd.f32 %v2359, %v2651
        %v2653 = vpop.f32.mrf.mxu0
        %v2654 = vadd.f32 %v2359, %v2653
        %2655 = vmatmul.bf16.gmra.mxu0 %v2490
        %v2656 = vpop.f32.mrf.mxu0
        %v2657 = vadd.f32 %v2359, %v2656
        %v2658 = vpop.f32.mrf.mxu0
        %v2659 = vadd.f32 %v2359, %v2658
        %2660 = vmatmul.bf16.gmra.mxu0 %v2493
        %v2661 = vpop.f32.mrf.mxu0
        %v2662 = vadd.f32 %v2359, %v2661
        %v2663 = vpop.f32.mrf.mxu0
        %v2664 = vadd.f32 %v2359, %v2663
        %2665 = vmatmul.bf16.gmra.mxu0 %v2496
        %v2666 = vpop.f32.mrf.mxu0
        %v2667 = vadd.f32 %v2359, %v2666
        %v2668 = vpop.f32.mrf.mxu0
        %v2669 = vadd.f32 %v2359, %v2668
        %2670 = vmatmul.bf16.gmra.mxu0 %v2499
        %v2671 = vpop.f32.mrf.mxu0
        %v2672 = vadd.f32 %v2359, %v2671
        %v2673 = vpop.f32.mrf.mxu0
        %v2674 = vadd.f32 %v2359, %v2673
        %2675 = vmatmul.bf16.gmra.mxu0 %v2502
        %v2676 = vpop.f32.mrf.mxu0
        %v2677 = vadd.f32 %v2359, %v2676
        %v2678 = vpop.f32.mrf.mxu0
        %v2679 = vadd.f32 %v2359, %v2678
        %2680 = vmatmul.bf16.gmra.mxu0 %v2505
        %v2681 = vpop.f32.mrf.mxu0
        %v2682 = vadd.f32 %v2359, %v2681
        %v2683 = vpop.f32.mrf.mxu0
        %v2684 = vadd.f32 %v2359, %v2683
        %2685 = vmatmul.bf16.gmra.mxu0 %v2508
        %v2686 = vpop.f32.mrf.mxu0
        %v2687 = vadd.f32 %v2359, %v2686
        %v2688 = vpop.f32.mrf.mxu0
        %v2689 = vadd.f32 %v2359, %v2688
        %2690 = vmatmul.bf16.gmra.mxu0 %v2511
        %v2691 = vpop.f32.mrf.mxu0
        %v2692 = vadd.f32 %v2359, %v2691
        %v2693 = vpop.f32.mrf.mxu0
        %v2694 = vadd.f32 %v2359, %v2693
        %2695 = vmatmul.bf16.gmra.mxu0 %v2514
        %v2696 = vpop.f32.mrf.mxu0
        %v2697 = vadd.f32 %v2359, %v2696
        %v2698 = vpop.f32.mrf.mxu0
        %v2699 = vadd.f32 %v2359, %v2698
        %2700 = vdwg.mxu0
        %v2701 = vmax.f32 %v2533, 0.0
        %v2702 = vmax.f32 %v2622, 0.0
        %v2703 = vmax.f32 %v2535, 0.0
        %v2704 = vmax.f32 %v2624, 0.0
        %v2705 = vmax.f32 %v2538, 0.0
        %v2706 = vmax.f32 %v2627, 0.0
        %v2707 = vmax.f32 %v2540, 0.0
        %v2708 = vmax.f32 %v2629, 0.0
        %v2709 = vmax.f32 %v2543, 0.0
        %v2710 = vmax.f32 %v2632, 0.0
        %v2711 = vmax.f32 %v2545, 0.0
        %v2712 = vmax.f32 %v2634, 0.0
        %v2713 = vmax.f32 %v2548, 0.0
        %v2714 = vmax.f32 %v2637, 0.0
        %v2715 = vmax.f32 %v2550, 0.0
        %v2716 = vmax.f32 %v2639, 0.0
        %v2717 = vmax.f32 %v2553, 0.0
        %v2718 = vmax.f32 %v2642, 0.0
        %v2719 = vmax.f32 %v2555, 0.0
        %v2720 = vmax.f32 %v2644, 0.0
        %v2721 = vmax.f32 %v2558, 0.0
        %v2722 = vmax.f32 %v2647, 0.0
        %v2723 = vmax.f32 %v2560, 0.0
        %v2724 = vmax.f32 %v2649, 0.0
        %v2725 = vmax.f32 %v2563, 0.0
        %v2726 = vmax.f32 %v2652, 0.0
        %v2727 = vmax.f32 %v2565, 0.0
        %v2728 = vmax.f32 %v2654, 0.0
        %v2729 = vmax.f32 %v2568, 0.0
        %v2730 = vmax.f32 %v2657, 0.0
        %v2731 = vmax.f32 %v2570, 0.0
        %v2732 = vmax.f32 %v2659, 0.0
        %v2733 = vmax.f32 %v2573, 0.0
        %v2734 = vmax.f32 %v2662, 0.0
        %v2735 = vmax.f32 %v2575, 0.0
        %v2736 = vmax.f32 %v2664, 0.0
        %v2737 = vmax.f32 %v2578, 0.0
        %v2738 = vmax.f32 %v2667, 0.0
        %v2739 = vmax.f32 %v2580, 0.0
        %v2740 = vmax.f32 %v2669, 0.0
        %v2741 = vmax.f32 %v2583, 0.0
        %v2742 = vmax.f32 %v2672, 0.0
        %v2743 = vmax.f32 %v2585, 0.0
        %v2744 = vmax.f32 %v2674, 0.0
        %v2745 = vmax.f32 %v2588, 0.0
        %v2746 = vmax.f32 %v2677, 0.0
        %v2747 = vmax.f32 %v2590, 0.0
        %v2748 = vmax.f32 %v2679, 0.0
        %v2749 = vmax.f32 %v2593, 0.0
        %v2750 = vmax.f32 %v2682, 0.0
        %v2751 = vmax.f32 %v2595, 0.0
        %v2752 = vmax.f32 %v2684, 0.0
        %v2753 = vmax.f32 %v2598, 0.0
        %v2754 = vmax.f32 %v2687, 0.0
        %v2755 = vmax.f32 %v2600, 0.0
        %v2756 = vmax.f32 %v2689, 0.0
        %v2757 = vmax.f32 %v2603, 0.0
        %v2758 = vmax.f32 %v2692, 0.0
        %v2759 = vmax.f32 %v2605, 0.0
        %v2760 = vmax.f32 %v2694, 0.0
        %v2761 = vmax.f32 %v2608, 0.0
        %v2762 = vmax.f32 %v2697, 0.0
        %v2763 = vmax.f32 %v2610, 0.0
        %v2764 = vmax.f32 %v2699, 0.0
        %v2765 = vld [vmem:[%s6] sm:$0xff]
        %v2766 = vld [vmem:[%s6 + $0x8] sm:$0xff]
        %v2767 = vld [vmem:[%s6 + $0x10] sm:$0xff]
        %v2768 = vld [vmem:[%s6 + $0x18] sm:$0xff]
        %v2769 = vld [vmem:[%s6 + $0x20] sm:$0xff]
        %v2770 = vld [vmem:[%s6 + $0x28] sm:$0xff]
        %v2771 = vld [vmem:[%s6 + $0x30] sm:$0xff]
        %v2772 = vld [vmem:[%s6 + $0x38] sm:$0xff]
        %v2773 = vpack.c.bf16 %v2703, %v2701
        %v2774 = vpack.c.bf16 %v2704, %v2702
        %v2775 = vpack.c.bf16 %v2707, %v2705
        %v2776 = vpack.c.bf16 %v2708, %v2706
        %v2777 = vpack.c.bf16 %v2711, %v2709
        %v2778 = vpack.c.bf16 %v2712, %v2710
        %v2779 = vpack.c.bf16 %v2715, %v2713
        %v2780 = vpack.c.bf16 %v2716, %v2714
        %v2781 = vpack.c.bf16 %v2719, %v2717
        %v2782 = vpack.c.bf16 %v2720, %v2718
        %v2783 = vpack.c.bf16 %v2723, %v2721
        %v2784 = vpack.c.bf16 %v2724, %v2722
        %v2785 = vpack.c.bf16 %v2727, %v2725
        %v2786 = vpack.c.bf16 %v2728, %v2726
        %v2787 = vpack.c.bf16 %v2731, %v2729
        %v2788 = vpack.c.bf16 %v2732, %v2730
        %v2789 = vpack.c.bf16 %v2735, %v2733
        %v2790 = vpack.c.bf16 %v2736, %v2734
        %v2791 = vpack.c.bf16 %v2739, %v2737
        %v2792 = vpack.c.bf16 %v2740, %v2738
        %v2793 = vpack.c.bf16 %v2743, %v2741
        %v2794 = vpack.c.bf16 %v2744, %v2742
        %v2795 = vpack.c.bf16 %v2747, %v2745
        %v2796 = vpack.c.bf16 %v2748, %v2746
        %v2797 = vpack.c.bf16 %v2751, %v2749
        %v2798 = vpack.c.bf16 %v2752, %v2750
        %v2799 = vpack.c.bf16 %v2755, %v2753
        %v2800 = vpack.c.bf16 %v2756, %v2754
        %v2801 = vpack.c.bf16 %v2759, %v2757
        %v2802 = vpack.c.bf16 %v2760, %v2758
        %v2803 = vpack.c.bf16 %v2763, %v2761
        %v2804 = vpack.c.bf16 %v2764, %v2762
        %v2813 = vunpack.c.l.b16 %v2765
        %v2814 = vunpack.c.h.b16 %v2765
        %v2815 = vunpack.c.l.b16 %v2766
        %v2816 = vunpack.c.h.b16 %v2766
        %v2817 = vunpack.c.l.b16 %v2767
        %v2818 = vunpack.c.h.b16 %v2767
        %v2819 = vunpack.c.l.b16 %v2768
        %v2820 = vunpack.c.h.b16 %v2768
        %v2821 = vunpack.c.l.b16 %v2769
        %v2822 = vunpack.c.h.b16 %v2769
        %v2823 = vunpack.c.l.b16 %v2770
        %v2824 = vunpack.c.h.b16 %v2770
        %v2825 = vunpack.c.l.b16 %v2771
        %v2826 = vunpack.c.h.b16 %v2771
        %v2827 = vunpack.c.l.b16 %v2772
        %v2828 = vunpack.c.h.b16 %v2772
        %v2829 = vpack.c.b16 %v2815, %v2813
        %v2830 = vpack.c.b16 %v2816, %v2814
        %v2831 = vpack.c.b16 %v2819, %v2817
        %v2832 = vpack.c.b16 %v2820, %v2818
        %v2833 = vpack.c.b16 %v2823, %v2821
        %v2834 = vpack.c.b16 %v2824, %v2822
        %v2835 = vpack.c.b16 %v2827, %v2825
        %v2836 = vpack.c.b16 %v2828, %v2826
        %2845 = vmatpush.bf16.msra.mxu0 %v2787
        %2846 = vmatpush.bf16.msra.mxu0 %v2785
        %2847 = vmatpush.bf16.msra.mxu0 %v2783
        %2848 = vmatpush.bf16.msra.mxu0 %v2781
        %2849 = vmatpush.bf16.msra.mxu0 %v2779
        %2850 = vmatpush.bf16.msra.mxu0 %v2777
        %2851 = vmatpush.bf16.msra.mxu0 %v2775
        %2852 = vmatpush.bf16.msra.mxu0 %v2773
        %2853 = vmatmul.bf16.gmra.mxu0 %v2829
        %v2854 = vpop.f32.mrf.mxu0
        %v2855 = vadd.f32 0.0, %v2854
        %v2856 = vpop.f32.mrf.mxu0
        %v2857 = vadd.f32 0.0, %v2856
        %2858 = vmatmul.bf16.gmra.mxu0 %v2831
        %v2859 = vpop.f32.mrf.mxu0
        %v2860 = vadd.f32 0.0, %v2859
        %v2861 = vpop.f32.mrf.mxu0
        %v2862 = vadd.f32 0.0, %v2861
        %2863 = vmatmul.bf16.gmra.mxu0 %v2833
        %v2864 = vpop.f32.mrf.mxu0
        %v2865 = vadd.f32 0.0, %v2864
        %v2866 = vpop.f32.mrf.mxu0
        %v2867 = vadd.f32 0.0, %v2866
        %2868 = vmatmul.bf16.gmra.mxu0 %v2835
        %v2869 = vpop.f32.mrf.mxu0
        %v2870 = vadd.f32 0.0, %v2869
        %v2871 = vpop.f32.mrf.mxu0
        %v2872 = vadd.f32 0.0, %v2871
        %2873 = vdwg.mxu0
        %2874 = vmatpush.bf16.msra.mxu0 %v2803
        %2875 = vmatpush.bf16.msra.mxu0 %v2801
        %2876 = vmatpush.bf16.msra.mxu0 %v2799
        %2877 = vmatpush.bf16.msra.mxu0 %v2797
        %2878 = vmatpush.bf16.msra.mxu0 %v2795
        %2879 = vmatpush.bf16.msra.mxu0 %v2793
        %2880 = vmatpush.bf16.msra.mxu0 %v2791
        %2881 = vmatpush.bf16.msra.mxu0 %v2789
        %2882 = vmatmul.bf16.gmra.mxu0 %v2830
        %v2883 = vpop.f32.mrf.mxu0
        %v2884 = vadd.f32 %v2855, %v2883
        %v2885 = vpop.f32.mrf.mxu0
        %v2886 = vadd.f32 %v2857, %v2885
        %2887 = vmatmul.bf16.gmra.mxu0 %v2832
        %v2888 = vpop.f32.mrf.mxu0
        %v2889 = vadd.f32 %v2860, %v2888
        %v2890 = vpop.f32.mrf.mxu0
        %v2891 = vadd.f32 %v2862, %v2890
        %2892 = vmatmul.bf16.gmra.mxu0 %v2834
        %v2893 = vpop.f32.mrf.mxu0
        %v2894 = vadd.f32 %v2865, %v2893
        %v2895 = vpop.f32.mrf.mxu0
        %v2896 = vadd.f32 %v2867, %v2895
        %2897 = vmatmul.bf16.gmra.mxu0 %v2836
        %v2898 = vpop.f32.mrf.mxu0
        %v2899 = vadd.f32 %v2870, %v2898
        %v2900 = vpop.f32.mrf.mxu0
        %v2901 = vadd.f32 %v2872, %v2900
        %2902 = vdwg.mxu0
        %2903 = vmatpush.bf16.msra.mxu0 %v2788
        %2904 = vmatpush.bf16.msra.mxu0 %v2786
        %2905 = vmatpush.bf16.msra.mxu0 %v2784
        %2906 = vmatpush.bf16.msra.mxu0 %v2782
        %2907 = vmatpush.bf16.msra.mxu0 %v2780
        %2908 = vmatpush.bf16.msra.mxu0 %v2778
        %2909 = vmatpush.bf16.msra.mxu0 %v2776
        %2910 = vmatpush.bf16.msra.mxu0 %v2774
        %2911 = vmatmul.bf16.gmra.mxu0 %v2829
        %v2912 = vpop.f32.mrf.mxu0
        %v2913 = vadd.f32 0.0, %v2912
        %v2914 = vpop.f32.mrf.mxu0
        %v2915 = vadd.f32 0.0, %v2914
        %2916 = vmatmul.bf16.gmra.mxu0 %v2831
        %v2917 = vpop.f32.mrf.mxu0
        %v2918 = vadd.f32 0.0, %v2917
        %v2919 = vpop.f32.mrf.mxu0
        %v2920 = vadd.f32 0.0, %v2919
        %2921 = vmatmul.bf16.gmra.mxu0 %v2833
        %v2922 = vpop.f32.mrf.mxu0
        %v2923 = vadd.f32 0.0, %v2922
        %v2924 = vpop.f32.mrf.mxu0
        %v2925 = vadd.f32 0.0, %v2924
        %2926 = vmatmul.bf16.gmra.mxu0 %v2835
        %v2927 = vpop.f32.mrf.mxu0
        %v2928 = vadd.f32 0.0, %v2927
        %v2929 = vpop.f32.mrf.mxu0
        %v2930 = vadd.f32 0.0, %v2929
        %2931 = vdwg.mxu0
        %2932 = vmatpush.bf16.msra.mxu0 %v2804
        %2933 = vmatpush.bf16.msra.mxu0 %v2802
        %2934 = vmatpush.bf16.msra.mxu0 %v2800
        %2935 = vmatpush.bf16.msra.mxu0 %v2798
        %2936 = vmatpush.bf16.msra.mxu0 %v2796
        %2937 = vmatpush.bf16.msra.mxu0 %v2794
        %2938 = vmatpush.bf16.msra.mxu0 %v2792
        %2939 = vmatpush.bf16.msra.mxu0 %v2790
        %2940 = vmatmul.bf16.gmra.mxu0 %v2830
        %v2941 = vpop.f32.mrf.mxu0
        %v2942 = vadd.f32 %v2913, %v2941
        %v2943 = vpop.f32.mrf.mxu0
        %v2944 = vadd.f32 %v2915, %v2943
        %2945 = vmatmul.bf16.gmra.mxu0 %v2832
        %v2946 = vpop.f32.mrf.mxu0
        %v2947 = vadd.f32 %v2918, %v2946
        %v2948 = vpop.f32.mrf.mxu0
        %v2949 = vadd.f32 %v2920, %v2948
        %2950 = vmatmul.bf16.gmra.mxu0 %v2834
        %v2951 = vpop.f32.mrf.mxu0
        %v2952 = vadd.f32 %v2923, %v2951
        %v2953 = vpop.f32.mrf.mxu0
        %v2954 = vadd.f32 %v2925, %v2953
        %2955 = vmatmul.bf16.gmra.mxu0 %v2836
        %v2956 = vpop.f32.mrf.mxu0
        %v2957 = vadd.f32 %v2928, %v2956
        %v2958 = vpop.f32.mrf.mxu0
        %v2959 = vadd.f32 %v2930, %v2958
        %2960 = vdwg.mxu0
        %2961 = vst [vmem:[#allocation4] sm:$0xff] 0.0
        %2962 = vst [vmem:[#allocation4 + $0x8] sm:$0xff] 0.0
        %2963 = vst [vmem:[#allocation4 + $0x10] sm:$0x3] 0.0
        %2964 = vst [vmem:[#allocation4 + $0x18] sm:$0x3] 0.0
        %s2965 = scalar_lea.vmem [#allocation4], 288
        %2966 = vst [vmem:[%s2965] sm:$0xff] 0.0
        %2967 = vst [vmem:[%s2965 + $0x8] sm:$0xff] 0.0
        %2968 = vst [vmem:[%s2965 + $0x10] sm:$0x3] 0.0
        %2969 = vst [vmem:[%s2965 + $0x18] sm:$0x3] 0.0
        %v2970 = vlaneseq
        %vm2971 = vcmp.ge.s32.totalorder %v2970, 0
        %vm2972 = vcmp.lt.s32.totalorder %v2970, 256
        %vm2973 = vmand %vm2971, %vm2972
        %2974 = vst.msk [vmem:[#allocation4] ss:$8 sm:$0x3] %vm2973, 0.0
        %2975 = vst.msk [vmem:[#allocation4] ss:$8 sm:$0x0] %vm2973, 0.0
        %s2976 = scalar_lea.vmem [#allocation4], 32
        %2977 = vst.msk [vmem:[%s2976] ss:$8 sm:$0x3] %vm2973, 0.0
        %2978 = vst.msk [vmem:[%s2976] ss:$8 sm:$0x0] %vm2973, 0.0
        %s2979 = scalar_lea.vmem [#allocation4], 64
        %2980 = vst.msk [vmem:[%s2979] ss:$8 sm:$0x3] %vm2973, 0.0
        %2981 = vst.msk [vmem:[%s2979] ss:$8 sm:$0x0] %vm2973, 0.0
        %s2982 = scalar_lea.vmem [#allocation4], 96
        %2983 = vst.msk [vmem:[%s2982] ss:$8 sm:$0x3] %vm2973, 0.0
        %2984 = vst.msk [vmem:[%s2982] ss:$8 sm:$0x0] %vm2973, 0.0
        %s2985 = scalar_lea.vmem [#allocation4], 128
        %2986 = vst.msk [vmem:[%s2985] ss:$8 sm:$0x3] %vm2973, 0.0
        %2987 = vst.msk [vmem:[%s2985] ss:$8 sm:$0x0] %vm2973, 0.0
        %s2988 = scalar_lea.vmem [#allocation4], 160
        %2989 = vst.msk [vmem:[%s2988] ss:$8 sm:$0x3] %vm2973, 0.0
        %2990 = vst.msk [vmem:[%s2988] ss:$8 sm:$0x0] %vm2973, 0.0
        %s2991 = scalar_lea.vmem [#allocation4], 192
        %2992 = vst.msk [vmem:[%s2991] ss:$8 sm:$0x3] %vm2973, 0.0
        %2993 = vst.msk [vmem:[%s2991] ss:$8 sm:$0x0] %vm2973, 0.0
        %s2994 = scalar_lea.vmem [#allocation4], 224
        %2995 = vst.msk [vmem:[%s2994] ss:$8 sm:$0x3] %vm2973, 0.0
        %2996 = vst.msk [vmem:[%s2994] ss:$8 sm:$0x0] %vm2973, 0.0
        %s2997 = scalar_lea.vmem [#allocation4], 256
        %2998 = vst.msk [vmem:[%s2997] ss:$8 sm:$0x3] %vm2973, 0.0
        %2999 = vst.msk [vmem:[%s2997] ss:$8 sm:$0x0] %vm2973, 0.0
        %s3000 = scalar_lea.vmem [#allocation4], 288
        %3001 = vst.msk [vmem:[%s3000] ss:$8 sm:$0x3] %vm2973, 0.0
        %3002 = vst.msk [vmem:[%s3000] ss:$8 sm:$0x0] %vm2973, 0.0
        %s3003 = scalar_lea.vmem [#allocation4], 17
        %3004 = vst.msk [vmem:[%s3003] ss:$8 sm:$0x3] %vm2973, 0.0
        %3005 = vst.msk [vmem:[%s3003] ss:$8 sm:$0x0] %vm2973, 0.0
        %s3006 = scalar_lea.vmem [#allocation4], 49
        %3007 = vst.msk [vmem:[%s3006] ss:$8 sm:$0x3] %vm2973, 0.0
        %3008 = vst.msk [vmem:[%s3006] ss:$8 sm:$0x0] %vm2973, 0.0
        %s3009 = scalar_lea.vmem [#allocation4], 81
        %3010 = vst.msk [vmem:[%s3009] ss:$8 sm:$0x3] %vm2973, 0.0
        %3011 = vst.msk [vmem:[%s3009] ss:$8 sm:$0x0] %vm2973, 0.0
        %s3012 = scalar_lea.vmem [#allocation4], 113
        %3013 = vst.msk [vmem:[%s3012] ss:$8 sm:$0x3] %vm2973, 0.0
        %3014 = vst.msk [vmem:[%s3012] ss:$8 sm:$0x0] %vm2973, 0.0
        %s3015 = scalar_lea.vmem [#allocation4], 145
        %3016 = vst.msk [vmem:[%s3015] ss:$8 sm:$0x3] %vm2973, 0.0
        %3017 = vst.msk [vmem:[%s3015] ss:$8 sm:$0x0] %vm2973, 0.0
        %s3018 = scalar_lea.vmem [#allocation4], 177
        %3019 = vst.msk [vmem:[%s3018] ss:$8 sm:$0x3] %vm2973, 0.0
        %3020 = vst.msk [vmem:[%s3018] ss:$8 sm:$0x0] %vm2973, 0.0
        %s3021 = scalar_lea.vmem [#allocation4], 209
        %3022 = vst.msk [vmem:[%s3021] ss:$8 sm:$0x3] %vm2973, 0.0
        %3023 = vst.msk [vmem:[%s3021] ss:$8 sm:$0x0] %vm2973, 0.0
        %s3024 = scalar_lea.vmem [#allocation4], 241
        %3025 = vst.msk [vmem:[%s3024] ss:$8 sm:$0x3] %vm2973, 0.0
        %3026 = vst.msk [vmem:[%s3024] ss:$8 sm:$0x0] %vm2973, 0.0
        %s3027 = scalar_lea.vmem [#allocation4], 273
        %3028 = vst.msk [vmem:[%s3027] ss:$8 sm:$0x3] %vm2973, 0.0
        %3029 = vst.msk [vmem:[%s3027] ss:$8 sm:$0x0] %vm2973, 0.0
        %s3030 = scalar_lea.vmem [#allocation4], 305
        %3031 = vst.msk [vmem:[%s3030] ss:$8 sm:$0x3] %vm2973, 0.0
        %3032 = vst.msk [vmem:[%s3030] ss:$8 sm:$0x0] %vm2973, 0.0
        %v3049 = vrot.slane %v2884, 7
        %v3050 = vrot.slane %v2942, 7
        %v3051 = vrot.slane %v2886, 7
        %v3052 = vrot.slane %v2944, 7
        %v3053 = vrot.slane %v2889, 7
        %v3054 = vrot.slane %v2947, 7
        %v3055 = vrot.slane %v2891, 7
        %v3056 = vrot.slane %v2949, 7
        %v3057 = vrot.slane %v2894, 7
        %v3058 = vrot.slane %v2952, 7
        %v3059 = vrot.slane %v2896, 7
        %v3060 = vrot.slane %v2954, 7
        %v3061 = vrot.slane %v2899, 7
        %v3062 = vrot.slane %v2957, 7
        %v3063 = vrot.slane %v2901, 7
        %v3064 = vrot.slane %v2959, 7
        %s3081 = scalar_lea.vmem [#allocation4], 32
        %3082 = vst [vmem:[%s3081] sm:$0xfe] %v3049
        %3083 = vst [vmem:[%s3081 + $0x8] sm:$0xfe] %v3050
        %3084 = vst [vmem:[%s3081 + $0x10] sm:$0x1] %v3049
        %3085 = vst [vmem:[%s3081 + $0x18] sm:$0x1] %v3050
        %3086 = vst [vmem:[%s3081 + $0x20] sm:$0xfe] %v3051
        %3087 = vst [vmem:[%s3081 + $0x28] sm:$0xfe] %v3052
        %3088 = vst [vmem:[%s3081 + $0x30] sm:$0x1] %v3051
        %3089 = vst [vmem:[%s3081 + $0x38] sm:$0x1] %v3052
        %3090 = vst [vmem:[%s3081 + $0x40] sm:$0xfe] %v3053
        %3091 = vst [vmem:[%s3081 + $0x48] sm:$0xfe] %v3054
        %3092 = vst [vmem:[%s3081 + $0x50] sm:$0x1] %v3053
        %3093 = vst [vmem:[%s3081 + $0x58] sm:$0x1] %v3054
        %3094 = vst [vmem:[%s3081 + $0x60] sm:$0xfe] %v3055
        %3095 = vst [vmem:[%s3081 + $0x68] sm:$0xfe] %v3056
        %3096 = vst [vmem:[%s3081 + $0x70] sm:$0x1] %v3055
        %3097 = vst [vmem:[%s3081 + $0x78] sm:$0x1] %v3056
        %3098 = vst [vmem:[%s3081 + $0x80] sm:$0xfe] %v3057
        %3099 = vst [vmem:[%s3081 + $0x88] sm:$0xfe] %v3058
        %3100 = vst [vmem:[%s3081 + $0x90] sm:$0x1] %v3057
        %3101 = vst [vmem:[%s3081 + $0x98] sm:$0x1] %v3058
        %3102 = vst [vmem:[%s3081 + $0xa0] sm:$0xfe] %v3059
        %3103 = vst [vmem:[%s3081 + $0xa8] sm:$0xfe] %v3060
        %3104 = vst [vmem:[%s3081 + $0xb0] sm:$0x1] %v3059
        %3105 = vst [vmem:[%s3081 + $0xb8] sm:$0x1] %v3060
        %3106 = vst [vmem:[%s3081 + $0xc0] sm:$0xfe] %v3061
        %3107 = vst [vmem:[%s3081 + $0xc8] sm:$0xfe] %v3062
        %3108 = vst [vmem:[%s3081 + $0xd0] sm:$0x1] %v3061
        %3109 = vst [vmem:[%s3081 + $0xd8] sm:$0x1] %v3062
        %3110 = vst [vmem:[%s3081 + $0xe0] sm:$0xfe] %v3063
        %3111 = vst [vmem:[%s3081 + $0xe8] sm:$0xfe] %v3064
        %3112 = vst [vmem:[%s3081 + $0xf0] sm:$0x1] %v3063
        %3113 = vst [vmem:[%s3081 + $0xf8] sm:$0x1] %v3064
        %v3114 = vld [vmem:[#allocation4] sm:$0xff]
        %v3115 = vld [vmem:[#allocation4 + $0x8] sm:$0xff]
        %v3116 = vld [vmem:[#allocation4 + $0x20] sm:$0xff]
        %v3117 = vld [vmem:[#allocation4 + $0x28] sm:$0xff]
        %v3118 = vld [vmem:[#allocation4 + $0x40] sm:$0xff]
        %v3119 = vld [vmem:[#allocation4 + $0x48] sm:$0xff]
        %v3120 = vld [vmem:[#allocation4 + $0x60] sm:$0xff]
        %v3121 = vld [vmem:[#allocation4 + $0x68] sm:$0xff]
        %v3122 = vld [vmem:[#allocation4 + $0x80] sm:$0xff]
        %v3123 = vld [vmem:[#allocation4 + $0x88] sm:$0xff]
        %v3124 = vld [vmem:[#allocation4 + $0xa0] sm:$0xff]
        %v3125 = vld [vmem:[#allocation4 + $0xa8] sm:$0xff]
        %v3126 = vld [vmem:[#allocation4 + $0xc0] sm:$0xff]
        %v3127 = vld [vmem:[#allocation4 + $0xc8] sm:$0xff]
        %v3128 = vld [vmem:[#allocation4 + $0xe0] sm:$0xff]
        %v3129 = vld [vmem:[#allocation4 + $0xe8] sm:$0xff]
        %v3130 = vpack.c.bf16 %v3115, %v3114
        %v3131 = vpack.c.bf16 %v3117, %v3116
        %v3132 = vpack.c.bf16 %v3119, %v3118
        %v3133 = vpack.c.bf16 %v3121, %v3120
        %v3134 = vpack.c.bf16 %v3123, %v3122
        %v3135 = vpack.c.bf16 %v3125, %v3124
        %v3136 = vpack.c.bf16 %v3127, %v3126
        %v3137 = vpack.c.bf16 %v3129, %v3128
        %3138 = vst [vmem:[#allocation5] sm:$0xff] %v3130
        %3139 = vst [vmem:[#allocation5 + $0x48] sm:$0xff] %v3131
        %3140 = vst [vmem:[#allocation5 + $0x90] sm:$0xff] %v3132
        %3141 = vst [vmem:[#allocation5 + $0xd8] sm:$0xff] %v3133
        %3142 = vst [vmem:[#allocation5 + $0x120] sm:$0xff] %v3134
        %3143 = vst [vmem:[#allocation5 + $0x168] sm:$0xff] %v3135
        %3144 = vst [vmem:[#allocation5 + $0x1b0] sm:$0xff] %v3136
        %3145 = vst [vmem:[#allocation5 + $0x1f8] sm:$0xff] %v3137
        %v3146 = vld [vmem:[#allocation4] sm:$0xfe]
        %v3147 = vld [vmem:[#allocation4 + $0x8] sm:$0xfe]
        %v3148 = vld [vmem:[#allocation4 + $0x10] sm:$0x1]
        %v3149 = vld [vmem:[#allocation4 + $0x18] sm:$0x1]
        %v3150 = vld [vmem:[#allocation4 + $0x20] sm:$0xfe]
        %v3151 = vld [vmem:[#allocation4 + $0x28] sm:$0xfe]
        %v3152 = vld [vmem:[#allocation4 + $0x30] sm:$0x1]
        %v3153 = vld [vmem:[#allocation4 + $0x38] sm:$0x1]
        %v3154 = vld [vmem:[#allocation4 + $0x40] sm:$0xfe]
        %v3155 = vld [vmem:[#allocation4 + $0x48] sm:$0xfe]
        %v3156 = vld [vmem:[#allocation4 + $0x50] sm:$0x1]
        %v3157 = vld [vmem:[#allocation4 + $0x58] sm:$0x1]
        %v3158 = vld [vmem:[#allocation4 + $0x60] sm:$0xfe]
        %v3159 = vld [vmem:[#allocation4 + $0x68] sm:$0xfe]
        %v3160 = vld [vmem:[#allocation4 + $0x70] sm:$0x1]
        %v3161 = vld [vmem:[#allocation4 + $0x78] sm:$0x1]
        %v3162 = vld [vmem:[#allocation4 + $0x80] sm:$0xfe]
        %v3163 = vld [vmem:[#allocation4 + $0x88] sm:$0xfe]
        %v3164 = vld [vmem:[#allocation4 + $0x90] sm:$0x1]
        %v3165 = vld [vmem:[#allocation4 + $0x98] sm:$0x1]
        %v3166 = vld [vmem:[#allocation4 + $0xa0] sm:$0xfe]
        %v3167 = vld [vmem:[#allocation4 + $0xa8] sm:$0xfe]
        %v3168 = vld [vmem:[#allocation4 + $0xb0] sm:$0x1]
        %v3169 = vld [vmem:[#allocation4 + $0xb8] sm:$0x1]
        %v3170 = vld [vmem:[#allocation4 + $0xc0] sm:$0xfe]
        %v3171 = vld [vmem:[#allocation4 + $0xc8] sm:$0xfe]
        %v3172 = vld [vmem:[#allocation4 + $0xd0] sm:$0x1]
        %v3173 = vld [vmem:[#allocation4 + $0xd8] sm:$0x1]
        %v3174 = vld [vmem:[#allocation4 + $0xe0] sm:$0xfe]
        %v3175 = vld [vmem:[#allocation4 + $0xe8] sm:$0xfe]
        %v3176 = vld [vmem:[#allocation4 + $0xf0] sm:$0x1]
        %v3177 = vld [vmem:[#allocation4 + $0xf8] sm:$0x1]
        %vm3210 = vcmask 1046528
        %v3211 = vrot.slane %v3146, 1
        %v3212 = vrot.slane %v3148, 1
        %v3213 = vsel %vm3210, %v3211, %v3212
        %v3214 = vrot.slane %v3147, 1
        %v3215 = vrot.slane %v3149, 1
        %v3216 = vsel %vm3210, %v3214, %v3215
        %v3217 = vrot.slane %v3150, 1
        %v3218 = vrot.slane %v3152, 1
        %v3219 = vsel %vm3210, %v3217, %v3218
        %v3220 = vrot.slane %v3151, 1
        %v3221 = vrot.slane %v3153, 1
        %v3222 = vsel %vm3210, %v3220, %v3221
        %v3223 = vrot.slane %v3154, 1
        %v3224 = vrot.slane %v3156, 1
        %v3225 = vsel %vm3210, %v3223, %v3224
        %v3226 = vrot.slane %v3155, 1
        %v3227 = vrot.slane %v3157, 1
        %v3228 = vsel %vm3210, %v3226, %v3227
        %v3229 = vrot.slane %v3158, 1
        %v3230 = vrot.slane %v3160, 1
        %v3231 = vsel %vm3210, %v3229, %v3230
        %v3232 = vrot.slane %v3159, 1
        %v3233 = vrot.slane %v3161, 1
        %v3234 = vsel %vm3210, %v3232, %v3233
        %v3235 = vrot.slane %v3162, 1
        %v3236 = vrot.slane %v3164, 1
        %v3237 = vsel %vm3210, %v3235, %v3236
        %v3238 = vrot.slane %v3163, 1
        %v3239 = vrot.slane %v3165, 1
        %v3240 = vsel %vm3210, %v3238, %v3239
        %v3241 = vrot.slane %v3166, 1
        %v3242 = vrot.slane %v3168, 1
        %v3243 = vsel %vm3210, %v3241, %v3242
        %v3244 = vrot.slane %v3167, 1
        %v3245 = vrot.slane %v3169, 1
        %v3246 = vsel %vm3210, %v3244, %v3245
        %v3247 = vrot.slane %v3170, 1
        %v3248 = vrot.slane %v3172, 1
        %v3249 = vsel %vm3210, %v3247, %v3248
        %v3250 = vrot.slane %v3171, 1
        %v3251 = vrot.slane %v3173, 1
        %v3252 = vsel %vm3210, %v3250, %v3251
        %v3253 = vrot.slane %v3174, 1
        %v3254 = vrot.slane %v3176, 1
        %v3255 = vsel %vm3210, %v3253, %v3254
        %v3256 = vrot.slane %v3175, 1
        %v3257 = vrot.slane %v3177, 1
        %v3258 = vsel %vm3210, %v3256, %v3257
        %v3275 = vpack.c.bf16 %v3216, %v3213
        %v3276 = vpack.c.bf16 %v3222, %v3219
        %v3277 = vpack.c.bf16 %v3228, %v3225
        %v3278 = vpack.c.bf16 %v3234, %v3231
        %v3279 = vpack.c.bf16 %v3240, %v3237
        %v3280 = vpack.c.bf16 %v3246, %v3243
        %v3281 = vpack.c.bf16 %v3252, %v3249
        %v3282 = vpack.c.bf16 %v3258, %v3255
        %3283 = vst [vmem:[#allocation5 + $0x8] sm:$0xff] %v3275
        %3284 = vst [vmem:[#allocation5 + $0x50] sm:$0xff] %v3276
        %3285 = vst [vmem:[#allocation5 + $0x98] sm:$0xff] %v3277
        %3286 = vst [vmem:[#allocation5 + $0xe0] sm:$0xff] %v3278
        %3287 = vst [vmem:[#allocation5 + $0x128] sm:$0xff] %v3279
        %3288 = vst [vmem:[#allocation5 + $0x170] sm:$0xff] %v3280
        %3289 = vst [vmem:[#allocation5 + $0x1b8] sm:$0xff] %v3281
        %3290 = vst [vmem:[#allocation5 + $0x200] sm:$0xff] %v3282
        %v3291 = vld [vmem:[#allocation4] sm:$0xfc]
        %v3292 = vld [vmem:[#allocation4 + $0x8] sm:$0xfc]
        %v3293 = vld [vmem:[#allocation4 + $0x10] sm:$0x3]
        %v3294 = vld [vmem:[#allocation4 + $0x18] sm:$0x3]
        %v3295 = vld [vmem:[#allocation4 + $0x20] sm:$0xfc]
        %v3296 = vld [vmem:[#allocation4 + $0x28] sm:$0xfc]
        %v3297 = vld [vmem:[#allocation4 + $0x30] sm:$0x3]
        %v3298 = vld [vmem:[#allocation4 + $0x38] sm:$0x3]
        %v3299 = vld [vmem:[#allocation4 + $0x40] sm:$0xfc]
        %v3300 = vld [vmem:[#allocation4 + $0x48] sm:$0xfc]
        %v3301 = vld [vmem:[#allocation4 + $0x50] sm:$0x3]
        %v3302 = vld [vmem:[#allocation4 + $0x58] sm:$0x3]
        %v3303 = vld [vmem:[#allocation4 + $0x60] sm:$0xfc]
        %v3304 = vld [vmem:[#allocation4 + $0x68] sm:$0xfc]
        %v3305 = vld [vmem:[#allocation4 + $0x70] sm:$0x3]
        %v3306 = vld [vmem:[#allocation4 + $0x78] sm:$0x3]
        %v3307 = vld [vmem:[#allocation4 + $0x80] sm:$0xfc]
        %v3308 = vld [vmem:[#allocation4 + $0x88] sm:$0xfc]
        %v3309 = vld [vmem:[#allocation4 + $0x90] sm:$0x3]
        %v3310 = vld [vmem:[#allocation4 + $0x98] sm:$0x3]
        %v3311 = vld [vmem:[#allocation4 + $0xa0] sm:$0xfc]
        %v3312 = vld [vmem:[#allocation4 + $0xa8] sm:$0xfc]
        %v3313 = vld [vmem:[#allocation4 + $0xb0] sm:$0x3]
        %v3314 = vld [vmem:[#allocation4 + $0xb8] sm:$0x3]
        %v3315 = vld [vmem:[#allocation4 + $0xc0] sm:$0xfc]
        %v3316 = vld [vmem:[#allocation4 + $0xc8] sm:$0xfc]
        %v3317 = vld [vmem:[#allocation4 + $0xd0] sm:$0x3]
        %v3318 = vld [vmem:[#allocation4 + $0xd8] sm:$0x3]
        %v3319 = vld [vmem:[#allocation4 + $0xe0] sm:$0xfc]
        %v3320 = vld [vmem:[#allocation4 + $0xe8] sm:$0xfc]
        %v3321 = vld [vmem:[#allocation4 + $0xf0] sm:$0x3]
        %v3322 = vld [vmem:[#allocation4 + $0xf8] sm:$0x3]
        %vm3355 = vcmask 1045504
        %v3356 = vrot.slane %v3291, 2
        %v3357 = vrot.slane %v3293, 2
        %v3358 = vsel %vm3355, %v3356, %v3357
        %v3359 = vrot.slane %v3292, 2
        %v3360 = vrot.slane %v3294, 2
        %v3361 = vsel %vm3355, %v3359, %v3360
        %v3362 = vrot.slane %v3295, 2
        %v3363 = vrot.slane %v3297, 2
        %v3364 = vsel %vm3355, %v3362, %v3363
        %v3365 = vrot.slane %v3296, 2
        %v3366 = vrot.slane %v3298, 2
        %v3367 = vsel %vm3355, %v3365, %v3366
        %v3368 = vrot.slane %v3299, 2
        %v3369 = vrot.slane %v3301, 2
        %v3370 = vsel %vm3355, %v3368, %v3369
        %v3371 = vrot.slane %v3300, 2
        %v3372 = vrot.slane %v3302, 2
        %v3373 = vsel %vm3355, %v3371, %v3372
        %v3374 = vrot.slane %v3303, 2
        %v3375 = vrot.slane %v3305, 2
        %v3376 = vsel %vm3355, %v3374, %v3375
        %v3377 = vrot.slane %v3304, 2
        %v3378 = vrot.slane %v3306, 2
        %v3379 = vsel %vm3355, %v3377, %v3378
        %v3380 = vrot.slane %v3307, 2
        %v3381 = vrot.slane %v3309, 2
        %v3382 = vsel %vm3355, %v3380, %v3381
        %v3383 = vrot.slane %v3308, 2
        %v3384 = vrot.slane %v3310, 2
        %v3385 = vsel %vm3355, %v3383, %v3384
        %v3386 = vrot.slane %v3311, 2
        %v3387 = vrot.slane %v3313, 2
        %v3388 = vsel %vm3355, %v3386, %v3387
        %v3389 = vrot.slane %v3312, 2
        %v3390 = vrot.slane %v3314, 2
        %v3391 = vsel %vm3355, %v3389, %v3390
        %v3392 = vrot.slane %v3315, 2
        %v3393 = vrot.slane %v3317, 2
        %v3394 = vsel %vm3355, %v3392, %v3393
        %v3395 = vrot.slane %v3316, 2
        %v3396 = vrot.slane %v3318, 2
        %v3397 = vsel %vm3355, %v3395, %v3396
        %v3398 = vrot.slane %v3319, 2
        %v3399 = vrot.slane %v3321, 2
        %v3400 = vsel %vm3355, %v3398, %v3399
        %v3401 = vrot.slane %v3320, 2
        %v3402 = vrot.slane %v3322, 2
        %v3403 = vsel %vm3355, %v3401, %v3402
        %v3420 = vpack.c.bf16 %v3361, %v3358
        %v3421 = vpack.c.bf16 %v3367, %v3364
        %v3422 = vpack.c.bf16 %v3373, %v3370
        %v3423 = vpack.c.bf16 %v3379, %v3376
        %v3424 = vpack.c.bf16 %v3385, %v3382
        %v3425 = vpack.c.bf16 %v3391, %v3388
        %v3426 = vpack.c.bf16 %v3397, %v3394
        %v3427 = vpack.c.bf16 %v3403, %v3400
        %3428 = vst [vmem:[#allocation5 + $0x10] sm:$0xff] %v3420
        %3429 = vst [vmem:[#allocation5 + $0x58] sm:$0xff] %v3421
        %3430 = vst [vmem:[#allocation5 + $0xa0] sm:$0xff] %v3422
        %3431 = vst [vmem:[#allocation5 + $0xe8] sm:$0xff] %v3423
        %3432 = vst [vmem:[#allocation5 + $0x130] sm:$0xff] %v3424
        %3433 = vst [vmem:[#allocation5 + $0x178] sm:$0xff] %v3425
        %3434 = vst [vmem:[#allocation5 + $0x1c0] sm:$0xff] %v3426
        %3435 = vst [vmem:[#allocation5 + $0x208] sm:$0xff] %v3427
        %v3436 = vld [vmem:[%s3081] sm:$0xff]
        %v3437 = vld [vmem:[%s3081 + $0x8] sm:$0xff]
        %v3438 = vld [vmem:[%s3081 + $0x20] sm:$0xff]
        %v3439 = vld [vmem:[%s3081 + $0x28] sm:$0xff]
        %v3440 = vld [vmem:[%s3081 + $0x40] sm:$0xff]
        %v3441 = vld [vmem:[%s3081 + $0x48] sm:$0xff]
        %v3442 = vld [vmem:[%s3081 + $0x60] sm:$0xff]
        %v3443 = vld [vmem:[%s3081 + $0x68] sm:$0xff]
        %v3444 = vld [vmem:[%s3081 + $0x80] sm:$0xff]
        %v3445 = vld [vmem:[%s3081 + $0x88] sm:$0xff]
        %v3446 = vld [vmem:[%s3081 + $0xa0] sm:$0xff]
        %v3447 = vld [vmem:[%s3081 + $0xa8] sm:$0xff]
        %v3448 = vld [vmem:[%s3081 + $0xc0] sm:$0xff]
        %v3449 = vld [vmem:[%s3081 + $0xc8] sm:$0xff]
        %v3450 = vld [vmem:[%s3081 + $0xe0] sm:$0xff]
        %v3451 = vld [vmem:[%s3081 + $0xe8] sm:$0xff]
        %v3452 = vpack.c.bf16 %v3437, %v3436
        %v3453 = vpack.c.bf16 %v3439, %v3438
        %v3454 = vpack.c.bf16 %v3441, %v3440
        %v3455 = vpack.c.bf16 %v3443, %v3442
        %v3456 = vpack.c.bf16 %v3445, %v3444
        %v3457 = vpack.c.bf16 %v3447, %v3446
        %v3458 = vpack.c.bf16 %v3449, %v3448
        %v3459 = vpack.c.bf16 %v3451, %v3450
        %3460 = vst [vmem:[#allocation5 + $0x18] sm:$0xff] %v3452
        %3461 = vst [vmem:[#allocation5 + $0x60] sm:$0xff] %v3453
        %3462 = vst [vmem:[#allocation5 + $0xa8] sm:$0xff] %v3454
        %3463 = vst [vmem:[#allocation5 + $0xf0] sm:$0xff] %v3455
        %3464 = vst [vmem:[#allocation5 + $0x138] sm:$0xff] %v3456
        %3465 = vst [vmem:[#allocation5 + $0x180] sm:$0xff] %v3457
        %3466 = vst [vmem:[#allocation5 + $0x1c8] sm:$0xff] %v3458
        %3467 = vst [vmem:[#allocation5 + $0x210] sm:$0xff] %v3459
        %v3468 = vld [vmem:[%s3081] sm:$0xfe]
        %v3469 = vld [vmem:[%s3081 + $0x8] sm:$0xfe]
        %v3470 = vld [vmem:[%s3081 + $0x10] sm:$0x1]
        %v3471 = vld [vmem:[%s3081 + $0x18] sm:$0x1]
        %v3472 = vld [vmem:[%s3081 + $0x20] sm:$0xfe]
        %v3473 = vld [vmem:[%s3081 + $0x28] sm:$0xfe]
        %v3474 = vld [vmem:[%s3081 + $0x30] sm:$0x1]
        %v3475 = vld [vmem:[%s3081 + $0x38] sm:$0x1]
        %v3476 = vld [vmem:[%s3081 + $0x40] sm:$0xfe]
        %v3477 = vld [vmem:[%s3081 + $0x48] sm:$0xfe]
        %v3478 = vld [vmem:[%s3081 + $0x50] sm:$0x1]
        %v3479 = vld [vmem:[%s3081 + $0x58] sm:$0x1]
        %v3480 = vld [vmem:[%s3081 + $0x60] sm:$0xfe]
        %v3481 = vld [vmem:[%s3081 + $0x68] sm:$0xfe]
        %v3482 = vld [vmem:[%s3081 + $0x70] sm:$0x1]
        %v3483 = vld [vmem:[%s3081 + $0x78] sm:$0x1]
        %v3484 = vld [vmem:[%s3081 + $0x80] sm:$0xfe]
        %v3485 = vld [vmem:[%s3081 + $0x88] sm:$0xfe]
        %v3486 = vld [vmem:[%s3081 + $0x90] sm:$0x1]
        %v3487 = vld [vmem:[%s3081 + $0x98] sm:$0x1]
        %v3488 = vld [vmem:[%s3081 + $0xa0] sm:$0xfe]
        %v3489 = vld [vmem:[%s3081 + $0xa8] sm:$0xfe]
        %v3490 = vld [vmem:[%s3081 + $0xb0] sm:$0x1]
        %v3491 = vld [vmem:[%s3081 + $0xb8] sm:$0x1]
        %v3492 = vld [vmem:[%s3081 + $0xc0] sm:$0xfe]
        %v3493 = vld [vmem:[%s3081 + $0xc8] sm:$0xfe]
        %v3494 = vld [vmem:[%s3081 + $0xd0] sm:$0x1]
        %v3495 = vld [vmem:[%s3081 + $0xd8] sm:$0x1]
        %v3496 = vld [vmem:[%s3081 + $0xe0] sm:$0xfe]
        %v3497 = vld [vmem:[%s3081 + $0xe8] sm:$0xfe]
        %v3498 = vld [vmem:[%s3081 + $0xf0] sm:$0x1]
        %v3499 = vld [vmem:[%s3081 + $0xf8] sm:$0x1]
        %v3532 = vrot.slane %v3468, 1
        %v3533 = vrot.slane %v3470, 1
        %v3534 = vsel %vm3210, %v3532, %v3533
        %v3535 = vrot.slane %v3469, 1
        %v3536 = vrot.slane %v3471, 1
        %v3537 = vsel %vm3210, %v3535, %v3536
        %v3538 = vrot.slane %v3472, 1
        %v3539 = vrot.slane %v3474, 1
        %v3540 = vsel %vm3210, %v3538, %v3539
        %v3541 = vrot.slane %v3473, 1
        %v3542 = vrot.slane %v3475, 1
        %v3543 = vsel %vm3210, %v3541, %v3542
        %v3544 = vrot.slane %v3476, 1
        %v3545 = vrot.slane %v3478, 1
        %v3546 = vsel %vm3210, %v3544, %v3545
        %v3547 = vrot.slane %v3477, 1
        %v3548 = vrot.slane %v3479, 1
        %v3549 = vsel %vm3210, %v3547, %v3548
        %v3550 = vrot.slane %v3480, 1
        %v3551 = vrot.slane %v3482, 1
        %v3552 = vsel %vm3210, %v3550, %v3551
        %v3553 = vrot.slane %v3481, 1
        %v3554 = vrot.slane %v3483, 1
        %v3555 = vsel %vm3210, %v3553, %v3554
        %v3556 = vrot.slane %v3484, 1
        %v3557 = vrot.slane %v3486, 1
        %v3558 = vsel %vm3210, %v3556, %v3557
        %v3559 = vrot.slane %v3485, 1
        %v3560 = vrot.slane %v3487, 1
        %v3561 = vsel %vm3210, %v3559, %v3560
        %v3562 = vrot.slane %v3488, 1
        %v3563 = vrot.slane %v3490, 1
        %v3564 = vsel %vm3210, %v3562, %v3563
        %v3565 = vrot.slane %v3489, 1
        %v3566 = vrot.slane %v3491, 1
        %v3567 = vsel %vm3210, %v3565, %v3566
        %v3568 = vrot.slane %v3492, 1
        %v3569 = vrot.slane %v3494, 1
        %v3570 = vsel %vm3210, %v3568, %v3569
        %v3571 = vrot.slane %v3493, 1
        %v3572 = vrot.slane %v3495, 1
        %v3573 = vsel %vm3210, %v3571, %v3572
        %v3574 = vrot.slane %v3496, 1
        %v3575 = vrot.slane %v3498, 1
        %v3576 = vsel %vm3210, %v3574, %v3575
        %v3577 = vrot.slane %v3497, 1
        %v3578 = vrot.slane %v3499, 1
        %v3579 = vsel %vm3210, %v3577, %v3578
        %v3596 = vpack.c.bf16 %v3537, %v3534
        %v3597 = vpack.c.bf16 %v3543, %v3540
        %v3598 = vpack.c.bf16 %v3549, %v3546
        %v3599 = vpack.c.bf16 %v3555, %v3552
        %v3600 = vpack.c.bf16 %v3561, %v3558
        %v3601 = vpack.c.bf16 %v3567, %v3564
        %v3602 = vpack.c.bf16 %v3573, %v3570
        %v3603 = vpack.c.bf16 %v3579, %v3576
        %3604 = vst [vmem:[#allocation5 + $0x20] sm:$0xff] %v3596
        %3605 = vst [vmem:[#allocation5 + $0x68] sm:$0xff] %v3597
        %3606 = vst [vmem:[#allocation5 + $0xb0] sm:$0xff] %v3598
        %3607 = vst [vmem:[#allocation5 + $0xf8] sm:$0xff] %v3599
        %3608 = vst [vmem:[#allocation5 + $0x140] sm:$0xff] %v3600
        %3609 = vst [vmem:[#allocation5 + $0x188] sm:$0xff] %v3601
        %3610 = vst [vmem:[#allocation5 + $0x1d0] sm:$0xff] %v3602
        %3611 = vst [vmem:[#allocation5 + $0x218] sm:$0xff] %v3603
        %v3612 = vld [vmem:[%s3081] sm:$0xfc]
        %v3613 = vld [vmem:[%s3081 + $0x8] sm:$0xfc]
        %v3614 = vld [vmem:[%s3081 + $0x10] sm:$0x3]
        %v3615 = vld [vmem:[%s3081 + $0x18] sm:$0x3]
        %v3616 = vld [vmem:[%s3081 + $0x20] sm:$0xfc]
        %v3617 = vld [vmem:[%s3081 + $0x28] sm:$0xfc]
        %v3618 = vld [vmem:[%s3081 + $0x30] sm:$0x3]
        %v3619 = vld [vmem:[%s3081 + $0x38] sm:$0x3]
        %v3620 = vld [vmem:[%s3081 + $0x40] sm:$0xfc]
        %v3621 = vld [vmem:[%s3081 + $0x48] sm:$0xfc]
        %v3622 = vld [vmem:[%s3081 + $0x50] sm:$0x3]
        %v3623 = vld [vmem:[%s3081 + $0x58] sm:$0x3]
        %v3624 = vld [vmem:[%s3081 + $0x60] sm:$0xfc]
        %v3625 = vld [vmem:[%s3081 + $0x68] sm:$0xfc]
        %v3626 = vld [vmem:[%s3081 + $0x70] sm:$0x3]
        %v3627 = vld [vmem:[%s3081 + $0x78] sm:$0x3]
        %v3628 = vld [vmem:[%s3081 + $0x80] sm:$0xfc]
        %v3629 = vld [vmem:[%s3081 + $0x88] sm:$0xfc]
        %v3630 = vld [vmem:[%s3081 + $0x90] sm:$0x3]
        %v3631 = vld [vmem:[%s3081 + $0x98] sm:$0x3]
        %v3632 = vld [vmem:[%s3081 + $0xa0] sm:$0xfc]
        %v3633 = vld [vmem:[%s3081 + $0xa8] sm:$0xfc]
        %v3634 = vld [vmem:[%s3081 + $0xb0] sm:$0x3]
        %v3635 = vld [vmem:[%s3081 + $0xb8] sm:$0x3]
        %v3636 = vld [vmem:[%s3081 + $0xc0] sm:$0xfc]
        %v3637 = vld [vmem:[%s3081 + $0xc8] sm:$0xfc]
        %v3638 = vld [vmem:[%s3081 + $0xd0] sm:$0x3]
        %v3639 = vld [vmem:[%s3081 + $0xd8] sm:$0x3]
        %v3640 = vld [vmem:[%s3081 + $0xe0] sm:$0xfc]
        %v3641 = vld [vmem:[%s3081 + $0xe8] sm:$0xfc]
        %v3642 = vld [vmem:[%s3081 + $0xf0] sm:$0x3]
        %v3643 = vld [vmem:[%s3081 + $0xf8] sm:$0x3]
        %v3676 = vrot.slane %v3612, 2
        %v3677 = vrot.slane %v3614, 2
        %v3678 = vsel %vm3355, %v3676, %v3677
        %v3679 = vrot.slane %v3613, 2
        %v3680 = vrot.slane %v3615, 2
        %v3681 = vsel %vm3355, %v3679, %v3680
        %v3682 = vrot.slane %v3616, 2
        %v3683 = vrot.slane %v3618, 2
        %v3684 = vsel %vm3355, %v3682, %v3683
        %v3685 = vrot.slane %v3617, 2
        %v3686 = vrot.slane %v3619, 2
        %v3687 = vsel %vm3355, %v3685, %v3686
        %v3688 = vrot.slane %v3620, 2
        %v3689 = vrot.slane %v3622, 2
        %v3690 = vsel %vm3355, %v3688, %v3689
        %v3691 = vrot.slane %v3621, 2
        %v3692 = vrot.slane %v3623, 2
        %v3693 = vsel %vm3355, %v3691, %v3692
        %v3694 = vrot.slane %v3624, 2
        %v3695 = vrot.slane %v3626, 2
        %v3696 = vsel %vm3355, %v3694, %v3695
        %v3697 = vrot.slane %v3625, 2
        %v3698 = vrot.slane %v3627, 2
        %v3699 = vsel %vm3355, %v3697, %v3698
        %v3700 = vrot.slane %v3628, 2
        %v3701 = vrot.slane %v3630, 2
        %v3702 = vsel %vm3355, %v3700, %v3701
        %v3703 = vrot.slane %v3629, 2
        %v3704 = vrot.slane %v3631, 2
        %v3705 = vsel %vm3355, %v3703, %v3704
        %v3706 = vrot.slane %v3632, 2
        %v3707 = vrot.slane %v3634, 2
        %v3708 = vsel %vm3355, %v3706, %v3707
        %v3709 = vrot.slane %v3633, 2
        %v3710 = vrot.slane %v3635, 2
        %v3711 = vsel %vm3355, %v3709, %v3710
        %v3712 = vrot.slane %v3636, 2
        %v3713 = vrot.slane %v3638, 2
        %v3714 = vsel %vm3355, %v3712, %v3713
        %v3715 = vrot.slane %v3637, 2
        %v3716 = vrot.slane %v3639, 2
        %v3717 = vsel %vm3355, %v3715, %v3716
        %v3718 = vrot.slane %v3640, 2
        %v3719 = vrot.slane %v3642, 2
        %v3720 = vsel %vm3355, %v3718, %v3719
        %v3721 = vrot.slane %v3641, 2
        %v3722 = vrot.slane %v3643, 2
        %v3723 = vsel %vm3355, %v3721, %v3722
        %v3740 = vpack.c.bf16 %v3681, %v3678
        %v3741 = vpack.c.bf16 %v3687, %v3684
        %v3742 = vpack.c.bf16 %v3693, %v3690
        %v3743 = vpack.c.bf16 %v3699, %v3696
        %v3744 = vpack.c.bf16 %v3705, %v3702
        %v3745 = vpack.c.bf16 %v3711, %v3708
        %v3746 = vpack.c.bf16 %v3717, %v3714
        %v3747 = vpack.c.bf16 %v3723, %v3720
        %3748 = vst [vmem:[#allocation5 + $0x28] sm:$0xff] %v3740
        %3749 = vst [vmem:[#allocation5 + $0x70] sm:$0xff] %v3741
        %3750 = vst [vmem:[#allocation5 + $0xb8] sm:$0xff] %v3742
        %3751 = vst [vmem:[#allocation5 + $0x100] sm:$0xff] %v3743
        %3752 = vst [vmem:[#allocation5 + $0x148] sm:$0xff] %v3744
        %3753 = vst [vmem:[#allocation5 + $0x190] sm:$0xff] %v3745
        %3754 = vst [vmem:[#allocation5 + $0x1d8] sm:$0xff] %v3746
        %3755 = vst [vmem:[#allocation5 + $0x220] sm:$0xff] %v3747
        %s3756 = scalar_lea.vmem [#allocation4], 64
        %v3757 = vld [vmem:[%s3756] sm:$0xff]
        %v3758 = vld [vmem:[%s3756 + $0x8] sm:$0xff]
        %v3759 = vld [vmem:[%s3756 + $0x20] sm:$0xff]
        %v3760 = vld [vmem:[%s3756 + $0x28] sm:$0xff]
        %v3761 = vld [vmem:[%s3756 + $0x40] sm:$0xff]
        %v3762 = vld [vmem:[%s3756 + $0x48] sm:$0xff]
        %v3763 = vld [vmem:[%s3756 + $0x60] sm:$0xff]
        %v3764 = vld [vmem:[%s3756 + $0x68] sm:$0xff]
        %v3765 = vld [vmem:[%s3756 + $0x80] sm:$0xff]
        %v3766 = vld [vmem:[%s3756 + $0x88] sm:$0xff]
        %v3767 = vld [vmem:[%s3756 + $0xa0] sm:$0xff]
        %v3768 = vld [vmem:[%s3756 + $0xa8] sm:$0xff]
        %v3769 = vld [vmem:[%s3756 + $0xc0] sm:$0xff]
        %v3770 = vld [vmem:[%s3756 + $0xc8] sm:$0xff]
        %v3771 = vld [vmem:[%s3756 + $0xe0] sm:$0xff]
        %v3772 = vld [vmem:[%s3756 + $0xe8] sm:$0xff]
        %v3773 = vpack.c.bf16 %v3758, %v3757
        %v3774 = vpack.c.bf16 %v3760, %v3759
        %v3775 = vpack.c.bf16 %v3762, %v3761
        %v3776 = vpack.c.bf16 %v3764, %v3763
        %v3777 = vpack.c.bf16 %v3766, %v3765
        %v3778 = vpack.c.bf16 %v3768, %v3767
        %v3779 = vpack.c.bf16 %v3770, %v3769
        %v3780 = vpack.c.bf16 %v3772, %v3771
        %3781 = vst [vmem:[#allocation5 + $0x30] sm:$0xff] %v3773
        %3782 = vst [vmem:[#allocation5 + $0x78] sm:$0xff] %v3774
        %3783 = vst [vmem:[#allocation5 + $0xc0] sm:$0xff] %v3775
        %3784 = vst [vmem:[#allocation5 + $0x108] sm:$0xff] %v3776
        %3785 = vst [vmem:[#allocation5 + $0x150] sm:$0xff] %v3777
        %3786 = vst [vmem:[#allocation5 + $0x198] sm:$0xff] %v3778
        %3787 = vst [vmem:[#allocation5 + $0x1e0] sm:$0xff] %v3779
        %3788 = vst [vmem:[#allocation5 + $0x228] sm:$0xff] %v3780
        %v3789 = vld [vmem:[%s3756] sm:$0xfe]
        %v3790 = vld [vmem:[%s3756 + $0x8] sm:$0xfe]
        %v3791 = vld [vmem:[%s3756 + $0x10] sm:$0x1]
        %v3792 = vld [vmem:[%s3756 + $0x18] sm:$0x1]
        %v3793 = vld [vmem:[%s3756 + $0x20] sm:$0xfe]
        %v3794 = vld [vmem:[%s3756 + $0x28] sm:$0xfe]
        %v3795 = vld [vmem:[%s3756 + $0x30] sm:$0x1]
        %v3796 = vld [vmem:[%s3756 + $0x38] sm:$0x1]
        %v3797 = vld [vmem:[%s3756 + $0x40] sm:$0xfe]
        %v3798 = vld [vmem:[%s3756 + $0x48] sm:$0xfe]
        %v3799 = vld [vmem:[%s3756 + $0x50] sm:$0x1]
        %v3800 = vld [vmem:[%s3756 + $0x58] sm:$0x1]
        %v3801 = vld [vmem:[%s3756 + $0x60] sm:$0xfe]
        %v3802 = vld [vmem:[%s3756 + $0x68] sm:$0xfe]
        %v3803 = vld [vmem:[%s3756 + $0x70] sm:$0x1]
        %v3804 = vld [vmem:[%s3756 + $0x78] sm:$0x1]
        %v3805 = vld [vmem:[%s3756 + $0x80] sm:$0xfe]
        %v3806 = vld [vmem:[%s3756 + $0x88] sm:$0xfe]
        %v3807 = vld [vmem:[%s3756 + $0x90] sm:$0x1]
        %v3808 = vld [vmem:[%s3756 + $0x98] sm:$0x1]
        %v3809 = vld [vmem:[%s3756 + $0xa0] sm:$0xfe]
        %v3810 = vld [vmem:[%s3756 + $0xa8] sm:$0xfe]
        %v3811 = vld [vmem:[%s3756 + $0xb0] sm:$0x1]
        %v3812 = vld [vmem:[%s3756 + $0xb8] sm:$0x1]
        %v3813 = vld [vmem:[%s3756 + $0xc0] sm:$0xfe]
        %v3814 = vld [vmem:[%s3756 + $0xc8] sm:$0xfe]
        %v3815 = vld [vmem:[%s3756 + $0xd0] sm:$0x1]
        %v3816 = vld [vmem:[%s3756 + $0xd8] sm:$0x1]
        %v3817 = vld [vmem:[%s3756 + $0xe0] sm:$0xfe]
        %v3818 = vld [vmem:[%s3756 + $0xe8] sm:$0xfe]
        %v3819 = vld [vmem:[%s3756 + $0xf0] sm:$0x1]
        %v3820 = vld [vmem:[%s3756 + $0xf8] sm:$0x1]
        %v3853 = vrot.slane %v3789, 1
        %v3854 = vrot.slane %v3791, 1
        %v3855 = vsel %vm3210, %v3853, %v3854
        %v3856 = vrot.slane %v3790, 1
        %v3857 = vrot.slane %v3792, 1
        %v3858 = vsel %vm3210, %v3856, %v3857
        %v3859 = vrot.slane %v3793, 1
        %v3860 = vrot.slane %v3795, 1
        %v3861 = vsel %vm3210, %v3859, %v3860
        %v3862 = vrot.slane %v3794, 1
        %v3863 = vrot.slane %v3796, 1
        %v3864 = vsel %vm3210, %v3862, %v3863
        %v3865 = vrot.slane %v3797, 1
        %v3866 = vrot.slane %v3799, 1
        %v3867 = vsel %vm3210, %v3865, %v3866
        %v3868 = vrot.slane %v3798, 1
        %v3869 = vrot.slane %v3800, 1
        %v3870 = vsel %vm3210, %v3868, %v3869
        %v3871 = vrot.slane %v3801, 1
        %v3872 = vrot.slane %v3803, 1
        %v3873 = vsel %vm3210, %v3871, %v3872
        %v3874 = vrot.slane %v3802, 1
        %v3875 = vrot.slane %v3804, 1
        %v3876 = vsel %vm3210, %v3874, %v3875
        %v3877 = vrot.slane %v3805, 1
        %v3878 = vrot.slane %v3807, 1
        %v3879 = vsel %vm3210, %v3877, %v3878
        %v3880 = vrot.slane %v3806, 1
        %v3881 = vrot.slane %v3808, 1
        %v3882 = vsel %vm3210, %v3880, %v3881
        %v3883 = vrot.slane %v3809, 1
        %v3884 = vrot.slane %v3811, 1
        %v3885 = vsel %vm3210, %v3883, %v3884
        %v3886 = vrot.slane %v3810, 1
        %v3887 = vrot.slane %v3812, 1
        %v3888 = vsel %vm3210, %v3886, %v3887
        %v3889 = vrot.slane %v3813, 1
        %v3890 = vrot.slane %v3815, 1
        %v3891 = vsel %vm3210, %v3889, %v3890
        %v3892 = vrot.slane %v3814, 1
        %v3893 = vrot.slane %v3816, 1
        %v3894 = vsel %vm3210, %v3892, %v3893
        %v3895 = vrot.slane %v3817, 1
        %v3896 = vrot.slane %v3819, 1
        %v3897 = vsel %vm3210, %v3895, %v3896
        %v3898 = vrot.slane %v3818, 1
        %v3899 = vrot.slane %v3820, 1
        %v3900 = vsel %vm3210, %v3898, %v3899
        %v3917 = vpack.c.bf16 %v3858, %v3855
        %v3918 = vpack.c.bf16 %v3864, %v3861
        %v3919 = vpack.c.bf16 %v3870, %v3867
        %v3920 = vpack.c.bf16 %v3876, %v3873
        %v3921 = vpack.c.bf16 %v3882, %v3879
        %v3922 = vpack.c.bf16 %v3888, %v3885
        %v3923 = vpack.c.bf16 %v3894, %v3891
        %v3924 = vpack.c.bf16 %v3900, %v3897
        %3925 = vst [vmem:[#allocation5 + $0x38] sm:$0xff] %v3917
        %3926 = vst [vmem:[#allocation5 + $0x80] sm:$0xff] %v3918
        %3927 = vst [vmem:[#allocation5 + $0xc8] sm:$0xff] %v3919
        %3928 = vst [vmem:[#allocation5 + $0x110] sm:$0xff] %v3920
        %3929 = vst [vmem:[#allocation5 + $0x158] sm:$0xff] %v3921
        %3930 = vst [vmem:[#allocation5 + $0x1a0] sm:$0xff] %v3922
        %3931 = vst [vmem:[#allocation5 + $0x1e8] sm:$0xff] %v3923
        %3932 = vst [vmem:[#allocation5 + $0x230] sm:$0xff] %v3924
        %v3933 = vld [vmem:[%s3756] sm:$0xfc]
        %v3934 = vld [vmem:[%s3756 + $0x8] sm:$0xfc]
        %v3935 = vld [vmem:[%s3756 + $0x10] sm:$0x3]
        %v3936 = vld [vmem:[%s3756 + $0x18] sm:$0x3]
        %v3937 = vld [vmem:[%s3756 + $0x20] sm:$0xfc]
        %v3938 = vld [vmem:[%s3756 + $0x28] sm:$0xfc]
        %v3939 = vld [vmem:[%s3756 + $0x30] sm:$0x3]
        %v3940 = vld [vmem:[%s3756 + $0x38] sm:$0x3]
        %v3941 = vld [vmem:[%s3756 + $0x40] sm:$0xfc]
        %v3942 = vld [vmem:[%s3756 + $0x48] sm:$0xfc]
        %v3943 = vld [vmem:[%s3756 + $0x50] sm:$0x3]
        %v3944 = vld [vmem:[%s3756 + $0x58] sm:$0x3]
        %v3945 = vld [vmem:[%s3756 + $0x60] sm:$0xfc]
        %v3946 = vld [vmem:[%s3756 + $0x68] sm:$0xfc]
        %v3947 = vld [vmem:[%s3756 + $0x70] sm:$0x3]
        %v3948 = vld [vmem:[%s3756 + $0x78] sm:$0x3]
        %v3949 = vld [vmem:[%s3756 + $0x80] sm:$0xfc]
        %v3950 = vld [vmem:[%s3756 + $0x88] sm:$0xfc]
        %v3951 = vld [vmem:[%s3756 + $0x90] sm:$0x3]
        %v3952 = vld [vmem:[%s3756 + $0x98] sm:$0x3]
        %v3953 = vld [vmem:[%s3756 + $0xa0] sm:$0xfc]
        %v3954 = vld [vmem:[%s3756 + $0xa8] sm:$0xfc]
        %v3955 = vld [vmem:[%s3756 + $0xb0] sm:$0x3]
        %v3956 = vld [vmem:[%s3756 + $0xb8] sm:$0x3]
        %v3957 = vld [vmem:[%s3756 + $0xc0] sm:$0xfc]
        %v3958 = vld [vmem:[%s3756 + $0xc8] sm:$0xfc]
        %v3959 = vld [vmem:[%s3756 + $0xd0] sm:$0x3]
        %v3960 = vld [vmem:[%s3756 + $0xd8] sm:$0x3]
        %v3961 = vld [vmem:[%s3756 + $0xe0] sm:$0xfc]
        %v3962 = vld [vmem:[%s3756 + $0xe8] sm:$0xfc]
        %v3963 = vld [vmem:[%s3756 + $0xf0] sm:$0x3]
        %v3964 = vld [vmem:[%s3756 + $0xf8] sm:$0x3]
        %v3997 = vrot.slane %v3933, 2
        %v3998 = vrot.slane %v3935, 2
        %v3999 = vsel %vm3355, %v3997, %v3998
        %v4000 = vrot.slane %v3934, 2
        %v4001 = vrot.slane %v3936, 2
        %v4002 = vsel %vm3355, %v4000, %v4001
        %v4003 = vrot.slane %v3937, 2
        %v4004 = vrot.slane %v3939, 2
        %v4005 = vsel %vm3355, %v4003, %v4004
        %v4006 = vrot.slane %v3938, 2
        %v4007 = vrot.slane %v3940, 2
        %v4008 = vsel %vm3355, %v4006, %v4007
        %v4009 = vrot.slane %v3941, 2
        %v4010 = vrot.slane %v3943, 2
        %v4011 = vsel %vm3355, %v4009, %v4010
        %v4012 = vrot.slane %v3942, 2
        %v4013 = vrot.slane %v3944, 2
        %v4014 = vsel %vm3355, %v4012, %v4013
        %v4015 = vrot.slane %v3945, 2
        %v4016 = vrot.slane %v3947, 2
        %v4017 = vsel %vm3355, %v4015, %v4016
        %v4018 = vrot.slane %v3946, 2
        %v4019 = vrot.slane %v3948, 2
        %v4020 = vsel %vm3355, %v4018, %v4019
        %v4021 = vrot.slane %v3949, 2
        %v4022 = vrot.slane %v3951, 2
        %v4023 = vsel %vm3355, %v4021, %v4022
        %v4024 = vrot.slane %v3950, 2
        %v4025 = vrot.slane %v3952, 2
        %v4026 = vsel %vm3355, %v4024, %v4025
        %v4027 = vrot.slane %v3953, 2
        %v4028 = vrot.slane %v3955, 2
        %v4029 = vsel %vm3355, %v4027, %v4028
        %v4030 = vrot.slane %v3954, 2
        %v4031 = vrot.slane %v3956, 2
        %v4032 = vsel %vm3355, %v4030, %v4031
        %v4033 = vrot.slane %v3957, 2
        %v4034 = vrot.slane %v3959, 2
        %v4035 = vsel %vm3355, %v4033, %v4034
        %v4036 = vrot.slane %v3958, 2
        %v4037 = vrot.slane %v3960, 2
        %v4038 = vsel %vm3355, %v4036, %v4037
        %v4039 = vrot.slane %v3961, 2
        %v4040 = vrot.slane %v3963, 2
        %v4041 = vsel %vm3355, %v4039, %v4040
        %v4042 = vrot.slane %v3962, 2
        %v4043 = vrot.slane %v3964, 2
        %v4044 = vsel %vm3355, %v4042, %v4043
        %v4061 = vpack.c.bf16 %v4002, %v3999
        %v4062 = vpack.c.bf16 %v4008, %v4005
        %v4063 = vpack.c.bf16 %v4014, %v4011
        %v4064 = vpack.c.bf16 %v4020, %v4017
        %v4065 = vpack.c.bf16 %v4026, %v4023
        %v4066 = vpack.c.bf16 %v4032, %v4029
        %v4067 = vpack.c.bf16 %v4038, %v4035
        %v4068 = vpack.c.bf16 %v4044, %v4041
        %4069 = vst [vmem:[#allocation5 + $0x40] sm:$0xff] %v4061
        %4070 = vst [vmem:[#allocation5 + $0x88] sm:$0xff] %v4062
        %4071 = vst [vmem:[#allocation5 + $0xd0] sm:$0xff] %v4063
        %4072 = vst [vmem:[#allocation5 + $0x118] sm:$0xff] %v4064
        %4073 = vst [vmem:[#allocation5 + $0x160] sm:$0xff] %v4065
        %4074 = vst [vmem:[#allocation5 + $0x1a8] sm:$0xff] %v4066
        %4075 = vst [vmem:[#allocation5 + $0x1f0] sm:$0xff] %v4067
        %4076 = vst [vmem:[#allocation5 + $0x238] sm:$0xff] %v4068
        %v4077 = vld [vmem:[#allocation5] sm:$0xff]
        %v4078 = vld [vmem:[#allocation5 + $0x8] sm:$0xff]
        %v4079 = vld [vmem:[#allocation5 + $0x10] sm:$0xff]
        %v4080 = vld [vmem:[#allocation5 + $0x18] sm:$0xff]
        %v4081 = vld [vmem:[#allocation5 + $0x20] sm:$0xff]
        %v4082 = vld [vmem:[#allocation5 + $0x28] sm:$0xff]
        %v4083 = vld [vmem:[#allocation5 + $0x30] sm:$0xff]
        %v4084 = vld [vmem:[#allocation5 + $0x38] sm:$0xff]
        %v4085 = vld [vmem:[#allocation5 + $0x40] sm:$0xff]
        %v4086 = vld [vmem:[#allocation5 + $0x48] sm:$0xff]
        %v4087 = vld [vmem:[#allocation5 + $0x50] sm:$0xff]
        %v4088 = vld [vmem:[#allocation5 + $0x58] sm:$0xff]
        %v4089 = vld [vmem:[#allocation5 + $0x60] sm:$0xff]
        %v4090 = vld [vmem:[#allocation5 + $0x68] sm:$0xff]
        %v4091 = vld [vmem:[#allocation5 + $0x70] sm:$0xff]
        %v4092 = vld [vmem:[#allocation5 + $0x78] sm:$0xff]
        %v4093 = vld [vmem:[#allocation5 + $0x80] sm:$0xff]
        %v4094 = vld [vmem:[#allocation5 + $0x88] sm:$0xff]
        %v4095 = vld [vmem:[#allocation5 + $0x90] sm:$0xff]
        %v4096 = vld [vmem:[#allocation5 + $0x98] sm:$0xff]
        %v4097 = vld [vmem:[#allocation5 + $0xa0] sm:$0xff]
        %v4098 = vld [vmem:[#allocation5 + $0xa8] sm:$0xff]
        %v4099 = vld [vmem:[#allocation5 + $0xb0] sm:$0xff]
        %v4100 = vld [vmem:[#allocation5 + $0xb8] sm:$0xff]
        %v4101 = vld [vmem:[#allocation5 + $0xc0] sm:$0xff]
        %v4102 = vld [vmem:[#allocation5 + $0xc8] sm:$0xff]
        %v4103 = vld [vmem:[#allocation5 + $0xd0] sm:$0xff]
        %v4104 = vld [vmem:[#allocation5 + $0xd8] sm:$0xff]
        %v4105 = vld [vmem:[#allocation5 + $0xe0] sm:$0xff]
        %v4106 = vld [vmem:[#allocation5 + $0xe8] sm:$0xff]
        %v4107 = vld [vmem:[#allocation5 + $0xf0] sm:$0xff]
        %v4108 = vld [vmem:[#allocation5 + $0xf8] sm:$0xff]
        %v4109 = vld [vmem:[#allocation5 + $0x100] sm:$0xff]
        %v4110 = vld [vmem:[#allocation5 + $0x108] sm:$0xff]
        %v4111 = vld [vmem:[#allocation5 + $0x110] sm:$0xff]
        %v4112 = vld [vmem:[#allocation5 + $0x118] sm:$0xff]
        %v4113 = vld [vmem:[#allocation5 + $0x120] sm:$0xff]
        %v4114 = vld [vmem:[#allocation5 + $0x128] sm:$0xff]
        %v4115 = vld [vmem:[#allocation5 + $0x130] sm:$0xff]
        %v4116 = vld [vmem:[#allocation5 + $0x138] sm:$0xff]
        %v4117 = vld [vmem:[#allocation5 + $0x140] sm:$0xff]
        %v4118 = vld [vmem:[#allocation5 + $0x148] sm:$0xff]
        %v4119 = vld [vmem:[#allocation5 + $0x150] sm:$0xff]
        %v4120 = vld [vmem:[#allocation5 + $0x158] sm:$0xff]
        %v4121 = vld [vmem:[#allocation5 + $0x160] sm:$0xff]
        %v4122 = vld [vmem:[#allocation5 + $0x168] sm:$0xff]
        %v4123 = vld [vmem:[#allocation5 + $0x170] sm:$0xff]
        %v4124 = vld [vmem:[#allocation5 + $0x178] sm:$0xff]
        %v4125 = vld [vmem:[#allocation5 + $0x180] sm:$0xff]
        %v4126 = vld [vmem:[#allocation5 + $0x188] sm:$0xff]
        %v4127 = vld [vmem:[#allocation5 + $0x190] sm:$0xff]
        %v4128 = vld [vmem:[#allocation5 + $0x198] sm:$0xff]
        %v4129 = vld [vmem:[#allocation5 + $0x1a0] sm:$0xff]
        %v4130 = vld [vmem:[#allocation5 + $0x1a8] sm:$0xff]
        %v4131 = vld [vmem:[#allocation5 + $0x1b0] sm:$0xff]
        %v4132 = vld [vmem:[#allocation5 + $0x1b8] sm:$0xff]
        %v4133 = vld [vmem:[#allocation5 + $0x1c0] sm:$0xff]
        %v4134 = vld [vmem:[#allocation5 + $0x1c8] sm:$0xff]
        %v4135 = vld [vmem:[#allocation5 + $0x1d0] sm:$0xff]
        %v4136 = vld [vmem:[#allocation5 + $0x1d8] sm:$0xff]
        %v4137 = vld [vmem:[#allocation5 + $0x1e0] sm:$0xff]
        %v4138 = vld [vmem:[#allocation5 + $0x1e8] sm:$0xff]
        %v4139 = vld [vmem:[#allocation5 + $0x1f0] sm:$0xff]
        %v4140 = vld [vmem:[#allocation5 + $0x1f8] sm:$0xff]
        %v4141 = vld [vmem:[#allocation5 + $0x200] sm:$0xff]
        %v4142 = vld [vmem:[#allocation5 + $0x208] sm:$0xff]
        %v4143 = vld [vmem:[#allocation5 + $0x210] sm:$0xff]
        %v4144 = vld [vmem:[#allocation5 + $0x218] sm:$0xff]
        %v4145 = vld [vmem:[#allocation5 + $0x220] sm:$0xff]
        %v4146 = vld [vmem:[#allocation5 + $0x228] sm:$0xff]
        %v4147 = vld [vmem:[#allocation5 + $0x230] sm:$0xff]
        %v4148 = vld [vmem:[#allocation5 + $0x238] sm:$0xff]
        %v4149 = vld [vmem:[%s3] sm:$0xff]
        %v4150 = vld [vmem:[%s3 + $0x8] sm:$0xff]
        %v4151 = vld [vmem:[%s3 + $0x10] sm:$0xff]
        %v4152 = vld [vmem:[%s3 + $0x18] sm:$0xff]
        %v4153 = vld [vmem:[%s3 + $0x20] sm:$0xff]
        %v4154 = vld [vmem:[%s3 + $0x28] sm:$0xff]
        %v4155 = vld [vmem:[%s3 + $0x30] sm:$0xff]
        %v4156 = vld [vmem:[%s3 + $0x38] sm:$0xff]
        %v4157 = vld [vmem:[%s3 + $0x40] sm:$0xff]
        %v4158 = vld [vmem:[%s3 + $0x48] sm:$0xff]
        %v4159 = vld [vmem:[%s3 + $0x50] sm:$0xff]
        %v4160 = vld [vmem:[%s3 + $0x58] sm:$0xff]
        %v4161 = vld [vmem:[%s3 + $0x60] sm:$0xff]
        %v4162 = vld [vmem:[%s3 + $0x68] sm:$0xff]
        %v4163 = vld [vmem:[%s3 + $0x70] sm:$0xff]
        %v4164 = vld [vmem:[%s3 + $0x78] sm:$0xff]
        %v4165 = vld [vmem:[%s3 + $0x80] sm:$0xff]
        %v4166 = vld [vmem:[%s3 + $0x88] sm:$0xff]
        %v4167 = vld [vmem:[%s3 + $0x90] sm:$0xff]
        %v4168 = vld [vmem:[%s3 + $0x98] sm:$0xff]
        %v4169 = vld [vmem:[%s3 + $0xa0] sm:$0xff]
        %v4170 = vld [vmem:[%s3 + $0xa8] sm:$0xff]
        %v4171 = vld [vmem:[%s3 + $0xb0] sm:$0xff]
        %v4172 = vld [vmem:[%s3 + $0xb8] sm:$0xff]
        %v4173 = vld [vmem:[%s3 + $0xc0] sm:$0xff]
        %v4174 = vld [vmem:[%s3 + $0xc8] sm:$0xff]
        %v4175 = vld [vmem:[%s3 + $0xd0] sm:$0xff]
        %v4176 = vld [vmem:[%s3 + $0xd8] sm:$0xff]
        %v4177 = vld [vmem:[%s3 + $0xe0] sm:$0xff]
        %v4178 = vld [vmem:[%s3 + $0xe8] sm:$0xff]
        %v4179 = vld [vmem:[%s3 + $0xf0] sm:$0xff]
        %v4180 = vld [vmem:[%s3 + $0xf8] sm:$0xff]
        %v4181 = vld [vmem:[%s3 + $0x100] sm:$0xff]
        %v4182 = vld [vmem:[%s3 + $0x108] sm:$0xff]
        %v4183 = vld [vmem:[%s3 + $0x110] sm:$0xff]
        %v4184 = vld [vmem:[%s3 + $0x118] sm:$0xff]
        %v4185 = vld [vmem:[%s3 + $0x120] sm:$0xff]
        %v4186 = vld [vmem:[%s3 + $0x128] sm:$0xff]
        %v4187 = vld [vmem:[%s3 + $0x130] sm:$0xff]
        %v4188 = vld [vmem:[%s3 + $0x138] sm:$0xff]
        %v4189 = vld [vmem:[%s3 + $0x140] sm:$0xff]
        %v4190 = vld [vmem:[%s3 + $0x148] sm:$0xff]
        %v4191 = vld [vmem:[%s3 + $0x150] sm:$0xff]
        %v4192 = vld [vmem:[%s3 + $0x158] sm:$0xff]
        %v4193 = vld [vmem:[%s3 + $0x160] sm:$0xff]
        %v4194 = vld [vmem:[%s3 + $0x168] sm:$0xff]
        %v4195 = vld [vmem:[%s3 + $0x170] sm:$0xff]
        %v4196 = vld [vmem:[%s3 + $0x178] sm:$0xff]
        %v4197 = vld [vmem:[%s3 + $0x180] sm:$0xff]
        %v4198 = vld [vmem:[%s3 + $0x188] sm:$0xff]
        %v4199 = vld [vmem:[%s3 + $0x190] sm:$0xff]
        %v4200 = vld [vmem:[%s3 + $0x198] sm:$0xff]
        %v4201 = vld [vmem:[%s3 + $0x1a0] sm:$0xff]
        %v4202 = vld [vmem:[%s3 + $0x1a8] sm:$0xff]
        %v4203 = vld [vmem:[%s3 + $0x1b0] sm:$0xff]
        %v4204 = vld [vmem:[%s3 + $0x1b8] sm:$0xff]
        %v4205 = vld [vmem:[%s3 + $0x1c0] sm:$0xff]
        %v4206 = vld [vmem:[%s3 + $0x1c8] sm:$0xff]
        %v4207 = vld [vmem:[%s3 + $0x1d0] sm:$0xff]
        %v4208 = vld [vmem:[%s3 + $0x1d8] sm:$0xff]
        %v4209 = vld [vmem:[%s3 + $0x1e0] sm:$0xff]
        %v4210 = vld [vmem:[%s3 + $0x1e8] sm:$0xff]
        %v4211 = vld [vmem:[%s3 + $0x1f0] sm:$0xff]
        %v4212 = vld [vmem:[%s3 + $0x1f8] sm:$0xff]
        %v4213 = vld [vmem:[%s3 + $0x200] sm:$0xff]
        %v4214 = vld [vmem:[%s3 + $0x208] sm:$0xff]
        %v4215 = vld [vmem:[%s3 + $0x210] sm:$0xff]
        %v4216 = vld [vmem:[%s3 + $0x218] sm:$0xff]
        %v4217 = vld [vmem:[%s3 + $0x220] sm:$0xff]
        %v4218 = vld [vmem:[%s3 + $0x228] sm:$0xff]
        %v4219 = vld [vmem:[%s3 + $0x230] sm:$0xff]
        %v4220 = vld [vmem:[%s3 + $0x238] sm:$0xff]
        %v4221 = vld [vmem:[%s3 + $0x240] sm:$0xff]
        %v4222 = vld [vmem:[%s3 + $0x248] sm:$0xff]
        %v4223 = vld [vmem:[%s3 + $0x250] sm:$0xff]
        %v4224 = vld [vmem:[%s3 + $0x258] sm:$0xff]
        %v4225 = vld [vmem:[%s3 + $0x260] sm:$0xff]
        %v4226 = vld [vmem:[%s3 + $0x268] sm:$0xff]
        %v4227 = vld [vmem:[%s3 + $0x270] sm:$0xff]
        %v4228 = vld [vmem:[%s3 + $0x278] sm:$0xff]
        %v4229 = vld [vmem:[%s3 + $0x280] sm:$0xff]
        %v4230 = vld [vmem:[%s3 + $0x288] sm:$0xff]
        %v4231 = vld [vmem:[%s3 + $0x290] sm:$0xff]
        %v4232 = vld [vmem:[%s3 + $0x298] sm:$0xff]
        %v4233 = vld [vmem:[%s3 + $0x2a0] sm:$0xff]
        %v4234 = vld [vmem:[%s3 + $0x2a8] sm:$0xff]
        %v4235 = vld [vmem:[%s3 + $0x2b0] sm:$0xff]
        %v4236 = vld [vmem:[%s3 + $0x2b8] sm:$0xff]
        %v4237 = vld [vmem:[%s3 + $0x2c0] sm:$0xff]
        %v4238 = vld [vmem:[%s3 + $0x2c8] sm:$0xff]
        %v4239 = vld [vmem:[%s3 + $0x2d0] sm:$0xff]
        %v4240 = vld [vmem:[%s3 + $0x2d8] sm:$0xff]
        %v4241 = vld [vmem:[%s3 + $0x2e0] sm:$0xff]
        %v4242 = vld [vmem:[%s3 + $0x2e8] sm:$0xff]
        %v4243 = vld [vmem:[%s3 + $0x2f0] sm:$0xff]
        %v4244 = vld [vmem:[%s3 + $0x2f8] sm:$0xff]
        %v4245 = vld [vmem:[%s3 + $0x300] sm:$0xff]
        %v4246 = vld [vmem:[%s3 + $0x308] sm:$0xff]
        %v4247 = vld [vmem:[%s3 + $0x310] sm:$0xff]
        %v4248 = vld [vmem:[%s3 + $0x318] sm:$0xff]
        %v4249 = vld [vmem:[%s3 + $0x320] sm:$0xff]
        %v4250 = vld [vmem:[%s3 + $0x328] sm:$0xff]
        %v4251 = vld [vmem:[%s3 + $0x330] sm:$0xff]
        %v4252 = vld [vmem:[%s3 + $0x338] sm:$0xff]
        %v4253 = vld [vmem:[%s3 + $0x340] sm:$0xff]
        %v4254 = vld [vmem:[%s3 + $0x348] sm:$0xff]
        %v4255 = vld [vmem:[%s3 + $0x350] sm:$0xff]
        %v4256 = vld [vmem:[%s3 + $0x358] sm:$0xff]
        %v4257 = vld [vmem:[%s3 + $0x360] sm:$0xff]
        %v4258 = vld [vmem:[%s3 + $0x368] sm:$0xff]
        %v4259 = vld [vmem:[%s3 + $0x370] sm:$0xff]
        %v4260 = vld [vmem:[%s3 + $0x378] sm:$0xff]
        %v4261 = vld [vmem:[%s3 + $0x380] sm:$0xff]
        %v4262 = vld [vmem:[%s3 + $0x388] sm:$0xff]
        %v4263 = vld [vmem:[%s3 + $0x390] sm:$0xff]
        %v4264 = vld [vmem:[%s3 + $0x398] sm:$0xff]
        %v4265 = vld [vmem:[%s3 + $0x3a0] sm:$0xff]
        %v4266 = vld [vmem:[%s3 + $0x3a8] sm:$0xff]
        %v4267 = vld [vmem:[%s3 + $0x3b0] sm:$0xff]
        %v4268 = vld [vmem:[%s3 + $0x3b8] sm:$0xff]
        %v4269 = vld [vmem:[%s3 + $0x3c0] sm:$0xff]
        %v4270 = vld [vmem:[%s3 + $0x3c8] sm:$0xff]
        %v4271 = vld [vmem:[%s3 + $0x3d0] sm:$0xff]
        %v4272 = vld [vmem:[%s3 + $0x3d8] sm:$0xff]
        %v4273 = vld [vmem:[%s3 + $0x3e0] sm:$0xff]
        %v4274 = vld [vmem:[%s3 + $0x3e8] sm:$0xff]
        %v4275 = vld [vmem:[%s3 + $0x3f0] sm:$0xff]
        %v4276 = vld [vmem:[%s3 + $0x3f8] sm:$0xff]
        %v4277 = vld [vmem:[%s3 + $0x400] sm:$0xff]
        %v4278 = vld [vmem:[%s3 + $0x408] sm:$0xff]
        %v4279 = vld [vmem:[%s3 + $0x410] sm:$0xff]
        %v4280 = vld [vmem:[%s3 + $0x418] sm:$0xff]
        %v4281 = vld [vmem:[%s3 + $0x420] sm:$0xff]
        %v4282 = vld [vmem:[%s3 + $0x428] sm:$0xff]
        %v4283 = vld [vmem:[%s3 + $0x430] sm:$0xff]
        %v4284 = vld [vmem:[%s3 + $0x438] sm:$0xff]
        %v4285 = vld [vmem:[%s3 + $0x440] sm:$0xff]
        %v4286 = vld [vmem:[%s3 + $0x448] sm:$0xff]
        %v4287 = vld [vmem:[%s3 + $0x450] sm:$0xff]
        %v4288 = vld [vmem:[%s3 + $0x458] sm:$0xff]
        %v4289 = vld [vmem:[%s3 + $0x460] sm:$0xff]
        %v4290 = vld [vmem:[%s3 + $0x468] sm:$0xff]
        %v4291 = vld [vmem:[%s3 + $0x470] sm:$0xff]
        %v4292 = vld [vmem:[%s3 + $0x478] sm:$0xff]
        %v4293 = vld [vmem:[%s3 + $0x480] sm:$0xff]
        %v4294 = vld [vmem:[%s3 + $0x488] sm:$0xff]
        %v4295 = vld [vmem:[%s3 + $0x490] sm:$0xff]
        %v4296 = vld [vmem:[%s3 + $0x498] sm:$0xff]
        %v4297 = vld [vmem:[%s3 + $0x4a0] sm:$0xff]
        %v4298 = vld [vmem:[%s3 + $0x4a8] sm:$0xff]
        %v4299 = vld [vmem:[%s3 + $0x4b0] sm:$0xff]
        %v4300 = vld [vmem:[%s3 + $0x4b8] sm:$0xff]
        %v4301 = vld [vmem:[%s3 + $0x4c0] sm:$0xff]
        %v4302 = vld [vmem:[%s3 + $0x4c8] sm:$0xff]
        %v4303 = vld [vmem:[%s3 + $0x4d0] sm:$0xff]
        %v4304 = vld [vmem:[%s3 + $0x4d8] sm:$0xff]
        %v4305 = vld [vmem:[%s3 + $0x4e0] sm:$0xff]
        %v4306 = vld [vmem:[%s3 + $0x4e8] sm:$0xff]
        %v4307 = vld [vmem:[%s3 + $0x4f0] sm:$0xff]
        %v4308 = vld [vmem:[%s3 + $0x4f8] sm:$0xff]
        %v4309 = vld [vmem:[%s3 + $0x500] sm:$0xff]
        %v4310 = vld [vmem:[%s3 + $0x508] sm:$0xff]
        %v4311 = vld [vmem:[%s3 + $0x510] sm:$0xff]
        %v4312 = vld [vmem:[%s3 + $0x518] sm:$0xff]
        %v4313 = vld [vmem:[%s3 + $0x520] sm:$0xff]
        %v4314 = vld [vmem:[%s3 + $0x528] sm:$0xff]
        %v4315 = vld [vmem:[%s3 + $0x530] sm:$0xff]
        %v4316 = vld [vmem:[%s3 + $0x538] sm:$0xff]
        %v4317 = vld [vmem:[%s3 + $0x540] sm:$0xff]
        %v4318 = vld [vmem:[%s3 + $0x548] sm:$0xff]
        %v4319 = vld [vmem:[%s3 + $0x550] sm:$0xff]
        %v4320 = vld [vmem:[%s3 + $0x558] sm:$0xff]
        %v4321 = vld [vmem:[%s3 + $0x560] sm:$0xff]
        %v4322 = vld [vmem:[%s3 + $0x568] sm:$0xff]
        %v4323 = vld [vmem:[%s3 + $0x570] sm:$0xff]
        %v4324 = vld [vmem:[%s3 + $0x578] sm:$0xff]
        %v4325 = vld [vmem:[%s3 + $0x580] sm:$0xff]
        %v4326 = vld [vmem:[%s3 + $0x588] sm:$0xff]
        %v4327 = vld [vmem:[%s3 + $0x590] sm:$0xff]
        %v4328 = vld [vmem:[%s3 + $0x598] sm:$0xff]
        %v4329 = vld [vmem:[%s3 + $0x5a0] sm:$0xff]
        %v4330 = vld [vmem:[%s3 + $0x5a8] sm:$0xff]
        %v4331 = vld [vmem:[%s3 + $0x5b0] sm:$0xff]
        %v4332 = vld [vmem:[%s3 + $0x5b8] sm:$0xff]
        %v4333 = vld [vmem:[%s3 + $0x5c0] sm:$0xff]
        %v4334 = vld [vmem:[%s3 + $0x5c8] sm:$0xff]
        %v4335 = vld [vmem:[%s3 + $0x5d0] sm:$0xff]
        %v4336 = vld [vmem:[%s3 + $0x5d8] sm:$0xff]
        %v4337 = vld [vmem:[%s3 + $0x5e0] sm:$0xff]
        %v4338 = vld [vmem:[%s3 + $0x5e8] sm:$0xff]
        %v4339 = vld [vmem:[%s3 + $0x5f0] sm:$0xff]
        %v4340 = vld [vmem:[%s3 + $0x5f8] sm:$0xff]
        %v4341 = vld [vmem:[%s3 + $0x600] sm:$0xff]
        %v4342 = vld [vmem:[%s3 + $0x608] sm:$0xff]
        %v4343 = vld [vmem:[%s3 + $0x610] sm:$0xff]
        %v4344 = vld [vmem:[%s3 + $0x618] sm:$0xff]
        %v4345 = vld [vmem:[%s3 + $0x620] sm:$0xff]
        %v4346 = vld [vmem:[%s3 + $0x628] sm:$0xff]
        %v4347 = vld [vmem:[%s3 + $0x630] sm:$0xff]
        %v4348 = vld [vmem:[%s3 + $0x638] sm:$0xff]
        %v4349 = vld [vmem:[%s3 + $0x640] sm:$0xff]
        %v4350 = vld [vmem:[%s3 + $0x648] sm:$0xff]
        %v4351 = vld [vmem:[%s3 + $0x650] sm:$0xff]
        %v4352 = vld [vmem:[%s3 + $0x658] sm:$0xff]
        %v4353 = vld [vmem:[%s3 + $0x660] sm:$0xff]
        %v4354 = vld [vmem:[%s3 + $0x668] sm:$0xff]
        %v4355 = vld [vmem:[%s3 + $0x670] sm:$0xff]
        %v4356 = vld [vmem:[%s3 + $0x678] sm:$0xff]
        %v4357 = vld [vmem:[%s3 + $0x680] sm:$0xff]
        %v4358 = vld [vmem:[%s3 + $0x688] sm:$0xff]
        %v4359 = vld [vmem:[%s3 + $0x690] sm:$0xff]
        %v4360 = vld [vmem:[%s3 + $0x698] sm:$0xff]
        %v4361 = vld [vmem:[%s3 + $0x6a0] sm:$0xff]
        %v4362 = vld [vmem:[%s3 + $0x6a8] sm:$0xff]
        %v4363 = vld [vmem:[%s3 + $0x6b0] sm:$0xff]
        %v4364 = vld [vmem:[%s3 + $0x6b8] sm:$0xff]
        %v4365 = vld [vmem:[%s3 + $0x6c0] sm:$0xff]
        %v4366 = vld [vmem:[%s3 + $0x6c8] sm:$0xff]
        %v4367 = vld [vmem:[%s3 + $0x6d0] sm:$0xff]
        %v4368 = vld [vmem:[%s3 + $0x6d8] sm:$0xff]
        %v4369 = vld [vmem:[%s3 + $0x6e0] sm:$0xff]
        %v4370 = vld [vmem:[%s3 + $0x6e8] sm:$0xff]
        %v4371 = vld [vmem:[%s3 + $0x6f0] sm:$0xff]
        %v4372 = vld [vmem:[%s3 + $0x6f8] sm:$0xff]
        %v4373 = vld [vmem:[%s3 + $0x700] sm:$0xff]
        %v4374 = vld [vmem:[%s3 + $0x708] sm:$0xff]
        %v4375 = vld [vmem:[%s3 + $0x710] sm:$0xff]
        %v4376 = vld [vmem:[%s3 + $0x718] sm:$0xff]
        %v4377 = vld [vmem:[%s3 + $0x720] sm:$0xff]
        %v4378 = vld [vmem:[%s3 + $0x728] sm:$0xff]
        %v4379 = vld [vmem:[%s3 + $0x730] sm:$0xff]
        %v4380 = vld [vmem:[%s3 + $0x738] sm:$0xff]
        %v4381 = vld [vmem:[%s3 + $0x740] sm:$0xff]
        %v4382 = vld [vmem:[%s3 + $0x748] sm:$0xff]
        %v4383 = vld [vmem:[%s3 + $0x750] sm:$0xff]
        %v4384 = vld [vmem:[%s3 + $0x758] sm:$0xff]
        %v4385 = vld [vmem:[%s3 + $0x760] sm:$0xff]
        %v4386 = vld [vmem:[%s3 + $0x768] sm:$0xff]
        %v4387 = vld [vmem:[%s3 + $0x770] sm:$0xff]
        %v4388 = vld [vmem:[%s3 + $0x778] sm:$0xff]
        %v4389 = vld [vmem:[%s3 + $0x780] sm:$0xff]
        %v4390 = vld [vmem:[%s3 + $0x788] sm:$0xff]
        %v4391 = vld [vmem:[%s3 + $0x790] sm:$0xff]
        %v4392 = vld [vmem:[%s3 + $0x798] sm:$0xff]
        %v4393 = vld [vmem:[%s3 + $0x7a0] sm:$0xff]
        %v4394 = vld [vmem:[%s3 + $0x7a8] sm:$0xff]
        %v4395 = vld [vmem:[%s3 + $0x7b0] sm:$0xff]
        %v4396 = vld [vmem:[%s3 + $0x7b8] sm:$0xff]
        %v4397 = vld [vmem:[%s3 + $0x7c0] sm:$0xff]
        %v4398 = vld [vmem:[%s3 + $0x7c8] sm:$0xff]
        %v4399 = vld [vmem:[%s3 + $0x7d0] sm:$0xff]
        %v4400 = vld [vmem:[%s3 + $0x7d8] sm:$0xff]
        %v4401 = vld [vmem:[%s3 + $0x7e0] sm:$0xff]
        %v4402 = vld [vmem:[%s3 + $0x7e8] sm:$0xff]
        %v4403 = vld [vmem:[%s3 + $0x7f0] sm:$0xff]
        %v4404 = vld [vmem:[%s3 + $0x7f8] sm:$0xff]
        %v4405 = vld [vmem:[%s3 + $0x800] sm:$0xff]
        %v4406 = vld [vmem:[%s3 + $0x808] sm:$0xff]
        %v4407 = vld [vmem:[%s3 + $0x810] sm:$0xff]
        %v4408 = vld [vmem:[%s3 + $0x818] sm:$0xff]
        %v4409 = vld [vmem:[%s3 + $0x820] sm:$0xff]
        %v4410 = vld [vmem:[%s3 + $0x828] sm:$0xff]
        %v4411 = vld [vmem:[%s3 + $0x830] sm:$0xff]
        %v4412 = vld [vmem:[%s3 + $0x838] sm:$0xff]
        %v4413 = vld [vmem:[%s3 + $0x840] sm:$0xff]
        %v4414 = vld [vmem:[%s3 + $0x848] sm:$0xff]
        %v4415 = vld [vmem:[%s3 + $0x850] sm:$0xff]
        %v4416 = vld [vmem:[%s3 + $0x858] sm:$0xff]
        %v4417 = vld [vmem:[%s3 + $0x860] sm:$0xff]
        %v4418 = vld [vmem:[%s3 + $0x868] sm:$0xff]
        %v4419 = vld [vmem:[%s3 + $0x870] sm:$0xff]
        %v4420 = vld [vmem:[%s3 + $0x878] sm:$0xff]
        %v4421 = vld [vmem:[%s3 + $0x880] sm:$0xff]
        %v4422 = vld [vmem:[%s3 + $0x888] sm:$0xff]
        %v4423 = vld [vmem:[%s3 + $0x890] sm:$0xff]
        %v4424 = vld [vmem:[%s3 + $0x898] sm:$0xff]
        %v4425 = vld [vmem:[%s3 + $0x8a0] sm:$0xff]
        %v4426 = vld [vmem:[%s3 + $0x8a8] sm:$0xff]
        %v4427 = vld [vmem:[%s3 + $0x8b0] sm:$0xff]
        %v4428 = vld [vmem:[%s3 + $0x8b8] sm:$0xff]
        %v4429 = vld [vmem:[%s3 + $0x8c0] sm:$0xff]
        %v4430 = vld [vmem:[%s3 + $0x8c8] sm:$0xff]
        %v4431 = vld [vmem:[%s3 + $0x8d0] sm:$0xff]
        %v4432 = vld [vmem:[%s3 + $0x8d8] sm:$0xff]
        %v4433 = vld [vmem:[%s3 + $0x8e0] sm:$0xff]
        %v4434 = vld [vmem:[%s3 + $0x8e8] sm:$0xff]
        %v4435 = vld [vmem:[%s3 + $0x8f0] sm:$0xff]
        %v4436 = vld [vmem:[%s3 + $0x8f8] sm:$0xff]
        %v4437 = vld [vmem:[%s6] sm:$0xff]
        %v4438 = vld [vmem:[%s6 + $0x8] sm:$0xff]
        %v4439 = vld [vmem:[%s6 + $0x10] sm:$0xff]
        %v4440 = vld [vmem:[%s6 + $0x18] sm:$0xff]
        %v4441 = vld [vmem:[%s6 + $0x20] sm:$0xff]
        %v4442 = vld [vmem:[%s6 + $0x28] sm:$0xff]
        %v4443 = vld [vmem:[%s6 + $0x30] sm:$0xff]
        %v4444 = vld [vmem:[%s6 + $0x38] sm:$0xff]
        %v4445 = vld [vmem:[%s276] sm:$0xff]
        %v4446 = vld [vmem:[%s276 + $0x8] sm:$0xff]
        %v4447 = vld [vmem:[%s276 + $0x10] sm:$0xff]
        %v4448 = vld [vmem:[%s276 + $0x18] sm:$0xff]
        %v4449 = vld [vmem:[%s276 + $0x20] sm:$0xff]
        %v4450 = vld [vmem:[%s276 + $0x28] sm:$0xff]
        %v4451 = vld [vmem:[%s276 + $0x30] sm:$0xff]
        %v4452 = vld [vmem:[%s276 + $0x38] sm:$0xff]
        %v4453 = vld [vmem:[%s276 + $0x40] sm:$0xff]
        %v4454 = vld [vmem:[%s276 + $0x48] sm:$0xff]
        %v4455 = vld [vmem:[%s276 + $0x50] sm:$0xff]
        %v4456 = vld [vmem:[%s276 + $0x58] sm:$0xff]
        %v4457 = vld [vmem:[%s276 + $0x60] sm:$0xff]
        %v4458 = vld [vmem:[%s276 + $0x68] sm:$0xff]
        %v4459 = vld [vmem:[%s276 + $0x70] sm:$0xff]
        %v4460 = vld [vmem:[%s276 + $0x78] sm:$0xff]
        %v4461 = vld [vmem:[%s276 + $0x80] sm:$0xff]
        %v4462 = vld [vmem:[%s276 + $0x88] sm:$0xff]
        %v4463 = vld [vmem:[%s276 + $0x90] sm:$0xff]
        %v4464 = vld [vmem:[%s276 + $0x98] sm:$0xff]
        %v4465 = vld [vmem:[%s276 + $0xa0] sm:$0xff]
        %v4466 = vld [vmem:[%s276 + $0xa8] sm:$0xff]
        %v4467 = vld [vmem:[%s276 + $0xb0] sm:$0xff]
        %v4468 = vld [vmem:[%s276 + $0xb8] sm:$0xff]
        %v4469 = vld [vmem:[%s276 + $0xc0] sm:$0xff]
        %v4470 = vld [vmem:[%s276 + $0xc8] sm:$0xff]
        %v4471 = vld [vmem:[%s276 + $0xd0] sm:$0xff]
        %v4472 = vld [vmem:[%s276 + $0xd8] sm:$0xff]
        %v4473 = vld [vmem:[%s276 + $0xe0] sm:$0xff]
        %v4474 = vld [vmem:[%s276 + $0xe8] sm:$0xff]
        %v4475 = vld [vmem:[%s276 + $0xf0] sm:$0xff]
        %v4476 = vld [vmem:[%s276 + $0xf8] sm:$0xff]
        %v4477 = vpack.c.bf16 %v4446, %v4445
        %v4478 = vpack.c.bf16 %v4448, %v4447
        %v4479 = vpack.c.bf16 %v4450, %v4449
        %v4480 = vpack.c.bf16 %v4452, %v4451
        %v4481 = vpack.c.bf16 %v4454, %v4453
        %v4482 = vpack.c.bf16 %v4456, %v4455
        %v4483 = vpack.c.bf16 %v4458, %v4457
        %v4484 = vpack.c.bf16 %v4460, %v4459
        %v4485 = vpack.c.bf16 %v4462, %v4461
        %v4486 = vpack.c.bf16 %v4464, %v4463
        %v4487 = vpack.c.bf16 %v4466, %v4465
        %v4488 = vpack.c.bf16 %v4468, %v4467
        %v4489 = vpack.c.bf16 %v4470, %v4469
        %v4490 = vpack.c.bf16 %v4472, %v4471
        %v4491 = vpack.c.bf16 %v4474, %v4473
        %v4492 = vpack.c.bf16 %v4476, %v4475
        %v4501 = vunpack.c.l.b16 %v4437
        %v4502 = vunpack.c.h.b16 %v4437
        %v4503 = vunpack.c.l.b16 %v4438
        %v4504 = vunpack.c.h.b16 %v4438
        %v4505 = vunpack.c.l.b16 %v4439
        %v4506 = vunpack.c.h.b16 %v4439
        %v4507 = vunpack.c.l.b16 %v4440
        %v4508 = vunpack.c.h.b16 %v4440
        %v4509 = vunpack.c.l.b16 %v4441
        %v4510 = vunpack.c.h.b16 %v4441
        %v4511 = vunpack.c.l.b16 %v4442
        %v4512 = vunpack.c.h.b16 %v4442
        %v4513 = vunpack.c.l.b16 %v4443
        %v4514 = vunpack.c.h.b16 %v4443
        %v4515 = vunpack.c.l.b16 %v4444
        %v4516 = vunpack.c.h.b16 %v4444
        %v4517 = vpack.c.b16 %v4503, %v4501
        %v4518 = vpack.c.b16 %v4504, %v4502
        %v4519 = vpack.c.b16 %v4507, %v4505
        %v4520 = vpack.c.b16 %v4508, %v4506
        %v4521 = vpack.c.b16 %v4511, %v4509
        %v4522 = vpack.c.b16 %v4512, %v4510
        %v4523 = vpack.c.b16 %v4515, %v4513
        %v4524 = vpack.c.b16 %v4516, %v4514
        %4533 = vmatpush.bf16.msra.mxu0 %v4484
        %4534 = vmatpush.bf16.msra.mxu0 %v4483
        %4535 = vmatpush.bf16.msra.mxu0 %v4482
        %4536 = vmatpush.bf16.msra.mxu0 %v4481
        %4537 = vmatpush.bf16.msra.mxu0 %v4480
        %4538 = vmatpush.bf16.msra.mxu0 %v4479
        %4539 = vmatpush.bf16.msra.mxu0 %v4478
        %4540 = vmatpush.bf16.msra.mxu0 %v4477
        %4541 = vmatmul.bf16.gmra.mxu0 %v4517
        %v4542 = vpop.f32.mrf.mxu0
        %v4543 = vadd.f32 0.0, %v4542
        %v4544 = vpop.f32.mrf.mxu0
        %v4545 = vadd.f32 0.0, %v4544
        %4546 = vmatmul.bf16.gmra.mxu0 %v4519
        %v4547 = vpop.f32.mrf.mxu0
        %v4548 = vadd.f32 0.0, %v4547
        %v4549 = vpop.f32.mrf.mxu0
        %v4550 = vadd.f32 0.0, %v4549
        %4551 = vmatmul.bf16.gmra.mxu0 %v4521
        %v4552 = vpop.f32.mrf.mxu0
        %v4553 = vadd.f32 0.0, %v4552
        %v4554 = vpop.f32.mrf.mxu0
        %v4555 = vadd.f32 0.0, %v4554
        %4556 = vmatmul.bf16.gmra.mxu0 %v4523
        %v4557 = vpop.f32.mrf.mxu0
        %v4558 = vadd.f32 0.0, %v4557
        %v4559 = vpop.f32.mrf.mxu0
        %v4560 = vadd.f32 0.0, %v4559
        %4561 = vdwg.mxu0
        %4562 = vmatpush.bf16.msra.mxu0 %v4492
        %4563 = vmatpush.bf16.msra.mxu0 %v4491
        %4564 = vmatpush.bf16.msra.mxu0 %v4490
        %4565 = vmatpush.bf16.msra.mxu0 %v4489
        %4566 = vmatpush.bf16.msra.mxu0 %v4488
        %4567 = vmatpush.bf16.msra.mxu0 %v4487
        %4568 = vmatpush.bf16.msra.mxu0 %v4486
        %4569 = vmatpush.bf16.msra.mxu0 %v4485
        %4570 = vmatmul.bf16.gmra.mxu0 %v4518
        %v4571 = vpop.f32.mrf.mxu0
        %v4572 = vadd.f32 %v4543, %v4571
        %v4573 = vpop.f32.mrf.mxu0
        %v4574 = vadd.f32 %v4545, %v4573
        %4575 = vmatmul.bf16.gmra.mxu0 %v4520
        %v4576 = vpop.f32.mrf.mxu0
        %v4577 = vadd.f32 %v4548, %v4576
        %v4578 = vpop.f32.mrf.mxu0
        %v4579 = vadd.f32 %v4550, %v4578
        %4580 = vmatmul.bf16.gmra.mxu0 %v4522
        %v4581 = vpop.f32.mrf.mxu0
        %v4582 = vadd.f32 %v4553, %v4581
        %v4583 = vpop.f32.mrf.mxu0
        %v4584 = vadd.f32 %v4555, %v4583
        %4585 = vmatmul.bf16.gmra.mxu0 %v4524
        %v4586 = vpop.f32.mrf.mxu0
        %v4587 = vadd.f32 %v4558, %v4586
        %v4588 = vpop.f32.mrf.mxu0
        %v4589 = vadd.f32 %v4560, %v4588
        %4590 = vdwg.mxu0
        %v4591 = vpack.c.bf16 %v4574, %v4572
        %v4592 = vpack.c.bf16 %v4579, %v4577
        %v4593 = vpack.c.bf16 %v4584, %v4582
        %v4594 = vpack.c.bf16 %v4589, %v4587
        %v4595 = vld [vmem:[%s4] sm:$0xf]
        %4597 = vst [vmem:[#allocation1] ss:$4 sm:$0xff] %v4595
        %v4598 = vld.sshfl [vmem:[#allocation1] sm:$0xff pattern:$0x73625140]
        %v4599 = vld.sshfl [vmem:[#allocation1 + $0x8] sm:$0xff pattern:$0x73625140]
        %v4601 = vsel %vm278, %v4591, 0
        %v4604 = vsel %vm278, %v4592, 0
        %v4607 = vsel %vm278, %v4593, 0
        %v4610 = vsel %vm278, %v4594, 0
        %v4612 = vsel %vm2516, %v4598, 0
        %v4614 = vsel %vm2516, %v4599, 0
        %4616 = vmatpush.bf16.msra.mxu0 0
        %4617 = vmatpush.bf16.msra.mxu0 0
        %4618 = vmatpush.bf16.msra.mxu0 0
        %4619 = vmatpush.bf16.msra.mxu0 0
        %4620 = vmatpush.bf16.msra.mxu0 0
        %4621 = vmatpush.bf16.msra.mxu0 0
        %4622 = vmatpush.bf16.msra.mxu0 0
        %4623 = vmatpush.bf16.msra.mxu0 %v4612
        %4624 = vmatmul.bf16.gmra.mxu0 %v4601
        %v4625 = vpop.f32.mrf.mxu0
        %v4626 = vadd.f32 0.0, %v4625
        %v4627 = vpop.f32.mrf.mxu0
        %v4628 = vadd.f32 0.0, %v4627
        %4629 = vmatmul.bf16.gmra.mxu0 %v4604
        %v4630 = vpop.f32.mrf.mxu0
        %v4631 = vadd.f32 0.0, %v4630
        %v4632 = vpop.f32.mrf.mxu0
        %v4633 = vadd.f32 0.0, %v4632
        %4634 = vmatmul.bf16.gmra.mxu0 %v4607
        %v4635 = vpop.f32.mrf.mxu0
        %v4636 = vadd.f32 0.0, %v4635
        %v4637 = vpop.f32.mrf.mxu0
        %v4638 = vadd.f32 0.0, %v4637
        %4639 = vmatmul.bf16.gmra.mxu0 %v4610
        %v4640 = vpop.f32.mrf.mxu0
        %v4641 = vadd.f32 0.0, %v4640
        %v4642 = vpop.f32.mrf.mxu0
        %v4643 = vadd.f32 0.0, %v4642
        %4644 = vdwg.mxu0
        %4645 = vmatpush.bf16.msra.mxu0 0
        %4646 = vmatpush.bf16.msra.mxu0 0
        %4647 = vmatpush.bf16.msra.mxu0 0
        %4648 = vmatpush.bf16.msra.mxu0 0
        %4649 = vmatpush.bf16.msra.mxu0 0
        %4650 = vmatpush.bf16.msra.mxu0 0
        %4651 = vmatpush.bf16.msra.mxu0 0
        %4652 = vmatpush.bf16.msra.mxu0 %v4614
        %4653 = vmatmul.bf16.gmra.mxu0 %v4601
        %v4654 = vpop.f32.mrf.mxu0
        %v4655 = vadd.f32 0.0, %v4654
        %v4656 = vpop.f32.mrf.mxu0
        %v4657 = vadd.f32 0.0, %v4656
        %4658 = vmatmul.bf16.gmra.mxu0 %v4604
        %v4659 = vpop.f32.mrf.mxu0
        %v4660 = vadd.f32 0.0, %v4659
        %v4661 = vpop.f32.mrf.mxu0
        %v4662 = vadd.f32 0.0, %v4661
        %4663 = vmatmul.bf16.gmra.mxu0 %v4607
        %v4664 = vpop.f32.mrf.mxu0
        %v4665 = vadd.f32 0.0, %v4664
        %v4666 = vpop.f32.mrf.mxu0
        %v4667 = vadd.f32 0.0, %v4666
        %4668 = vmatmul.bf16.gmra.mxu0 %v4610
        %v4669 = vpop.f32.mrf.mxu0
        %v4670 = vadd.f32 0.0, %v4669
        %v4671 = vpop.f32.mrf.mxu0
        %v4672 = vadd.f32 0.0, %v4671
        %4673 = vdwg.mxu0
        %v4746 = vunpack.c.l.b16 %v4077
        %v4747 = vunpack.c.h.b16 %v4077
        %v4748 = vunpack.c.l.b16 %v4078
        %v4749 = vunpack.c.h.b16 %v4078
        %v4750 = vunpack.c.l.b16 %v4079
        %v4751 = vunpack.c.h.b16 %v4079
        %v4752 = vunpack.c.l.b16 %v4080
        %v4753 = vunpack.c.h.b16 %v4080
        %v4754 = vunpack.c.l.b16 %v4081
        %v4755 = vunpack.c.h.b16 %v4081
        %v4756 = vunpack.c.l.b16 %v4082
        %v4757 = vunpack.c.h.b16 %v4082
        %v4758 = vunpack.c.l.b16 %v4083
        %v4759 = vunpack.c.h.b16 %v4083
        %v4760 = vunpack.c.l.b16 %v4084
        %v4761 = vunpack.c.h.b16 %v4084
        %v4762 = vunpack.c.l.b16 %v4085
        %v4763 = vunpack.c.h.b16 %v4085
        %v4764 = vunpack.c.l.b16 %v4086
        %v4765 = vunpack.c.h.b16 %v4086
        %v4766 = vunpack.c.l.b16 %v4087
        %v4767 = vunpack.c.h.b16 %v4087
        %v4768 = vunpack.c.l.b16 %v4088
        %v4769 = vunpack.c.h.b16 %v4088
        %v4770 = vunpack.c.l.b16 %v4089
        %v4771 = vunpack.c.h.b16 %v4089
        %v4772 = vunpack.c.l.b16 %v4090
        %v4773 = vunpack.c.h.b16 %v4090
        %v4774 = vunpack.c.l.b16 %v4091
        %v4775 = vunpack.c.h.b16 %v4091
        %v4776 = vunpack.c.l.b16 %v4092
        %v4777 = vunpack.c.h.b16 %v4092
        %v4778 = vunpack.c.l.b16 %v4093
        %v4779 = vunpack.c.h.b16 %v4093
        %v4780 = vunpack.c.l.b16 %v4094
        %v4781 = vunpack.c.h.b16 %v4094
        %v4782 = vunpack.c.l.b16 %v4095
        %v4783 = vunpack.c.h.b16 %v4095
        %v4784 = vunpack.c.l.b16 %v4096
        %v4785 = vunpack.c.h.b16 %v4096
        %v4786 = vunpack.c.l.b16 %v4097
        %v4787 = vunpack.c.h.b16 %v4097
        %v4788 = vunpack.c.l.b16 %v4098
        %v4789 = vunpack.c.h.b16 %v4098
        %v4790 = vunpack.c.l.b16 %v4099
        %v4791 = vunpack.c.h.b16 %v4099
        %v4792 = vunpack.c.l.b16 %v4100
        %v4793 = vunpack.c.h.b16 %v4100
        %v4794 = vunpack.c.l.b16 %v4101
        %v4795 = vunpack.c.h.b16 %v4101
        %v4796 = vunpack.c.l.b16 %v4102
        %v4797 = vunpack.c.h.b16 %v4102
        %v4798 = vunpack.c.l.b16 %v4103
        %v4799 = vunpack.c.h.b16 %v4103
        %v4800 = vunpack.c.l.b16 %v4104
        %v4801 = vunpack.c.h.b16 %v4104
        %v4802 = vunpack.c.l.b16 %v4105
        %v4803 = vunpack.c.h.b16 %v4105
        %v4804 = vunpack.c.l.b16 %v4106
        %v4805 = vunpack.c.h.b16 %v4106
        %v4806 = vunpack.c.l.b16 %v4107
        %v4807 = vunpack.c.h.b16 %v4107
        %v4808 = vunpack.c.l.b16 %v4108
        %v4809 = vunpack.c.h.b16 %v4108
        %v4810 = vunpack.c.l.b16 %v4109
        %v4811 = vunpack.c.h.b16 %v4109
        %v4812 = vunpack.c.l.b16 %v4110
        %v4813 = vunpack.c.h.b16 %v4110
        %v4814 = vunpack.c.l.b16 %v4111
        %v4815 = vunpack.c.h.b16 %v4111
        %v4816 = vunpack.c.l.b16 %v4112
        %v4817 = vunpack.c.h.b16 %v4112
        %v4818 = vunpack.c.l.b16 %v4113
        %v4819 = vunpack.c.h.b16 %v4113
        %v4820 = vunpack.c.l.b16 %v4114
        %v4821 = vunpack.c.h.b16 %v4114
        %v4822 = vunpack.c.l.b16 %v4115
        %v4823 = vunpack.c.h.b16 %v4115
        %v4824 = vunpack.c.l.b16 %v4116
        %v4825 = vunpack.c.h.b16 %v4116
        %v4826 = vunpack.c.l.b16 %v4117
        %v4827 = vunpack.c.h.b16 %v4117
        %v4828 = vunpack.c.l.b16 %v4118
        %v4829 = vunpack.c.h.b16 %v4118
        %v4830 = vunpack.c.l.b16 %v4119
        %v4831 = vunpack.c.h.b16 %v4119
        %v4832 = vunpack.c.l.b16 %v4120
        %v4833 = vunpack.c.h.b16 %v4120
        %v4834 = vunpack.c.l.b16 %v4121
        %v4835 = vunpack.c.h.b16 %v4121
        %v4836 = vunpack.c.l.b16 %v4122
        %v4837 = vunpack.c.h.b16 %v4122
        %v4838 = vunpack.c.l.b16 %v4123
        %v4839 = vunpack.c.h.b16 %v4123
        %v4840 = vunpack.c.l.b16 %v4124
        %v4841 = vunpack.c.h.b16 %v4124
        %v4842 = vunpack.c.l.b16 %v4125
        %v4843 = vunpack.c.h.b16 %v4125
        %v4844 = vunpack.c.l.b16 %v4126
        %v4845 = vunpack.c.h.b16 %v4126
        %v4846 = vunpack.c.l.b16 %v4127
        %v4847 = vunpack.c.h.b16 %v4127
        %v4848 = vunpack.c.l.b16 %v4128
        %v4849 = vunpack.c.h.b16 %v4128
        %v4850 = vunpack.c.l.b16 %v4129
        %v4851 = vunpack.c.h.b16 %v4129
        %v4852 = vunpack.c.l.b16 %v4130
        %v4853 = vunpack.c.h.b16 %v4130
        %v4854 = vunpack.c.l.b16 %v4131
        %v4855 = vunpack.c.h.b16 %v4131
        %v4856 = vunpack.c.l.b16 %v4132
        %v4857 = vunpack.c.h.b16 %v4132
        %v4858 = vunpack.c.l.b16 %v4133
        %v4859 = vunpack.c.h.b16 %v4133
        %v4860 = vunpack.c.l.b16 %v4134
        %v4861 = vunpack.c.h.b16 %v4134
        %v4862 = vunpack.c.l.b16 %v4135
        %v4863 = vunpack.c.h.b16 %v4135
        %v4864 = vunpack.c.l.b16 %v4136
        %v4865 = vunpack.c.h.b16 %v4136
        %v4866 = vunpack.c.l.b16 %v4137
        %v4867 = vunpack.c.h.b16 %v4137
        %v4868 = vunpack.c.l.b16 %v4138
        %v4869 = vunpack.c.h.b16 %v4138
        %v4870 = vunpack.c.l.b16 %v4139
        %v4871 = vunpack.c.h.b16 %v4139
        %v4872 = vunpack.c.l.b16 %v4140
        %v4873 = vunpack.c.h.b16 %v4140
        %v4874 = vunpack.c.l.b16 %v4141
        %v4875 = vunpack.c.h.b16 %v4141
        %v4876 = vunpack.c.l.b16 %v4142
        %v4877 = vunpack.c.h.b16 %v4142
        %v4878 = vunpack.c.l.b16 %v4143
        %v4879 = vunpack.c.h.b16 %v4143
        %v4880 = vunpack.c.l.b16 %v4144
        %v4881 = vunpack.c.h.b16 %v4144
        %v4882 = vunpack.c.l.b16 %v4145
        %v4883 = vunpack.c.h.b16 %v4145
        %v4884 = vunpack.c.l.b16 %v4146
        %v4885 = vunpack.c.h.b16 %v4146
        %v4886 = vunpack.c.l.b16 %v4147
        %v4887 = vunpack.c.h.b16 %v4147
        %v4888 = vunpack.c.l.b16 %v4148
        %v4889 = vunpack.c.h.b16 %v4148
        %v4890 = vpack.c.b16 %v4764, %v4746
        %v4891 = vpack.c.b16 %v4765, %v4747
        %v4892 = vpack.c.b16 %v4766, %v4748
        %v4893 = vpack.c.b16 %v4767, %v4749
        %v4894 = vpack.c.b16 %v4768, %v4750
        %v4895 = vpack.c.b16 %v4769, %v4751
        %v4896 = vpack.c.b16 %v4770, %v4752
        %v4897 = vpack.c.b16 %v4771, %v4753
        %v4898 = vpack.c.b16 %v4772, %v4754
        %v4899 = vpack.c.b16 %v4773, %v4755
        %v4900 = vpack.c.b16 %v4774, %v4756
        %v4901 = vpack.c.b16 %v4775, %v4757
        %v4902 = vpack.c.b16 %v4776, %v4758
        %v4903 = vpack.c.b16 %v4777, %v4759
        %v4904 = vpack.c.b16 %v4778, %v4760
        %v4905 = vpack.c.b16 %v4779, %v4761
        %v4906 = vpack.c.b16 %v4780, %v4762
        %v4907 = vpack.c.b16 %v4781, %v4763
        %v4908 = vpack.c.b16 %v4800, %v4782
        %v4909 = vpack.c.b16 %v4801, %v4783
        %v4910 = vpack.c.b16 %v4802, %v4784
        %v4911 = vpack.c.b16 %v4803, %v4785
        %v4912 = vpack.c.b16 %v4804, %v4786
        %v4913 = vpack.c.b16 %v4805, %v4787
        %v4914 = vpack.c.b16 %v4806, %v4788
        %v4915 = vpack.c.b16 %v4807, %v4789
        %v4916 = vpack.c.b16 %v4808, %v4790
        %v4917 = vpack.c.b16 %v4809, %v4791
        %v4918 = vpack.c.b16 %v4810, %v4792
        %v4919 = vpack.c.b16 %v4811, %v4793
        %v4920 = vpack.c.b16 %v4812, %v4794
        %v4921 = vpack.c.b16 %v4813, %v4795
        %v4922 = vpack.c.b16 %v4814, %v4796
        %v4923 = vpack.c.b16 %v4815, %v4797
        %v4924 = vpack.c.b16 %v4816, %v4798
        %v4925 = vpack.c.b16 %v4817, %v4799
        %v4926 = vpack.c.b16 %v4836, %v4818
        %v4927 = vpack.c.b16 %v4837, %v4819
        %v4928 = vpack.c.b16 %v4838, %v4820
        %v4929 = vpack.c.b16 %v4839, %v4821
        %v4930 = vpack.c.b16 %v4840, %v4822
        %v4931 = vpack.c.b16 %v4841, %v4823
        %v4932 = vpack.c.b16 %v4842, %v4824
        %v4933 = vpack.c.b16 %v4843, %v4825
        %v4934 = vpack.c.b16 %v4844, %v4826
        %v4935 = vpack.c.b16 %v4845, %v4827
        %v4936 = vpack.c.b16 %v4846, %v4828
        %v4937 = vpack.c.b16 %v4847, %v4829
        %v4938 = vpack.c.b16 %v4848, %v4830
        %v4939 = vpack.c.b16 %v4849, %v4831
        %v4940 = vpack.c.b16 %v4850, %v4832
        %v4941 = vpack.c.b16 %v4851, %v4833
        %v4942 = vpack.c.b16 %v4852, %v4834
        %v4943 = vpack.c.b16 %v4853, %v4835
        %v4944 = vpack.c.b16 %v4872, %v4854
        %v4945 = vpack.c.b16 %v4873, %v4855
        %v4946 = vpack.c.b16 %v4874, %v4856
        %v4947 = vpack.c.b16 %v4875, %v4857
        %v4948 = vpack.c.b16 %v4876, %v4858
        %v4949 = vpack.c.b16 %v4877, %v4859
        %v4950 = vpack.c.b16 %v4878, %v4860
        %v4951 = vpack.c.b16 %v4879, %v4861
        %v4952 = vpack.c.b16 %v4880, %v4862
        %v4953 = vpack.c.b16 %v4881, %v4863
        %v4954 = vpack.c.b16 %v4882, %v4864
        %v4955 = vpack.c.b16 %v4883, %v4865
        %v4956 = vpack.c.b16 %v4884, %v4866
        %v4957 = vpack.c.b16 %v4885, %v4867
        %v4958 = vpack.c.b16 %v4886, %v4868
        %v4959 = vpack.c.b16 %v4887, %v4869
        %v4960 = vpack.c.b16 %v4888, %v4870
        %v4961 = vpack.c.b16 %v4889, %v4871
        %v5322 = vunpack.c.l.b16 %v4149
        %v5323 = vunpack.c.h.b16 %v4149
        %v5324 = vunpack.c.l.b16 %v4150
        %v5325 = vunpack.c.h.b16 %v4150
        %v5326 = vunpack.c.l.b16 %v4151
        %v5327 = vunpack.c.h.b16 %v4151
        %v5328 = vunpack.c.l.b16 %v4152
        %v5329 = vunpack.c.h.b16 %v4152
        %v5330 = vunpack.c.l.b16 %v4153
        %v5331 = vunpack.c.h.b16 %v4153
        %v5332 = vunpack.c.l.b16 %v4154
        %v5333 = vunpack.c.h.b16 %v4154
        %v5334 = vunpack.c.l.b16 %v4155
        %v5335 = vunpack.c.h.b16 %v4155
        %v5336 = vunpack.c.l.b16 %v4156
        %v5337 = vunpack.c.h.b16 %v4156
        %v5338 = vunpack.c.l.b16 %v4157
        %v5339 = vunpack.c.h.b16 %v4157
        %v5340 = vunpack.c.l.b16 %v4158
        %v5341 = vunpack.c.h.b16 %v4158
        %v5342 = vunpack.c.l.b16 %v4159
        %v5343 = vunpack.c.h.b16 %v4159
        %v5344 = vunpack.c.l.b16 %v4160
        %v5345 = vunpack.c.h.b16 %v4160
        %v5346 = vunpack.c.l.b16 %v4161
        %v5347 = vunpack.c.h.b16 %v4161
        %v5348 = vunpack.c.l.b16 %v4162
        %v5349 = vunpack.c.h.b16 %v4162
        %v5350 = vunpack.c.l.b16 %v4163
        %v5351 = vunpack.c.h.b16 %v4163
        %v5352 = vunpack.c.l.b16 %v4164
        %v5353 = vunpack.c.h.b16 %v4164
        %v5354 = vunpack.c.l.b16 %v4165
        %v5355 = vunpack.c.h.b16 %v4165
        %v5356 = vunpack.c.l.b16 %v4166
        %v5357 = vunpack.c.h.b16 %v4166
        %v5358 = vunpack.c.l.b16 %v4167
        %v5359 = vunpack.c.h.b16 %v4167
        %v5360 = vunpack.c.l.b16 %v4168
        %v5361 = vunpack.c.h.b16 %v4168
        %v5362 = vunpack.c.l.b16 %v4169
        %v5363 = vunpack.c.h.b16 %v4169
        %v5364 = vunpack.c.l.b16 %v4170
        %v5365 = vunpack.c.h.b16 %v4170
        %v5366 = vunpack.c.l.b16 %v4171
        %v5367 = vunpack.c.h.b16 %v4171
        %v5368 = vunpack.c.l.b16 %v4172
        %v5369 = vunpack.c.h.b16 %v4172
        %v5370 = vunpack.c.l.b16 %v4173
        %v5371 = vunpack.c.h.b16 %v4173
        %v5372 = vunpack.c.l.b16 %v4174
        %v5373 = vunpack.c.h.b16 %v4174
        %v5374 = vunpack.c.l.b16 %v4175
        %v5375 = vunpack.c.h.b16 %v4175
        %v5376 = vunpack.c.l.b16 %v4176
        %v5377 = vunpack.c.h.b16 %v4176
        %v5378 = vunpack.c.l.b16 %v4177
        %v5379 = vunpack.c.h.b16 %v4177
        %v5380 = vunpack.c.l.b16 %v4178
        %v5381 = vunpack.c.h.b16 %v4178
        %v5382 = vunpack.c.l.b16 %v4179
        %v5383 = vunpack.c.h.b16 %v4179
        %v5384 = vunpack.c.l.b16 %v4180
        %v5385 = vunpack.c.h.b16 %v4180
        %v5386 = vunpack.c.l.b16 %v4181
        %v5387 = vunpack.c.h.b16 %v4181
        %v5388 = vunpack.c.l.b16 %v4182
        %v5389 = vunpack.c.h.b16 %v4182
        %v5390 = vunpack.c.l.b16 %v4183
        %v5391 = vunpack.c.h.b16 %v4183
        %v5392 = vunpack.c.l.b16 %v4184
        %v5393 = vunpack.c.h.b16 %v4184
        %v5394 = vunpack.c.l.b16 %v4185
        %v5395 = vunpack.c.h.b16 %v4185
        %v5396 = vunpack.c.l.b16 %v4186
        %v5397 = vunpack.c.h.b16 %v4186
        %v5398 = vunpack.c.l.b16 %v4187
        %v5399 = vunpack.c.h.b16 %v4187
        %v5400 = vunpack.c.l.b16 %v4188
        %v5401 = vunpack.c.h.b16 %v4188
        %v5402 = vunpack.c.l.b16 %v4189
        %v5403 = vunpack.c.h.b16 %v4189
        %v5404 = vunpack.c.l.b16 %v4190
        %v5405 = vunpack.c.h.b16 %v4190
        %v5406 = vunpack.c.l.b16 %v4191
        %v5407 = vunpack.c.h.b16 %v4191
        %v5408 = vunpack.c.l.b16 %v4192
        %v5409 = vunpack.c.h.b16 %v4192
        %v5410 = vunpack.c.l.b16 %v4193
        %v5411 = vunpack.c.h.b16 %v4193
        %v5412 = vunpack.c.l.b16 %v4194
        %v5413 = vunpack.c.h.b16 %v4194
        %v5414 = vunpack.c.l.b16 %v4195
        %v5415 = vunpack.c.h.b16 %v4195
        %v5416 = vunpack.c.l.b16 %v4196
        %v5417 = vunpack.c.h.b16 %v4196
        %v5418 = vunpack.c.l.b16 %v4197
        %v5419 = vunpack.c.h.b16 %v4197
        %v5420 = vunpack.c.l.b16 %v4198
        %v5421 = vunpack.c.h.b16 %v4198
        %v5422 = vunpack.c.l.b16 %v4199
        %v5423 = vunpack.c.h.b16 %v4199
        %v5424 = vunpack.c.l.b16 %v4200
        %v5425 = vunpack.c.h.b16 %v4200
        %v5426 = vunpack.c.l.b16 %v4201
        %v5427 = vunpack.c.h.b16 %v4201
        %v5428 = vunpack.c.l.b16 %v4202
        %v5429 = vunpack.c.h.b16 %v4202
        %v5430 = vunpack.c.l.b16 %v4203
        %v5431 = vunpack.c.h.b16 %v4203
        %v5432 = vunpack.c.l.b16 %v4204
        %v5433 = vunpack.c.h.b16 %v4204
        %v5434 = vunpack.c.l.b16 %v4205
        %v5435 = vunpack.c.h.b16 %v4205
        %v5436 = vunpack.c.l.b16 %v4206
        %v5437 = vunpack.c.h.b16 %v4206
        %v5438 = vunpack.c.l.b16 %v4207
        %v5439 = vunpack.c.h.b16 %v4207
        %v5440 = vunpack.c.l.b16 %v4208
        %v5441 = vunpack.c.h.b16 %v4208
        %v5442 = vunpack.c.l.b16 %v4209
        %v5443 = vunpack.c.h.b16 %v4209
        %v5444 = vunpack.c.l.b16 %v4210
        %v5445 = vunpack.c.h.b16 %v4210
        %v5446 = vunpack.c.l.b16 %v4211
        %v5447 = vunpack.c.h.b16 %v4211
        %v5448 = vunpack.c.l.b16 %v4212
        %v5449 = vunpack.c.h.b16 %v4212
        %v5450 = vunpack.c.l.b16 %v4213
        %v5451 = vunpack.c.h.b16 %v4213
        %v5452 = vunpack.c.l.b16 %v4214
        %v5453 = vunpack.c.h.b16 %v4214
        %v5454 = vunpack.c.l.b16 %v4215
        %v5455 = vunpack.c.h.b16 %v4215
        %v5456 = vunpack.c.l.b16 %v4216
        %v5457 = vunpack.c.h.b16 %v4216
        %v5458 = vunpack.c.l.b16 %v4217
        %v5459 = vunpack.c.h.b16 %v4217
        %v5460 = vunpack.c.l.b16 %v4218
        %v5461 = vunpack.c.h.b16 %v4218
        %v5462 = vunpack.c.l.b16 %v4219
        %v5463 = vunpack.c.h.b16 %v4219
        %v5464 = vunpack.c.l.b16 %v4220
        %v5465 = vunpack.c.h.b16 %v4220
        %v5466 = vunpack.c.l.b16 %v4221
        %v5467 = vunpack.c.h.b16 %v4221
        %v5468 = vunpack.c.l.b16 %v4222
        %v5469 = vunpack.c.h.b16 %v4222
        %v5470 = vunpack.c.l.b16 %v4223
        %v5471 = vunpack.c.h.b16 %v4223
        %v5472 = vunpack.c.l.b16 %v4224
        %v5473 = vunpack.c.h.b16 %v4224
        %v5474 = vunpack.c.l.b16 %v4225
        %v5475 = vunpack.c.h.b16 %v4225
        %v5476 = vunpack.c.l.b16 %v4226
        %v5477 = vunpack.c.h.b16 %v4226
        %v5478 = vunpack.c.l.b16 %v4227
        %v5479 = vunpack.c.h.b16 %v4227
        %v5480 = vunpack.c.l.b16 %v4228
        %v5481 = vunpack.c.h.b16 %v4228
        %v5482 = vunpack.c.l.b16 %v4229
        %v5483 = vunpack.c.h.b16 %v4229
        %v5484 = vunpack.c.l.b16 %v4230
        %v5485 = vunpack.c.h.b16 %v4230
        %v5486 = vunpack.c.l.b16 %v4231
        %v5487 = vunpack.c.h.b16 %v4231
        %v5488 = vunpack.c.l.b16 %v4232
        %v5489 = vunpack.c.h.b16 %v4232
        %v5490 = vunpack.c.l.b16 %v4233
        %v5491 = vunpack.c.h.b16 %v4233
        %v5492 = vunpack.c.l.b16 %v4234
        %v5493 = vunpack.c.h.b16 %v4234
        %v5494 = vunpack.c.l.b16 %v4235
        %v5495 = vunpack.c.h.b16 %v4235
        %v5496 = vunpack.c.l.b16 %v4236
        %v5497 = vunpack.c.h.b16 %v4236
        %v5498 = vunpack.c.l.b16 %v4237
        %v5499 = vunpack.c.h.b16 %v4237
        %v5500 = vunpack.c.l.b16 %v4238
        %v5501 = vunpack.c.h.b16 %v4238
        %v5502 = vunpack.c.l.b16 %v4239
        %v5503 = vunpack.c.h.b16 %v4239
        %v5504 = vunpack.c.l.b16 %v4240
        %v5505 = vunpack.c.h.b16 %v4240
        %v5506 = vunpack.c.l.b16 %v4241
        %v5507 = vunpack.c.h.b16 %v4241
        %v5508 = vunpack.c.l.b16 %v4242
        %v5509 = vunpack.c.h.b16 %v4242
        %v5510 = vunpack.c.l.b16 %v4243
        %v5511 = vunpack.c.h.b16 %v4243
        %v5512 = vunpack.c.l.b16 %v4244
        %v5513 = vunpack.c.h.b16 %v4244
        %v5514 = vunpack.c.l.b16 %v4245
        %v5515 = vunpack.c.h.b16 %v4245
        %v5516 = vunpack.c.l.b16 %v4246
        %v5517 = vunpack.c.h.b16 %v4246
        %v5518 = vunpack.c.l.b16 %v4247
        %v5519 = vunpack.c.h.b16 %v4247
        %v5520 = vunpack.c.l.b16 %v4248
        %v5521 = vunpack.c.h.b16 %v4248
        %v5522 = vunpack.c.l.b16 %v4249
        %v5523 = vunpack.c.h.b16 %v4249
        %v5524 = vunpack.c.l.b16 %v4250
        %v5525 = vunpack.c.h.b16 %v4250
        %v5526 = vunpack.c.l.b16 %v4251
        %v5527 = vunpack.c.h.b16 %v4251
        %v5528 = vunpack.c.l.b16 %v4252
        %v5529 = vunpack.c.h.b16 %v4252
        %v5530 = vunpack.c.l.b16 %v4253
        %v5531 = vunpack.c.h.b16 %v4253
        %v5532 = vunpack.c.l.b16 %v4254
        %v5533 = vunpack.c.h.b16 %v4254
        %v5534 = vunpack.c.l.b16 %v4255
        %v5535 = vunpack.c.h.b16 %v4255
        %v5536 = vunpack.c.l.b16 %v4256
        %v5537 = vunpack.c.h.b16 %v4256
        %v5538 = vunpack.c.l.b16 %v4257
        %v5539 = vunpack.c.h.b16 %v4257
        %v5540 = vunpack.c.l.b16 %v4258
        %v5541 = vunpack.c.h.b16 %v4258
        %v5542 = vunpack.c.l.b16 %v4259
        %v5543 = vunpack.c.h.b16 %v4259
        %v5544 = vunpack.c.l.b16 %v4260
        %v5545 = vunpack.c.h.b16 %v4260
        %v5546 = vunpack.c.l.b16 %v4261
        %v5547 = vunpack.c.h.b16 %v4261
        %v5548 = vunpack.c.l.b16 %v4262
        %v5549 = vunpack.c.h.b16 %v4262
        %v5550 = vunpack.c.l.b16 %v4263
        %v5551 = vunpack.c.h.b16 %v4263
        %v5552 = vunpack.c.l.b16 %v4264
        %v5553 = vunpack.c.h.b16 %v4264
        %v5554 = vunpack.c.l.b16 %v4265
        %v5555 = vunpack.c.h.b16 %v4265
        %v5556 = vunpack.c.l.b16 %v4266
        %v5557 = vunpack.c.h.b16 %v4266
        %v5558 = vunpack.c.l.b16 %v4267
        %v5559 = vunpack.c.h.b16 %v4267
        %v5560 = vunpack.c.l.b16 %v4268
        %v5561 = vunpack.c.h.b16 %v4268
        %v5562 = vunpack.c.l.b16 %v4269
        %v5563 = vunpack.c.h.b16 %v4269
        %v5564 = vunpack.c.l.b16 %v4270
        %v5565 = vunpack.c.h.b16 %v4270
        %v5566 = vunpack.c.l.b16 %v4271
        %v5567 = vunpack.c.h.b16 %v4271
        %v5568 = vunpack.c.l.b16 %v4272
        %v5569 = vunpack.c.h.b16 %v4272
        %v5570 = vunpack.c.l.b16 %v4273
        %v5571 = vunpack.c.h.b16 %v4273
        %v5572 = vunpack.c.l.b16 %v4274
        %v5573 = vunpack.c.h.b16 %v4274
        %v5574 = vunpack.c.l.b16 %v4275
        %v5575 = vunpack.c.h.b16 %v4275
        %v5576 = vunpack.c.l.b16 %v4276
        %v5577 = vunpack.c.h.b16 %v4276
        %v5578 = vunpack.c.l.b16 %v4277
        %v5579 = vunpack.c.h.b16 %v4277
        %v5580 = vunpack.c.l.b16 %v4278
        %v5581 = vunpack.c.h.b16 %v4278
        %v5582 = vunpack.c.l.b16 %v4279
        %v5583 = vunpack.c.h.b16 %v4279
        %v5584 = vunpack.c.l.b16 %v4280
        %v5585 = vunpack.c.h.b16 %v4280
        %v5586 = vunpack.c.l.b16 %v4281
        %v5587 = vunpack.c.h.b16 %v4281
        %v5588 = vunpack.c.l.b16 %v4282
        %v5589 = vunpack.c.h.b16 %v4282
        %v5590 = vunpack.c.l.b16 %v4283
        %v5591 = vunpack.c.h.b16 %v4283
        %v5592 = vunpack.c.l.b16 %v4284
        %v5593 = vunpack.c.h.b16 %v4284
        %v5594 = vunpack.c.l.b16 %v4285
        %v5595 = vunpack.c.h.b16 %v4285
        %v5596 = vunpack.c.l.b16 %v4286
        %v5597 = vunpack.c.h.b16 %v4286
        %v5598 = vunpack.c.l.b16 %v4287
        %v5599 = vunpack.c.h.b16 %v4287
        %v5600 = vunpack.c.l.b16 %v4288
        %v5601 = vunpack.c.h.b16 %v4288
        %v5602 = vunpack.c.l.b16 %v4289
        %v5603 = vunpack.c.h.b16 %v4289
        %v5604 = vunpack.c.l.b16 %v4290
        %v5605 = vunpack.c.h.b16 %v4290
        %v5606 = vunpack.c.l.b16 %v4291
        %v5607 = vunpack.c.h.b16 %v4291
        %v5608 = vunpack.c.l.b16 %v4292
        %v5609 = vunpack.c.h.b16 %v4292
        %v5610 = vunpack.c.l.b16 %v4293
        %v5611 = vunpack.c.h.b16 %v4293
        %v5612 = vunpack.c.l.b16 %v4294
        %v5613 = vunpack.c.h.b16 %v4294
        %v5614 = vunpack.c.l.b16 %v4295
        %v5615 = vunpack.c.h.b16 %v4295
        %v5616 = vunpack.c.l.b16 %v4296
        %v5617 = vunpack.c.h.b16 %v4296
        %v5618 = vunpack.c.l.b16 %v4297
        %v5619 = vunpack.c.h.b16 %v4297
        %v5620 = vunpack.c.l.b16 %v4298
        %v5621 = vunpack.c.h.b16 %v4298
        %v5622 = vunpack.c.l.b16 %v4299
        %v5623 = vunpack.c.h.b16 %v4299
        %v5624 = vunpack.c.l.b16 %v4300
        %v5625 = vunpack.c.h.b16 %v4300
        %v5626 = vunpack.c.l.b16 %v4301
        %v5627 = vunpack.c.h.b16 %v4301
        %v5628 = vunpack.c.l.b16 %v4302
        %v5629 = vunpack.c.h.b16 %v4302
        %v5630 = vunpack.c.l.b16 %v4303
        %v5631 = vunpack.c.h.b16 %v4303
        %v5632 = vunpack.c.l.b16 %v4304
        %v5633 = vunpack.c.h.b16 %v4304
        %v5634 = vunpack.c.l.b16 %v4305
        %v5635 = vunpack.c.h.b16 %v4305
        %v5636 = vunpack.c.l.b16 %v4306
        %v5637 = vunpack.c.h.b16 %v4306
        %v5638 = vunpack.c.l.b16 %v4307
        %v5639 = vunpack.c.h.b16 %v4307
        %v5640 = vunpack.c.l.b16 %v4308
        %v5641 = vunpack.c.h.b16 %v4308
        %v5642 = vunpack.c.l.b16 %v4309
        %v5643 = vunpack.c.h.b16 %v4309
        %v5644 = vunpack.c.l.b16 %v4310
        %v5645 = vunpack.c.h.b16 %v4310
        %v5646 = vunpack.c.l.b16 %v4311
        %v5647 = vunpack.c.h.b16 %v4311
        %v5648 = vunpack.c.l.b16 %v4312
        %v5649 = vunpack.c.h.b16 %v4312
        %v5650 = vunpack.c.l.b16 %v4313
        %v5651 = vunpack.c.h.b16 %v4313
        %v5652 = vunpack.c.l.b16 %v4314
        %v5653 = vunpack.c.h.b16 %v4314
        %v5654 = vunpack.c.l.b16 %v4315
        %v5655 = vunpack.c.h.b16 %v4315
        %v5656 = vunpack.c.l.b16 %v4316
        %v5657 = vunpack.c.h.b16 %v4316
        %v5658 = vunpack.c.l.b16 %v4317
        %v5659 = vunpack.c.h.b16 %v4317
        %v5660 = vunpack.c.l.b16 %v4318
        %v5661 = vunpack.c.h.b16 %v4318
        %v5662 = vunpack.c.l.b16 %v4319
        %v5663 = vunpack.c.h.b16 %v4319
        %v5664 = vunpack.c.l.b16 %v4320
        %v5665 = vunpack.c.h.b16 %v4320
        %v5666 = vunpack.c.l.b16 %v4321
        %v5667 = vunpack.c.h.b16 %v4321
        %v5668 = vunpack.c.l.b16 %v4322
        %v5669 = vunpack.c.h.b16 %v4322
        %v5670 = vunpack.c.l.b16 %v4323
        %v5671 = vunpack.c.h.b16 %v4323
        %v5672 = vunpack.c.l.b16 %v4324
        %v5673 = vunpack.c.h.b16 %v4324
        %v5674 = vunpack.c.l.b16 %v4325
        %v5675 = vunpack.c.h.b16 %v4325
        %v5676 = vunpack.c.l.b16 %v4326
        %v5677 = vunpack.c.h.b16 %v4326
        %v5678 = vunpack.c.l.b16 %v4327
        %v5679 = vunpack.c.h.b16 %v4327
        %v5680 = vunpack.c.l.b16 %v4328
        %v5681 = vunpack.c.h.b16 %v4328
        %v5682 = vunpack.c.l.b16 %v4329
        %v5683 = vunpack.c.h.b16 %v4329
        %v5684 = vunpack.c.l.b16 %v4330
        %v5685 = vunpack.c.h.b16 %v4330
        %v5686 = vunpack.c.l.b16 %v4331
        %v5687 = vunpack.c.h.b16 %v4331
        %v5688 = vunpack.c.l.b16 %v4332
        %v5689 = vunpack.c.h.b16 %v4332
        %v5690 = vunpack.c.l.b16 %v4333
        %v5691 = vunpack.c.h.b16 %v4333
        %v5692 = vunpack.c.l.b16 %v4334
        %v5693 = vunpack.c.h.b16 %v4334
        %v5694 = vunpack.c.l.b16 %v4335
        %v5695 = vunpack.c.h.b16 %v4335
        %v5696 = vunpack.c.l.b16 %v4336
        %v5697 = vunpack.c.h.b16 %v4336
        %v5698 = vunpack.c.l.b16 %v4337
        %v5699 = vunpack.c.h.b16 %v4337
        %v5700 = vunpack.c.l.b16 %v4338
        %v5701 = vunpack.c.h.b16 %v4338
        %v5702 = vunpack.c.l.b16 %v4339
        %v5703 = vunpack.c.h.b16 %v4339
        %v5704 = vunpack.c.l.b16 %v4340
        %v5705 = vunpack.c.h.b16 %v4340
        %v5706 = vunpack.c.l.b16 %v4341
        %v5707 = vunpack.c.h.b16 %v4341
        %v5708 = vunpack.c.l.b16 %v4342
        %v5709 = vunpack.c.h.b16 %v4342
        %v5710 = vunpack.c.l.b16 %v4343
        %v5711 = vunpack.c.h.b16 %v4343
        %v5712 = vunpack.c.l.b16 %v4344
        %v5713 = vunpack.c.h.b16 %v4344
        %v5714 = vunpack.c.l.b16 %v4345
        %v5715 = vunpack.c.h.b16 %v4345
        %v5716 = vunpack.c.l.b16 %v4346
        %v5717 = vunpack.c.h.b16 %v4346
        %v5718 = vunpack.c.l.b16 %v4347
        %v5719 = vunpack.c.h.b16 %v4347
        %v5720 = vunpack.c.l.b16 %v4348
        %v5721 = vunpack.c.h.b16 %v4348
        %v5722 = vunpack.c.l.b16 %v4349
        %v5723 = vunpack.c.h.b16 %v4349
        %v5724 = vunpack.c.l.b16 %v4350
        %v5725 = vunpack.c.h.b16 %v4350
        %v5726 = vunpack.c.l.b16 %v4351
        %v5727 = vunpack.c.h.b16 %v4351
        %v5728 = vunpack.c.l.b16 %v4352
        %v5729 = vunpack.c.h.b16 %v4352
        %v5730 = vunpack.c.l.b16 %v4353
        %v5731 = vunpack.c.h.b16 %v4353
        %v5732 = vunpack.c.l.b16 %v4354
        %v5733 = vunpack.c.h.b16 %v4354
        %v5734 = vunpack.c.l.b16 %v4355
        %v5735 = vunpack.c.h.b16 %v4355
        %v5736 = vunpack.c.l.b16 %v4356
        %v5737 = vunpack.c.h.b16 %v4356
        %v5738 = vunpack.c.l.b16 %v4357
        %v5739 = vunpack.c.h.b16 %v4357
        %v5740 = vunpack.c.l.b16 %v4358
        %v5741 = vunpack.c.h.b16 %v4358
        %v5742 = vunpack.c.l.b16 %v4359
        %v5743 = vunpack.c.h.b16 %v4359
        %v5744 = vunpack.c.l.b16 %v4360
        %v5745 = vunpack.c.h.b16 %v4360
        %v5746 = vunpack.c.l.b16 %v4361
        %v5747 = vunpack.c.h.b16 %v4361
        %v5748 = vunpack.c.l.b16 %v4362
        %v5749 = vunpack.c.h.b16 %v4362
        %v5750 = vunpack.c.l.b16 %v4363
        %v5751 = vunpack.c.h.b16 %v4363
        %v5752 = vunpack.c.l.b16 %v4364
        %v5753 = vunpack.c.h.b16 %v4364
        %v5754 = vunpack.c.l.b16 %v4365
        %v5755 = vunpack.c.h.b16 %v4365
        %v5756 = vunpack.c.l.b16 %v4366
        %v5757 = vunpack.c.h.b16 %v4366
        %v5758 = vunpack.c.l.b16 %v4367
        %v5759 = vunpack.c.h.b16 %v4367
        %v5760 = vunpack.c.l.b16 %v4368
        %v5761 = vunpack.c.h.b16 %v4368
        %v5762 = vunpack.c.l.b16 %v4369
        %v5763 = vunpack.c.h.b16 %v4369
        %v5764 = vunpack.c.l.b16 %v4370
        %v5765 = vunpack.c.h.b16 %v4370
        %v5766 = vunpack.c.l.b16 %v4371
        %v5767 = vunpack.c.h.b16 %v4371
        %v5768 = vunpack.c.l.b16 %v4372
        %v5769 = vunpack.c.h.b16 %v4372
        %v5770 = vunpack.c.l.b16 %v4373
        %v5771 = vunpack.c.h.b16 %v4373
        %v5772 = vunpack.c.l.b16 %v4374
        %v5773 = vunpack.c.h.b16 %v4374
        %v5774 = vunpack.c.l.b16 %v4375
        %v5775 = vunpack.c.h.b16 %v4375
        %v5776 = vunpack.c.l.b16 %v4376
        %v5777 = vunpack.c.h.b16 %v4376
        %v5778 = vunpack.c.l.b16 %v4377
        %v5779 = vunpack.c.h.b16 %v4377
        %v5780 = vunpack.c.l.b16 %v4378
        %v5781 = vunpack.c.h.b16 %v4378
        %v5782 = vunpack.c.l.b16 %v4379
        %v5783 = vunpack.c.h.b16 %v4379
        %v5784 = vunpack.c.l.b16 %v4380
        %v5785 = vunpack.c.h.b16 %v4380
        %v5786 = vunpack.c.l.b16 %v4381
        %v5787 = vunpack.c.h.b16 %v4381
        %v5788 = vunpack.c.l.b16 %v4382
        %v5789 = vunpack.c.h.b16 %v4382
        %v5790 = vunpack.c.l.b16 %v4383
        %v5791 = vunpack.c.h.b16 %v4383
        %v5792 = vunpack.c.l.b16 %v4384
        %v5793 = vunpack.c.h.b16 %v4384
        %v5794 = vunpack.c.l.b16 %v4385
        %v5795 = vunpack.c.h.b16 %v4385
        %v5796 = vunpack.c.l.b16 %v4386
        %v5797 = vunpack.c.h.b16 %v4386
        %v5798 = vunpack.c.l.b16 %v4387
        %v5799 = vunpack.c.h.b16 %v4387
        %v5800 = vunpack.c.l.b16 %v4388
        %v5801 = vunpack.c.h.b16 %v4388
        %v5802 = vunpack.c.l.b16 %v4389
        %v5803 = vunpack.c.h.b16 %v4389
        %v5804 = vunpack.c.l.b16 %v4390
        %v5805 = vunpack.c.h.b16 %v4390
        %v5806 = vunpack.c.l.b16 %v4391
        %v5807 = vunpack.c.h.b16 %v4391
        %v5808 = vunpack.c.l.b16 %v4392
        %v5809 = vunpack.c.h.b16 %v4392
        %v5810 = vunpack.c.l.b16 %v4393
        %v5811 = vunpack.c.h.b16 %v4393
        %v5812 = vunpack.c.l.b16 %v4394
        %v5813 = vunpack.c.h.b16 %v4394
        %v5814 = vunpack.c.l.b16 %v4395
        %v5815 = vunpack.c.h.b16 %v4395
        %v5816 = vunpack.c.l.b16 %v4396
        %v5817 = vunpack.c.h.b16 %v4396
        %v5818 = vunpack.c.l.b16 %v4397
        %v5819 = vunpack.c.h.b16 %v4397
        %v5820 = vunpack.c.l.b16 %v4398
        %v5821 = vunpack.c.h.b16 %v4398
        %v5822 = vunpack.c.l.b16 %v4399
        %v5823 = vunpack.c.h.b16 %v4399
        %v5824 = vunpack.c.l.b16 %v4400
        %v5825 = vunpack.c.h.b16 %v4400
        %v5826 = vunpack.c.l.b16 %v4401
        %v5827 = vunpack.c.h.b16 %v4401
        %v5828 = vunpack.c.l.b16 %v4402
        %v5829 = vunpack.c.h.b16 %v4402
        %v5830 = vunpack.c.l.b16 %v4403
        %v5831 = vunpack.c.h.b16 %v4403
        %v5832 = vunpack.c.l.b16 %v4404
        %v5833 = vunpack.c.h.b16 %v4404
        %v5834 = vunpack.c.l.b16 %v4405
        %v5835 = vunpack.c.h.b16 %v4405
        %v5836 = vunpack.c.l.b16 %v4406
        %v5837 = vunpack.c.h.b16 %v4406
        %v5838 = vunpack.c.l.b16 %v4407
        %v5839 = vunpack.c.h.b16 %v4407
        %v5840 = vunpack.c.l.b16 %v4408
        %v5841 = vunpack.c.h.b16 %v4408
        %v5842 = vunpack.c.l.b16 %v4409
        %v5843 = vunpack.c.h.b16 %v4409
        %v5844 = vunpack.c.l.b16 %v4410
        %v5845 = vunpack.c.h.b16 %v4410
        %v5846 = vunpack.c.l.b16 %v4411
        %v5847 = vunpack.c.h.b16 %v4411
        %v5848 = vunpack.c.l.b16 %v4412
        %v5849 = vunpack.c.h.b16 %v4412
        %v5850 = vunpack.c.l.b16 %v4413
        %v5851 = vunpack.c.h.b16 %v4413
        %v5852 = vunpack.c.l.b16 %v4414
        %v5853 = vunpack.c.h.b16 %v4414
        %v5854 = vunpack.c.l.b16 %v4415
        %v5855 = vunpack.c.h.b16 %v4415
        %v5856 = vunpack.c.l.b16 %v4416
        %v5857 = vunpack.c.h.b16 %v4416
        %v5858 = vunpack.c.l.b16 %v4417
        %v5859 = vunpack.c.h.b16 %v4417
        %v5860 = vunpack.c.l.b16 %v4418
        %v5861 = vunpack.c.h.b16 %v4418
        %v5862 = vunpack.c.l.b16 %v4419
        %v5863 = vunpack.c.h.b16 %v4419
        %v5864 = vunpack.c.l.b16 %v4420
        %v5865 = vunpack.c.h.b16 %v4420
        %v5866 = vunpack.c.l.b16 %v4421
        %v5867 = vunpack.c.h.b16 %v4421
        %v5868 = vunpack.c.l.b16 %v4422
        %v5869 = vunpack.c.h.b16 %v4422
        %v5870 = vunpack.c.l.b16 %v4423
        %v5871 = vunpack.c.h.b16 %v4423
        %v5872 = vunpack.c.l.b16 %v4424
        %v5873 = vunpack.c.h.b16 %v4424
        %v5874 = vunpack.c.l.b16 %v4425
        %v5875 = vunpack.c.h.b16 %v4425
        %v5876 = vunpack.c.l.b16 %v4426
        %v5877 = vunpack.c.h.b16 %v4426
        %v5878 = vunpack.c.l.b16 %v4427
        %v5879 = vunpack.c.h.b16 %v4427
        %v5880 = vunpack.c.l.b16 %v4428
        %v5881 = vunpack.c.h.b16 %v4428
        %v5882 = vunpack.c.l.b16 %v4429
        %v5883 = vunpack.c.h.b16 %v4429
        %v5884 = vunpack.c.l.b16 %v4430
        %v5885 = vunpack.c.h.b16 %v4430
        %v5886 = vunpack.c.l.b16 %v4431
        %v5887 = vunpack.c.h.b16 %v4431
        %v5888 = vunpack.c.l.b16 %v4432
        %v5889 = vunpack.c.h.b16 %v4432
        %v5890 = vunpack.c.l.b16 %v4433
        %v5891 = vunpack.c.h.b16 %v4433
        %v5892 = vunpack.c.l.b16 %v4434
        %v5893 = vunpack.c.h.b16 %v4434
        %v5894 = vunpack.c.l.b16 %v4435
        %v5895 = vunpack.c.h.b16 %v4435
        %v5896 = vunpack.c.l.b16 %v4436
        %v5897 = vunpack.c.h.b16 %v4436
        %v5898 = vpack.c.b16 %v5324, %v5322
        %v5899 = vpack.c.b16 %v5325, %v5323
        %v5900 = vpack.c.b16 %v5328, %v5326
        %v5901 = vpack.c.b16 %v5329, %v5327
        %v5902 = vpack.c.b16 %v5332, %v5330
        %v5903 = vpack.c.b16 %v5333, %v5331
        %v5904 = vpack.c.b16 %v5336, %v5334
        %v5905 = vpack.c.b16 %v5337, %v5335
        %v5906 = vpack.c.b16 %v5340, %v5338
        %v5907 = vpack.c.b16 %v5341, %v5339
        %v5908 = vpack.c.b16 %v5344, %v5342
        %v5909 = vpack.c.b16 %v5345, %v5343
        %v5910 = vpack.c.b16 %v5348, %v5346
        %v5911 = vpack.c.b16 %v5349, %v5347
        %v5912 = vpack.c.b16 %v5352, %v5350
        %v5913 = vpack.c.b16 %v5353, %v5351
        %v5914 = vpack.c.b16 %v5356, %v5354
        %v5915 = vpack.c.b16 %v5357, %v5355
        %v5916 = vpack.c.b16 %v5360, %v5358
        %v5917 = vpack.c.b16 %v5361, %v5359
        %v5918 = vpack.c.b16 %v5364, %v5362
        %v5919 = vpack.c.b16 %v5365, %v5363
        %v5920 = vpack.c.b16 %v5368, %v5366
        %v5921 = vpack.c.b16 %v5369, %v5367
        %v5922 = vpack.c.b16 %v5372, %v5370
        %v5923 = vpack.c.b16 %v5373, %v5371
        %v5924 = vpack.c.b16 %v5376, %v5374
        %v5925 = vpack.c.b16 %v5377, %v5375
        %v5926 = vpack.c.b16 %v5380, %v5378
        %v5927 = vpack.c.b16 %v5381, %v5379
        %v5928 = vpack.c.b16 %v5384, %v5382
        %v5929 = vpack.c.b16 %v5385, %v5383
        %v5930 = vpack.c.b16 %v5388, %v5386
        %v5931 = vpack.c.b16 %v5389, %v5387
        %v5932 = vpack.c.b16 %v5392, %v5390
        %v5933 = vpack.c.b16 %v5393, %v5391
        %v5934 = vpack.c.b16 %v5396, %v5394
        %v5935 = vpack.c.b16 %v5397, %v5395
        %v5936 = vpack.c.b16 %v5400, %v5398
        %v5937 = vpack.c.b16 %v5401, %v5399
        %v5938 = vpack.c.b16 %v5404, %v5402
        %v5939 = vpack.c.b16 %v5405, %v5403
        %v5940 = vpack.c.b16 %v5408, %v5406
        %v5941 = vpack.c.b16 %v5409, %v5407
        %v5942 = vpack.c.b16 %v5412, %v5410
        %v5943 = vpack.c.b16 %v5413, %v5411
        %v5944 = vpack.c.b16 %v5416, %v5414
        %v5945 = vpack.c.b16 %v5417, %v5415
        %v5946 = vpack.c.b16 %v5420, %v5418
        %v5947 = vpack.c.b16 %v5421, %v5419
        %v5948 = vpack.c.b16 %v5424, %v5422
        %v5949 = vpack.c.b16 %v5425, %v5423
        %v5950 = vpack.c.b16 %v5428, %v5426
        %v5951 = vpack.c.b16 %v5429, %v5427
        %v5952 = vpack.c.b16 %v5432, %v5430
        %v5953 = vpack.c.b16 %v5433, %v5431
        %v5954 = vpack.c.b16 %v5436, %v5434
        %v5955 = vpack.c.b16 %v5437, %v5435
        %v5956 = vpack.c.b16 %v5440, %v5438
        %v5957 = vpack.c.b16 %v5441, %v5439
        %v5958 = vpack.c.b16 %v5444, %v5442
        %v5959 = vpack.c.b16 %v5445, %v5443
        %v5960 = vpack.c.b16 %v5448, %v5446
        %v5961 = vpack.c.b16 %v5449, %v5447
        %v5962 = vpack.c.b16 %v5452, %v5450
        %v5963 = vpack.c.b16 %v5453, %v5451
        %v5964 = vpack.c.b16 %v5456, %v5454
        %v5965 = vpack.c.b16 %v5457, %v5455
        %v5966 = vpack.c.b16 %v5460, %v5458
        %v5967 = vpack.c.b16 %v5461, %v5459
        %v5968 = vpack.c.b16 %v5464, %v5462
        %v5969 = vpack.c.b16 %v5465, %v5463
        %v5970 = vpack.c.b16 %v5468, %v5466
        %v5971 = vpack.c.b16 %v5469, %v5467
        %v5972 = vpack.c.b16 %v5472, %v5470
        %v5973 = vpack.c.b16 %v5473, %v5471
        %v5974 = vpack.c.b16 %v5476, %v5474
        %v5975 = vpack.c.b16 %v5477, %v5475
        %v5976 = vpack.c.b16 %v5480, %v5478
        %v5977 = vpack.c.b16 %v5481, %v5479
        %v5978 = vpack.c.b16 %v5484, %v5482
        %v5979 = vpack.c.b16 %v5485, %v5483
        %v5980 = vpack.c.b16 %v5488, %v5486
        %v5981 = vpack.c.b16 %v5489, %v5487
        %v5982 = vpack.c.b16 %v5492, %v5490
        %v5983 = vpack.c.b16 %v5493, %v5491
        %v5984 = vpack.c.b16 %v5496, %v5494
        %v5985 = vpack.c.b16 %v5497, %v5495
        %v5986 = vpack.c.b16 %v5500, %v5498
        %v5987 = vpack.c.b16 %v5501, %v5499
        %v5988 = vpack.c.b16 %v5504, %v5502
        %v5989 = vpack.c.b16 %v5505, %v5503
        %v5990 = vpack.c.b16 %v5508, %v5506
        %v5991 = vpack.c.b16 %v5509, %v5507
        %v5992 = vpack.c.b16 %v5512, %v5510
        %v5993 = vpack.c.b16 %v5513, %v5511
        %v5994 = vpack.c.b16 %v5516, %v5514
        %v5995 = vpack.c.b16 %v5517, %v5515
        %v5996 = vpack.c.b16 %v5520, %v5518
        %v5997 = vpack.c.b16 %v5521, %v5519
        %v5998 = vpack.c.b16 %v5524, %v5522
        %v5999 = vpack.c.b16 %v5525, %v5523
        %v6000 = vpack.c.b16 %v5528, %v5526
        %v6001 = vpack.c.b16 %v5529, %v5527
        %v6002 = vpack.c.b16 %v5532, %v5530
        %v6003 = vpack.c.b16 %v5533, %v5531
        %v6004 = vpack.c.b16 %v5536, %v5534
        %v6005 = vpack.c.b16 %v5537, %v5535
        %v6006 = vpack.c.b16 %v5540, %v5538
        %v6007 = vpack.c.b16 %v5541, %v5539
        %v6008 = vpack.c.b16 %v5544, %v5542
        %v6009 = vpack.c.b16 %v5545, %v5543
        %v6010 = vpack.c.b16 %v5548, %v5546
        %v6011 = vpack.c.b16 %v5549, %v5547
        %v6012 = vpack.c.b16 %v5552, %v5550
        %v6013 = vpack.c.b16 %v5553, %v5551
        %v6014 = vpack.c.b16 %v5556, %v5554
        %v6015 = vpack.c.b16 %v5557, %v5555
        %v6016 = vpack.c.b16 %v5560, %v5558
        %v6017 = vpack.c.b16 %v5561, %v5559
        %v6018 = vpack.c.b16 %v5564, %v5562
        %v6019 = vpack.c.b16 %v5565, %v5563
        %v6020 = vpack.c.b16 %v5568, %v5566
        %v6021 = vpack.c.b16 %v5569, %v5567
        %v6022 = vpack.c.b16 %v5572, %v5570
        %v6023 = vpack.c.b16 %v5573, %v5571
        %v6024 = vpack.c.b16 %v5576, %v5574
        %v6025 = vpack.c.b16 %v5577, %v5575
        %v6026 = vpack.c.b16 %v5580, %v5578
        %v6027 = vpack.c.b16 %v5581, %v5579
        %v6028 = vpack.c.b16 %v5584, %v5582
        %v6029 = vpack.c.b16 %v5585, %v5583
        %v6030 = vpack.c.b16 %v5588, %v5586
        %v6031 = vpack.c.b16 %v5589, %v5587
        %v6032 = vpack.c.b16 %v5592, %v5590
        %v6033 = vpack.c.b16 %v5593, %v5591
        %v6034 = vpack.c.b16 %v5596, %v5594
        %v6035 = vpack.c.b16 %v5597, %v5595
        %v6036 = vpack.c.b16 %v5600, %v5598
        %v6037 = vpack.c.b16 %v5601, %v5599
        %v6038 = vpack.c.b16 %v5604, %v5602
        %v6039 = vpack.c.b16 %v5605, %v5603
        %v6040 = vpack.c.b16 %v5608, %v5606
        %v6041 = vpack.c.b16 %v5609, %v5607
        %v6042 = vpack.c.b16 %v5612, %v5610
        %v6043 = vpack.c.b16 %v5613, %v5611
        %v6044 = vpack.c.b16 %v5616, %v5614
        %v6045 = vpack.c.b16 %v5617, %v5615
        %v6046 = vpack.c.b16 %v5620, %v5618
        %v6047 = vpack.c.b16 %v5621, %v5619
        %v6048 = vpack.c.b16 %v5624, %v5622
        %v6049 = vpack.c.b16 %v5625, %v5623
        %v6050 = vpack.c.b16 %v5628, %v5626
        %v6051 = vpack.c.b16 %v5629, %v5627
        %v6052 = vpack.c.b16 %v5632, %v5630
        %v6053 = vpack.c.b16 %v5633, %v5631
        %v6054 = vpack.c.b16 %v5636, %v5634
        %v6055 = vpack.c.b16 %v5637, %v5635
        %v6056 = vpack.c.b16 %v5640, %v5638
        %v6057 = vpack.c.b16 %v5641, %v5639
        %v6058 = vpack.c.b16 %v5644, %v5642
        %v6059 = vpack.c.b16 %v5645, %v5643
        %v6060 = vpack.c.b16 %v5648, %v5646
        %v6061 = vpack.c.b16 %v5649, %v5647
        %v6062 = vpack.c.b16 %v5652, %v5650
        %v6063 = vpack.c.b16 %v5653, %v5651
        %v6064 = vpack.c.b16 %v5656, %v5654
        %v6065 = vpack.c.b16 %v5657, %v5655
        %v6066 = vpack.c.b16 %v5660, %v5658
        %v6067 = vpack.c.b16 %v5661, %v5659
        %v6068 = vpack.c.b16 %v5664, %v5662
        %v6069 = vpack.c.b16 %v5665, %v5663
        %v6070 = vpack.c.b16 %v5668, %v5666
        %v6071 = vpack.c.b16 %v5669, %v5667
        %v6072 = vpack.c.b16 %v5672, %v5670
        %v6073 = vpack.c.b16 %v5673, %v5671
        %v6074 = vpack.c.b16 %v5676, %v5674
        %v6075 = vpack.c.b16 %v5677, %v5675
        %v6076 = vpack.c.b16 %v5680, %v5678
        %v6077 = vpack.c.b16 %v5681, %v5679
        %v6078 = vpack.c.b16 %v5684, %v5682
        %v6079 = vpack.c.b16 %v5685, %v5683
        %v6080 = vpack.c.b16 %v5688, %v5686
        %v6081 = vpack.c.b16 %v5689, %v5687
        %v6082 = vpack.c.b16 %v5692, %v5690
        %v6083 = vpack.c.b16 %v5693, %v5691
        %v6084 = vpack.c.b16 %v5696, %v5694
        %v6085 = vpack.c.b16 %v5697, %v5695
        %v6086 = vpack.c.b16 %v5700, %v5698
        %v6087 = vpack.c.b16 %v5701, %v5699
        %v6088 = vpack.c.b16 %v5704, %v5702
        %v6089 = vpack.c.b16 %v5705, %v5703
        %v6090 = vpack.c.b16 %v5708, %v5706
        %v6091 = vpack.c.b16 %v5709, %v5707
        %v6092 = vpack.c.b16 %v5712, %v5710
        %v6093 = vpack.c.b16 %v5713, %v5711
        %v6094 = vpack.c.b16 %v5716, %v5714
        %v6095 = vpack.c.b16 %v5717, %v5715
        %v6096 = vpack.c.b16 %v5720, %v5718
        %v6097 = vpack.c.b16 %v5721, %v5719
        %v6098 = vpack.c.b16 %v5724, %v5722
        %v6099 = vpack.c.b16 %v5725, %v5723
        %v6100 = vpack.c.b16 %v5728, %v5726
        %v6101 = vpack.c.b16 %v5729, %v5727
        %v6102 = vpack.c.b16 %v5732, %v5730
        %v6103 = vpack.c.b16 %v5733, %v5731
        %v6104 = vpack.c.b16 %v5736, %v5734
        %v6105 = vpack.c.b16 %v5737, %v5735
        %v6106 = vpack.c.b16 %v5740, %v5738
        %v6107 = vpack.c.b16 %v5741, %v5739
        %v6108 = vpack.c.b16 %v5744, %v5742
        %v6109 = vpack.c.b16 %v5745, %v5743
        %v6110 = vpack.c.b16 %v5748, %v5746
        %v6111 = vpack.c.b16 %v5749, %v5747
        %v6112 = vpack.c.b16 %v5752, %v5750
        %v6113 = vpack.c.b16 %v5753, %v5751
        %v6114 = vpack.c.b16 %v5756, %v5754
        %v6115 = vpack.c.b16 %v5757, %v5755
        %v6116 = vpack.c.b16 %v5760, %v5758
        %v6117 = vpack.c.b16 %v5761, %v5759
        %v6118 = vpack.c.b16 %v5764, %v5762
        %v6119 = vpack.c.b16 %v5765, %v5763
        %v6120 = vpack.c.b16 %v5768, %v5766
        %v6121 = vpack.c.b16 %v5769, %v5767
        %v6122 = vpack.c.b16 %v5772, %v5770
        %v6123 = vpack.c.b16 %v5773, %v5771
        %v6124 = vpack.c.b16 %v5776, %v5774
        %v6125 = vpack.c.b16 %v5777, %v5775
        %v6126 = vpack.c.b16 %v5780, %v5778
        %v6127 = vpack.c.b16 %v5781, %v5779
        %v6128 = vpack.c.b16 %v5784, %v5782
        %v6129 = vpack.c.b16 %v5785, %v5783
        %v6130 = vpack.c.b16 %v5788, %v5786
        %v6131 = vpack.c.b16 %v5789, %v5787
        %v6132 = vpack.c.b16 %v5792, %v5790
        %v6133 = vpack.c.b16 %v5793, %v5791
        %v6134 = vpack.c.b16 %v5796, %v5794
        %v6135 = vpack.c.b16 %v5797, %v5795
        %v6136 = vpack.c.b16 %v5800, %v5798
        %v6137 = vpack.c.b16 %v5801, %v5799
        %v6138 = vpack.c.b16 %v5804, %v5802
        %v6139 = vpack.c.b16 %v5805, %v5803
        %v6140 = vpack.c.b16 %v5808, %v5806
        %v6141 = vpack.c.b16 %v5809, %v5807
        %v6142 = vpack.c.b16 %v5812, %v5810
        %v6143 = vpack.c.b16 %v5813, %v5811
        %v6144 = vpack.c.b16 %v5816, %v5814
        %v6145 = vpack.c.b16 %v5817, %v5815
        %v6146 = vpack.c.b16 %v5820, %v5818
        %v6147 = vpack.c.b16 %v5821, %v5819
        %v6148 = vpack.c.b16 %v5824, %v5822
        %v6149 = vpack.c.b16 %v5825, %v5823
        %v6150 = vpack.c.b16 %v5828, %v5826
        %v6151 = vpack.c.b16 %v5829, %v5827
        %v6152 = vpack.c.b16 %v5832, %v5830
        %v6153 = vpack.c.b16 %v5833, %v5831
        %v6154 = vpack.c.b16 %v5836, %v5834
        %v6155 = vpack.c.b16 %v5837, %v5835
        %v6156 = vpack.c.b16 %v5840, %v5838
        %v6157 = vpack.c.b16 %v5841, %v5839
        %v6158 = vpack.c.b16 %v5844, %v5842
        %v6159 = vpack.c.b16 %v5845, %v5843
        %v6160 = vpack.c.b16 %v5848, %v5846
        %v6161 = vpack.c.b16 %v5849, %v5847
        %v6162 = vpack.c.b16 %v5852, %v5850
        %v6163 = vpack.c.b16 %v5853, %v5851
        %v6164 = vpack.c.b16 %v5856, %v5854
        %v6165 = vpack.c.b16 %v5857, %v5855
        %v6166 = vpack.c.b16 %v5860, %v5858
        %v6167 = vpack.c.b16 %v5861, %v5859
        %v6168 = vpack.c.b16 %v5864, %v5862
        %v6169 = vpack.c.b16 %v5865, %v5863
        %v6170 = vpack.c.b16 %v5868, %v5866
        %v6171 = vpack.c.b16 %v5869, %v5867
        %v6172 = vpack.c.b16 %v5872, %v5870
        %v6173 = vpack.c.b16 %v5873, %v5871
        %v6174 = vpack.c.b16 %v5876, %v5874
        %v6175 = vpack.c.b16 %v5877, %v5875
        %v6176 = vpack.c.b16 %v5880, %v5878
        %v6177 = vpack.c.b16 %v5881, %v5879
        %v6178 = vpack.c.b16 %v5884, %v5882
        %v6179 = vpack.c.b16 %v5885, %v5883
        %v6180 = vpack.c.b16 %v5888, %v5886
        %v6181 = vpack.c.b16 %v5889, %v5887
        %v6182 = vpack.c.b16 %v5892, %v5890
        %v6183 = vpack.c.b16 %v5893, %v5891
        %v6184 = vpack.c.b16 %v5896, %v5894
        %v6185 = vpack.c.b16 %v5897, %v5895
        %6474 = vmatpush.bf16.msra.mxu0 %v5912
        %6475 = vmatpush.bf16.msra.mxu0 %v5910
        %6476 = vmatpush.bf16.msra.mxu0 %v5908
        %6477 = vmatpush.bf16.msra.mxu0 %v5906
        %6478 = vmatpush.bf16.msra.mxu0 %v5904
        %6479 = vmatpush.bf16.msra.mxu0 %v5902
        %6480 = vmatpush.bf16.msra.mxu0 %v5900
        %6481 = vmatpush.bf16.msra.mxu0 %v5898
        %6482 = vmatmul.bf16.gmra.mxu0 %v4890
        %v6483 = vpop.f32.mrf.mxu0
        %v6484 = vadd.f32 %v4626, %v6483
        %v6485 = vpop.f32.mrf.mxu0
        %v6486 = vadd.f32 %v4628, %v6485
        %6487 = vmatmul.bf16.gmra.mxu0 %v4908
        %v6488 = vpop.f32.mrf.mxu0
        %v6489 = vadd.f32 %v4631, %v6488
        %v6490 = vpop.f32.mrf.mxu0
        %v6491 = vadd.f32 %v4633, %v6490
        %6492 = vmatmul.bf16.gmra.mxu0 %v4926
        %v6493 = vpop.f32.mrf.mxu0
        %v6494 = vadd.f32 %v4636, %v6493
        %v6495 = vpop.f32.mrf.mxu0
        %v6496 = vadd.f32 %v4638, %v6495
        %6497 = vmatmul.bf16.gmra.mxu0 %v4944
        %v6498 = vpop.f32.mrf.mxu0
        %v6499 = vadd.f32 %v4641, %v6498
        %v6500 = vpop.f32.mrf.mxu0
        %v6501 = vadd.f32 %v4643, %v6500
        %6502 = vdwg.mxu0
        %6503 = vmatpush.bf16.msra.mxu0 %v5928
        %6504 = vmatpush.bf16.msra.mxu0 %v5926
        %6505 = vmatpush.bf16.msra.mxu0 %v5924
        %6506 = vmatpush.bf16.msra.mxu0 %v5922
        %6507 = vmatpush.bf16.msra.mxu0 %v5920
        %6508 = vmatpush.bf16.msra.mxu0 %v5918
        %6509 = vmatpush.bf16.msra.mxu0 %v5916
        %6510 = vmatpush.bf16.msra.mxu0 %v5914
        %6511 = vmatmul.bf16.gmra.mxu0 %v4891
        %v6512 = vpop.f32.mrf.mxu0
        %v6513 = vadd.f32 %v6484, %v6512
        %v6514 = vpop.f32.mrf.mxu0
        %v6515 = vadd.f32 %v6486, %v6514
        %6516 = vmatmul.bf16.gmra.mxu0 %v4909
        %v6517 = vpop.f32.mrf.mxu0
        %v6518 = vadd.f32 %v6489, %v6517
        %v6519 = vpop.f32.mrf.mxu0
        %v6520 = vadd.f32 %v6491, %v6519
        %6521 = vmatmul.bf16.gmra.mxu0 %v4927
        %v6522 = vpop.f32.mrf.mxu0
        %v6523 = vadd.f32 %v6494, %v6522
        %v6524 = vpop.f32.mrf.mxu0
        %v6525 = vadd.f32 %v6496, %v6524
        %6526 = vmatmul.bf16.gmra.mxu0 %v4945
        %v6527 = vpop.f32.mrf.mxu0
        %v6528 = vadd.f32 %v6499, %v6527
        %v6529 = vpop.f32.mrf.mxu0
        %v6530 = vadd.f32 %v6501, %v6529
        %6531 = vdwg.mxu0
        %6532 = vmatpush.bf16.msra.mxu0 %v5944
        %6533 = vmatpush.bf16.msra.mxu0 %v5942
        %6534 = vmatpush.bf16.msra.mxu0 %v5940
        %6535 = vmatpush.bf16.msra.mxu0 %v5938
        %6536 = vmatpush.bf16.msra.mxu0 %v5936
        %6537 = vmatpush.bf16.msra.mxu0 %v5934
        %6538 = vmatpush.bf16.msra.mxu0 %v5932
        %6539 = vmatpush.bf16.msra.mxu0 %v5930
        %6540 = vmatmul.bf16.gmra.mxu0 %v4892
        %v6541 = vpop.f32.mrf.mxu0
        %v6542 = vadd.f32 %v6513, %v6541
        %v6543 = vpop.f32.mrf.mxu0
        %v6544 = vadd.f32 %v6515, %v6543
        %6545 = vmatmul.bf16.gmra.mxu0 %v4910
        %v6546 = vpop.f32.mrf.mxu0
        %v6547 = vadd.f32 %v6518, %v6546
        %v6548 = vpop.f32.mrf.mxu0
        %v6549 = vadd.f32 %v6520, %v6548
        %6550 = vmatmul.bf16.gmra.mxu0 %v4928
        %v6551 = vpop.f32.mrf.mxu0
        %v6552 = vadd.f32 %v6523, %v6551
        %v6553 = vpop.f32.mrf.mxu0
        %v6554 = vadd.f32 %v6525, %v6553
        %6555 = vmatmul.bf16.gmra.mxu0 %v4946
        %v6556 = vpop.f32.mrf.mxu0
        %v6557 = vadd.f32 %v6528, %v6556
        %v6558 = vpop.f32.mrf.mxu0
        %v6559 = vadd.f32 %v6530, %v6558
        %6560 = vdwg.mxu0
        %6561 = vmatpush.bf16.msra.mxu0 %v5960
        %6562 = vmatpush.bf16.msra.mxu0 %v5958
        %6563 = vmatpush.bf16.msra.mxu0 %v5956
        %6564 = vmatpush.bf16.msra.mxu0 %v5954
        %6565 = vmatpush.bf16.msra.mxu0 %v5952
        %6566 = vmatpush.bf16.msra.mxu0 %v5950
        %6567 = vmatpush.bf16.msra.mxu0 %v5948
        %6568 = vmatpush.bf16.msra.mxu0 %v5946
        %6569 = vmatmul.bf16.gmra.mxu0 %v4893
        %v6570 = vpop.f32.mrf.mxu0
        %v6571 = vadd.f32 %v6542, %v6570
        %v6572 = vpop.f32.mrf.mxu0
        %v6573 = vadd.f32 %v6544, %v6572
        %6574 = vmatmul.bf16.gmra.mxu0 %v4911
        %v6575 = vpop.f32.mrf.mxu0
        %v6576 = vadd.f32 %v6547, %v6575
        %v6577 = vpop.f32.mrf.mxu0
        %v6578 = vadd.f32 %v6549, %v6577
        %6579 = vmatmul.bf16.gmra.mxu0 %v4929
        %v6580 = vpop.f32.mrf.mxu0
        %v6581 = vadd.f32 %v6552, %v6580
        %v6582 = vpop.f32.mrf.mxu0
        %v6583 = vadd.f32 %v6554, %v6582
        %6584 = vmatmul.bf16.gmra.mxu0 %v4947
        %v6585 = vpop.f32.mrf.mxu0
        %v6586 = vadd.f32 %v6557, %v6585
        %v6587 = vpop.f32.mrf.mxu0
        %v6588 = vadd.f32 %v6559, %v6587
        %6589 = vdwg.mxu0
        %6590 = vmatpush.bf16.msra.mxu0 %v5976
        %6591 = vmatpush.bf16.msra.mxu0 %v5974
        %6592 = vmatpush.bf16.msra.mxu0 %v5972
        %6593 = vmatpush.bf16.msra.mxu0 %v5970
        %6594 = vmatpush.bf16.msra.mxu0 %v5968
        %6595 = vmatpush.bf16.msra.mxu0 %v5966
        %6596 = vmatpush.bf16.msra.mxu0 %v5964
        %6597 = vmatpush.bf16.msra.mxu0 %v5962
        %6598 = vmatmul.bf16.gmra.mxu0 %v4894
        %v6599 = vpop.f32.mrf.mxu0
        %v6600 = vadd.f32 %v6571, %v6599
        %v6601 = vpop.f32.mrf.mxu0
        %v6602 = vadd.f32 %v6573, %v6601
        %6603 = vmatmul.bf16.gmra.mxu0 %v4912
        %v6604 = vpop.f32.mrf.mxu0
        %v6605 = vadd.f32 %v6576, %v6604
        %v6606 = vpop.f32.mrf.mxu0
        %v6607 = vadd.f32 %v6578, %v6606
        %6608 = vmatmul.bf16.gmra.mxu0 %v4930
        %v6609 = vpop.f32.mrf.mxu0
        %v6610 = vadd.f32 %v6581, %v6609
        %v6611 = vpop.f32.mrf.mxu0
        %v6612 = vadd.f32 %v6583, %v6611
        %6613 = vmatmul.bf16.gmra.mxu0 %v4948
        %v6614 = vpop.f32.mrf.mxu0
        %v6615 = vadd.f32 %v6586, %v6614
        %v6616 = vpop.f32.mrf.mxu0
        %v6617 = vadd.f32 %v6588, %v6616
        %6618 = vdwg.mxu0
        %6619 = vmatpush.bf16.msra.mxu0 %v5992
        %6620 = vmatpush.bf16.msra.mxu0 %v5990
        %6621 = vmatpush.bf16.msra.mxu0 %v5988
        %6622 = vmatpush.bf16.msra.mxu0 %v5986
        %6623 = vmatpush.bf16.msra.mxu0 %v5984
        %6624 = vmatpush.bf16.msra.mxu0 %v5982
        %6625 = vmatpush.bf16.msra.mxu0 %v5980
        %6626 = vmatpush.bf16.msra.mxu0 %v5978
        %6627 = vmatmul.bf16.gmra.mxu0 %v4895
        %v6628 = vpop.f32.mrf.mxu0
        %v6629 = vadd.f32 %v6600, %v6628
        %v6630 = vpop.f32.mrf.mxu0
        %v6631 = vadd.f32 %v6602, %v6630
        %6632 = vmatmul.bf16.gmra.mxu0 %v4913
        %v6633 = vpop.f32.mrf.mxu0
        %v6634 = vadd.f32 %v6605, %v6633
        %v6635 = vpop.f32.mrf.mxu0
        %v6636 = vadd.f32 %v6607, %v6635
        %6637 = vmatmul.bf16.gmra.mxu0 %v4931
        %v6638 = vpop.f32.mrf.mxu0
        %v6639 = vadd.f32 %v6610, %v6638
        %v6640 = vpop.f32.mrf.mxu0
        %v6641 = vadd.f32 %v6612, %v6640
        %6642 = vmatmul.bf16.gmra.mxu0 %v4949
        %v6643 = vpop.f32.mrf.mxu0
        %v6644 = vadd.f32 %v6615, %v6643
        %v6645 = vpop.f32.mrf.mxu0
        %v6646 = vadd.f32 %v6617, %v6645
        %6647 = vdwg.mxu0
        %6648 = vmatpush.bf16.msra.mxu0 %v6008
        %6649 = vmatpush.bf16.msra.mxu0 %v6006
        %6650 = vmatpush.bf16.msra.mxu0 %v6004
        %6651 = vmatpush.bf16.msra.mxu0 %v6002
        %6652 = vmatpush.bf16.msra.mxu0 %v6000
        %6653 = vmatpush.bf16.msra.mxu0 %v5998
        %6654 = vmatpush.bf16.msra.mxu0 %v5996
        %6655 = vmatpush.bf16.msra.mxu0 %v5994
        %6656 = vmatmul.bf16.gmra.mxu0 %v4896
        %v6657 = vpop.f32.mrf.mxu0
        %v6658 = vadd.f32 %v6629, %v6657
        %v6659 = vpop.f32.mrf.mxu0
        %v6660 = vadd.f32 %v6631, %v6659
        %6661 = vmatmul.bf16.gmra.mxu0 %v4914
        %v6662 = vpop.f32.mrf.mxu0
        %v6663 = vadd.f32 %v6634, %v6662
        %v6664 = vpop.f32.mrf.mxu0
        %v6665 = vadd.f32 %v6636, %v6664
        %6666 = vmatmul.bf16.gmra.mxu0 %v4932
        %v6667 = vpop.f32.mrf.mxu0
        %v6668 = vadd.f32 %v6639, %v6667
        %v6669 = vpop.f32.mrf.mxu0
        %v6670 = vadd.f32 %v6641, %v6669
        %6671 = vmatmul.bf16.gmra.mxu0 %v4950
        %v6672 = vpop.f32.mrf.mxu0
        %v6673 = vadd.f32 %v6644, %v6672
        %v6674 = vpop.f32.mrf.mxu0
        %v6675 = vadd.f32 %v6646, %v6674
        %6676 = vdwg.mxu0
        %6677 = vmatpush.bf16.msra.mxu0 %v6024
        %6678 = vmatpush.bf16.msra.mxu0 %v6022
        %6679 = vmatpush.bf16.msra.mxu0 %v6020
        %6680 = vmatpush.bf16.msra.mxu0 %v6018
        %6681 = vmatpush.bf16.msra.mxu0 %v6016
        %6682 = vmatpush.bf16.msra.mxu0 %v6014
        %6683 = vmatpush.bf16.msra.mxu0 %v6012
        %6684 = vmatpush.bf16.msra.mxu0 %v6010
        %6685 = vmatmul.bf16.gmra.mxu0 %v4897
        %v6686 = vpop.f32.mrf.mxu0
        %v6687 = vadd.f32 %v6658, %v6686
        %v6688 = vpop.f32.mrf.mxu0
        %v6689 = vadd.f32 %v6660, %v6688
        %6690 = vmatmul.bf16.gmra.mxu0 %v4915
        %v6691 = vpop.f32.mrf.mxu0
        %v6692 = vadd.f32 %v6663, %v6691
        %v6693 = vpop.f32.mrf.mxu0
        %v6694 = vadd.f32 %v6665, %v6693
        %6695 = vmatmul.bf16.gmra.mxu0 %v4933
        %v6696 = vpop.f32.mrf.mxu0
        %v6697 = vadd.f32 %v6668, %v6696
        %v6698 = vpop.f32.mrf.mxu0
        %v6699 = vadd.f32 %v6670, %v6698
        %6700 = vmatmul.bf16.gmra.mxu0 %v4951
        %v6701 = vpop.f32.mrf.mxu0
        %v6702 = vadd.f32 %v6673, %v6701
        %v6703 = vpop.f32.mrf.mxu0
        %v6704 = vadd.f32 %v6675, %v6703
        %6705 = vdwg.mxu0
        %6706 = vmatpush.bf16.msra.mxu0 %v6040
        %6707 = vmatpush.bf16.msra.mxu0 %v6038
        %6708 = vmatpush.bf16.msra.mxu0 %v6036
        %6709 = vmatpush.bf16.msra.mxu0 %v6034
        %6710 = vmatpush.bf16.msra.mxu0 %v6032
        %6711 = vmatpush.bf16.msra.mxu0 %v6030
        %6712 = vmatpush.bf16.msra.mxu0 %v6028
        %6713 = vmatpush.bf16.msra.mxu0 %v6026
        %6714 = vmatmul.bf16.gmra.mxu0 %v4898
        %v6715 = vpop.f32.mrf.mxu0
        %v6716 = vadd.f32 %v6687, %v6715
        %v6717 = vpop.f32.mrf.mxu0
        %v6718 = vadd.f32 %v6689, %v6717
        %6719 = vmatmul.bf16.gmra.mxu0 %v4916
        %v6720 = vpop.f32.mrf.mxu0
        %v6721 = vadd.f32 %v6692, %v6720
        %v6722 = vpop.f32.mrf.mxu0
        %v6723 = vadd.f32 %v6694, %v6722
        %6724 = vmatmul.bf16.gmra.mxu0 %v4934
        %v6725 = vpop.f32.mrf.mxu0
        %v6726 = vadd.f32 %v6697, %v6725
        %v6727 = vpop.f32.mrf.mxu0
        %v6728 = vadd.f32 %v6699, %v6727
        %6729 = vmatmul.bf16.gmra.mxu0 %v4952
        %v6730 = vpop.f32.mrf.mxu0
        %v6731 = vadd.f32 %v6702, %v6730
        %v6732 = vpop.f32.mrf.mxu0
        %v6733 = vadd.f32 %v6704, %v6732
        %6734 = vdwg.mxu0
        %6735 = vmatpush.bf16.msra.mxu0 %v6056
        %6736 = vmatpush.bf16.msra.mxu0 %v6054
        %6737 = vmatpush.bf16.msra.mxu0 %v6052
        %6738 = vmatpush.bf16.msra.mxu0 %v6050
        %6739 = vmatpush.bf16.msra.mxu0 %v6048
        %6740 = vmatpush.bf16.msra.mxu0 %v6046
        %6741 = vmatpush.bf16.msra.mxu0 %v6044
        %6742 = vmatpush.bf16.msra.mxu0 %v6042
        %6743 = vmatmul.bf16.gmra.mxu0 %v4899
        %v6744 = vpop.f32.mrf.mxu0
        %v6745 = vadd.f32 %v6716, %v6744
        %v6746 = vpop.f32.mrf.mxu0
        %v6747 = vadd.f32 %v6718, %v6746
        %6748 = vmatmul.bf16.gmra.mxu0 %v4917
        %v6749 = vpop.f32.mrf.mxu0
        %v6750 = vadd.f32 %v6721, %v6749
        %v6751 = vpop.f32.mrf.mxu0
        %v6752 = vadd.f32 %v6723, %v6751
        %6753 = vmatmul.bf16.gmra.mxu0 %v4935
        %v6754 = vpop.f32.mrf.mxu0
        %v6755 = vadd.f32 %v6726, %v6754
        %v6756 = vpop.f32.mrf.mxu0
        %v6757 = vadd.f32 %v6728, %v6756
        %6758 = vmatmul.bf16.gmra.mxu0 %v4953
        %v6759 = vpop.f32.mrf.mxu0
        %v6760 = vadd.f32 %v6731, %v6759
        %v6761 = vpop.f32.mrf.mxu0
        %v6762 = vadd.f32 %v6733, %v6761
        %6763 = vdwg.mxu0
        %6764 = vmatpush.bf16.msra.mxu0 %v6072
        %6765 = vmatpush.bf16.msra.mxu0 %v6070
        %6766 = vmatpush.bf16.msra.mxu0 %v6068
        %6767 = vmatpush.bf16.msra.mxu0 %v6066
        %6768 = vmatpush.bf16.msra.mxu0 %v6064
        %6769 = vmatpush.bf16.msra.mxu0 %v6062
        %6770 = vmatpush.bf16.msra.mxu0 %v6060
        %6771 = vmatpush.bf16.msra.mxu0 %v6058
        %6772 = vmatmul.bf16.gmra.mxu0 %v4900
        %v6773 = vpop.f32.mrf.mxu0
        %v6774 = vadd.f32 %v6745, %v6773
        %v6775 = vpop.f32.mrf.mxu0
        %v6776 = vadd.f32 %v6747, %v6775
        %6777 = vmatmul.bf16.gmra.mxu0 %v4918
        %v6778 = vpop.f32.mrf.mxu0
        %v6779 = vadd.f32 %v6750, %v6778
        %v6780 = vpop.f32.mrf.mxu0
        %v6781 = vadd.f32 %v6752, %v6780
        %6782 = vmatmul.bf16.gmra.mxu0 %v4936
        %v6783 = vpop.f32.mrf.mxu0
        %v6784 = vadd.f32 %v6755, %v6783
        %v6785 = vpop.f32.mrf.mxu0
        %v6786 = vadd.f32 %v6757, %v6785
        %6787 = vmatmul.bf16.gmra.mxu0 %v4954
        %v6788 = vpop.f32.mrf.mxu0
        %v6789 = vadd.f32 %v6760, %v6788
        %v6790 = vpop.f32.mrf.mxu0
        %v6791 = vadd.f32 %v6762, %v6790
        %6792 = vdwg.mxu0
        %6793 = vmatpush.bf16.msra.mxu0 %v6088
        %6794 = vmatpush.bf16.msra.mxu0 %v6086
        %6795 = vmatpush.bf16.msra.mxu0 %v6084
        %6796 = vmatpush.bf16.msra.mxu0 %v6082
        %6797 = vmatpush.bf16.msra.mxu0 %v6080
        %6798 = vmatpush.bf16.msra.mxu0 %v6078
        %6799 = vmatpush.bf16.msra.mxu0 %v6076
        %6800 = vmatpush.bf16.msra.mxu0 %v6074
        %6801 = vmatmul.bf16.gmra.mxu0 %v4901
        %v6802 = vpop.f32.mrf.mxu0
        %v6803 = vadd.f32 %v6774, %v6802
        %v6804 = vpop.f32.mrf.mxu0
        %v6805 = vadd.f32 %v6776, %v6804
        %6806 = vmatmul.bf16.gmra.mxu0 %v4919
        %v6807 = vpop.f32.mrf.mxu0
        %v6808 = vadd.f32 %v6779, %v6807
        %v6809 = vpop.f32.mrf.mxu0
        %v6810 = vadd.f32 %v6781, %v6809
        %6811 = vmatmul.bf16.gmra.mxu0 %v4937
        %v6812 = vpop.f32.mrf.mxu0
        %v6813 = vadd.f32 %v6784, %v6812
        %v6814 = vpop.f32.mrf.mxu0
        %v6815 = vadd.f32 %v6786, %v6814
        %6816 = vmatmul.bf16.gmra.mxu0 %v4955
        %v6817 = vpop.f32.mrf.mxu0
        %v6818 = vadd.f32 %v6789, %v6817
        %v6819 = vpop.f32.mrf.mxu0
        %v6820 = vadd.f32 %v6791, %v6819
        %6821 = vdwg.mxu0
        %6822 = vmatpush.bf16.msra.mxu0 %v6104
        %6823 = vmatpush.bf16.msra.mxu0 %v6102
        %6824 = vmatpush.bf16.msra.mxu0 %v6100
        %6825 = vmatpush.bf16.msra.mxu0 %v6098
        %6826 = vmatpush.bf16.msra.mxu0 %v6096
        %6827 = vmatpush.bf16.msra.mxu0 %v6094
        %6828 = vmatpush.bf16.msra.mxu0 %v6092
        %6829 = vmatpush.bf16.msra.mxu0 %v6090
        %6830 = vmatmul.bf16.gmra.mxu0 %v4902
        %v6831 = vpop.f32.mrf.mxu0
        %v6832 = vadd.f32 %v6803, %v6831
        %v6833 = vpop.f32.mrf.mxu0
        %v6834 = vadd.f32 %v6805, %v6833
        %6835 = vmatmul.bf16.gmra.mxu0 %v4920
        %v6836 = vpop.f32.mrf.mxu0
        %v6837 = vadd.f32 %v6808, %v6836
        %v6838 = vpop.f32.mrf.mxu0
        %v6839 = vadd.f32 %v6810, %v6838
        %6840 = vmatmul.bf16.gmra.mxu0 %v4938
        %v6841 = vpop.f32.mrf.mxu0
        %v6842 = vadd.f32 %v6813, %v6841
        %v6843 = vpop.f32.mrf.mxu0
        %v6844 = vadd.f32 %v6815, %v6843
        %6845 = vmatmul.bf16.gmra.mxu0 %v4956
        %v6846 = vpop.f32.mrf.mxu0
        %v6847 = vadd.f32 %v6818, %v6846
        %v6848 = vpop.f32.mrf.mxu0
        %v6849 = vadd.f32 %v6820, %v6848
        %6850 = vdwg.mxu0
        %6851 = vmatpush.bf16.msra.mxu0 %v6120
        %6852 = vmatpush.bf16.msra.mxu0 %v6118
        %6853 = vmatpush.bf16.msra.mxu0 %v6116
        %6854 = vmatpush.bf16.msra.mxu0 %v6114
        %6855 = vmatpush.bf16.msra.mxu0 %v6112
        %6856 = vmatpush.bf16.msra.mxu0 %v6110
        %6857 = vmatpush.bf16.msra.mxu0 %v6108
        %6858 = vmatpush.bf16.msra.mxu0 %v6106
        %6859 = vmatmul.bf16.gmra.mxu0 %v4903
        %v6860 = vpop.f32.mrf.mxu0
        %v6861 = vadd.f32 %v6832, %v6860
        %v6862 = vpop.f32.mrf.mxu0
        %v6863 = vadd.f32 %v6834, %v6862
        %6864 = vmatmul.bf16.gmra.mxu0 %v4921
        %v6865 = vpop.f32.mrf.mxu0
        %v6866 = vadd.f32 %v6837, %v6865
        %v6867 = vpop.f32.mrf.mxu0
        %v6868 = vadd.f32 %v6839, %v6867
        %6869 = vmatmul.bf16.gmra.mxu0 %v4939
        %v6870 = vpop.f32.mrf.mxu0
        %v6871 = vadd.f32 %v6842, %v6870
        %v6872 = vpop.f32.mrf.mxu0
        %v6873 = vadd.f32 %v6844, %v6872
        %6874 = vmatmul.bf16.gmra.mxu0 %v4957
        %v6875 = vpop.f32.mrf.mxu0
        %v6876 = vadd.f32 %v6847, %v6875
        %v6877 = vpop.f32.mrf.mxu0
        %v6878 = vadd.f32 %v6849, %v6877
        %6879 = vdwg.mxu0
        %6880 = vmatpush.bf16.msra.mxu0 %v6136
        %6881 = vmatpush.bf16.msra.mxu0 %v6134
        %6882 = vmatpush.bf16.msra.mxu0 %v6132
        %6883 = vmatpush.bf16.msra.mxu0 %v6130
        %6884 = vmatpush.bf16.msra.mxu0 %v6128
        %6885 = vmatpush.bf16.msra.mxu0 %v6126
        %6886 = vmatpush.bf16.msra.mxu0 %v6124
        %6887 = vmatpush.bf16.msra.mxu0 %v6122
        %6888 = vmatmul.bf16.gmra.mxu0 %v4904
        %v6889 = vpop.f32.mrf.mxu0
        %v6890 = vadd.f32 %v6861, %v6889
        %v6891 = vpop.f32.mrf.mxu0
        %v6892 = vadd.f32 %v6863, %v6891
        %6893 = vmatmul.bf16.gmra.mxu0 %v4922
        %v6894 = vpop.f32.mrf.mxu0
        %v6895 = vadd.f32 %v6866, %v6894
        %v6896 = vpop.f32.mrf.mxu0
        %v6897 = vadd.f32 %v6868, %v6896
        %6898 = vmatmul.bf16.gmra.mxu0 %v4940
        %v6899 = vpop.f32.mrf.mxu0
        %v6900 = vadd.f32 %v6871, %v6899
        %v6901 = vpop.f32.mrf.mxu0
        %v6902 = vadd.f32 %v6873, %v6901
        %6903 = vmatmul.bf16.gmra.mxu0 %v4958
        %v6904 = vpop.f32.mrf.mxu0
        %v6905 = vadd.f32 %v6876, %v6904
        %v6906 = vpop.f32.mrf.mxu0
        %v6907 = vadd.f32 %v6878, %v6906
        %6908 = vdwg.mxu0
        %6909 = vmatpush.bf16.msra.mxu0 %v6152
        %6910 = vmatpush.bf16.msra.mxu0 %v6150
        %6911 = vmatpush.bf16.msra.mxu0 %v6148
        %6912 = vmatpush.bf16.msra.mxu0 %v6146
        %6913 = vmatpush.bf16.msra.mxu0 %v6144
        %6914 = vmatpush.bf16.msra.mxu0 %v6142
        %6915 = vmatpush.bf16.msra.mxu0 %v6140
        %6916 = vmatpush.bf16.msra.mxu0 %v6138
        %6917 = vmatmul.bf16.gmra.mxu0 %v4905
        %v6918 = vpop.f32.mrf.mxu0
        %v6919 = vadd.f32 %v6890, %v6918
        %v6920 = vpop.f32.mrf.mxu0
        %v6921 = vadd.f32 %v6892, %v6920
        %6922 = vmatmul.bf16.gmra.mxu0 %v4923
        %v6923 = vpop.f32.mrf.mxu0
        %v6924 = vadd.f32 %v6895, %v6923
        %v6925 = vpop.f32.mrf.mxu0
        %v6926 = vadd.f32 %v6897, %v6925
        %6927 = vmatmul.bf16.gmra.mxu0 %v4941
        %v6928 = vpop.f32.mrf.mxu0
        %v6929 = vadd.f32 %v6900, %v6928
        %v6930 = vpop.f32.mrf.mxu0
        %v6931 = vadd.f32 %v6902, %v6930
        %6932 = vmatmul.bf16.gmra.mxu0 %v4959
        %v6933 = vpop.f32.mrf.mxu0
        %v6934 = vadd.f32 %v6905, %v6933
        %v6935 = vpop.f32.mrf.mxu0
        %v6936 = vadd.f32 %v6907, %v6935
        %6937 = vdwg.mxu0
        %6938 = vmatpush.bf16.msra.mxu0 %v6168
        %6939 = vmatpush.bf16.msra.mxu0 %v6166
        %6940 = vmatpush.bf16.msra.mxu0 %v6164
        %6941 = vmatpush.bf16.msra.mxu0 %v6162
        %6942 = vmatpush.bf16.msra.mxu0 %v6160
        %6943 = vmatpush.bf16.msra.mxu0 %v6158
        %6944 = vmatpush.bf16.msra.mxu0 %v6156
        %6945 = vmatpush.bf16.msra.mxu0 %v6154
        %6946 = vmatmul.bf16.gmra.mxu0 %v4906
        %v6947 = vpop.f32.mrf.mxu0
        %v6948 = vadd.f32 %v6919, %v6947
        %v6949 = vpop.f32.mrf.mxu0
        %v6950 = vadd.f32 %v6921, %v6949
        %6951 = vmatmul.bf16.gmra.mxu0 %v4924
        %v6952 = vpop.f32.mrf.mxu0
        %v6953 = vadd.f32 %v6924, %v6952
        %v6954 = vpop.f32.mrf.mxu0
        %v6955 = vadd.f32 %v6926, %v6954
        %6956 = vmatmul.bf16.gmra.mxu0 %v4942
        %v6957 = vpop.f32.mrf.mxu0
        %v6958 = vadd.f32 %v6929, %v6957
        %v6959 = vpop.f32.mrf.mxu0
        %v6960 = vadd.f32 %v6931, %v6959
        %6961 = vmatmul.bf16.gmra.mxu0 %v4960
        %v6962 = vpop.f32.mrf.mxu0
        %v6963 = vadd.f32 %v6934, %v6962
        %v6964 = vpop.f32.mrf.mxu0
        %v6965 = vadd.f32 %v6936, %v6964
        %6966 = vdwg.mxu0
        %6967 = vmatpush.bf16.msra.mxu0 %v6184
        %6968 = vmatpush.bf16.msra.mxu0 %v6182
        %6969 = vmatpush.bf16.msra.mxu0 %v6180
        %6970 = vmatpush.bf16.msra.mxu0 %v6178
        %6971 = vmatpush.bf16.msra.mxu0 %v6176
        %6972 = vmatpush.bf16.msra.mxu0 %v6174
        %6973 = vmatpush.bf16.msra.mxu0 %v6172
        %6974 = vmatpush.bf16.msra.mxu0 %v6170
        %6975 = vmatmul.bf16.gmra.mxu0 %v4907
        %v6976 = vpop.f32.mrf.mxu0
        %v6977 = vadd.f32 %v6948, %v6976
        %v6978 = vpop.f32.mrf.mxu0
        %v6979 = vadd.f32 %v6950, %v6978
        %6980 = vmatmul.bf16.gmra.mxu0 %v4925
        %v6981 = vpop.f32.mrf.mxu0
        %v6982 = vadd.f32 %v6953, %v6981
        %v6983 = vpop.f32.mrf.mxu0
        %v6984 = vadd.f32 %v6955, %v6983
        %6985 = vmatmul.bf16.gmra.mxu0 %v4943
        %v6986 = vpop.f32.mrf.mxu0
        %v6987 = vadd.f32 %v6958, %v6986
        %v6988 = vpop.f32.mrf.mxu0
        %v6989 = vadd.f32 %v6960, %v6988
        %6990 = vmatmul.bf16.gmra.mxu0 %v4961
        %v6991 = vpop.f32.mrf.mxu0
        %v6992 = vadd.f32 %v6963, %v6991
        %v6993 = vpop.f32.mrf.mxu0
        %v6994 = vadd.f32 %v6965, %v6993
        %6995 = vdwg.mxu0
        %6996 = vmatpush.bf16.msra.mxu0 %v5913
        %6997 = vmatpush.bf16.msra.mxu0 %v5911
        %6998 = vmatpush.bf16.msra.mxu0 %v5909
        %6999 = vmatpush.bf16.msra.mxu0 %v5907
        %7000 = vmatpush.bf16.msra.mxu0 %v5905
        %7001 = vmatpush.bf16.msra.mxu0 %v5903
        %7002 = vmatpush.bf16.msra.mxu0 %v5901
        %7003 = vmatpush.bf16.msra.mxu0 %v5899
        %7004 = vmatmul.bf16.gmra.mxu0 %v4890
        %v7005 = vpop.f32.mrf.mxu0
        %v7006 = vadd.f32 %v4655, %v7005
        %v7007 = vpop.f32.mrf.mxu0
        %v7008 = vadd.f32 %v4657, %v7007
        %7009 = vmatmul.bf16.gmra.mxu0 %v4908
        %v7010 = vpop.f32.mrf.mxu0
        %v7011 = vadd.f32 %v4660, %v7010
        %v7012 = vpop.f32.mrf.mxu0
        %v7013 = vadd.f32 %v4662, %v7012
        %7014 = vmatmul.bf16.gmra.mxu0 %v4926
        %v7015 = vpop.f32.mrf.mxu0
        %v7016 = vadd.f32 %v4665, %v7015
        %v7017 = vpop.f32.mrf.mxu0
        %v7018 = vadd.f32 %v4667, %v7017
        %7019 = vmatmul.bf16.gmra.mxu0 %v4944
        %v7020 = vpop.f32.mrf.mxu0
        %v7021 = vadd.f32 %v4670, %v7020
        %v7022 = vpop.f32.mrf.mxu0
        %v7023 = vadd.f32 %v4672, %v7022
        %7024 = vdwg.mxu0
        %7025 = vmatpush.bf16.msra.mxu0 %v5929
        %7026 = vmatpush.bf16.msra.mxu0 %v5927
        %7027 = vmatpush.bf16.msra.mxu0 %v5925
        %7028 = vmatpush.bf16.msra.mxu0 %v5923
        %7029 = vmatpush.bf16.msra.mxu0 %v5921
        %7030 = vmatpush.bf16.msra.mxu0 %v5919
        %7031 = vmatpush.bf16.msra.mxu0 %v5917
        %7032 = vmatpush.bf16.msra.mxu0 %v5915
        %7033 = vmatmul.bf16.gmra.mxu0 %v4891
        %v7034 = vpop.f32.mrf.mxu0
        %v7035 = vadd.f32 %v7006, %v7034
        %v7036 = vpop.f32.mrf.mxu0
        %v7037 = vadd.f32 %v7008, %v7036
        %7038 = vmatmul.bf16.gmra.mxu0 %v4909
        %v7039 = vpop.f32.mrf.mxu0
        %v7040 = vadd.f32 %v7011, %v7039
        %v7041 = vpop.f32.mrf.mxu0
        %v7042 = vadd.f32 %v7013, %v7041
        %7043 = vmatmul.bf16.gmra.mxu0 %v4927
        %v7044 = vpop.f32.mrf.mxu0
        %v7045 = vadd.f32 %v7016, %v7044
        %v7046 = vpop.f32.mrf.mxu0
        %v7047 = vadd.f32 %v7018, %v7046
        %7048 = vmatmul.bf16.gmra.mxu0 %v4945
        %v7049 = vpop.f32.mrf.mxu0
        %v7050 = vadd.f32 %v7021, %v7049
        %v7051 = vpop.f32.mrf.mxu0
        %v7052 = vadd.f32 %v7023, %v7051
        %7053 = vdwg.mxu0
        %7054 = vmatpush.bf16.msra.mxu0 %v5945
        %7055 = vmatpush.bf16.msra.mxu0 %v5943
        %7056 = vmatpush.bf16.msra.mxu0 %v5941
        %7057 = vmatpush.bf16.msra.mxu0 %v5939
        %7058 = vmatpush.bf16.msra.mxu0 %v5937
        %7059 = vmatpush.bf16.msra.mxu0 %v5935
        %7060 = vmatpush.bf16.msra.mxu0 %v5933
        %7061 = vmatpush.bf16.msra.mxu0 %v5931
        %7062 = vmatmul.bf16.gmra.mxu0 %v4892
        %v7063 = vpop.f32.mrf.mxu0
        %v7064 = vadd.f32 %v7035, %v7063
        %v7065 = vpop.f32.mrf.mxu0
        %v7066 = vadd.f32 %v7037, %v7065
        %7067 = vmatmul.bf16.gmra.mxu0 %v4910
        %v7068 = vpop.f32.mrf.mxu0
        %v7069 = vadd.f32 %v7040, %v7068
        %v7070 = vpop.f32.mrf.mxu0
        %v7071 = vadd.f32 %v7042, %v7070
        %7072 = vmatmul.bf16.gmra.mxu0 %v4928
        %v7073 = vpop.f32.mrf.mxu0
        %v7074 = vadd.f32 %v7045, %v7073
        %v7075 = vpop.f32.mrf.mxu0
        %v7076 = vadd.f32 %v7047, %v7075
        %7077 = vmatmul.bf16.gmra.mxu0 %v4946
        %v7078 = vpop.f32.mrf.mxu0
        %v7079 = vadd.f32 %v7050, %v7078
        %v7080 = vpop.f32.mrf.mxu0
        %v7081 = vadd.f32 %v7052, %v7080
        %7082 = vdwg.mxu0
        %7083 = vmatpush.bf16.msra.mxu0 %v5961
        %7084 = vmatpush.bf16.msra.mxu0 %v5959
        %7085 = vmatpush.bf16.msra.mxu0 %v5957
        %7086 = vmatpush.bf16.msra.mxu0 %v5955
        %7087 = vmatpush.bf16.msra.mxu0 %v5953
        %7088 = vmatpush.bf16.msra.mxu0 %v5951
        %7089 = vmatpush.bf16.msra.mxu0 %v5949
        %7090 = vmatpush.bf16.msra.mxu0 %v5947
        %7091 = vmatmul.bf16.gmra.mxu0 %v4893
        %v7092 = vpop.f32.mrf.mxu0
        %v7093 = vadd.f32 %v7064, %v7092
        %v7094 = vpop.f32.mrf.mxu0
        %v7095 = vadd.f32 %v7066, %v7094
        %7096 = vmatmul.bf16.gmra.mxu0 %v4911
        %v7097 = vpop.f32.mrf.mxu0
        %v7098 = vadd.f32 %v7069, %v7097
        %v7099 = vpop.f32.mrf.mxu0
        %v7100 = vadd.f32 %v7071, %v7099
        %7101 = vmatmul.bf16.gmra.mxu0 %v4929
        %v7102 = vpop.f32.mrf.mxu0
        %v7103 = vadd.f32 %v7074, %v7102
        %v7104 = vpop.f32.mrf.mxu0
        %v7105 = vadd.f32 %v7076, %v7104
        %7106 = vmatmul.bf16.gmra.mxu0 %v4947
        %v7107 = vpop.f32.mrf.mxu0
        %v7108 = vadd.f32 %v7079, %v7107
        %v7109 = vpop.f32.mrf.mxu0
        %v7110 = vadd.f32 %v7081, %v7109
        %7111 = vdwg.mxu0
        %7112 = vmatpush.bf16.msra.mxu0 %v5977
        %7113 = vmatpush.bf16.msra.mxu0 %v5975
        %7114 = vmatpush.bf16.msra.mxu0 %v5973
        %7115 = vmatpush.bf16.msra.mxu0 %v5971
        %7116 = vmatpush.bf16.msra.mxu0 %v5969
        %7117 = vmatpush.bf16.msra.mxu0 %v5967
        %7118 = vmatpush.bf16.msra.mxu0 %v5965
        %7119 = vmatpush.bf16.msra.mxu0 %v5963
        %7120 = vmatmul.bf16.gmra.mxu0 %v4894
        %v7121 = vpop.f32.mrf.mxu0
        %v7122 = vadd.f32 %v7093, %v7121
        %v7123 = vpop.f32.mrf.mxu0
        %v7124 = vadd.f32 %v7095, %v7123
        %7125 = vmatmul.bf16.gmra.mxu0 %v4912
        %v7126 = vpop.f32.mrf.mxu0
        %v7127 = vadd.f32 %v7098, %v7126
        %v7128 = vpop.f32.mrf.mxu0
        %v7129 = vadd.f32 %v7100, %v7128
        %7130 = vmatmul.bf16.gmra.mxu0 %v4930
        %v7131 = vpop.f32.mrf.mxu0
        %v7132 = vadd.f32 %v7103, %v7131
        %v7133 = vpop.f32.mrf.mxu0
        %v7134 = vadd.f32 %v7105, %v7133
        %7135 = vmatmul.bf16.gmra.mxu0 %v4948
        %v7136 = vpop.f32.mrf.mxu0
        %v7137 = vadd.f32 %v7108, %v7136
        %v7138 = vpop.f32.mrf.mxu0
        %v7139 = vadd.f32 %v7110, %v7138
        %7140 = vdwg.mxu0
        %7141 = vmatpush.bf16.msra.mxu0 %v5993
        %7142 = vmatpush.bf16.msra.mxu0 %v5991
        %7143 = vmatpush.bf16.msra.mxu0 %v5989
        %7144 = vmatpush.bf16.msra.mxu0 %v5987
        %7145 = vmatpush.bf16.msra.mxu0 %v5985
        %7146 = vmatpush.bf16.msra.mxu0 %v5983
        %7147 = vmatpush.bf16.msra.mxu0 %v5981
        %7148 = vmatpush.bf16.msra.mxu0 %v5979
        %7149 = vmatmul.bf16.gmra.mxu0 %v4895
        %v7150 = vpop.f32.mrf.mxu0
        %v7151 = vadd.f32 %v7122, %v7150
        %v7152 = vpop.f32.mrf.mxu0
        %v7153 = vadd.f32 %v7124, %v7152
        %7154 = vmatmul.bf16.gmra.mxu0 %v4913
        %v7155 = vpop.f32.mrf.mxu0
        %v7156 = vadd.f32 %v7127, %v7155
        %v7157 = vpop.f32.mrf.mxu0
        %v7158 = vadd.f32 %v7129, %v7157
        %7159 = vmatmul.bf16.gmra.mxu0 %v4931
        %v7160 = vpop.f32.mrf.mxu0
        %v7161 = vadd.f32 %v7132, %v7160
        %v7162 = vpop.f32.mrf.mxu0
        %v7163 = vadd.f32 %v7134, %v7162
        %7164 = vmatmul.bf16.gmra.mxu0 %v4949
        %v7165 = vpop.f32.mrf.mxu0
        %v7166 = vadd.f32 %v7137, %v7165
        %v7167 = vpop.f32.mrf.mxu0
        %v7168 = vadd.f32 %v7139, %v7167
        %7169 = vdwg.mxu0
        %7170 = vmatpush.bf16.msra.mxu0 %v6009
        %7171 = vmatpush.bf16.msra.mxu0 %v6007
        %7172 = vmatpush.bf16.msra.mxu0 %v6005
        %7173 = vmatpush.bf16.msra.mxu0 %v6003
        %7174 = vmatpush.bf16.msra.mxu0 %v6001
        %7175 = vmatpush.bf16.msra.mxu0 %v5999
        %7176 = vmatpush.bf16.msra.mxu0 %v5997
        %7177 = vmatpush.bf16.msra.mxu0 %v5995
        %7178 = vmatmul.bf16.gmra.mxu0 %v4896
        %v7179 = vpop.f32.mrf.mxu0
        %v7180 = vadd.f32 %v7151, %v7179
        %v7181 = vpop.f32.mrf.mxu0
        %v7182 = vadd.f32 %v7153, %v7181
        %7183 = vmatmul.bf16.gmra.mxu0 %v4914
        %v7184 = vpop.f32.mrf.mxu0
        %v7185 = vadd.f32 %v7156, %v7184
        %v7186 = vpop.f32.mrf.mxu0
        %v7187 = vadd.f32 %v7158, %v7186
        %7188 = vmatmul.bf16.gmra.mxu0 %v4932
        %v7189 = vpop.f32.mrf.mxu0
        %v7190 = vadd.f32 %v7161, %v7189
        %v7191 = vpop.f32.mrf.mxu0
        %v7192 = vadd.f32 %v7163, %v7191
        %7193 = vmatmul.bf16.gmra.mxu0 %v4950
        %v7194 = vpop.f32.mrf.mxu0
        %v7195 = vadd.f32 %v7166, %v7194
        %v7196 = vpop.f32.mrf.mxu0
        %v7197 = vadd.f32 %v7168, %v7196
        %7198 = vdwg.mxu0
        %7199 = vmatpush.bf16.msra.mxu0 %v6025
        %7200 = vmatpush.bf16.msra.mxu0 %v6023
        %7201 = vmatpush.bf16.msra.mxu0 %v6021
        %7202 = vmatpush.bf16.msra.mxu0 %v6019
        %7203 = vmatpush.bf16.msra.mxu0 %v6017
        %7204 = vmatpush.bf16.msra.mxu0 %v6015
        %7205 = vmatpush.bf16.msra.mxu0 %v6013
        %7206 = vmatpush.bf16.msra.mxu0 %v6011
        %7207 = vmatmul.bf16.gmra.mxu0 %v4897
        %v7208 = vpop.f32.mrf.mxu0
        %v7209 = vadd.f32 %v7180, %v7208
        %v7210 = vpop.f32.mrf.mxu0
        %v7211 = vadd.f32 %v7182, %v7210
        %7212 = vmatmul.bf16.gmra.mxu0 %v4915
        %v7213 = vpop.f32.mrf.mxu0
        %v7214 = vadd.f32 %v7185, %v7213
        %v7215 = vpop.f32.mrf.mxu0
        %v7216 = vadd.f32 %v7187, %v7215
        %7217 = vmatmul.bf16.gmra.mxu0 %v4933
        %v7218 = vpop.f32.mrf.mxu0
        %v7219 = vadd.f32 %v7190, %v7218
        %v7220 = vpop.f32.mrf.mxu0
        %v7221 = vadd.f32 %v7192, %v7220
        %7222 = vmatmul.bf16.gmra.mxu0 %v4951
        %v7223 = vpop.f32.mrf.mxu0
        %v7224 = vadd.f32 %v7195, %v7223
        %v7225 = vpop.f32.mrf.mxu0
        %v7226 = vadd.f32 %v7197, %v7225
        %7227 = vdwg.mxu0
        %7228 = vmatpush.bf16.msra.mxu0 %v6041
        %7229 = vmatpush.bf16.msra.mxu0 %v6039
        %7230 = vmatpush.bf16.msra.mxu0 %v6037
        %7231 = vmatpush.bf16.msra.mxu0 %v6035
        %7232 = vmatpush.bf16.msra.mxu0 %v6033
        %7233 = vmatpush.bf16.msra.mxu0 %v6031
        %7234 = vmatpush.bf16.msra.mxu0 %v6029
        %7235 = vmatpush.bf16.msra.mxu0 %v6027
        %7236 = vmatmul.bf16.gmra.mxu0 %v4898
        %v7237 = vpop.f32.mrf.mxu0
        %v7238 = vadd.f32 %v7209, %v7237
        %v7239 = vpop.f32.mrf.mxu0
        %v7240 = vadd.f32 %v7211, %v7239
        %7241 = vmatmul.bf16.gmra.mxu0 %v4916
        %v7242 = vpop.f32.mrf.mxu0
        %v7243 = vadd.f32 %v7214, %v7242
        %v7244 = vpop.f32.mrf.mxu0
        %v7245 = vadd.f32 %v7216, %v7244
        %7246 = vmatmul.bf16.gmra.mxu0 %v4934
        %v7247 = vpop.f32.mrf.mxu0
        %v7248 = vadd.f32 %v7219, %v7247
        %v7249 = vpop.f32.mrf.mxu0
        %v7250 = vadd.f32 %v7221, %v7249
        %7251 = vmatmul.bf16.gmra.mxu0 %v4952
        %v7252 = vpop.f32.mrf.mxu0
        %v7253 = vadd.f32 %v7224, %v7252
        %v7254 = vpop.f32.mrf.mxu0
        %v7255 = vadd.f32 %v7226, %v7254
        %7256 = vdwg.mxu0
        %7257 = vmatpush.bf16.msra.mxu0 %v6057
        %7258 = vmatpush.bf16.msra.mxu0 %v6055
        %7259 = vmatpush.bf16.msra.mxu0 %v6053
        %7260 = vmatpush.bf16.msra.mxu0 %v6051
        %7261 = vmatpush.bf16.msra.mxu0 %v6049
        %7262 = vmatpush.bf16.msra.mxu0 %v6047
        %7263 = vmatpush.bf16.msra.mxu0 %v6045
        %7264 = vmatpush.bf16.msra.mxu0 %v6043
        %7265 = vmatmul.bf16.gmra.mxu0 %v4899
        %v7266 = vpop.f32.mrf.mxu0
        %v7267 = vadd.f32 %v7238, %v7266
        %v7268 = vpop.f32.mrf.mxu0
        %v7269 = vadd.f32 %v7240, %v7268
        %7270 = vmatmul.bf16.gmra.mxu0 %v4917
        %v7271 = vpop.f32.mrf.mxu0
        %v7272 = vadd.f32 %v7243, %v7271
        %v7273 = vpop.f32.mrf.mxu0
        %v7274 = vadd.f32 %v7245, %v7273
        %7275 = vmatmul.bf16.gmra.mxu0 %v4935
        %v7276 = vpop.f32.mrf.mxu0
        %v7277 = vadd.f32 %v7248, %v7276
        %v7278 = vpop.f32.mrf.mxu0
        %v7279 = vadd.f32 %v7250, %v7278
        %7280 = vmatmul.bf16.gmra.mxu0 %v4953
        %v7281 = vpop.f32.mrf.mxu0
        %v7282 = vadd.f32 %v7253, %v7281
        %v7283 = vpop.f32.mrf.mxu0
        %v7284 = vadd.f32 %v7255, %v7283
        %7285 = vdwg.mxu0
        %7286 = vmatpush.bf16.msra.mxu0 %v6073
        %7287 = vmatpush.bf16.msra.mxu0 %v6071
        %7288 = vmatpush.bf16.msra.mxu0 %v6069
        %7289 = vmatpush.bf16.msra.mxu0 %v6067
        %7290 = vmatpush.bf16.msra.mxu0 %v6065
        %7291 = vmatpush.bf16.msra.mxu0 %v6063
        %7292 = vmatpush.bf16.msra.mxu0 %v6061
        %7293 = vmatpush.bf16.msra.mxu0 %v6059
        %7294 = vmatmul.bf16.gmra.mxu0 %v4900
        %v7295 = vpop.f32.mrf.mxu0
        %v7296 = vadd.f32 %v7267, %v7295
        %v7297 = vpop.f32.mrf.mxu0
        %v7298 = vadd.f32 %v7269, %v7297
        %7299 = vmatmul.bf16.gmra.mxu0 %v4918
        %v7300 = vpop.f32.mrf.mxu0
        %v7301 = vadd.f32 %v7272, %v7300
        %v7302 = vpop.f32.mrf.mxu0
        %v7303 = vadd.f32 %v7274, %v7302
        %7304 = vmatmul.bf16.gmra.mxu0 %v4936
        %v7305 = vpop.f32.mrf.mxu0
        %v7306 = vadd.f32 %v7277, %v7305
        %v7307 = vpop.f32.mrf.mxu0
        %v7308 = vadd.f32 %v7279, %v7307
        %7309 = vmatmul.bf16.gmra.mxu0 %v4954
        %v7310 = vpop.f32.mrf.mxu0
        %v7311 = vadd.f32 %v7282, %v7310
        %v7312 = vpop.f32.mrf.mxu0
        %v7313 = vadd.f32 %v7284, %v7312
        %7314 = vdwg.mxu0
        %7315 = vmatpush.bf16.msra.mxu0 %v6089
        %7316 = vmatpush.bf16.msra.mxu0 %v6087
        %7317 = vmatpush.bf16.msra.mxu0 %v6085
        %7318 = vmatpush.bf16.msra.mxu0 %v6083
        %7319 = vmatpush.bf16.msra.mxu0 %v6081
        %7320 = vmatpush.bf16.msra.mxu0 %v6079
        %7321 = vmatpush.bf16.msra.mxu0 %v6077
        %7322 = vmatpush.bf16.msra.mxu0 %v6075
        %7323 = vmatmul.bf16.gmra.mxu0 %v4901
        %v7324 = vpop.f32.mrf.mxu0
        %v7325 = vadd.f32 %v7296, %v7324
        %v7326 = vpop.f32.mrf.mxu0
        %v7327 = vadd.f32 %v7298, %v7326
        %7328 = vmatmul.bf16.gmra.mxu0 %v4919
        %v7329 = vpop.f32.mrf.mxu0
        %v7330 = vadd.f32 %v7301, %v7329
        %v7331 = vpop.f32.mrf.mxu0
        %v7332 = vadd.f32 %v7303, %v7331
        %7333 = vmatmul.bf16.gmra.mxu0 %v4937
        %v7334 = vpop.f32.mrf.mxu0
        %v7335 = vadd.f32 %v7306, %v7334
        %v7336 = vpop.f32.mrf.mxu0
        %v7337 = vadd.f32 %v7308, %v7336
        %7338 = vmatmul.bf16.gmra.mxu0 %v4955
        %v7339 = vpop.f32.mrf.mxu0
        %v7340 = vadd.f32 %v7311, %v7339
        %v7341 = vpop.f32.mrf.mxu0
        %v7342 = vadd.f32 %v7313, %v7341
        %7343 = vdwg.mxu0
        %7344 = vmatpush.bf16.msra.mxu0 %v6105
        %7345 = vmatpush.bf16.msra.mxu0 %v6103
        %7346 = vmatpush.bf16.msra.mxu0 %v6101
        %7347 = vmatpush.bf16.msra.mxu0 %v6099
        %7348 = vmatpush.bf16.msra.mxu0 %v6097
        %7349 = vmatpush.bf16.msra.mxu0 %v6095
        %7350 = vmatpush.bf16.msra.mxu0 %v6093
        %7351 = vmatpush.bf16.msra.mxu0 %v6091
        %7352 = vmatmul.bf16.gmra.mxu0 %v4902
        %v7353 = vpop.f32.mrf.mxu0
        %v7354 = vadd.f32 %v7325, %v7353
        %v7355 = vpop.f32.mrf.mxu0
        %v7356 = vadd.f32 %v7327, %v7355
        %7357 = vmatmul.bf16.gmra.mxu0 %v4920
        %v7358 = vpop.f32.mrf.mxu0
        %v7359 = vadd.f32 %v7330, %v7358
        %v7360 = vpop.f32.mrf.mxu0
        %v7361 = vadd.f32 %v7332, %v7360
        %7362 = vmatmul.bf16.gmra.mxu0 %v4938
        %v7363 = vpop.f32.mrf.mxu0
        %v7364 = vadd.f32 %v7335, %v7363
        %v7365 = vpop.f32.mrf.mxu0
        %v7366 = vadd.f32 %v7337, %v7365
        %7367 = vmatmul.bf16.gmra.mxu0 %v4956
        %v7368 = vpop.f32.mrf.mxu0
        %v7369 = vadd.f32 %v7340, %v7368
        %v7370 = vpop.f32.mrf.mxu0
        %v7371 = vadd.f32 %v7342, %v7370
        %7372 = vdwg.mxu0
        %7373 = vmatpush.bf16.msra.mxu0 %v6121
        %7374 = vmatpush.bf16.msra.mxu0 %v6119
        %7375 = vmatpush.bf16.msra.mxu0 %v6117
        %7376 = vmatpush.bf16.msra.mxu0 %v6115
        %7377 = vmatpush.bf16.msra.mxu0 %v6113
        %7378 = vmatpush.bf16.msra.mxu0 %v6111
        %7379 = vmatpush.bf16.msra.mxu0 %v6109
        %7380 = vmatpush.bf16.msra.mxu0 %v6107
        %7381 = vmatmul.bf16.gmra.mxu0 %v4903
        %v7382 = vpop.f32.mrf.mxu0
        %v7383 = vadd.f32 %v7354, %v7382
        %v7384 = vpop.f32.mrf.mxu0
        %v7385 = vadd.f32 %v7356, %v7384
        %7386 = vmatmul.bf16.gmra.mxu0 %v4921
        %v7387 = vpop.f32.mrf.mxu0
        %v7388 = vadd.f32 %v7359, %v7387
        %v7389 = vpop.f32.mrf.mxu0
        %v7390 = vadd.f32 %v7361, %v7389
        %7391 = vmatmul.bf16.gmra.mxu0 %v4939
        %v7392 = vpop.f32.mrf.mxu0
        %v7393 = vadd.f32 %v7364, %v7392
        %v7394 = vpop.f32.mrf.mxu0
        %v7395 = vadd.f32 %v7366, %v7394
        %7396 = vmatmul.bf16.gmra.mxu0 %v4957
        %v7397 = vpop.f32.mrf.mxu0
        %v7398 = vadd.f32 %v7369, %v7397
        %v7399 = vpop.f32.mrf.mxu0
        %v7400 = vadd.f32 %v7371, %v7399
        %7401 = vdwg.mxu0
        %7402 = vmatpush.bf16.msra.mxu0 %v6137
        %7403 = vmatpush.bf16.msra.mxu0 %v6135
        %7404 = vmatpush.bf16.msra.mxu0 %v6133
        %7405 = vmatpush.bf16.msra.mxu0 %v6131
        %7406 = vmatpush.bf16.msra.mxu0 %v6129
        %7407 = vmatpush.bf16.msra.mxu0 %v6127
        %7408 = vmatpush.bf16.msra.mxu0 %v6125
        %7409 = vmatpush.bf16.msra.mxu0 %v6123
        %7410 = vmatmul.bf16.gmra.mxu0 %v4904
        %v7411 = vpop.f32.mrf.mxu0
        %v7412 = vadd.f32 %v7383, %v7411
        %v7413 = vpop.f32.mrf.mxu0
        %v7414 = vadd.f32 %v7385, %v7413
        %7415 = vmatmul.bf16.gmra.mxu0 %v4922
        %v7416 = vpop.f32.mrf.mxu0
        %v7417 = vadd.f32 %v7388, %v7416
        %v7418 = vpop.f32.mrf.mxu0
        %v7419 = vadd.f32 %v7390, %v7418
        %7420 = vmatmul.bf16.gmra.mxu0 %v4940
        %v7421 = vpop.f32.mrf.mxu0
        %v7422 = vadd.f32 %v7393, %v7421
        %v7423 = vpop.f32.mrf.mxu0
        %v7424 = vadd.f32 %v7395, %v7423
        %7425 = vmatmul.bf16.gmra.mxu0 %v4958
        %v7426 = vpop.f32.mrf.mxu0
        %v7427 = vadd.f32 %v7398, %v7426
        %v7428 = vpop.f32.mrf.mxu0
        %v7429 = vadd.f32 %v7400, %v7428
        %7430 = vdwg.mxu0
        %7431 = vmatpush.bf16.msra.mxu0 %v6153
        %7432 = vmatpush.bf16.msra.mxu0 %v6151
        %7433 = vmatpush.bf16.msra.mxu0 %v6149
        %7434 = vmatpush.bf16.msra.mxu0 %v6147
        %7435 = vmatpush.bf16.msra.mxu0 %v6145
        %7436 = vmatpush.bf16.msra.mxu0 %v6143
        %7437 = vmatpush.bf16.msra.mxu0 %v6141
        %7438 = vmatpush.bf16.msra.mxu0 %v6139
        %7439 = vmatmul.bf16.gmra.mxu0 %v4905
        %v7440 = vpop.f32.mrf.mxu0
        %v7441 = vadd.f32 %v7412, %v7440
        %v7442 = vpop.f32.mrf.mxu0
        %v7443 = vadd.f32 %v7414, %v7442
        %7444 = vmatmul.bf16.gmra.mxu0 %v4923
        %v7445 = vpop.f32.mrf.mxu0
        %v7446 = vadd.f32 %v7417, %v7445
        %v7447 = vpop.f32.mrf.mxu0
        %v7448 = vadd.f32 %v7419, %v7447
        %7449 = vmatmul.bf16.gmra.mxu0 %v4941
        %v7450 = vpop.f32.mrf.mxu0
        %v7451 = vadd.f32 %v7422, %v7450
        %v7452 = vpop.f32.mrf.mxu0
        %v7453 = vadd.f32 %v7424, %v7452
        %7454 = vmatmul.bf16.gmra.mxu0 %v4959
        %v7455 = vpop.f32.mrf.mxu0
        %v7456 = vadd.f32 %v7427, %v7455
        %v7457 = vpop.f32.mrf.mxu0
        %v7458 = vadd.f32 %v7429, %v7457
        %7459 = vdwg.mxu0
        %7460 = vmatpush.bf16.msra.mxu0 %v6169
        %7461 = vmatpush.bf16.msra.mxu0 %v6167
        %7462 = vmatpush.bf16.msra.mxu0 %v6165
        %7463 = vmatpush.bf16.msra.mxu0 %v6163
        %7464 = vmatpush.bf16.msra.mxu0 %v6161
        %7465 = vmatpush.bf16.msra.mxu0 %v6159
        %7466 = vmatpush.bf16.msra.mxu0 %v6157
        %7467 = vmatpush.bf16.msra.mxu0 %v6155
        %7468 = vmatmul.bf16.gmra.mxu0 %v4906
        %v7469 = vpop.f32.mrf.mxu0
        %v7470 = vadd.f32 %v7441, %v7469
        %v7471 = vpop.f32.mrf.mxu0
        %v7472 = vadd.f32 %v7443, %v7471
        %7473 = vmatmul.bf16.gmra.mxu0 %v4924
        %v7474 = vpop.f32.mrf.mxu0
        %v7475 = vadd.f32 %v7446, %v7474
        %v7476 = vpop.f32.mrf.mxu0
        %v7477 = vadd.f32 %v7448, %v7476
        %7478 = vmatmul.bf16.gmra.mxu0 %v4942
        %v7479 = vpop.f32.mrf.mxu0
        %v7480 = vadd.f32 %v7451, %v7479
        %v7481 = vpop.f32.mrf.mxu0
        %v7482 = vadd.f32 %v7453, %v7481
        %7483 = vmatmul.bf16.gmra.mxu0 %v4960
        %v7484 = vpop.f32.mrf.mxu0
        %v7485 = vadd.f32 %v7456, %v7484
        %v7486 = vpop.f32.mrf.mxu0
        %v7487 = vadd.f32 %v7458, %v7486
        %7488 = vdwg.mxu0
        %7489 = vmatpush.bf16.msra.mxu0 %v6185
        %7490 = vmatpush.bf16.msra.mxu0 %v6183
        %7491 = vmatpush.bf16.msra.mxu0 %v6181
        %7492 = vmatpush.bf16.msra.mxu0 %v6179
        %7493 = vmatpush.bf16.msra.mxu0 %v6177
        %7494 = vmatpush.bf16.msra.mxu0 %v6175
        %7495 = vmatpush.bf16.msra.mxu0 %v6173
        %7496 = vmatpush.bf16.msra.mxu0 %v6171
        %7497 = vmatmul.bf16.gmra.mxu0 %v4907
        %v7498 = vpop.f32.mrf.mxu0
        %v7499 = vadd.f32 %v7470, %v7498
        %v7500 = vpop.f32.mrf.mxu0
        %v7501 = vadd.f32 %v7472, %v7500
        %7502 = vmatmul.bf16.gmra.mxu0 %v4925
        %v7503 = vpop.f32.mrf.mxu0
        %v7504 = vadd.f32 %v7475, %v7503
        %v7505 = vpop.f32.mrf.mxu0
        %v7506 = vadd.f32 %v7477, %v7505
        %7507 = vmatmul.bf16.gmra.mxu0 %v4943
        %v7508 = vpop.f32.mrf.mxu0
        %v7509 = vadd.f32 %v7480, %v7508
        %v7510 = vpop.f32.mrf.mxu0
        %v7511 = vadd.f32 %v7482, %v7510
        %7512 = vmatmul.bf16.gmra.mxu0 %v4961
        %v7513 = vpop.f32.mrf.mxu0
        %v7514 = vadd.f32 %v7485, %v7513
        %v7515 = vpop.f32.mrf.mxu0
        %v7516 = vadd.f32 %v7487, %v7515
        %7517 = vdwg.mxu0
        %v7518 = vld [vmem:[%s5] sm:$0x3]
        %v7520 = vperm.slane %v7518, 0
        %v7521 = vperm.slane %v7518, 1
        %v7524 = vadd.f32 %v6977, %v7520
        %v7525 = vadd.f32 %v7499, %v7521
        %v7526 = vadd.f32 %v6979, %v7520
        %v7527 = vadd.f32 %v7501, %v7521
        %v7528 = vadd.f32 %v6982, %v7520
        %v7529 = vadd.f32 %v7504, %v7521
        %v7530 = vadd.f32 %v6984, %v7520
        %v7531 = vadd.f32 %v7506, %v7521
        %v7532 = vadd.f32 %v6987, %v7520
        %v7533 = vadd.f32 %v7509, %v7521
        %v7534 = vadd.f32 %v6989, %v7520
        %v7535 = vadd.f32 %v7511, %v7521
        %v7536 = vadd.f32 %v6992, %v7520
        %v7537 = vadd.f32 %v7514, %v7521
        %v7538 = vadd.f32 %v6994, %v7520
        %v7539 = vadd.f32 %v7516, %v7521
        %7540 = vst [vmem:[%s271] sm:$0xff] %v7524
        %7541 = vst [vmem:[%s271 + $0x8] sm:$0xff] %v7525
        %7542 = vst [vmem:[%s271 + $0x10] sm:$0xff] %v7526
        %7543 = vst [vmem:[%s271 + $0x18] sm:$0xff] %v7527
        %7544 = vst [vmem:[%s271 + $0x20] sm:$0xff] %v7528
        %7545 = vst [vmem:[%s271 + $0x28] sm:$0xff] %v7529
        %7546 = vst [vmem:[%s271 + $0x30] sm:$0xff] %v7530
        %7547 = vst [vmem:[%s271 + $0x38] sm:$0xff] %v7531
        %7548 = vst [vmem:[%s271 + $0x40] sm:$0xff] %v7532
        %7549 = vst [vmem:[%s271 + $0x48] sm:$0xff] %v7533
        %7550 = vst [vmem:[%s271 + $0x50] sm:$0xff] %v7534
        %7551 = vst [vmem:[%s271 + $0x58] sm:$0xff] %v7535
        %7552 = vst [vmem:[%s271 + $0x60] sm:$0xff] %v7536
        %7553 = vst [vmem:[%s271 + $0x68] sm:$0xff] %v7537
        %7554 = vst [vmem:[%s271 + $0x70] sm:$0xff] %v7538
        %7555 = vst [vmem:[%s271 + $0x78] sm:$0xff] %v7539
        %s7556 = sand.u32 %s181, 1
        %s7557 = scalar_lea.sflag [#allocation7], %s7556
        %s7558 = sand.u32 %s181, 1
        %s7559 = smul.addr %s7558, 128
        %s7560 = scalar_lea.vmem [#allocation6], %s7559
        // Predicated region
        $region49: #{resnet_block_down.1} parent=47 // pred_check
          %p7561 = pneg %p191
        $region50: #{resnet_block_down.1} parent=47 // pred_check_branch
          %7563 = sbr.rel (%p7561) target = $region52
        $region51: #{resnet_block_down.1} parent=47 // pred_region
          %7565 = vsyncadd %s7557, 0
          %s7566 = smul.addr %s21, 16
          %s7567 = smul.addr %s7566, 8
          %s7568 = scalar_lea.hbm %s7, %s7567
          %s7569 = sshll.u32 %s7560, 4
          %s7570 = int_to_ptr.vmem [resolvable:$true] %s7569
          %s7571 = sshll.u32 %s7568, 4
          %s7572 = int_to_ptr.hbm [resolvable:$true] %s7571
          %7577 = dma.vmem_to_hbm [thread:$0]  %s7570, 2048, %s7572, %s7557, 256, 256, 16
        $region52: #{resnet_block_down.1} parent=47 // pred_fallthru
          _
      $region48: #{resnet_block_down.1} parent=5 // pred_fallthru
        _
      %p7578 = scmp.le.s32.totalorder 2, %s16
      // Predicated region
      $region53: #{resnet_block_down.1} parent=5 // pred_check
        %p7579 = pneg %p7578
      $region54: #{resnet_block_down.1} parent=5 // pred_check_branch
        %7581 = sbr.rel (%p7579) target = $region56
      $region55: #{resnet_block_down.1} parent=5 // pred_region
        %s7582 = ssub.s32 %s16, 2
        // Predicated region
        $region57: #{resnet_block_down.1} parent=55 // pred_check
          %p7583 = pneg %p197
        $region58: #{resnet_block_down.1} parent=55 // pred_check_branch
          %7585 = sbr.rel (%p7583) target = $region60
        $region59: #{resnet_block_down.1} parent=55 // pred_region
          %s7586 = sand.u32 %s182, 1
          %s7587 = scalar_lea.sflag [#allocation7], %s7586
          %s7588 = sand.u32 %s182, 1
          %s7589 = smul.addr %s7588, 128
          %s7590 = scalar_lea.vmem [#allocation6], %s7589
          %7592 = dma.done %s7587, 2048
        $region60: #{resnet_block_down.1} parent=55 // pred_fallthru
          _
      $region56: #{resnet_block_down.1} parent=5 // pred_fallthru
        _
    $region6: #{resnet_block_down.1} parent=1 // loop_footer
      %s20 = sadd.s32 1, %s16
    $region7: #{resnet_block_down.1} parent=1 // loop_footer_branch
      %15 = sbr.rel target = $region3
    $region8: #{resnet_block_down.1} parent=1 // loop_exit
      _
    %7593 = vsyncpa [#allocation7], 1
    %s7594 = scalar_lea.sflag [#allocation7], 1
    %7595 = vsyncpa %s7594, 1

</llo_original>
